<compile_context>
chip_gen: v5e
topology: v5e:2x2
jax: 0.10.0
libtpu: 0.0.40
codegen_flags: <defaults>
</compile_context>

<pallas_src>
import numpy as np
import jax
import jax.numpy as jnp
from jax.experimental import pallas as pl
from jax.experimental.pallas import tpu as pltpu


# --- fixed "weights", constructed exactly as in the PyTorch __init__ ---------
def build_filts():
    ll = np.array([[0.5, 0.5], [0.5, 0.5]])
    lh = np.array([[-0.5, -0.5], [0.5, 0.5]])
    hl = np.array([[-0.5, 0.5], [-0.5, 0.5]])
    hh = np.array([[0.5, -0.5], [-0.5, 0.5]])
    filts = np.stack([ll[None, ::-1, ::-1], lh[None, ::-1, ::-1],
                      hl[None, ::-1, ::-1], hh[None, ::-1, ::-1]], axis=0)
    return filts.astype(np.float32)


FILTS = build_filts()  # (4, 1, 2, 2), non-trainable constants


def iwt_kernel(x_ref, o_ref):
    # x_ref: (Gt, 4, Ht, W)   -- the 4 wavelet sub-bands of Gt groups
    # o_ref: (Gt, Ht, 2, 2W)  -- (group, row i, row-parity p, interleaved 2j+q)
    a = x_ref[:, 0, :, :]
    b = x_ref[:, 1, :, :]
    c = x_ref[:, 2, :, :]
    d = x_ref[:, 3, :, :]
    # Haar butterfly: all taps are +/-0.5 (matches FILTS exactly).
    s1 = a + b
    d1 = a - b
    s2 = c + d
    d2 = c - d
    y00 = (s1 + s2) * 0.5   # (p=0, q=0)
    y01 = (s1 - s2) * 0.5   # (p=0, q=1)
    y10 = (d1 + d2) * 0.5   # (p=1, q=0)
    y11 = (d1 - d2) * 0.5   # (p=1, q=1)
    gt, ht, w = y00.shape
    # Lane-interleave the two column parities -> one wide (2W) row per parity p.
    row0 = jnp.stack([y00, y01], axis=-1).reshape(gt, ht, 2 * w)
    row1 = jnp.stack([y10, y11], axis=-1).reshape(gt, ht, 2 * w)
    o_ref[:, :, 0, :] = row0.astype(o_ref.dtype)
    o_ref[:, :, 1, :] = row1.astype(o_ref.dtype)


def _largest_divisor_leq(n, cap):
    cap = int(max(1, min(n, cap)))
    for dd in range(cap, 0, -1):
        if n % dd == 0:
            return dd
    return 1


def _choose_tiles(n_groups, H, W, itemsize):
    """Pick (groups_per_block, rows_per_block) targeting ~2 MiB blocks."""
    in_row = 4 * W * itemsize                   # one input row, 4 sub-bands
    out_row = 8 * max(2 * W, 128) * itemsize    # (2, 2W) minor tile padded to (8, >=128)
    row_bytes = in_row + out_row
    target = 2 * 1024 * 1024                    # per block; Pallas double-buffers on top
    rows_budget = max(1, target // row_bytes)
    if H <= rows_budget:
        ht = H
        g_cap = max(1, rows_budget // H)
        if n_groups >= 2:
            g_cap = min(g_cap, n_groups // 2)   # keep >=2 grid steps (v7x: 2 TensorCores)
        gt = _largest_divisor_leq(n_groups, g_cap)
    else:
        gt = 1
        if H % 8 == 0:
            ht = 8 * _largest_divisor_leq(H // 8, max(1, rows_budget // 8))
        else:
            ht = H                               # fall back to a full-plane block
    return gt, ht


def iwt(x):
    """Pallas TPU equivalent of IWT.forward (NCHW in, NCHW out)."""
    B, C4, H, W = x.shape
    assert C4 % 4 == 0, "channel count must be a multiple of 4"
    C = C4 // 4
    N = B * C
    itemsize = jnp.dtype(x.dtype).itemsize
    gt, ht = _choose_tiles(N, H, W, itemsize)

    # (B, 4C, H, W) -> (B*C, 4, H, W): channel 4g+k -> (group g, sub-band k). Free.
    xg = x.reshape(N, 4, H, W)

    out = pl.pallas_call(
        iwt_kernel,
        out_shape=jax.ShapeDtypeStruct((N, H, 2, 2 * W), x.dtype),
        grid_spec=pltpu.PrefetchScalarGridSpec(
            num_scalar_prefetch=0,
            grid=(N // gt, H // ht),
            in_specs=[pl.BlockSpec((gt, 4, ht, W), lambda g, h: (g, 0, h, 0))],
            out_specs=pl.BlockSpec((gt, ht, 2, 2 * W), lambda g, h: (g, h, 0, 0)),
        ),
        compiler_params=pltpu.CompilerParams(
            dimension_semantics=("parallel", "parallel"),
            vmem_limit_bytes=48 * 1024 * 1024,
        ),
    )(xg)

    # (N, H, 2, 2W) -> (B, C, 2H, 2W): pure row-major regrouping, no data movement.
    return out.reshape(B, C, 2 * H, 2 * W)


def reference_iwt(x_np):
    """numpy reference of F.conv_transpose2d(x, cat([filts]*C), groups=C, stride=2)."""
    B, C4, H, W = x_np.shape
    C = C4 // 4
    y = np.zeros((B, C, 2 * H, 2 * W), dtype=np.float32)
    for b in range(B):
        for g in range(C):
            for k in range(4):
                for p in range(2):
                    for q in range(2):
                        y[b, g, p::2, q::2] += x_np[b, 4 * g + k] * FILTS[k, 0, p, q]
    return y


if __name__ == "__main__":
    key = jax.random.PRNGKey(0)
    for shape in [(2, 8, 16, 16), (1, 12, 8, 24)]:
        key, sub = jax.random.split(key)
        x = jax.random.normal(sub, shape, dtype=jnp.float32)
        y = jax.block_until_ready(iwt(x))
        y_ref = reference_iwt(np.asarray(x))
        np.testing.assert_allclose(np.asarray(y), y_ref, rtol=1e-5, atol=1e-5)
    print("KERNEL_OK")
</pallas_src>

<mosaic_0001>
module attributes {stable_mosaic.version = 11 : i64} {
  func.func @iwt_kernel(%arg0: i32, %arg1: i32, %arg2: memref<2x4x16x16xf32, #tpu.memory_space<vmem>>, %arg3: memref<2x16x2x32xf32, #tpu.memory_space<vmem>>) attributes {dimension_semantics = [#tpu.dimension_semantics<parallel>, #tpu.dimension_semantics<parallel>], iteration_bounds = array<i64: 2, 1>, scalar_prefetch = 0 : i64, scratch_operands = 0 : i64, tpu.core_type = #tpu.core_type<tc>, window_params = [{transform_indices = @transform_0, window_bounds = array<i64: 2, 4, 16, 16>}, {transform_indices = @transform_1, window_bounds = array<i64: 2, 16, 2, 32>}]} {
    %c0 = arith.constant 0 : index
    %c0_0 = arith.constant 0 : index
    %c0_1 = arith.constant 0 : index
    %c0_2 = arith.constant 0 : index
    %0 = vector.load %arg2[%c0, %c0_0, %c0_1, %c0_2] : memref<2x4x16x16xf32, #tpu.memory_space<vmem>>, vector<2x1x16x16xf32>
    %1 = vector.shape_cast %0 : vector<2x1x16x16xf32> to vector<2x16x16xf32>
    %c0_3 = arith.constant 0 : index
    %c1 = arith.constant 1 : index
    %c0_4 = arith.constant 0 : index
    %c0_5 = arith.constant 0 : index
    %2 = vector.load %arg2[%c0_3, %c1, %c0_4, %c0_5] : memref<2x4x16x16xf32, #tpu.memory_space<vmem>>, vector<2x1x16x16xf32>
    %3 = vector.shape_cast %2 : vector<2x1x16x16xf32> to vector<2x16x16xf32>
    %c0_6 = arith.constant 0 : index
    %c2 = arith.constant 2 : index
    %c0_7 = arith.constant 0 : index
    %c0_8 = arith.constant 0 : index
    %4 = vector.load %arg2[%c0_6, %c2, %c0_7, %c0_8] : memref<2x4x16x16xf32, #tpu.memory_space<vmem>>, vector<2x1x16x16xf32>
    %5 = vector.shape_cast %4 : vector<2x1x16x16xf32> to vector<2x16x16xf32>
    %c0_9 = arith.constant 0 : index
    %c3 = arith.constant 3 : index
    %c0_10 = arith.constant 0 : index
    %c0_11 = arith.constant 0 : index
    %6 = vector.load %arg2[%c0_9, %c3, %c0_10, %c0_11] : memref<2x4x16x16xf32, #tpu.memory_space<vmem>>, vector<2x1x16x16xf32>
    %7 = vector.shape_cast %6 : vector<2x1x16x16xf32> to vector<2x16x16xf32>
    %8 = arith.addf %1, %3 : vector<2x16x16xf32>
    %9 = arith.subf %1, %3 : vector<2x16x16xf32>
    %10 = arith.addf %5, %7 : vector<2x16x16xf32>
    %11 = arith.subf %5, %7 : vector<2x16x16xf32>
    %12 = arith.addf %8, %10 : vector<2x16x16xf32>
    %cst = arith.constant 5.000000e-01 : f32
    %13 = vector.broadcast %cst : f32 to vector<2x16x16xf32>
    %14 = arith.mulf %12, %13 : vector<2x16x16xf32>
    %15 = arith.subf %8, %10 : vector<2x16x16xf32>
    %cst_12 = arith.constant 5.000000e-01 : f32
    %16 = vector.broadcast %cst_12 : f32 to vector<2x16x16xf32>
    %17 = arith.mulf %15, %16 : vector<2x16x16xf32>
    %18 = arith.addf %9, %11 : vector<2x16x16xf32>
    %cst_13 = arith.constant 5.000000e-01 : f32
    %19 = vector.broadcast %cst_13 : f32 to vector<2x16x16xf32>
    %20 = arith.mulf %18, %19 : vector<2x16x16xf32>
    %21 = arith.subf %9, %11 : vector<2x16x16xf32>
    %cst_14 = arith.constant 5.000000e-01 : f32
    %22 = vector.broadcast %cst_14 : f32 to vector<2x16x16xf32>
    %23 = arith.mulf %21, %22 : vector<2x16x16xf32>
    %24 = vector.shape_cast %14 : vector<2x16x16xf32> to vector<2x16x16x1xf32>
    %25 = vector.shape_cast %17 : vector<2x16x16xf32> to vector<2x16x16x1xf32>
    %26 = tpu.concatenate %24, %25 in 3 : vector<2x16x16x1xf32>, vector<2x16x16x1xf32> -> vector<2x16x16x2xf32>
    %27 = vector.shape_cast %26 : vector<2x16x16x2xf32> to vector<2x16x32xf32>
    %28 = vector.shape_cast %20 : vector<2x16x16xf32> to vector<2x16x16x1xf32>
    %29 = vector.shape_cast %23 : vector<2x16x16xf32> to vector<2x16x16x1xf32>
    %30 = tpu.concatenate %28, %29 in 3 : vector<2x16x16x1xf32>, vector<2x16x16x1xf32> -> vector<2x16x16x2xf32>
    %31 = vector.shape_cast %30 : vector<2x16x16x2xf32> to vector<2x16x32xf32>
    %c0_15 = arith.constant 0 : index
    %c0_16 = arith.constant 0 : index
    %c0_17 = arith.constant 0 : index
    %c0_18 = arith.constant 0 : index
    %32 = vector.load %arg3[%c0_15, %c0_16, %c0_17, %c0_18] : memref<2x16x2x32xf32, #tpu.memory_space<vmem>>, vector<2x16x1x32xf32>
    %33 = vector.shape_cast %32 : vector<2x16x1x32xf32> to vector<2x16x32xf32>
    %34 = vector.shape_cast %27 : vector<2x16x32xf32> to vector<2x16x1x32xf32>
    tpu.vector_store %arg3[%c0_15, %c0_16, %c0_17, %c0_18], %34 {strides = array<i32>} : memref<2x16x2x32xf32, #tpu.memory_space<vmem>>, vector<2x16x1x32xf32>,
    %c0_19 = arith.constant 0 : index
    %c0_20 = arith.constant 0 : index
    %c1_21 = arith.constant 1 : index
    %c0_22 = arith.constant 0 : index
    %35 = vector.load %arg3[%c0_19, %c0_20, %c1_21, %c0_22] : memref<2x16x2x32xf32, #tpu.memory_space<vmem>>, vector<2x16x1x32xf32>
    %36 = vector.shape_cast %35 : vector<2x16x1x32xf32> to vector<2x16x32xf32>
    %37 = vector.shape_cast %31 : vector<2x16x32xf32> to vector<2x16x1x32xf32>
    tpu.vector_store %arg3[%c0_19, %c0_20, %c1_21, %c0_22], %37 {strides = array<i32>} : memref<2x16x2x32xf32, #tpu.memory_space<vmem>>, vector<2x16x1x32xf32>,
    return
  }
  func.func @transform_0(%arg0: i32, %arg1: i32) -> (i32, i32, i32, i32) {
    %c0_i32 = arith.constant 0 : i32
    %c0_i32_0 = arith.constant 0 : i32
    %c0_i32_1 = arith.constant 0 : i32
    return %arg0, %c0_i32, %arg1, %c0_i32_0 : i32, i32, i32, i32
  }
  func.func @transform_1(%arg0: i32, %arg1: i32) -> (i32, i32, i32, i32) {
    %c0_i32 = arith.constant 0 : i32
    %c0_i32_0 = arith.constant 0 : i32
    %c0_i32_1 = arith.constant 0 : i32
    return %arg0, %arg1, %c0_i32, %c0_i32_0 : i32, i32, i32, i32
  }
}

</mosaic_0001>

<llo_original>
// kernel: tpu_custom_call.1
$region0: #{tpu_custom_call.1}
  #allocation0 [shape = 'u32[]', space=smem, size = 0x4, offset = 0x4, fixed_abs, tag = 'smem constant byte address 0x4 - core index']
  #allocation1 [shape = 'u32[72,128]{1,0:T(1,128)}', space=vmem, size = 0x9000, scoped, tag = 'internal scratch']
  %s0 = inlined_call_operand.hbm [shape: f32[4,4,16,16], index: 0, kind: input, shape index: {}]
  %s1 = inlined_call_operand.hbm [shape: f32[4,16,2,32], index: 1, kind: output, shape index: {}]
  %s2 = sld [smem:[#allocation0]]
  $region41: #{tpu_custom_call.1} parent=0
    _
  %s4 = ssub.s32 1, %s2
  %s5 = scalar_select 0, %s4, %s2
  $region1: #{tpu_custom_call.1} parent=0
    #allocation2 [shape = 'u8[131072]{0}', space=vmem, size = 0x20000, scoped, tag = 'input window, operand 0']
    #allocation3 [shape = 's32[2]{0}', space=sflag, size = 0x8, scoped, tag = 'scoped memory for tpu_custom_call.1']
    #allocation4 [shape = 's32[2]{0}', space=sflag, size = 0x8, scoped, tag = 'scoped memory for tpu_custom_call.1']
    #allocation5 [shape = 'u8[65536]{0}', space=vmem, size = 0x10000, scoped, tag = 'output window, operand 0']
    %6 = vsyncpa [#allocation3], 0
    %s7 = scalar_lea.sflag [#allocation3], 1
    %8 = vsyncpa %s7, 0
    %9 = vsyncpa [#allocation4], 0
    %s10 = scalar_lea.sflag [#allocation4], 1
    %11 = vsyncpa %s10, 0
    loop: start=0, step=1, limit=4
    $region2: #{tpu_custom_call.1} parent=1 // loop_pre_header
      _
    $region3: #{tpu_custom_call.1} parent=1 // loop_header
      %s13 = sphi 0, %s17
      %p14 = scmp.ge.s32.totalorder %s13, 4
      %s20 = sphi 0, %s32
      %s21 = sphi 0, %s28
      %s22 = sphi 0, %s20
      %s23 = sphi 0, %s21
      %s24 = sphi 0, %s22
      %s25 = sphi 0, %s23
      %s37 = sphi 0, %s39
      %s40 = sphi 0, %s37
      %s41 = sphi 0, %s40
      %s57 = sphi 0, %s41
      %s65 = sphi 0, %s67
      %s68 = sphi 0, %s65
      %s69 = sphi 0, %s68
      %s85 = sphi 0, %s69
    $region4: #{tpu_custom_call.1} parent=1 // loop_header_branch
      %16 = sbr.rel (%p14) target = $region8
    $region5: #{tpu_custom_call.1} parent=1 // loop_body
      %s18 = ssub.s32 %s13, 1
      %s19 = ssub.s32 %s13, 2
      %s26 = sadd.s32 1, %s21
      %p27 = scmp.ge.s32.totalorder %s26, 1
      %s28 = scalar_select %p27, 0, %s26
      %s29 = sadd.s32 1, %s20
      %s30 = scalar_select %p27, %s29, %s20
      %p31 = scmp.ge.s32.totalorder %s30, 2
      %s32 = scalar_select %p31, 0, %s30
      %s33 = ssub.s32 %s20, %s32
      %s34 = ssub.s32 %s21, %s28
      %s35 = sor.u32 %s33, %s34
      %p36 = scmp.eq.s32.totalorder %s35, 0
      %s38 = sadd.s32 %s37, 1
      %s39 = scalar_select %p36, %s37, %s38
      %p42 = pneg %p36
      %p43 = scmp.eq.s32.totalorder %s13, 1
      %p44 = por %p42, %p43
      %p45 = scmp.ne.s32.totalorder %s37, %s40
      %p46 = scmp.eq.s32.totalorder %s13, 0
      %p47 = por %p45, %p46
      %p48 = scmp.ne.s32.totalorder %s37, %s40
      %p49 = scmp.eq.s32.totalorder %s18, 1
      %p50 = por %p48, %p49
      %p51 = scmp.ne.s32.totalorder %s40, %s41
      %p52 = scmp.eq.s32.totalorder %s18, 0
      %p53 = por %p51, %p52
      %p54 = scmp.ne.s32.totalorder %s40, %s41
      %p55 = scmp.eq.s32.totalorder %s19, 1
      %p56 = por %p54, %p55
      %p58 = scmp.ne.s32.totalorder %s41, %s57
      %p59 = scmp.eq.s32.totalorder %s19, 0
      %p60 = por %p58, %p59
      %s61 = ssub.s32 %s20, %s32
      %s62 = ssub.s32 %s21, %s28
      %s63 = sor.u32 %s61, %s62
      %p64 = scmp.eq.s32.totalorder %s63, 0
      %s66 = sadd.s32 %s65, 1
      %s67 = scalar_select %p64, %s65, %s66
      %p70 = pneg %p64
      %p71 = scmp.eq.s32.totalorder %s13, 1
      %p72 = por %p70, %p71
      %p73 = scmp.ne.s32.totalorder %s65, %s68
      %p74 = scmp.eq.s32.totalorder %s13, 0
      %p75 = por %p73, %p74
      %p76 = scmp.ne.s32.totalorder %s65, %s68
      %p77 = scmp.eq.s32.totalorder %s18, 1
      %p78 = por %p76, %p77
      %p79 = scmp.ne.s32.totalorder %s68, %s69
      %p80 = scmp.eq.s32.totalorder %s18, 0
      %p81 = por %p79, %p80
      %p82 = scmp.ne.s32.totalorder %s68, %s69
      %p83 = scmp.eq.s32.totalorder %s19, 1
      %p84 = por %p82, %p83
      %p86 = scmp.ne.s32.totalorder %s69, %s85
      %p87 = scmp.eq.s32.totalorder %s19, 0
      %p88 = por %p86, %p87
      %p89 = scmp.le.s32.totalorder 1, %s13
      %p90 = scmp.lt.s32.totalorder %s13, 3
      %p91 = pnand %p89, %p90
      %p92 = pneg %p91
      // Predicated region
      $region9: #{tpu_custom_call.1} parent=5 // pred_check
        _
      $region10: #{tpu_custom_call.1} parent=5 // pred_check_branch
        %94 = sbr.rel (%p91) target = $region12
      $region11: #{tpu_custom_call.1} parent=5 // pred_region
        %s95 = ssub.s32 %s13, 1
      $region12: #{tpu_custom_call.1} parent=5 // pred_fallthru
        _
      %p96 = scmp.lt.s32.totalorder %s13, 2
      // Predicated region
      $region13: #{tpu_custom_call.1} parent=5 // pred_check
        %p97 = pneg %p96
      $region14: #{tpu_custom_call.1} parent=5 // pred_check_branch
        %99 = sbr.rel (%p97) target = $region16
      $region15: #{tpu_custom_call.1} parent=5 // pred_region
        // Predicated region
        $region17: #{tpu_custom_call.1} parent=15 // pred_check
          %p100 = pneg %p47
        $region18: #{tpu_custom_call.1} parent=15 // pred_check_branch
          %102 = sbr.rel (%p100) target = $region20
        $region19: #{tpu_custom_call.1} parent=15 // pred_region
          %s103 = sand.u32 %s37, 1
          %s104 = scalar_lea.sflag [#allocation3], %s103
          %s105 = sand.u32 %s37, 1
          %s106 = smul.addr %s105, 128
          %s107 = scalar_lea.vmem [#allocation2], %s106
          %s108 = smul.u32 2, %s20
          %s109 = smul.u32 2, %s21
          %111 = vsyncadd %s104, 0
          %s112 = smul.addr %s108, 8
          %s113 = sadd.s32 %s109, %s112
          %s114 = smul.addr %s113, 8
          %s115 = scalar_lea.hbm %s0, %s114
          %s116 = sshll.u32 %s115, 4
          %s117 = int_to_ptr.hbm [resolvable:$true] %s116
          %s118 = sshll.u32 %s107, 4
          %s119 = int_to_ptr.vmem [resolvable:$true] %s118
          %124 = dma.hbm_to_vmem [thread:$0]  %s117, 2048, %s119, %s104, 128, 128, 8
        $region20: #{tpu_custom_call.1} parent=15 // pred_fallthru
          _
      $region16: #{tpu_custom_call.1} parent=5 // pred_fallthru
        _
      %p125 = scmp.le.s32.totalorder 1, %s13
      %p126 = scmp.lt.s32.totalorder %s13, 3
      %p127 = pnand %p125, %p126
      %p128 = pneg %p127
      // Predicated region
      $region21: #{tpu_custom_call.1} parent=5 // pred_check
        _
      $region22: #{tpu_custom_call.1} parent=5 // pred_check_branch
        %130 = sbr.rel (%p127) target = $region24
      $region23: #{tpu_custom_call.1} parent=5 // pred_region
        %s131 = ssub.s32 %s13, 1
        %s132 = sand.u32 %s40, 1
        %s133 = scalar_lea.sflag [#allocation3], %s132
        %s134 = sand.u32 %s40, 1
        %s135 = smul.addr %s134, 128
        %s136 = scalar_lea.vmem [#allocation2], %s135
        // Predicated region
        $region25: #{tpu_custom_call.1} parent=23 // pred_check
          %p137 = pneg %p53
        $region26: #{tpu_custom_call.1} parent=23 // pred_check_branch
          %139 = sbr.rel (%p137) target = $region28
        $region27: #{tpu_custom_call.1} parent=23 // pred_region
          %141 = dma.done %s133, 2048
        $region28: #{tpu_custom_call.1} parent=23 // pred_fallthru
          _
        %s142 = sand.u32 %s40, 1
        %s143 = scalar_lea.sflag [#allocation3], %s142
        %s144 = sand.u32 %s40, 1
        %s145 = smul.addr %s144, 128
        %s146 = scalar_lea.vmem [#allocation2], %s145
        %p147 = pneg %p53
        %p148 = pneg %p50
        %p149 = pneg %p81
        %p150 = pneg %p78
        %s151 = sand.u32 %s68, 1
        %s152 = scalar_lea.sflag [#allocation4], %s151
        %s153 = sand.u32 %s68, 1
        %s154 = smul.addr %s153, 64
        %s155 = scalar_lea.vmem [#allocation5], %s154
        %s156 = smul.u32 2, %s22
        %s157 = smul.u32 2, %s23
        %s158 = smul.u32 2, %s22
        %s159 = smul.u32 16, %s23
        %v160 = vld [vmem:[%s136] sm:$0xff]
        %v161 = vld [vmem:[%s136 + $0x8] sm:$0xff]
        %v162 = vld [vmem:[%s136 + $0x40] sm:$0xff]
        %v163 = vld [vmem:[%s136 + $0x48] sm:$0xff]
        %s164 = scalar_lea.vmem %s136, 16 [#allocation2]
        %v165 = vld [vmem:[%s164] sm:$0xff]
        %v166 = vld [vmem:[%s164 + $0x8] sm:$0xff]
        %v167 = vld [vmem:[%s164 + $0x40] sm:$0xff]
        %v168 = vld [vmem:[%s164 + $0x48] sm:$0xff]
        %s169 = scalar_lea.vmem %s136, 32 [#allocation2]
        %v170 = vld [vmem:[%s169] sm:$0xff]
        %v171 = vld [vmem:[%s169 + $0x8] sm:$0xff]
        %v172 = vld [vmem:[%s169 + $0x40] sm:$0xff]
        %v173 = vld [vmem:[%s169 + $0x48] sm:$0xff]
        %s174 = scalar_lea.vmem %s136, 48 [#allocation2]
        %v175 = vld [vmem:[%s174] sm:$0xff]
        %v176 = vld [vmem:[%s174 + $0x8] sm:$0xff]
        %v177 = vld [vmem:[%s174 + $0x40] sm:$0xff]
        %v178 = vld [vmem:[%s174 + $0x48] sm:$0xff]
        %v179 = vadd.f32 %v160, %v165
        %v180 = vadd.f32 %v161, %v166
        %v181 = vadd.f32 %v162, %v167
        %v182 = vadd.f32 %v163, %v168
        %v183 = vsub.f32 %v160, %v165
        %v184 = vsub.f32 %v161, %v166
        %v185 = vsub.f32 %v162, %v167
        %v186 = vsub.f32 %v163, %v168
        %v187 = vadd.f32 %v170, %v175
        %v188 = vadd.f32 %v171, %v176
        %v189 = vadd.f32 %v172, %v177
        %v190 = vadd.f32 %v173, %v178
        %v191 = vsub.f32 %v170, %v175
        %v192 = vsub.f32 %v171, %v176
        %v193 = vsub.f32 %v172, %v177
        %v194 = vsub.f32 %v173, %v178
        %v195 = vadd.f32 %v179, %v187
        %v196 = vadd.f32 %v180, %v188
        %v197 = vadd.f32 %v181, %v189
        %v198 = vadd.f32 %v182, %v190
        %v199 = vmul.f32 %v195, 0.5
        %v200 = vmul.f32 %v196, 0.5
        %v201 = vmul.f32 %v197, 0.5
        %v202 = vmul.f32 %v198, 0.5
        %v203 = vsub.f32 %v179, %v187
        %v204 = vsub.f32 %v180, %v188
        %v205 = vsub.f32 %v181, %v189
        %v206 = vsub.f32 %v182, %v190
        %v207 = vmul.f32 %v203, 0.5
        %v208 = vmul.f32 %v204, 0.5
        %v209 = vmul.f32 %v205, 0.5
        %v210 = vmul.f32 %v206, 0.5
        %v211 = vadd.f32 %v183, %v191
        %v212 = vadd.f32 %v184, %v192
        %v213 = vadd.f32 %v185, %v193
        %v214 = vadd.f32 %v186, %v194
        %v215 = vmul.f32 %v211, 0.5
        %v216 = vmul.f32 %v212, 0.5
        %v217 = vmul.f32 %v213, 0.5
        %v218 = vmul.f32 %v214, 0.5
        %v219 = vsub.f32 %v183, %v191
        %v220 = vsub.f32 %v184, %v192
        %v221 = vsub.f32 %v185, %v193
        %v222 = vsub.f32 %v186, %v194
        %v223 = vmul.f32 %v219, 0.5
        %v224 = vmul.f32 %v220, 0.5
        %v225 = vmul.f32 %v221, 0.5
        %v226 = vmul.f32 %v222, 0.5
        %v227 = vperm.slane %v199, 0
        %v228 = vlaneseq
        %v229 = vshrl.u32 %v228, 7
        %231 = vset.pattern.permute.xlu0 %v229
        %232 = vperm.xlu0 %231, %v227
        %v233 = vpop.permute.xlu0 %232
        %v234 = vlaneseq
        %v235 = vshrl.u32 %v234, 7
        %v236 = vadd.s32 %v235, 8
        %237 = vset.pattern.permute.xlu0 %v236
        %238 = vperm.xlu0 %237, %v227
        %v239 = vpop.permute.xlu0 %238
        %v240 = vperm.slane %v199, 1
        %v241 = vlaneseq
        %v242 = vshrl.u32 %v241, 7
        %244 = vset.pattern.permute.xlu0 %v242
        %245 = vperm.xlu0 %244, %v240
        %v246 = vpop.permute.xlu0 %245
        %v247 = vlaneseq
        %v248 = vshrl.u32 %v247, 7
        %v249 = vadd.s32 %v248, 8
        %250 = vset.pattern.permute.xlu0 %v249
        %251 = vperm.xlu0 %250, %v240
        %v252 = vpop.permute.xlu0 %251
        %v253 = vperm.slane %v199, 2
        %v254 = vlaneseq
        %v255 = vshrl.u32 %v254, 7
        %257 = vset.pattern.permute.xlu0 %v255
        %258 = vperm.xlu0 %257, %v253
        %v259 = vpop.permute.xlu0 %258
        %v260 = vlaneseq
        %v261 = vshrl.u32 %v260, 7
        %v262 = vadd.s32 %v261, 8
        %263 = vset.pattern.permute.xlu0 %v262
        %264 = vperm.xlu0 %263, %v253
        %v265 = vpop.permute.xlu0 %264
        %v266 = vperm.slane %v199, 3
        %v267 = vlaneseq
        %v268 = vshrl.u32 %v267, 7
        %270 = vset.pattern.permute.xlu0 %v268
        %271 = vperm.xlu0 %270, %v266
        %v272 = vpop.permute.xlu0 %271
        %v273 = vlaneseq
        %v274 = vshrl.u32 %v273, 7
        %v275 = vadd.s32 %v274, 8
        %276 = vset.pattern.permute.xlu0 %v275
        %277 = vperm.xlu0 %276, %v266
        %v278 = vpop.permute.xlu0 %277
        %v279 = vperm.slane %v199, 4
        %v280 = vlaneseq
        %v281 = vshrl.u32 %v280, 7
        %283 = vset.pattern.permute.xlu0 %v281
        %284 = vperm.xlu0 %283, %v279
        %v285 = vpop.permute.xlu0 %284
        %v286 = vlaneseq
        %v287 = vshrl.u32 %v286, 7
        %v288 = vadd.s32 %v287, 8
        %289 = vset.pattern.permute.xlu0 %v288
        %290 = vperm.xlu0 %289, %v279
        %v291 = vpop.permute.xlu0 %290
        %v292 = vperm.slane %v199, 5
        %v293 = vlaneseq
        %v294 = vshrl.u32 %v293, 7
        %296 = vset.pattern.permute.xlu0 %v294
        %297 = vperm.xlu0 %296, %v292
        %v298 = vpop.permute.xlu0 %297
        %v299 = vlaneseq
        %v300 = vshrl.u32 %v299, 7
        %v301 = vadd.s32 %v300, 8
        %302 = vset.pattern.permute.xlu0 %v301
        %303 = vperm.xlu0 %302, %v292
        %v304 = vpop.permute.xlu0 %303
        %v305 = vperm.slane %v199, 6
        %v306 = vlaneseq
        %v307 = vshrl.u32 %v306, 7
        %309 = vset.pattern.permute.xlu0 %v307
        %310 = vperm.xlu0 %309, %v305
        %v311 = vpop.permute.xlu0 %310
        %v312 = vlaneseq
        %v313 = vshrl.u32 %v312, 7
        %v314 = vadd.s32 %v313, 8
        %315 = vset.pattern.permute.xlu0 %v314
        %316 = vperm.xlu0 %315, %v305
        %v317 = vpop.permute.xlu0 %316
        %v318 = vperm.slane %v199, 7
        %v319 = vlaneseq
        %v320 = vshrl.u32 %v319, 7
        %322 = vset.pattern.permute.xlu0 %v320
        %323 = vperm.xlu0 %322, %v318
        %v324 = vpop.permute.xlu0 %323
        %v325 = vlaneseq
        %v326 = vshrl.u32 %v325, 7
        %v327 = vadd.s32 %v326, 8
        %328 = vset.pattern.permute.xlu0 %v327
        %329 = vperm.xlu0 %328, %v318
        %v330 = vpop.permute.xlu0 %329
        %v331 = vperm.slane %v200, 0
        %v332 = vlaneseq
        %v333 = vshrl.u32 %v332, 7
        %335 = vset.pattern.permute.xlu0 %v333
        %336 = vperm.xlu0 %335, %v331
        %v337 = vpop.permute.xlu0 %336
        %v338 = vlaneseq
        %v339 = vshrl.u32 %v338, 7
        %v340 = vadd.s32 %v339, 8
        %341 = vset.pattern.permute.xlu0 %v340
        %342 = vperm.xlu0 %341, %v331
        %v343 = vpop.permute.xlu0 %342
        %v344 = vperm.slane %v200, 1
        %v345 = vlaneseq
        %v346 = vshrl.u32 %v345, 7
        %348 = vset.pattern.permute.xlu0 %v346
        %349 = vperm.xlu0 %348, %v344
        %v350 = vpop.permute.xlu0 %349
        %v351 = vlaneseq
        %v352 = vshrl.u32 %v351, 7
        %v353 = vadd.s32 %v352, 8
        %354 = vset.pattern.permute.xlu0 %v353
        %355 = vperm.xlu0 %354, %v344
        %v356 = vpop.permute.xlu0 %355
        %v357 = vperm.slane %v200, 2
        %v358 = vlaneseq
        %v359 = vshrl.u32 %v358, 7
        %361 = vset.pattern.permute.xlu0 %v359
        %362 = vperm.xlu0 %361, %v357
        %v363 = vpop.permute.xlu0 %362
        %v364 = vlaneseq
        %v365 = vshrl.u32 %v364, 7
        %v366 = vadd.s32 %v365, 8
        %367 = vset.pattern.permute.xlu0 %v366
        %368 = vperm.xlu0 %367, %v357
        %v369 = vpop.permute.xlu0 %368
        %v370 = vperm.slane %v200, 3
        %v371 = vlaneseq
        %v372 = vshrl.u32 %v371, 7
        %374 = vset.pattern.permute.xlu0 %v372
        %375 = vperm.xlu0 %374, %v370
        %v376 = vpop.permute.xlu0 %375
        %v377 = vlaneseq
        %v378 = vshrl.u32 %v377, 7
        %v379 = vadd.s32 %v378, 8
        %380 = vset.pattern.permute.xlu0 %v379
        %381 = vperm.xlu0 %380, %v370
        %v382 = vpop.permute.xlu0 %381
        %v383 = vperm.slane %v200, 4
        %v384 = vlaneseq
        %v385 = vshrl.u32 %v384, 7
        %387 = vset.pattern.permute.xlu0 %v385
        %388 = vperm.xlu0 %387, %v383
        %v389 = vpop.permute.xlu0 %388
        %v390 = vlaneseq
        %v391 = vshrl.u32 %v390, 7
        %v392 = vadd.s32 %v391, 8
        %393 = vset.pattern.permute.xlu0 %v392
        %394 = vperm.xlu0 %393, %v383
        %v395 = vpop.permute.xlu0 %394
        %v396 = vperm.slane %v200, 5
        %v397 = vlaneseq
        %v398 = vshrl.u32 %v397, 7
        %400 = vset.pattern.permute.xlu0 %v398
        %401 = vperm.xlu0 %400, %v396
        %v402 = vpop.permute.xlu0 %401
        %v403 = vlaneseq
        %v404 = vshrl.u32 %v403, 7
        %v405 = vadd.s32 %v404, 8
        %406 = vset.pattern.permute.xlu0 %v405
        %407 = vperm.xlu0 %406, %v396
        %v408 = vpop.permute.xlu0 %407
        %v409 = vperm.slane %v200, 6
        %v410 = vlaneseq
        %v411 = vshrl.u32 %v410, 7
        %413 = vset.pattern.permute.xlu0 %v411
        %414 = vperm.xlu0 %413, %v409
        %v415 = vpop.permute.xlu0 %414
        %v416 = vlaneseq
        %v417 = vshrl.u32 %v416, 7
        %v418 = vadd.s32 %v417, 8
        %419 = vset.pattern.permute.xlu0 %v418
        %420 = vperm.xlu0 %419, %v409
        %v421 = vpop.permute.xlu0 %420
        %v422 = vperm.slane %v200, 7
        %v423 = vlaneseq
        %v424 = vshrl.u32 %v423, 7
        %426 = vset.pattern.permute.xlu0 %v424
        %427 = vperm.xlu0 %426, %v422
        %v428 = vpop.permute.xlu0 %427
        %v429 = vlaneseq
        %v430 = vshrl.u32 %v429, 7
        %v431 = vadd.s32 %v430, 8
        %432 = vset.pattern.permute.xlu0 %v431
        %433 = vperm.xlu0 %432, %v422
        %v434 = vpop.permute.xlu0 %433
        %v435 = vperm.slane %v201, 0
        %v436 = vlaneseq
        %v437 = vshrl.u32 %v436, 7
        %439 = vset.pattern.permute.xlu0 %v437
        %440 = vperm.xlu0 %439, %v435
        %v441 = vpop.permute.xlu0 %440
        %v442 = vlaneseq
        %v443 = vshrl.u32 %v442, 7
        %v444 = vadd.s32 %v443, 8
        %445 = vset.pattern.permute.xlu0 %v444
        %446 = vperm.xlu0 %445, %v435
        %v447 = vpop.permute.xlu0 %446
        %v448 = vperm.slane %v201, 1
        %v449 = vlaneseq
        %v450 = vshrl.u32 %v449, 7
        %452 = vset.pattern.permute.xlu0 %v450
        %453 = vperm.xlu0 %452, %v448
        %v454 = vpop.permute.xlu0 %453
        %v455 = vlaneseq
        %v456 = vshrl.u32 %v455, 7
        %v457 = vadd.s32 %v456, 8
        %458 = vset.pattern.permute.xlu0 %v457
        %459 = vperm.xlu0 %458, %v448
        %v460 = vpop.permute.xlu0 %459
        %v461 = vperm.slane %v201, 2
        %v462 = vlaneseq
        %v463 = vshrl.u32 %v462, 7
        %465 = vset.pattern.permute.xlu0 %v463
        %466 = vperm.xlu0 %465, %v461
        %v467 = vpop.permute.xlu0 %466
        %v468 = vlaneseq
        %v469 = vshrl.u32 %v468, 7
        %v470 = vadd.s32 %v469, 8
        %471 = vset.pattern.permute.xlu0 %v470
        %472 = vperm.xlu0 %471, %v461
        %v473 = vpop.permute.xlu0 %472
        %v474 = vperm.slane %v201, 3
        %v475 = vlaneseq
        %v476 = vshrl.u32 %v475, 7
        %478 = vset.pattern.permute.xlu0 %v476
        %479 = vperm.xlu0 %478, %v474
        %v480 = vpop.permute.xlu0 %479
        %v481 = vlaneseq
        %v482 = vshrl.u32 %v481, 7
        %v483 = vadd.s32 %v482, 8
        %484 = vset.pattern.permute.xlu0 %v483
        %485 = vperm.xlu0 %484, %v474
        %v486 = vpop.permute.xlu0 %485
        %v487 = vperm.slane %v201, 4
        %v488 = vlaneseq
        %v489 = vshrl.u32 %v488, 7
        %491 = vset.pattern.permute.xlu0 %v489
        %492 = vperm.xlu0 %491, %v487
        %v493 = vpop.permute.xlu0 %492
        %v494 = vlaneseq
        %v495 = vshrl.u32 %v494, 7
        %v496 = vadd.s32 %v495, 8
        %497 = vset.pattern.permute.xlu0 %v496
        %498 = vperm.xlu0 %497, %v487
        %v499 = vpop.permute.xlu0 %498
        %v500 = vperm.slane %v201, 5
        %v501 = vlaneseq
        %v502 = vshrl.u32 %v501, 7
        %504 = vset.pattern.permute.xlu0 %v502
        %505 = vperm.xlu0 %504, %v500
        %v506 = vpop.permute.xlu0 %505
        %v507 = vlaneseq
        %v508 = vshrl.u32 %v507, 7
        %v509 = vadd.s32 %v508, 8
        %510 = vset.pattern.permute.xlu0 %v509
        %511 = vperm.xlu0 %510, %v500
        %v512 = vpop.permute.xlu0 %511
        %v513 = vperm.slane %v201, 6
        %v514 = vlaneseq
        %v515 = vshrl.u32 %v514, 7
        %517 = vset.pattern.permute.xlu0 %v515
        %518 = vperm.xlu0 %517, %v513
        %v519 = vpop.permute.xlu0 %518
        %v520 = vlaneseq
        %v521 = vshrl.u32 %v520, 7
        %v522 = vadd.s32 %v521, 8
        %523 = vset.pattern.permute.xlu0 %v522
        %524 = vperm.xlu0 %523, %v513
        %v525 = vpop.permute.xlu0 %524
        %v526 = vperm.slane %v201, 7
        %v527 = vlaneseq
        %v528 = vshrl.u32 %v527, 7
        %530 = vset.pattern.permute.xlu0 %v528
        %531 = vperm.xlu0 %530, %v526
        %v532 = vpop.permute.xlu0 %531
        %v533 = vlaneseq
        %v534 = vshrl.u32 %v533, 7
        %v535 = vadd.s32 %v534, 8
        %536 = vset.pattern.permute.xlu0 %v535
        %537 = vperm.xlu0 %536, %v526
        %v538 = vpop.permute.xlu0 %537
        %v539 = vperm.slane %v202, 0
        %v540 = vlaneseq
        %v541 = vshrl.u32 %v540, 7
        %543 = vset.pattern.permute.xlu0 %v541
        %544 = vperm.xlu0 %543, %v539
        %v545 = vpop.permute.xlu0 %544
        %v546 = vlaneseq
        %v547 = vshrl.u32 %v546, 7
        %v548 = vadd.s32 %v547, 8
        %549 = vset.pattern.permute.xlu0 %v548
        %550 = vperm.xlu0 %549, %v539
        %v551 = vpop.permute.xlu0 %550
        %v552 = vperm.slane %v202, 1
        %v553 = vlaneseq
        %v554 = vshrl.u32 %v553, 7
        %556 = vset.pattern.permute.xlu0 %v554
        %557 = vperm.xlu0 %556, %v552
        %v558 = vpop.permute.xlu0 %557
        %v559 = vlaneseq
        %v560 = vshrl.u32 %v559, 7
        %v561 = vadd.s32 %v560, 8
        %562 = vset.pattern.permute.xlu0 %v561
        %563 = vperm.xlu0 %562, %v552
        %v564 = vpop.permute.xlu0 %563
        %v565 = vperm.slane %v202, 2
        %v566 = vlaneseq
        %v567 = vshrl.u32 %v566, 7
        %569 = vset.pattern.permute.xlu0 %v567
        %570 = vperm.xlu0 %569, %v565
        %v571 = vpop.permute.xlu0 %570
        %v572 = vlaneseq
        %v573 = vshrl.u32 %v572, 7
        %v574 = vadd.s32 %v573, 8
        %575 = vset.pattern.permute.xlu0 %v574
        %576 = vperm.xlu0 %575, %v565
        %v577 = vpop.permute.xlu0 %576
        %v578 = vperm.slane %v202, 3
        %v579 = vlaneseq
        %v580 = vshrl.u32 %v579, 7
        %582 = vset.pattern.permute.xlu0 %v580
        %583 = vperm.xlu0 %582, %v578
        %v584 = vpop.permute.xlu0 %583
        %v585 = vlaneseq
        %v586 = vshrl.u32 %v585, 7
        %v587 = vadd.s32 %v586, 8
        %588 = vset.pattern.permute.xlu0 %v587
        %589 = vperm.xlu0 %588, %v578
        %v590 = vpop.permute.xlu0 %589
        %v591 = vperm.slane %v202, 4
        %v592 = vlaneseq
        %v593 = vshrl.u32 %v592, 7
        %595 = vset.pattern.permute.xlu0 %v593
        %596 = vperm.xlu0 %595, %v591
        %v597 = vpop.permute.xlu0 %596
        %v598 = vlaneseq
        %v599 = vshrl.u32 %v598, 7
        %v600 = vadd.s32 %v599, 8
        %601 = vset.pattern.permute.xlu0 %v600
        %602 = vperm.xlu0 %601, %v591
        %v603 = vpop.permute.xlu0 %602
        %v604 = vperm.slane %v202, 5
        %v605 = vlaneseq
        %v606 = vshrl.u32 %v605, 7
        %608 = vset.pattern.permute.xlu0 %v606
        %609 = vperm.xlu0 %608, %v604
        %v610 = vpop.permute.xlu0 %609
        %v611 = vlaneseq
        %v612 = vshrl.u32 %v611, 7
        %v613 = vadd.s32 %v612, 8
        %614 = vset.pattern.permute.xlu0 %v613
        %615 = vperm.xlu0 %614, %v604
        %v616 = vpop.permute.xlu0 %615
        %v617 = vperm.slane %v202, 6
        %v618 = vlaneseq
        %v619 = vshrl.u32 %v618, 7
        %621 = vset.pattern.permute.xlu0 %v619
        %622 = vperm.xlu0 %621, %v617
        %v623 = vpop.permute.xlu0 %622
        %v624 = vlaneseq
        %v625 = vshrl.u32 %v624, 7
        %v626 = vadd.s32 %v625, 8
        %627 = vset.pattern.permute.xlu0 %v626
        %628 = vperm.xlu0 %627, %v617
        %v629 = vpop.permute.xlu0 %628
        %v630 = vperm.slane %v202, 7
        %v631 = vlaneseq
        %v632 = vshrl.u32 %v631, 7
        %634 = vset.pattern.permute.xlu0 %v632
        %635 = vperm.xlu0 %634, %v630
        %v636 = vpop.permute.xlu0 %635
        %v637 = vlaneseq
        %v638 = vshrl.u32 %v637, 7
        %v639 = vadd.s32 %v638, 8
        %640 = vset.pattern.permute.xlu0 %v639
        %641 = vperm.xlu0 %640, %v630
        %v642 = vpop.permute.xlu0 %641
        %v643 = vperm.slane %v207, 0
        %v644 = vlaneseq
        %v645 = vshrl.u32 %v644, 7
        %647 = vset.pattern.permute.xlu0 %v645
        %648 = vperm.xlu0 %647, %v643
        %v649 = vpop.permute.xlu0 %648
        %v650 = vlaneseq
        %v651 = vshrl.u32 %v650, 7
        %v652 = vadd.s32 %v651, 8
        %653 = vset.pattern.permute.xlu0 %v652
        %654 = vperm.xlu0 %653, %v643
        %v655 = vpop.permute.xlu0 %654
        %v656 = vperm.slane %v207, 1
        %v657 = vlaneseq
        %v658 = vshrl.u32 %v657, 7
        %660 = vset.pattern.permute.xlu0 %v658
        %661 = vperm.xlu0 %660, %v656
        %v662 = vpop.permute.xlu0 %661
        %v663 = vlaneseq
        %v664 = vshrl.u32 %v663, 7
        %v665 = vadd.s32 %v664, 8
        %666 = vset.pattern.permute.xlu0 %v665
        %667 = vperm.xlu0 %666, %v656
        %v668 = vpop.permute.xlu0 %667
        %v669 = vperm.slane %v207, 2
        %v670 = vlaneseq
        %v671 = vshrl.u32 %v670, 7
        %673 = vset.pattern.permute.xlu0 %v671
        %674 = vperm.xlu0 %673, %v669
        %v675 = vpop.permute.xlu0 %674
        %v676 = vlaneseq
        %v677 = vshrl.u32 %v676, 7
        %v678 = vadd.s32 %v677, 8
        %679 = vset.pattern.permute.xlu0 %v678
        %680 = vperm.xlu0 %679, %v669
        %v681 = vpop.permute.xlu0 %680
        %v682 = vperm.slane %v207, 3
        %v683 = vlaneseq
        %v684 = vshrl.u32 %v683, 7
        %686 = vset.pattern.permute.xlu0 %v684
        %687 = vperm.xlu0 %686, %v682
        %v688 = vpop.permute.xlu0 %687
        %v689 = vlaneseq
        %v690 = vshrl.u32 %v689, 7
        %v691 = vadd.s32 %v690, 8
        %692 = vset.pattern.permute.xlu0 %v691
        %693 = vperm.xlu0 %692, %v682
        %v694 = vpop.permute.xlu0 %693
        %v695 = vperm.slane %v207, 4
        %v696 = vlaneseq
        %v697 = vshrl.u32 %v696, 7
        %699 = vset.pattern.permute.xlu0 %v697
        %700 = vperm.xlu0 %699, %v695
        %v701 = vpop.permute.xlu0 %700
        %v702 = vlaneseq
        %v703 = vshrl.u32 %v702, 7
        %v704 = vadd.s32 %v703, 8
        %705 = vset.pattern.permute.xlu0 %v704
        %706 = vperm.xlu0 %705, %v695
        %v707 = vpop.permute.xlu0 %706
        %v708 = vperm.slane %v207, 5
        %v709 = vlaneseq
        %v710 = vshrl.u32 %v709, 7
        %712 = vset.pattern.permute.xlu0 %v710
        %713 = vperm.xlu0 %712, %v708
        %v714 = vpop.permute.xlu0 %713
        %v715 = vlaneseq
        %v716 = vshrl.u32 %v715, 7
        %v717 = vadd.s32 %v716, 8
        %718 = vset.pattern.permute.xlu0 %v717
        %719 = vperm.xlu0 %718, %v708
        %v720 = vpop.permute.xlu0 %719
        %v721 = vperm.slane %v207, 6
        %v722 = vlaneseq
        %v723 = vshrl.u32 %v722, 7
        %725 = vset.pattern.permute.xlu0 %v723
        %726 = vperm.xlu0 %725, %v721
        %v727 = vpop.permute.xlu0 %726
        %v728 = vlaneseq
        %v729 = vshrl.u32 %v728, 7
        %v730 = vadd.s32 %v729, 8
        %731 = vset.pattern.permute.xlu0 %v730
        %732 = vperm.xlu0 %731, %v721
        %v733 = vpop.permute.xlu0 %732
        %v734 = vperm.slane %v207, 7
        %v735 = vlaneseq
        %v736 = vshrl.u32 %v735, 7
        %738 = vset.pattern.permute.xlu0 %v736
        %739 = vperm.xlu0 %738, %v734
        %v740 = vpop.permute.xlu0 %739
        %v741 = vlaneseq
        %v742 = vshrl.u32 %v741, 7
        %v743 = vadd.s32 %v742, 8
        %744 = vset.pattern.permute.xlu0 %v743
        %745 = vperm.xlu0 %744, %v734
        %v746 = vpop.permute.xlu0 %745
        %v747 = vperm.slane %v208, 0
        %v748 = vlaneseq
        %v749 = vshrl.u32 %v748, 7
        %751 = vset.pattern.permute.xlu0 %v749
        %752 = vperm.xlu0 %751, %v747
        %v753 = vpop.permute.xlu0 %752
        %v754 = vlaneseq
        %v755 = vshrl.u32 %v754, 7
        %v756 = vadd.s32 %v755, 8
        %757 = vset.pattern.permute.xlu0 %v756
        %758 = vperm.xlu0 %757, %v747
        %v759 = vpop.permute.xlu0 %758
        %v760 = vperm.slane %v208, 1
        %v761 = vlaneseq
        %v762 = vshrl.u32 %v761, 7
        %764 = vset.pattern.permute.xlu0 %v762
        %765 = vperm.xlu0 %764, %v760
        %v766 = vpop.permute.xlu0 %765
        %v767 = vlaneseq
        %v768 = vshrl.u32 %v767, 7
        %v769 = vadd.s32 %v768, 8
        %770 = vset.pattern.permute.xlu0 %v769
        %771 = vperm.xlu0 %770, %v760
        %v772 = vpop.permute.xlu0 %771
        %v773 = vperm.slane %v208, 2
        %v774 = vlaneseq
        %v775 = vshrl.u32 %v774, 7
        %777 = vset.pattern.permute.xlu0 %v775
        %778 = vperm.xlu0 %777, %v773
        %v779 = vpop.permute.xlu0 %778
        %v780 = vlaneseq
        %v781 = vshrl.u32 %v780, 7
        %v782 = vadd.s32 %v781, 8
        %783 = vset.pattern.permute.xlu0 %v782
        %784 = vperm.xlu0 %783, %v773
        %v785 = vpop.permute.xlu0 %784
        %v786 = vperm.slane %v208, 3
        %v787 = vlaneseq
        %v788 = vshrl.u32 %v787, 7
        %790 = vset.pattern.permute.xlu0 %v788
        %791 = vperm.xlu0 %790, %v786
        %v792 = vpop.permute.xlu0 %791
        %v793 = vlaneseq
        %v794 = vshrl.u32 %v793, 7
        %v795 = vadd.s32 %v794, 8
        %796 = vset.pattern.permute.xlu0 %v795
        %797 = vperm.xlu0 %796, %v786
        %v798 = vpop.permute.xlu0 %797
        %v799 = vperm.slane %v208, 4
        %v800 = vlaneseq
        %v801 = vshrl.u32 %v800, 7
        %803 = vset.pattern.permute.xlu0 %v801
        %804 = vperm.xlu0 %803, %v799
        %v805 = vpop.permute.xlu0 %804
        %v806 = vlaneseq
        %v807 = vshrl.u32 %v806, 7
        %v808 = vadd.s32 %v807, 8
        %809 = vset.pattern.permute.xlu0 %v808
        %810 = vperm.xlu0 %809, %v799
        %v811 = vpop.permute.xlu0 %810
        %v812 = vperm.slane %v208, 5
        %v813 = vlaneseq
        %v814 = vshrl.u32 %v813, 7
        %816 = vset.pattern.permute.xlu0 %v814
        %817 = vperm.xlu0 %816, %v812
        %v818 = vpop.permute.xlu0 %817
        %v819 = vlaneseq
        %v820 = vshrl.u32 %v819, 7
        %v821 = vadd.s32 %v820, 8
        %822 = vset.pattern.permute.xlu0 %v821
        %823 = vperm.xlu0 %822, %v812
        %v824 = vpop.permute.xlu0 %823
        %v825 = vperm.slane %v208, 6
        %v826 = vlaneseq
        %v827 = vshrl.u32 %v826, 7
        %829 = vset.pattern.permute.xlu0 %v827
        %830 = vperm.xlu0 %829, %v825
        %v831 = vpop.permute.xlu0 %830
        %v832 = vlaneseq
        %v833 = vshrl.u32 %v832, 7
        %v834 = vadd.s32 %v833, 8
        %835 = vset.pattern.permute.xlu0 %v834
        %836 = vperm.xlu0 %835, %v825
        %v837 = vpop.permute.xlu0 %836
        %v838 = vperm.slane %v208, 7
        %v839 = vlaneseq
        %v840 = vshrl.u32 %v839, 7
        %842 = vset.pattern.permute.xlu0 %v840
        %843 = vperm.xlu0 %842, %v838
        %v844 = vpop.permute.xlu0 %843
        %v845 = vlaneseq
        %v846 = vshrl.u32 %v845, 7
        %v847 = vadd.s32 %v846, 8
        %848 = vset.pattern.permute.xlu0 %v847
        %849 = vperm.xlu0 %848, %v838
        %v850 = vpop.permute.xlu0 %849
        %v851 = vperm.slane %v209, 0
        %v852 = vlaneseq
        %v853 = vshrl.u32 %v852, 7
        %855 = vset.pattern.permute.xlu0 %v853
        %856 = vperm.xlu0 %855, %v851
        %v857 = vpop.permute.xlu0 %856
        %v858 = vlaneseq
        %v859 = vshrl.u32 %v858, 7
        %v860 = vadd.s32 %v859, 8
        %861 = vset.pattern.permute.xlu0 %v860
        %862 = vperm.xlu0 %861, %v851
        %v863 = vpop.permute.xlu0 %862
        %v864 = vperm.slane %v209, 1
        %v865 = vlaneseq
        %v866 = vshrl.u32 %v865, 7
        %868 = vset.pattern.permute.xlu0 %v866
        %869 = vperm.xlu0 %868, %v864
        %v870 = vpop.permute.xlu0 %869
        %v871 = vlaneseq
        %v872 = vshrl.u32 %v871, 7
        %v873 = vadd.s32 %v872, 8
        %874 = vset.pattern.permute.xlu0 %v873
        %875 = vperm.xlu0 %874, %v864
        %v876 = vpop.permute.xlu0 %875
        %v877 = vperm.slane %v209, 2
        %v878 = vlaneseq
        %v879 = vshrl.u32 %v878, 7
        %881 = vset.pattern.permute.xlu0 %v879
        %882 = vperm.xlu0 %881, %v877
        %v883 = vpop.permute.xlu0 %882
        %v884 = vlaneseq
        %v885 = vshrl.u32 %v884, 7
        %v886 = vadd.s32 %v885, 8
        %887 = vset.pattern.permute.xlu0 %v886
        %888 = vperm.xlu0 %887, %v877
        %v889 = vpop.permute.xlu0 %888
        %v890 = vperm.slane %v209, 3
        %v891 = vlaneseq
        %v892 = vshrl.u32 %v891, 7
        %894 = vset.pattern.permute.xlu0 %v892
        %895 = vperm.xlu0 %894, %v890
        %v896 = vpop.permute.xlu0 %895
        %v897 = vlaneseq
        %v898 = vshrl.u32 %v897, 7
        %v899 = vadd.s32 %v898, 8
        %900 = vset.pattern.permute.xlu0 %v899
        %901 = vperm.xlu0 %900, %v890
        %v902 = vpop.permute.xlu0 %901
        %v903 = vperm.slane %v209, 4
        %v904 = vlaneseq
        %v905 = vshrl.u32 %v904, 7
        %907 = vset.pattern.permute.xlu0 %v905
        %908 = vperm.xlu0 %907, %v903
        %v909 = vpop.permute.xlu0 %908
        %v910 = vlaneseq
        %v911 = vshrl.u32 %v910, 7
        %v912 = vadd.s32 %v911, 8
        %913 = vset.pattern.permute.xlu0 %v912
        %914 = vperm.xlu0 %913, %v903
        %v915 = vpop.permute.xlu0 %914
        %v916 = vperm.slane %v209, 5
        %v917 = vlaneseq
        %v918 = vshrl.u32 %v917, 7
        %920 = vset.pattern.permute.xlu0 %v918
        %921 = vperm.xlu0 %920, %v916
        %v922 = vpop.permute.xlu0 %921
        %v923 = vlaneseq
        %v924 = vshrl.u32 %v923, 7
        %v925 = vadd.s32 %v924, 8
        %926 = vset.pattern.permute.xlu0 %v925
        %927 = vperm.xlu0 %926, %v916
        %v928 = vpop.permute.xlu0 %927
        %v929 = vperm.slane %v209, 6
        %v930 = vlaneseq
        %v931 = vshrl.u32 %v930, 7
        %933 = vset.pattern.permute.xlu0 %v931
        %934 = vperm.xlu0 %933, %v929
        %v935 = vpop.permute.xlu0 %934
        %v936 = vlaneseq
        %v937 = vshrl.u32 %v936, 7
        %v938 = vadd.s32 %v937, 8
        %939 = vset.pattern.permute.xlu0 %v938
        %940 = vperm.xlu0 %939, %v929
        %v941 = vpop.permute.xlu0 %940
        %v942 = vperm.slane %v209, 7
        %v943 = vlaneseq
        %v944 = vshrl.u32 %v943, 7
        %946 = vset.pattern.permute.xlu0 %v944
        %947 = vperm.xlu0 %946, %v942
        %v948 = vpop.permute.xlu0 %947
        %v949 = vlaneseq
        %v950 = vshrl.u32 %v949, 7
        %v951 = vadd.s32 %v950, 8
        %952 = vset.pattern.permute.xlu0 %v951
        %953 = vperm.xlu0 %952, %v942
        %v954 = vpop.permute.xlu0 %953
        %v955 = vperm.slane %v210, 0
        %v956 = vlaneseq
        %v957 = vshrl.u32 %v956, 7
        %959 = vset.pattern.permute.xlu0 %v957
        %960 = vperm.xlu0 %959, %v955
        %v961 = vpop.permute.xlu0 %960
        %v962 = vlaneseq
        %v963 = vshrl.u32 %v962, 7
        %v964 = vadd.s32 %v963, 8
        %965 = vset.pattern.permute.xlu0 %v964
        %966 = vperm.xlu0 %965, %v955
        %v967 = vpop.permute.xlu0 %966
        %v968 = vperm.slane %v210, 1
        %v969 = vlaneseq
        %v970 = vshrl.u32 %v969, 7
        %972 = vset.pattern.permute.xlu0 %v970
        %973 = vperm.xlu0 %972, %v968
        %v974 = vpop.permute.xlu0 %973
        %v975 = vlaneseq
        %v976 = vshrl.u32 %v975, 7
        %v977 = vadd.s32 %v976, 8
        %978 = vset.pattern.permute.xlu0 %v977
        %979 = vperm.xlu0 %978, %v968
        %v980 = vpop.permute.xlu0 %979
        %v981 = vperm.slane %v210, 2
        %v982 = vlaneseq
        %v983 = vshrl.u32 %v982, 7
        %985 = vset.pattern.permute.xlu0 %v983
        %986 = vperm.xlu0 %985, %v981
        %v987 = vpop.permute.xlu0 %986
        %v988 = vlaneseq
        %v989 = vshrl.u32 %v988, 7
        %v990 = vadd.s32 %v989, 8
        %991 = vset.pattern.permute.xlu0 %v990
        %992 = vperm.xlu0 %991, %v981
        %v993 = vpop.permute.xlu0 %992
        %v994 = vperm.slane %v210, 3
        %v995 = vlaneseq
        %v996 = vshrl.u32 %v995, 7
        %998 = vset.pattern.permute.xlu0 %v996
        %999 = vperm.xlu0 %998, %v994
        %v1000 = vpop.permute.xlu0 %999
        %v1001 = vlaneseq
        %v1002 = vshrl.u32 %v1001, 7
        %v1003 = vadd.s32 %v1002, 8
        %1004 = vset.pattern.permute.xlu0 %v1003
        %1005 = vperm.xlu0 %1004, %v994
        %v1006 = vpop.permute.xlu0 %1005
        %v1007 = vperm.slane %v210, 4
        %v1008 = vlaneseq
        %v1009 = vshrl.u32 %v1008, 7
        %1011 = vset.pattern.permute.xlu0 %v1009
        %1012 = vperm.xlu0 %1011, %v1007
        %v1013 = vpop.permute.xlu0 %1012
        %v1014 = vlaneseq
        %v1015 = vshrl.u32 %v1014, 7
        %v1016 = vadd.s32 %v1015, 8
        %1017 = vset.pattern.permute.xlu0 %v1016
        %1018 = vperm.xlu0 %1017, %v1007
        %v1019 = vpop.permute.xlu0 %1018
        %v1020 = vperm.slane %v210, 5
        %v1021 = vlaneseq
        %v1022 = vshrl.u32 %v1021, 7
        %1024 = vset.pattern.permute.xlu0 %v1022
        %1025 = vperm.xlu0 %1024, %v1020
        %v1026 = vpop.permute.xlu0 %1025
        %v1027 = vlaneseq
        %v1028 = vshrl.u32 %v1027, 7
        %v1029 = vadd.s32 %v1028, 8
        %1030 = vset.pattern.permute.xlu0 %v1029
        %1031 = vperm.xlu0 %1030, %v1020
        %v1032 = vpop.permute.xlu0 %1031
        %v1033 = vperm.slane %v210, 6
        %v1034 = vlaneseq
        %v1035 = vshrl.u32 %v1034, 7
        %1037 = vset.pattern.permute.xlu0 %v1035
        %1038 = vperm.xlu0 %1037, %v1033
        %v1039 = vpop.permute.xlu0 %1038
        %v1040 = vlaneseq
        %v1041 = vshrl.u32 %v1040, 7
        %v1042 = vadd.s32 %v1041, 8
        %1043 = vset.pattern.permute.xlu0 %v1042
        %1044 = vperm.xlu0 %1043, %v1033
        %v1045 = vpop.permute.xlu0 %1044
        %v1046 = vperm.slane %v210, 7
        %v1047 = vlaneseq
        %v1048 = vshrl.u32 %v1047, 7
        %1050 = vset.pattern.permute.xlu0 %v1048
        %1051 = vperm.xlu0 %1050, %v1046
        %v1052 = vpop.permute.xlu0 %1051
        %v1053 = vlaneseq
        %v1054 = vshrl.u32 %v1053, 7
        %v1055 = vadd.s32 %v1054, 8
        %1056 = vset.pattern.permute.xlu0 %v1055
        %1057 = vperm.xlu0 %1056, %v1046
        %v1058 = vpop.permute.xlu0 %1057
        %vm1059 = vcmask 7168
        %v1060 = vsel %vm1059, %v233, %v649
        %v1061 = vsel %vm1059, %v239, %v655
        %v1062 = vsel %vm1059, %v246, %v662
        %v1063 = vsel %vm1059, %v252, %v668
        %v1064 = vsel %vm1059, %v259, %v675
        %v1065 = vsel %vm1059, %v265, %v681
        %v1066 = vsel %vm1059, %v272, %v688
        %v1067 = vsel %vm1059, %v278, %v694
        %v1068 = vsel %vm1059, %v285, %v701
        %v1069 = vsel %vm1059, %v291, %v707
        %v1070 = vsel %vm1059, %v298, %v714
        %v1071 = vsel %vm1059, %v304, %v720
        %v1072 = vsel %vm1059, %v311, %v727
        %v1073 = vsel %vm1059, %v317, %v733
        %v1074 = vsel %vm1059, %v324, %v740
        %v1075 = vsel %vm1059, %v330, %v746
        %v1076 = vsel %vm1059, %v337, %v753
        %v1077 = vsel %vm1059, %v343, %v759
        %v1078 = vsel %vm1059, %v350, %v766
        %v1079 = vsel %vm1059, %v356, %v772
        %v1080 = vsel %vm1059, %v363, %v779
        %v1081 = vsel %vm1059, %v369, %v785
        %v1082 = vsel %vm1059, %v376, %v792
        %v1083 = vsel %vm1059, %v382, %v798
        %v1084 = vsel %vm1059, %v389, %v805
        %v1085 = vsel %vm1059, %v395, %v811
        %v1086 = vsel %vm1059, %v402, %v818
        %v1087 = vsel %vm1059, %v408, %v824
        %v1088 = vsel %vm1059, %v415, %v831
        %v1089 = vsel %vm1059, %v421, %v837
        %v1090 = vsel %vm1059, %v428, %v844
        %v1091 = vsel %vm1059, %v434, %v850
        %v1092 = vsel %vm1059, %v441, %v857
        %v1093 = vsel %vm1059, %v447, %v863
        %v1094 = vsel %vm1059, %v454, %v870
        %v1095 = vsel %vm1059, %v460, %v876
        %v1096 = vsel %vm1059, %v467, %v883
        %v1097 = vsel %vm1059, %v473, %v889
        %v1098 = vsel %vm1059, %v480, %v896
        %v1099 = vsel %vm1059, %v486, %v902
        %v1100 = vsel %vm1059, %v493, %v909
        %v1101 = vsel %vm1059, %v499, %v915
        %v1102 = vsel %vm1059, %v506, %v922
        %v1103 = vsel %vm1059, %v512, %v928
        %v1104 = vsel %vm1059, %v519, %v935
        %v1105 = vsel %vm1059, %v525, %v941
        %v1106 = vsel %vm1059, %v532, %v948
        %v1107 = vsel %vm1059, %v538, %v954
        %v1108 = vsel %vm1059, %v545, %v961
        %v1109 = vsel %vm1059, %v551, %v967
        %v1110 = vsel %vm1059, %v558, %v974
        %v1111 = vsel %vm1059, %v564, %v980
        %v1112 = vsel %vm1059, %v571, %v987
        %v1113 = vsel %vm1059, %v577, %v993
        %v1114 = vsel %vm1059, %v584, %v1000
        %v1115 = vsel %vm1059, %v590, %v1006
        %v1116 = vsel %vm1059, %v597, %v1013
        %v1117 = vsel %vm1059, %v603, %v1019
        %v1118 = vsel %vm1059, %v610, %v1026
        %v1119 = vsel %vm1059, %v616, %v1032
        %v1120 = vsel %vm1059, %v623, %v1039
        %v1121 = vsel %vm1059, %v629, %v1045
        %v1122 = vsel %vm1059, %v636, %v1052
        %v1123 = vsel %vm1059, %v642, %v1058
        %v1124 = vperm.slane %v215, 0
        %v1125 = vlaneseq
        %v1126 = vshrl.u32 %v1125, 7
        %1128 = vset.pattern.permute.xlu0 %v1126
        %1129 = vperm.xlu0 %1128, %v1124
        %v1130 = vpop.permute.xlu0 %1129
        %v1131 = vlaneseq
        %v1132 = vshrl.u32 %v1131, 7
        %v1133 = vadd.s32 %v1132, 8
        %1134 = vset.pattern.permute.xlu0 %v1133
        %1135 = vperm.xlu0 %1134, %v1124
        %v1136 = vpop.permute.xlu0 %1135
        %v1137 = vperm.slane %v215, 1
        %v1138 = vlaneseq
        %v1139 = vshrl.u32 %v1138, 7
        %1141 = vset.pattern.permute.xlu0 %v1139
        %1142 = vperm.xlu0 %1141, %v1137
        %v1143 = vpop.permute.xlu0 %1142
        %v1144 = vlaneseq
        %v1145 = vshrl.u32 %v1144, 7
        %v1146 = vadd.s32 %v1145, 8
        %1147 = vset.pattern.permute.xlu0 %v1146
        %1148 = vperm.xlu0 %1147, %v1137
        %v1149 = vpop.permute.xlu0 %1148
        %v1150 = vperm.slane %v215, 2
        %v1151 = vlaneseq
        %v1152 = vshrl.u32 %v1151, 7
        %1154 = vset.pattern.permute.xlu0 %v1152
        %1155 = vperm.xlu0 %1154, %v1150
        %v1156 = vpop.permute.xlu0 %1155
        %v1157 = vlaneseq
        %v1158 = vshrl.u32 %v1157, 7
        %v1159 = vadd.s32 %v1158, 8
        %1160 = vset.pattern.permute.xlu0 %v1159
        %1161 = vperm.xlu0 %1160, %v1150
        %v1162 = vpop.permute.xlu0 %1161
        %v1163 = vperm.slane %v215, 3
        %v1164 = vlaneseq
        %v1165 = vshrl.u32 %v1164, 7
        %1167 = vset.pattern.permute.xlu0 %v1165
        %1168 = vperm.xlu0 %1167, %v1163
        %v1169 = vpop.permute.xlu0 %1168
        %v1170 = vlaneseq
        %v1171 = vshrl.u32 %v1170, 7
        %v1172 = vadd.s32 %v1171, 8
        %1173 = vset.pattern.permute.xlu0 %v1172
        %1174 = vperm.xlu0 %1173, %v1163
        %v1175 = vpop.permute.xlu0 %1174
        %v1176 = vperm.slane %v215, 4
        %v1177 = vlaneseq
        %v1178 = vshrl.u32 %v1177, 7
        %1180 = vset.pattern.permute.xlu0 %v1178
        %1181 = vperm.xlu0 %1180, %v1176
        %v1182 = vpop.permute.xlu0 %1181
        %v1183 = vlaneseq
        %v1184 = vshrl.u32 %v1183, 7
        %v1185 = vadd.s32 %v1184, 8
        %1186 = vset.pattern.permute.xlu0 %v1185
        %1187 = vperm.xlu0 %1186, %v1176
        %v1188 = vpop.permute.xlu0 %1187
        %v1189 = vperm.slane %v215, 5
        %v1190 = vlaneseq
        %v1191 = vshrl.u32 %v1190, 7
        %1193 = vset.pattern.permute.xlu0 %v1191
        %1194 = vperm.xlu0 %1193, %v1189
        %v1195 = vpop.permute.xlu0 %1194
        %v1196 = vlaneseq
        %v1197 = vshrl.u32 %v1196, 7
        %v1198 = vadd.s32 %v1197, 8
        %1199 = vset.pattern.permute.xlu0 %v1198
        %1200 = vperm.xlu0 %1199, %v1189
        %v1201 = vpop.permute.xlu0 %1200
        %v1202 = vperm.slane %v215, 6
        %v1203 = vlaneseq
        %v1204 = vshrl.u32 %v1203, 7
        %1206 = vset.pattern.permute.xlu0 %v1204
        %1207 = vperm.xlu0 %1206, %v1202
        %v1208 = vpop.permute.xlu0 %1207
        %v1209 = vlaneseq
        %v1210 = vshrl.u32 %v1209, 7
        %v1211 = vadd.s32 %v1210, 8
        %1212 = vset.pattern.permute.xlu0 %v1211
        %1213 = vperm.xlu0 %1212, %v1202
        %v1214 = vpop.permute.xlu0 %1213
        %v1215 = vperm.slane %v215, 7
        %v1216 = vlaneseq
        %v1217 = vshrl.u32 %v1216, 7
        %1219 = vset.pattern.permute.xlu0 %v1217
        %1220 = vperm.xlu0 %1219, %v1215
        %v1221 = vpop.permute.xlu0 %1220
        %v1222 = vlaneseq
        %v1223 = vshrl.u32 %v1222, 7
        %v1224 = vadd.s32 %v1223, 8
        %1225 = vset.pattern.permute.xlu0 %v1224
        %1226 = vperm.xlu0 %1225, %v1215
        %v1227 = vpop.permute.xlu0 %1226
        %v1228 = vperm.slane %v216, 0
        %v1229 = vlaneseq
        %v1230 = vshrl.u32 %v1229, 7
        %1232 = vset.pattern.permute.xlu0 %v1230
        %1233 = vperm.xlu0 %1232, %v1228
        %v1234 = vpop.permute.xlu0 %1233
        %v1235 = vlaneseq
        %v1236 = vshrl.u32 %v1235, 7
        %v1237 = vadd.s32 %v1236, 8
        %1238 = vset.pattern.permute.xlu0 %v1237
        %1239 = vperm.xlu0 %1238, %v1228
        %v1240 = vpop.permute.xlu0 %1239
        %v1241 = vperm.slane %v216, 1
        %v1242 = vlaneseq
        %v1243 = vshrl.u32 %v1242, 7
        %1245 = vset.pattern.permute.xlu0 %v1243
        %1246 = vperm.xlu0 %1245, %v1241
        %v1247 = vpop.permute.xlu0 %1246
        %v1248 = vlaneseq
        %v1249 = vshrl.u32 %v1248, 7
        %v1250 = vadd.s32 %v1249, 8
        %1251 = vset.pattern.permute.xlu0 %v1250
        %1252 = vperm.xlu0 %1251, %v1241
        %v1253 = vpop.permute.xlu0 %1252
        %v1254 = vperm.slane %v216, 2
        %v1255 = vlaneseq
        %v1256 = vshrl.u32 %v1255, 7
        %1258 = vset.pattern.permute.xlu0 %v1256
        %1259 = vperm.xlu0 %1258, %v1254
        %v1260 = vpop.permute.xlu0 %1259
        %v1261 = vlaneseq
        %v1262 = vshrl.u32 %v1261, 7
        %v1263 = vadd.s32 %v1262, 8
        %1264 = vset.pattern.permute.xlu0 %v1263
        %1265 = vperm.xlu0 %1264, %v1254
        %v1266 = vpop.permute.xlu0 %1265
        %v1267 = vperm.slane %v216, 3
        %v1268 = vlaneseq
        %v1269 = vshrl.u32 %v1268, 7
        %1271 = vset.pattern.permute.xlu0 %v1269
        %1272 = vperm.xlu0 %1271, %v1267
        %v1273 = vpop.permute.xlu0 %1272
        %v1274 = vlaneseq
        %v1275 = vshrl.u32 %v1274, 7
        %v1276 = vadd.s32 %v1275, 8
        %1277 = vset.pattern.permute.xlu0 %v1276
        %1278 = vperm.xlu0 %1277, %v1267
        %v1279 = vpop.permute.xlu0 %1278
        %v1280 = vperm.slane %v216, 4
        %v1281 = vlaneseq
        %v1282 = vshrl.u32 %v1281, 7
        %1284 = vset.pattern.permute.xlu0 %v1282
        %1285 = vperm.xlu0 %1284, %v1280
        %v1286 = vpop.permute.xlu0 %1285
        %v1287 = vlaneseq
        %v1288 = vshrl.u32 %v1287, 7
        %v1289 = vadd.s32 %v1288, 8
        %1290 = vset.pattern.permute.xlu0 %v1289
        %1291 = vperm.xlu0 %1290, %v1280
        %v1292 = vpop.permute.xlu0 %1291
        %v1293 = vperm.slane %v216, 5
        %v1294 = vlaneseq
        %v1295 = vshrl.u32 %v1294, 7
        %1297 = vset.pattern.permute.xlu0 %v1295
        %1298 = vperm.xlu0 %1297, %v1293
        %v1299 = vpop.permute.xlu0 %1298
        %v1300 = vlaneseq
        %v1301 = vshrl.u32 %v1300, 7
        %v1302 = vadd.s32 %v1301, 8
        %1303 = vset.pattern.permute.xlu0 %v1302
        %1304 = vperm.xlu0 %1303, %v1293
        %v1305 = vpop.permute.xlu0 %1304
        %v1306 = vperm.slane %v216, 6
        %v1307 = vlaneseq
        %v1308 = vshrl.u32 %v1307, 7
        %1310 = vset.pattern.permute.xlu0 %v1308
        %1311 = vperm.xlu0 %1310, %v1306
        %v1312 = vpop.permute.xlu0 %1311
        %v1313 = vlaneseq
        %v1314 = vshrl.u32 %v1313, 7
        %v1315 = vadd.s32 %v1314, 8
        %1316 = vset.pattern.permute.xlu0 %v1315
        %1317 = vperm.xlu0 %1316, %v1306
        %v1318 = vpop.permute.xlu0 %1317
        %v1319 = vperm.slane %v216, 7
        %v1320 = vlaneseq
        %v1321 = vshrl.u32 %v1320, 7
        %1323 = vset.pattern.permute.xlu0 %v1321
        %1324 = vperm.xlu0 %1323, %v1319
        %v1325 = vpop.permute.xlu0 %1324
        %v1326 = vlaneseq
        %v1327 = vshrl.u32 %v1326, 7
        %v1328 = vadd.s32 %v1327, 8
        %1329 = vset.pattern.permute.xlu0 %v1328
        %1330 = vperm.xlu0 %1329, %v1319
        %v1331 = vpop.permute.xlu0 %1330
        %v1332 = vperm.slane %v217, 0
        %v1333 = vlaneseq
        %v1334 = vshrl.u32 %v1333, 7
        %1336 = vset.pattern.permute.xlu0 %v1334
        %1337 = vperm.xlu0 %1336, %v1332
        %v1338 = vpop.permute.xlu0 %1337
        %v1339 = vlaneseq
        %v1340 = vshrl.u32 %v1339, 7
        %v1341 = vadd.s32 %v1340, 8
        %1342 = vset.pattern.permute.xlu0 %v1341
        %1343 = vperm.xlu0 %1342, %v1332
        %v1344 = vpop.permute.xlu0 %1343
        %v1345 = vperm.slane %v217, 1
        %v1346 = vlaneseq
        %v1347 = vshrl.u32 %v1346, 7
        %1349 = vset.pattern.permute.xlu0 %v1347
        %1350 = vperm.xlu0 %1349, %v1345
        %v1351 = vpop.permute.xlu0 %1350
        %v1352 = vlaneseq
        %v1353 = vshrl.u32 %v1352, 7
        %v1354 = vadd.s32 %v1353, 8
        %1355 = vset.pattern.permute.xlu0 %v1354
        %1356 = vperm.xlu0 %1355, %v1345
        %v1357 = vpop.permute.xlu0 %1356
        %v1358 = vperm.slane %v217, 2
        %v1359 = vlaneseq
        %v1360 = vshrl.u32 %v1359, 7
        %1362 = vset.pattern.permute.xlu0 %v1360
        %1363 = vperm.xlu0 %1362, %v1358
        %v1364 = vpop.permute.xlu0 %1363
        %v1365 = vlaneseq
        %v1366 = vshrl.u32 %v1365, 7
        %v1367 = vadd.s32 %v1366, 8
        %1368 = vset.pattern.permute.xlu0 %v1367
        %1369 = vperm.xlu0 %1368, %v1358
        %v1370 = vpop.permute.xlu0 %1369
        %v1371 = vperm.slane %v217, 3
        %v1372 = vlaneseq
        %v1373 = vshrl.u32 %v1372, 7
        %1375 = vset.pattern.permute.xlu0 %v1373
        %1376 = vperm.xlu0 %1375, %v1371
        %v1377 = vpop.permute.xlu0 %1376
        %v1378 = vlaneseq
        %v1379 = vshrl.u32 %v1378, 7
        %v1380 = vadd.s32 %v1379, 8
        %1381 = vset.pattern.permute.xlu0 %v1380
        %1382 = vperm.xlu0 %1381, %v1371
        %v1383 = vpop.permute.xlu0 %1382
        %v1384 = vperm.slane %v217, 4
        %v1385 = vlaneseq
        %v1386 = vshrl.u32 %v1385, 7
        %1388 = vset.pattern.permute.xlu0 %v1386
        %1389 = vperm.xlu0 %1388, %v1384
        %v1390 = vpop.permute.xlu0 %1389
        %v1391 = vlaneseq
        %v1392 = vshrl.u32 %v1391, 7
        %v1393 = vadd.s32 %v1392, 8
        %1394 = vset.pattern.permute.xlu0 %v1393
        %1395 = vperm.xlu0 %1394, %v1384
        %v1396 = vpop.permute.xlu0 %1395
        %v1397 = vperm.slane %v217, 5
        %v1398 = vlaneseq
        %v1399 = vshrl.u32 %v1398, 7
        %1401 = vset.pattern.permute.xlu0 %v1399
        %1402 = vperm.xlu0 %1401, %v1397
        %v1403 = vpop.permute.xlu0 %1402
        %v1404 = vlaneseq
        %v1405 = vshrl.u32 %v1404, 7
        %v1406 = vadd.s32 %v1405, 8
        %1407 = vset.pattern.permute.xlu0 %v1406
        %1408 = vperm.xlu0 %1407, %v1397
        %v1409 = vpop.permute.xlu0 %1408
        %v1410 = vperm.slane %v217, 6
        %v1411 = vlaneseq
        %v1412 = vshrl.u32 %v1411, 7
        %1414 = vset.pattern.permute.xlu0 %v1412
        %1415 = vperm.xlu0 %1414, %v1410
        %v1416 = vpop.permute.xlu0 %1415
        %v1417 = vlaneseq
        %v1418 = vshrl.u32 %v1417, 7
        %v1419 = vadd.s32 %v1418, 8
        %1420 = vset.pattern.permute.xlu0 %v1419
        %1421 = vperm.xlu0 %1420, %v1410
        %v1422 = vpop.permute.xlu0 %1421
        %v1423 = vperm.slane %v217, 7
        %v1424 = vlaneseq
        %v1425 = vshrl.u32 %v1424, 7
        %1427 = vset.pattern.permute.xlu0 %v1425
        %1428 = vperm.xlu0 %1427, %v1423
        %v1429 = vpop.permute.xlu0 %1428
        %v1430 = vlaneseq
        %v1431 = vshrl.u32 %v1430, 7
        %v1432 = vadd.s32 %v1431, 8
        %1433 = vset.pattern.permute.xlu0 %v1432
        %1434 = vperm.xlu0 %1433, %v1423
        %v1435 = vpop.permute.xlu0 %1434
        %v1436 = vperm.slane %v218, 0
        %v1437 = vlaneseq
        %v1438 = vshrl.u32 %v1437, 7
        %1440 = vset.pattern.permute.xlu0 %v1438
        %1441 = vperm.xlu0 %1440, %v1436
        %v1442 = vpop.permute.xlu0 %1441
        %v1443 = vlaneseq
        %v1444 = vshrl.u32 %v1443, 7
        %v1445 = vadd.s32 %v1444, 8
        %1446 = vset.pattern.permute.xlu0 %v1445
        %1447 = vperm.xlu0 %1446, %v1436
        %v1448 = vpop.permute.xlu0 %1447
        %v1449 = vperm.slane %v218, 1
        %v1450 = vlaneseq
        %v1451 = vshrl.u32 %v1450, 7
        %1453 = vset.pattern.permute.xlu0 %v1451
        %1454 = vperm.xlu0 %1453, %v1449
        %v1455 = vpop.permute.xlu0 %1454
        %v1456 = vlaneseq
        %v1457 = vshrl.u32 %v1456, 7
        %v1458 = vadd.s32 %v1457, 8
        %1459 = vset.pattern.permute.xlu0 %v1458
        %1460 = vperm.xlu0 %1459, %v1449
        %v1461 = vpop.permute.xlu0 %1460
        %v1462 = vperm.slane %v218, 2
        %v1463 = vlaneseq
        %v1464 = vshrl.u32 %v1463, 7
        %1466 = vset.pattern.permute.xlu0 %v1464
        %1467 = vperm.xlu0 %1466, %v1462
        %v1468 = vpop.permute.xlu0 %1467
        %v1469 = vlaneseq
        %v1470 = vshrl.u32 %v1469, 7
        %v1471 = vadd.s32 %v1470, 8
        %1472 = vset.pattern.permute.xlu0 %v1471
        %1473 = vperm.xlu0 %1472, %v1462
        %v1474 = vpop.permute.xlu0 %1473
        %v1475 = vperm.slane %v218, 3
        %v1476 = vlaneseq
        %v1477 = vshrl.u32 %v1476, 7
        %1479 = vset.pattern.permute.xlu0 %v1477
        %1480 = vperm.xlu0 %1479, %v1475
        %v1481 = vpop.permute.xlu0 %1480
        %v1482 = vlaneseq
        %v1483 = vshrl.u32 %v1482, 7
        %v1484 = vadd.s32 %v1483, 8
        %1485 = vset.pattern.permute.xlu0 %v1484
        %1486 = vperm.xlu0 %1485, %v1475
        %v1487 = vpop.permute.xlu0 %1486
        %v1488 = vperm.slane %v218, 4
        %v1489 = vlaneseq
        %v1490 = vshrl.u32 %v1489, 7
        %1492 = vset.pattern.permute.xlu0 %v1490
        %1493 = vperm.xlu0 %1492, %v1488
        %v1494 = vpop.permute.xlu0 %1493
        %v1495 = vlaneseq
        %v1496 = vshrl.u32 %v1495, 7
        %v1497 = vadd.s32 %v1496, 8
        %1498 = vset.pattern.permute.xlu0 %v1497
        %1499 = vperm.xlu0 %1498, %v1488
        %v1500 = vpop.permute.xlu0 %1499
        %v1501 = vperm.slane %v218, 5
        %v1502 = vlaneseq
        %v1503 = vshrl.u32 %v1502, 7
        %1505 = vset.pattern.permute.xlu0 %v1503
        %1506 = vperm.xlu0 %1505, %v1501
        %v1507 = vpop.permute.xlu0 %1506
        %v1508 = vlaneseq
        %v1509 = vshrl.u32 %v1508, 7
        %v1510 = vadd.s32 %v1509, 8
        %1511 = vset.pattern.permute.xlu0 %v1510
        %1512 = vperm.xlu0 %1511, %v1501
        %v1513 = vpop.permute.xlu0 %1512
        %v1514 = vperm.slane %v218, 6
        %v1515 = vlaneseq
        %v1516 = vshrl.u32 %v1515, 7
        %1518 = vset.pattern.permute.xlu0 %v1516
        %1519 = vperm.xlu0 %1518, %v1514
        %v1520 = vpop.permute.xlu0 %1519
        %v1521 = vlaneseq
        %v1522 = vshrl.u32 %v1521, 7
        %v1523 = vadd.s32 %v1522, 8
        %1524 = vset.pattern.permute.xlu0 %v1523
        %1525 = vperm.xlu0 %1524, %v1514
        %v1526 = vpop.permute.xlu0 %1525
        %v1527 = vperm.slane %v218, 7
        %v1528 = vlaneseq
        %v1529 = vshrl.u32 %v1528, 7
        %1531 = vset.pattern.permute.xlu0 %v1529
        %1532 = vperm.xlu0 %1531, %v1527
        %v1533 = vpop.permute.xlu0 %1532
        %v1534 = vlaneseq
        %v1535 = vshrl.u32 %v1534, 7
        %v1536 = vadd.s32 %v1535, 8
        %1537 = vset.pattern.permute.xlu0 %v1536
        %1538 = vperm.xlu0 %1537, %v1527
        %v1539 = vpop.permute.xlu0 %1538
        %v1540 = vperm.slane %v223, 0
        %v1541 = vlaneseq
        %v1542 = vshrl.u32 %v1541, 7
        %1544 = vset.pattern.permute.xlu0 %v1542
        %1545 = vperm.xlu0 %1544, %v1540
        %v1546 = vpop.permute.xlu0 %1545
        %v1547 = vlaneseq
        %v1548 = vshrl.u32 %v1547, 7
        %v1549 = vadd.s32 %v1548, 8
        %1550 = vset.pattern.permute.xlu0 %v1549
        %1551 = vperm.xlu0 %1550, %v1540
        %v1552 = vpop.permute.xlu0 %1551
        %v1553 = vperm.slane %v223, 1
        %v1554 = vlaneseq
        %v1555 = vshrl.u32 %v1554, 7
        %1557 = vset.pattern.permute.xlu0 %v1555
        %1558 = vperm.xlu0 %1557, %v1553
        %v1559 = vpop.permute.xlu0 %1558
        %v1560 = vlaneseq
        %v1561 = vshrl.u32 %v1560, 7
        %v1562 = vadd.s32 %v1561, 8
        %1563 = vset.pattern.permute.xlu0 %v1562
        %1564 = vperm.xlu0 %1563, %v1553
        %v1565 = vpop.permute.xlu0 %1564
        %v1566 = vperm.slane %v223, 2
        %v1567 = vlaneseq
        %v1568 = vshrl.u32 %v1567, 7
        %1570 = vset.pattern.permute.xlu0 %v1568
        %1571 = vperm.xlu0 %1570, %v1566
        %v1572 = vpop.permute.xlu0 %1571
        %v1573 = vlaneseq
        %v1574 = vshrl.u32 %v1573, 7
        %v1575 = vadd.s32 %v1574, 8
        %1576 = vset.pattern.permute.xlu0 %v1575
        %1577 = vperm.xlu0 %1576, %v1566
        %v1578 = vpop.permute.xlu0 %1577
        %v1579 = vperm.slane %v223, 3
        %v1580 = vlaneseq
        %v1581 = vshrl.u32 %v1580, 7
        %1583 = vset.pattern.permute.xlu0 %v1581
        %1584 = vperm.xlu0 %1583, %v1579
        %v1585 = vpop.permute.xlu0 %1584
        %v1586 = vlaneseq
        %v1587 = vshrl.u32 %v1586, 7
        %v1588 = vadd.s32 %v1587, 8
        %1589 = vset.pattern.permute.xlu0 %v1588
        %1590 = vperm.xlu0 %1589, %v1579
        %v1591 = vpop.permute.xlu0 %1590
        %v1592 = vperm.slane %v223, 4
        %v1593 = vlaneseq
        %v1594 = vshrl.u32 %v1593, 7
        %1596 = vset.pattern.permute.xlu0 %v1594
        %1597 = vperm.xlu0 %1596, %v1592
        %v1598 = vpop.permute.xlu0 %1597
        %v1599 = vlaneseq
        %v1600 = vshrl.u32 %v1599, 7
        %v1601 = vadd.s32 %v1600, 8
        %1602 = vset.pattern.permute.xlu0 %v1601
        %1603 = vperm.xlu0 %1602, %v1592
        %v1604 = vpop.permute.xlu0 %1603
        %v1605 = vperm.slane %v223, 5
        %v1606 = vlaneseq
        %v1607 = vshrl.u32 %v1606, 7
        %1609 = vset.pattern.permute.xlu0 %v1607
        %1610 = vperm.xlu0 %1609, %v1605
        %v1611 = vpop.permute.xlu0 %1610
        %v1612 = vlaneseq
        %v1613 = vshrl.u32 %v1612, 7
        %v1614 = vadd.s32 %v1613, 8
        %1615 = vset.pattern.permute.xlu0 %v1614
        %1616 = vperm.xlu0 %1615, %v1605
        %v1617 = vpop.permute.xlu0 %1616
        %v1618 = vperm.slane %v223, 6
        %v1619 = vlaneseq
        %v1620 = vshrl.u32 %v1619, 7
        %1622 = vset.pattern.permute.xlu0 %v1620
        %1623 = vperm.xlu0 %1622, %v1618
        %v1624 = vpop.permute.xlu0 %1623
        %v1625 = vlaneseq
        %v1626 = vshrl.u32 %v1625, 7
        %v1627 = vadd.s32 %v1626, 8
        %1628 = vset.pattern.permute.xlu0 %v1627
        %1629 = vperm.xlu0 %1628, %v1618
        %v1630 = vpop.permute.xlu0 %1629
        %v1631 = vperm.slane %v223, 7
        %v1632 = vlaneseq
        %v1633 = vshrl.u32 %v1632, 7
        %1635 = vset.pattern.permute.xlu0 %v1633
        %1636 = vperm.xlu0 %1635, %v1631
        %v1637 = vpop.permute.xlu0 %1636
        %v1638 = vlaneseq
        %v1639 = vshrl.u32 %v1638, 7
        %v1640 = vadd.s32 %v1639, 8
        %1641 = vset.pattern.permute.xlu0 %v1640
        %1642 = vperm.xlu0 %1641, %v1631
        %v1643 = vpop.permute.xlu0 %1642
        %v1644 = vperm.slane %v224, 0
        %v1645 = vlaneseq
        %v1646 = vshrl.u32 %v1645, 7
        %1648 = vset.pattern.permute.xlu0 %v1646
        %1649 = vperm.xlu0 %1648, %v1644
        %v1650 = vpop.permute.xlu0 %1649
        %v1651 = vlaneseq
        %v1652 = vshrl.u32 %v1651, 7
        %v1653 = vadd.s32 %v1652, 8
        %1654 = vset.pattern.permute.xlu0 %v1653
        %1655 = vperm.xlu0 %1654, %v1644
        %v1656 = vpop.permute.xlu0 %1655
        %v1657 = vperm.slane %v224, 1
        %v1658 = vlaneseq
        %v1659 = vshrl.u32 %v1658, 7
        %1661 = vset.pattern.permute.xlu0 %v1659
        %1662 = vperm.xlu0 %1661, %v1657
        %v1663 = vpop.permute.xlu0 %1662
        %v1664 = vlaneseq
        %v1665 = vshrl.u32 %v1664, 7
        %v1666 = vadd.s32 %v1665, 8
        %1667 = vset.pattern.permute.xlu0 %v1666
        %1668 = vperm.xlu0 %1667, %v1657
        %v1669 = vpop.permute.xlu0 %1668
        %v1670 = vperm.slane %v224, 2
        %v1671 = vlaneseq
        %v1672 = vshrl.u32 %v1671, 7
        %1674 = vset.pattern.permute.xlu0 %v1672
        %1675 = vperm.xlu0 %1674, %v1670
        %v1676 = vpop.permute.xlu0 %1675
        %v1677 = vlaneseq
        %v1678 = vshrl.u32 %v1677, 7
        %v1679 = vadd.s32 %v1678, 8
        %1680 = vset.pattern.permute.xlu0 %v1679
        %1681 = vperm.xlu0 %1680, %v1670
        %v1682 = vpop.permute.xlu0 %1681
        %v1683 = vperm.slane %v224, 3
        %v1684 = vlaneseq
        %v1685 = vshrl.u32 %v1684, 7
        %1687 = vset.pattern.permute.xlu0 %v1685
        %1688 = vperm.xlu0 %1687, %v1683
        %v1689 = vpop.permute.xlu0 %1688
        %v1690 = vlaneseq
        %v1691 = vshrl.u32 %v1690, 7
        %v1692 = vadd.s32 %v1691, 8
        %1693 = vset.pattern.permute.xlu0 %v1692
        %1694 = vperm.xlu0 %1693, %v1683
        %v1695 = vpop.permute.xlu0 %1694
        %v1696 = vperm.slane %v224, 4
        %v1697 = vlaneseq
        %v1698 = vshrl.u32 %v1697, 7
        %1700 = vset.pattern.permute.xlu0 %v1698
        %1701 = vperm.xlu0 %1700, %v1696
        %v1702 = vpop.permute.xlu0 %1701
        %v1703 = vlaneseq
        %v1704 = vshrl.u32 %v1703, 7
        %v1705 = vadd.s32 %v1704, 8
        %1706 = vset.pattern.permute.xlu0 %v1705
        %1707 = vperm.xlu0 %1706, %v1696
        %v1708 = vpop.permute.xlu0 %1707
        %v1709 = vperm.slane %v224, 5
        %v1710 = vlaneseq
        %v1711 = vshrl.u32 %v1710, 7
        %1713 = vset.pattern.permute.xlu0 %v1711
        %1714 = vperm.xlu0 %1713, %v1709
        %v1715 = vpop.permute.xlu0 %1714
        %v1716 = vlaneseq
        %v1717 = vshrl.u32 %v1716, 7
        %v1718 = vadd.s32 %v1717, 8
        %1719 = vset.pattern.permute.xlu0 %v1718
        %1720 = vperm.xlu0 %1719, %v1709
        %v1721 = vpop.permute.xlu0 %1720
        %v1722 = vperm.slane %v224, 6
        %v1723 = vlaneseq
        %v1724 = vshrl.u32 %v1723, 7
        %1726 = vset.pattern.permute.xlu0 %v1724
        %1727 = vperm.xlu0 %1726, %v1722
        %v1728 = vpop.permute.xlu0 %1727
        %v1729 = vlaneseq
        %v1730 = vshrl.u32 %v1729, 7
        %v1731 = vadd.s32 %v1730, 8
        %1732 = vset.pattern.permute.xlu0 %v1731
        %1733 = vperm.xlu0 %1732, %v1722
        %v1734 = vpop.permute.xlu0 %1733
        %v1735 = vperm.slane %v224, 7
        %v1736 = vlaneseq
        %v1737 = vshrl.u32 %v1736, 7
        %1739 = vset.pattern.permute.xlu0 %v1737
        %1740 = vperm.xlu0 %1739, %v1735
        %v1741 = vpop.permute.xlu0 %1740
        %v1742 = vlaneseq
        %v1743 = vshrl.u32 %v1742, 7
        %v1744 = vadd.s32 %v1743, 8
        %1745 = vset.pattern.permute.xlu0 %v1744
        %1746 = vperm.xlu0 %1745, %v1735
        %v1747 = vpop.permute.xlu0 %1746
        %v1748 = vperm.slane %v225, 0
        %v1749 = vlaneseq
        %v1750 = vshrl.u32 %v1749, 7
        %1752 = vset.pattern.permute.xlu0 %v1750
        %1753 = vperm.xlu0 %1752, %v1748
        %v1754 = vpop.permute.xlu0 %1753
        %v1755 = vlaneseq
        %v1756 = vshrl.u32 %v1755, 7
        %v1757 = vadd.s32 %v1756, 8
        %1758 = vset.pattern.permute.xlu0 %v1757
        %1759 = vperm.xlu0 %1758, %v1748
        %v1760 = vpop.permute.xlu0 %1759
        %v1761 = vperm.slane %v225, 1
        %v1762 = vlaneseq
        %v1763 = vshrl.u32 %v1762, 7
        %1765 = vset.pattern.permute.xlu0 %v1763
        %1766 = vperm.xlu0 %1765, %v1761
        %v1767 = vpop.permute.xlu0 %1766
        %v1768 = vlaneseq
        %v1769 = vshrl.u32 %v1768, 7
        %v1770 = vadd.s32 %v1769, 8
        %1771 = vset.pattern.permute.xlu0 %v1770
        %1772 = vperm.xlu0 %1771, %v1761
        %v1773 = vpop.permute.xlu0 %1772
        %v1774 = vperm.slane %v225, 2
        %v1775 = vlaneseq
        %v1776 = vshrl.u32 %v1775, 7
        %1778 = vset.pattern.permute.xlu0 %v1776
        %1779 = vperm.xlu0 %1778, %v1774
        %v1780 = vpop.permute.xlu0 %1779
        %v1781 = vlaneseq
        %v1782 = vshrl.u32 %v1781, 7
        %v1783 = vadd.s32 %v1782, 8
        %1784 = vset.pattern.permute.xlu0 %v1783
        %1785 = vperm.xlu0 %1784, %v1774
        %v1786 = vpop.permute.xlu0 %1785
        %v1787 = vperm.slane %v225, 3
        %v1788 = vlaneseq
        %v1789 = vshrl.u32 %v1788, 7
        %1791 = vset.pattern.permute.xlu0 %v1789
        %1792 = vperm.xlu0 %1791, %v1787
        %v1793 = vpop.permute.xlu0 %1792
        %v1794 = vlaneseq
        %v1795 = vshrl.u32 %v1794, 7
        %v1796 = vadd.s32 %v1795, 8
        %1797 = vset.pattern.permute.xlu0 %v1796
        %1798 = vperm.xlu0 %1797, %v1787
        %v1799 = vpop.permute.xlu0 %1798
        %v1800 = vperm.slane %v225, 4
        %v1801 = vlaneseq
        %v1802 = vshrl.u32 %v1801, 7
        %1804 = vset.pattern.permute.xlu0 %v1802
        %1805 = vperm.xlu0 %1804, %v1800
        %v1806 = vpop.permute.xlu0 %1805
        %v1807 = vlaneseq
        %v1808 = vshrl.u32 %v1807, 7
        %v1809 = vadd.s32 %v1808, 8
        %1810 = vset.pattern.permute.xlu0 %v1809
        %1811 = vperm.xlu0 %1810, %v1800
        %v1812 = vpop.permute.xlu0 %1811
        %v1813 = vperm.slane %v225, 5
        %v1814 = vlaneseq
        %v1815 = vshrl.u32 %v1814, 7
        %1817 = vset.pattern.permute.xlu0 %v1815
        %1818 = vperm.xlu0 %1817, %v1813
        %v1819 = vpop.permute.xlu0 %1818
        %v1820 = vlaneseq
        %v1821 = vshrl.u32 %v1820, 7
        %v1822 = vadd.s32 %v1821, 8
        %1823 = vset.pattern.permute.xlu0 %v1822
        %1824 = vperm.xlu0 %1823, %v1813
        %v1825 = vpop.permute.xlu0 %1824
        %v1826 = vperm.slane %v225, 6
        %v1827 = vlaneseq
        %v1828 = vshrl.u32 %v1827, 7
        %1830 = vset.pattern.permute.xlu0 %v1828
        %1831 = vperm.xlu0 %1830, %v1826
        %v1832 = vpop.permute.xlu0 %1831
        %v1833 = vlaneseq
        %v1834 = vshrl.u32 %v1833, 7
        %v1835 = vadd.s32 %v1834, 8
        %1836 = vset.pattern.permute.xlu0 %v1835
        %1837 = vperm.xlu0 %1836, %v1826
        %v1838 = vpop.permute.xlu0 %1837
        %v1839 = vperm.slane %v225, 7
        %v1840 = vlaneseq
        %v1841 = vshrl.u32 %v1840, 7
        %1843 = vset.pattern.permute.xlu0 %v1841
        %1844 = vperm.xlu0 %1843, %v1839
        %v1845 = vpop.permute.xlu0 %1844
        %v1846 = vlaneseq
        %v1847 = vshrl.u32 %v1846, 7
        %v1848 = vadd.s32 %v1847, 8
        %1849 = vset.pattern.permute.xlu0 %v1848
        %1850 = vperm.xlu0 %1849, %v1839
        %v1851 = vpop.permute.xlu0 %1850
        %v1852 = vperm.slane %v226, 0
        %v1853 = vlaneseq
        %v1854 = vshrl.u32 %v1853, 7
        %1856 = vset.pattern.permute.xlu0 %v1854
        %1857 = vperm.xlu0 %1856, %v1852
        %v1858 = vpop.permute.xlu0 %1857
        %v1859 = vlaneseq
        %v1860 = vshrl.u32 %v1859, 7
        %v1861 = vadd.s32 %v1860, 8
        %1862 = vset.pattern.permute.xlu0 %v1861
        %1863 = vperm.xlu0 %1862, %v1852
        %v1864 = vpop.permute.xlu0 %1863
        %v1865 = vperm.slane %v226, 1
        %v1866 = vlaneseq
        %v1867 = vshrl.u32 %v1866, 7
        %1869 = vset.pattern.permute.xlu0 %v1867
        %1870 = vperm.xlu0 %1869, %v1865
        %v1871 = vpop.permute.xlu0 %1870
        %v1872 = vlaneseq
        %v1873 = vshrl.u32 %v1872, 7
        %v1874 = vadd.s32 %v1873, 8
        %1875 = vset.pattern.permute.xlu0 %v1874
        %1876 = vperm.xlu0 %1875, %v1865
        %v1877 = vpop.permute.xlu0 %1876
        %v1878 = vperm.slane %v226, 2
        %v1879 = vlaneseq
        %v1880 = vshrl.u32 %v1879, 7
        %1882 = vset.pattern.permute.xlu0 %v1880
        %1883 = vperm.xlu0 %1882, %v1878
        %v1884 = vpop.permute.xlu0 %1883
        %v1885 = vlaneseq
        %v1886 = vshrl.u32 %v1885, 7
        %v1887 = vadd.s32 %v1886, 8
        %1888 = vset.pattern.permute.xlu0 %v1887
        %1889 = vperm.xlu0 %1888, %v1878
        %v1890 = vpop.permute.xlu0 %1889
        %v1891 = vperm.slane %v226, 3
        %v1892 = vlaneseq
        %v1893 = vshrl.u32 %v1892, 7
        %1895 = vset.pattern.permute.xlu0 %v1893
        %1896 = vperm.xlu0 %1895, %v1891
        %v1897 = vpop.permute.xlu0 %1896
        %v1898 = vlaneseq
        %v1899 = vshrl.u32 %v1898, 7
        %v1900 = vadd.s32 %v1899, 8
        %1901 = vset.pattern.permute.xlu0 %v1900
        %1902 = vperm.xlu0 %1901, %v1891
        %v1903 = vpop.permute.xlu0 %1902
        %v1904 = vperm.slane %v226, 4
        %v1905 = vlaneseq
        %v1906 = vshrl.u32 %v1905, 7
        %1908 = vset.pattern.permute.xlu0 %v1906
        %1909 = vperm.xlu0 %1908, %v1904
        %v1910 = vpop.permute.xlu0 %1909
        %v1911 = vlaneseq
        %v1912 = vshrl.u32 %v1911, 7
        %v1913 = vadd.s32 %v1912, 8
        %1914 = vset.pattern.permute.xlu0 %v1913
        %1915 = vperm.xlu0 %1914, %v1904
        %v1916 = vpop.permute.xlu0 %1915
        %v1917 = vperm.slane %v226, 5
        %v1918 = vlaneseq
        %v1919 = vshrl.u32 %v1918, 7
        %1921 = vset.pattern.permute.xlu0 %v1919
        %1922 = vperm.xlu0 %1921, %v1917
        %v1923 = vpop.permute.xlu0 %1922
        %v1924 = vlaneseq
        %v1925 = vshrl.u32 %v1924, 7
        %v1926 = vadd.s32 %v1925, 8
        %1927 = vset.pattern.permute.xlu0 %v1926
        %1928 = vperm.xlu0 %1927, %v1917
        %v1929 = vpop.permute.xlu0 %1928
        %v1930 = vperm.slane %v226, 6
        %v1931 = vlaneseq
        %v1932 = vshrl.u32 %v1931, 7
        %1934 = vset.pattern.permute.xlu0 %v1932
        %1935 = vperm.xlu0 %1934, %v1930
        %v1936 = vpop.permute.xlu0 %1935
        %v1937 = vlaneseq
        %v1938 = vshrl.u32 %v1937, 7
        %v1939 = vadd.s32 %v1938, 8
        %1940 = vset.pattern.permute.xlu0 %v1939
        %1941 = vperm.xlu0 %1940, %v1930
        %v1942 = vpop.permute.xlu0 %1941
        %v1943 = vperm.slane %v226, 7
        %v1944 = vlaneseq
        %v1945 = vshrl.u32 %v1944, 7
        %1947 = vset.pattern.permute.xlu0 %v1945
        %1948 = vperm.xlu0 %1947, %v1943
        %v1949 = vpop.permute.xlu0 %1948
        %v1950 = vlaneseq
        %v1951 = vshrl.u32 %v1950, 7
        %v1952 = vadd.s32 %v1951, 8
        %1953 = vset.pattern.permute.xlu0 %v1952
        %1954 = vperm.xlu0 %1953, %v1943
        %v1955 = vpop.permute.xlu0 %1954
        %v1956 = vsel %vm1059, %v1130, %v1546
        %v1957 = vsel %vm1059, %v1136, %v1552
        %v1958 = vsel %vm1059, %v1143, %v1559
        %v1959 = vsel %vm1059, %v1149, %v1565
        %v1960 = vsel %vm1059, %v1156, %v1572
        %v1961 = vsel %vm1059, %v1162, %v1578
        %v1962 = vsel %vm1059, %v1169, %v1585
        %v1963 = vsel %vm1059, %v1175, %v1591
        %v1964 = vsel %vm1059, %v1182, %v1598
        %v1965 = vsel %vm1059, %v1188, %v1604
        %v1966 = vsel %vm1059, %v1195, %v1611
        %v1967 = vsel %vm1059, %v1201, %v1617
        %v1968 = vsel %vm1059, %v1208, %v1624
        %v1969 = vsel %vm1059, %v1214, %v1630
        %v1970 = vsel %vm1059, %v1221, %v1637
        %v1971 = vsel %vm1059, %v1227, %v1643
        %v1972 = vsel %vm1059, %v1234, %v1650
        %v1973 = vsel %vm1059, %v1240, %v1656
        %v1974 = vsel %vm1059, %v1247, %v1663
        %v1975 = vsel %vm1059, %v1253, %v1669
        %v1976 = vsel %vm1059, %v1260, %v1676
        %v1977 = vsel %vm1059, %v1266, %v1682
        %v1978 = vsel %vm1059, %v1273, %v1689
        %v1979 = vsel %vm1059, %v1279, %v1695
        %v1980 = vsel %vm1059, %v1286, %v1702
        %v1981 = vsel %vm1059, %v1292, %v1708
        %v1982 = vsel %vm1059, %v1299, %v1715
        %v1983 = vsel %vm1059, %v1305, %v1721
        %v1984 = vsel %vm1059, %v1312, %v1728
        %v1985 = vsel %vm1059, %v1318, %v1734
        %v1986 = vsel %vm1059, %v1325, %v1741
        %v1987 = vsel %vm1059, %v1331, %v1747
        %v1988 = vsel %vm1059, %v1338, %v1754
        %v1989 = vsel %vm1059, %v1344, %v1760
        %v1990 = vsel %vm1059, %v1351, %v1767
        %v1991 = vsel %vm1059, %v1357, %v1773
        %v1992 = vsel %vm1059, %v1364, %v1780
        %v1993 = vsel %vm1059, %v1370, %v1786
        %v1994 = vsel %vm1059, %v1377, %v1793
        %v1995 = vsel %vm1059, %v1383, %v1799
        %v1996 = vsel %vm1059, %v1390, %v1806
        %v1997 = vsel %vm1059, %v1396, %v1812
        %v1998 = vsel %vm1059, %v1403, %v1819
        %v1999 = vsel %vm1059, %v1409, %v1825
        %v2000 = vsel %vm1059, %v1416, %v1832
        %v2001 = vsel %vm1059, %v1422, %v1838
        %v2002 = vsel %vm1059, %v1429, %v1845
        %v2003 = vsel %vm1059, %v1435, %v1851
        %v2004 = vsel %vm1059, %v1442, %v1858
        %v2005 = vsel %vm1059, %v1448, %v1864
        %v2006 = vsel %vm1059, %v1455, %v1871
        %v2007 = vsel %vm1059, %v1461, %v1877
        %v2008 = vsel %vm1059, %v1468, %v1884
        %v2009 = vsel %vm1059, %v1474, %v1890
        %v2010 = vsel %vm1059, %v1481, %v1897
        %v2011 = vsel %vm1059, %v1487, %v1903
        %v2012 = vsel %vm1059, %v1494, %v1910
        %v2013 = vsel %vm1059, %v1500, %v1916
        %v2014 = vsel %vm1059, %v1507, %v1923
        %v2015 = vsel %vm1059, %v1513, %v1929
        %v2016 = vsel %vm1059, %v1520, %v1936
        %v2017 = vsel %vm1059, %v1526, %v1942
        %v2018 = vsel %vm1059, %v1533, %v1949
        %v2019 = vsel %vm1059, %v1539, %v1955
        %v2020 = vrot.slane %v1060, 4
        %vm2021 = vcmask 1047556
        %v2022 = vsel %vm2021, 0.0, %v2020
        %v2024 = vunpack.c.l.s4 1983009808
        %v2025 = vunpack.c.0.s8 %v2024
        %v2026 = vperm.slane %v1060, %v2025
        %v2028 = vunpack.c.l.s4 1983009808
        %v2029 = vunpack.c.0.s8 %v2028
        %v2030 = vperm.slane %v2022, %v2029
        %v2031 = vrot.slane %v2026, 4
        %v2032 = vsel %vm2021, 0.0, %v2031
        %v2034 = vunpack.c.l.s4 1934713408
        %v2035 = vunpack.c.0.s8 %v2034
        %v2036 = vperm.slane %v2026, %v2035
        %v2038 = vunpack.c.l.s4 1934713408
        %v2039 = vunpack.c.0.s8 %v2038
        %v2040 = vperm.slane %v2032, %v2039
        %v2041 = vrot.slane %v2030, 4
        %v2042 = vsel %vm2021, 0.0, %v2041
        %v2044 = vunpack.c.l.s4 1934713408
        %v2045 = vunpack.c.0.s8 %v2044
        %v2046 = vperm.slane %v2030, %v2045
        %v2048 = vunpack.c.l.s4 1934713408
        %v2049 = vunpack.c.0.s8 %v2048
        %v2050 = vperm.slane %v2042, %v2049
        %v2051 = vrot.slane %v2036, 4
        %v2052 = vsel %vm2021, 0.0, %v2051
        %v2053 = vrot.slane %v2040, 4
        %v2054 = vsel %vm2021, 0.0, %v2053
        %v2055 = vrot.slane %v2046, 4
        %v2056 = vsel %vm2021, 0.0, %v2055
        %v2057 = vrot.slane %v2050, 4
        %v2058 = vsel %vm2021, 0.0, %v2057
        %v2059 = vrot.slane %v1061, 4
        %v2060 = vsel %vm2021, 0.0, %v2059
        %v2062 = vunpack.c.l.s4 1983009808
        %v2063 = vunpack.c.0.s8 %v2062
        %v2064 = vperm.slane %v1061, %v2063
        %v2066 = vunpack.c.l.s4 1983009808
        %v2067 = vunpack.c.0.s8 %v2066
        %v2068 = vperm.slane %v2060, %v2067
        %v2069 = vrot.slane %v2064, 4
        %v2070 = vsel %vm2021, 0.0, %v2069
        %v2072 = vunpack.c.l.s4 1934713408
        %v2073 = vunpack.c.0.s8 %v2072
        %v2074 = vperm.slane %v2064, %v2073
        %v2076 = vunpack.c.l.s4 1934713408
        %v2077 = vunpack.c.0.s8 %v2076
        %v2078 = vperm.slane %v2070, %v2077
        %v2079 = vrot.slane %v2068, 4
        %v2080 = vsel %vm2021, 0.0, %v2079
        %v2082 = vunpack.c.l.s4 1934713408
        %v2083 = vunpack.c.0.s8 %v2082
        %v2084 = vperm.slane %v2068, %v2083
        %v2086 = vunpack.c.l.s4 1934713408
        %v2087 = vunpack.c.0.s8 %v2086
        %v2088 = vperm.slane %v2080, %v2087
        %v2089 = vrot.slane %v2074, 4
        %v2090 = vsel %vm2021, 0.0, %v2089
        %v2091 = vrot.slane %v2078, 4
        %v2092 = vsel %vm2021, 0.0, %v2091
        %v2093 = vrot.slane %v2084, 4
        %v2094 = vsel %vm2021, 0.0, %v2093
        %v2095 = vrot.slane %v2088, 4
        %v2096 = vsel %vm2021, 0.0, %v2095
        %v2097 = vrot.slane %v1062, 4
        %v2098 = vsel %vm2021, 0.0, %v2097
        %v2100 = vunpack.c.l.s4 1983009808
        %v2101 = vunpack.c.0.s8 %v2100
        %v2102 = vperm.slane %v1062, %v2101
        %v2104 = vunpack.c.l.s4 1983009808
        %v2105 = vunpack.c.0.s8 %v2104
        %v2106 = vperm.slane %v2098, %v2105
        %v2107 = vrot.slane %v2102, 4
        %v2108 = vsel %vm2021, 0.0, %v2107
        %v2110 = vunpack.c.l.s4 1934713408
        %v2111 = vunpack.c.0.s8 %v2110
        %v2112 = vperm.slane %v2102, %v2111
        %v2114 = vunpack.c.l.s4 1934713408
        %v2115 = vunpack.c.0.s8 %v2114
        %v2116 = vperm.slane %v2108, %v2115
        %v2117 = vrot.slane %v2106, 4
        %v2118 = vsel %vm2021, 0.0, %v2117
        %v2120 = vunpack.c.l.s4 1934713408
        %v2121 = vunpack.c.0.s8 %v2120
        %v2122 = vperm.slane %v2106, %v2121
        %v2124 = vunpack.c.l.s4 1934713408
        %v2125 = vunpack.c.0.s8 %v2124
        %v2126 = vperm.slane %v2118, %v2125
        %v2127 = vrot.slane %v2112, 4
        %v2128 = vsel %vm2021, 0.0, %v2127
        %v2129 = vrot.slane %v2116, 4
        %v2130 = vsel %vm2021, 0.0, %v2129
        %v2131 = vrot.slane %v2122, 4
        %v2132 = vsel %vm2021, 0.0, %v2131
        %v2133 = vrot.slane %v2126, 4
        %v2134 = vsel %vm2021, 0.0, %v2133
        %v2135 = vrot.slane %v1063, 4
        %v2136 = vsel %vm2021, 0.0, %v2135
        %v2138 = vunpack.c.l.s4 1983009808
        %v2139 = vunpack.c.0.s8 %v2138
        %v2140 = vperm.slane %v1063, %v2139
        %v2142 = vunpack.c.l.s4 1983009808
        %v2143 = vunpack.c.0.s8 %v2142
        %v2144 = vperm.slane %v2136, %v2143
        %v2145 = vrot.slane %v2140, 4
        %v2146 = vsel %vm2021, 0.0, %v2145
        %v2148 = vunpack.c.l.s4 1934713408
        %v2149 = vunpack.c.0.s8 %v2148
        %v2150 = vperm.slane %v2140, %v2149
        %v2152 = vunpack.c.l.s4 1934713408
        %v2153 = vunpack.c.0.s8 %v2152
        %v2154 = vperm.slane %v2146, %v2153
        %v2155 = vrot.slane %v2144, 4
        %v2156 = vsel %vm2021, 0.0, %v2155
        %v2158 = vunpack.c.l.s4 1934713408
        %v2159 = vunpack.c.0.s8 %v2158
        %v2160 = vperm.slane %v2144, %v2159
        %v2162 = vunpack.c.l.s4 1934713408
        %v2163 = vunpack.c.0.s8 %v2162
        %v2164 = vperm.slane %v2156, %v2163
        %v2165 = vrot.slane %v2150, 4
        %v2166 = vsel %vm2021, 0.0, %v2165
        %v2167 = vrot.slane %v2154, 4
        %v2168 = vsel %vm2021, 0.0, %v2167
        %v2169 = vrot.slane %v2160, 4
        %v2170 = vsel %vm2021, 0.0, %v2169
        %v2171 = vrot.slane %v2164, 4
        %v2172 = vsel %vm2021, 0.0, %v2171
        %v2173 = vrot.slane %v1064, 4
        %v2174 = vsel %vm2021, 0.0, %v2173
        %v2176 = vunpack.c.l.s4 1983009808
        %v2177 = vunpack.c.0.s8 %v2176
        %v2178 = vperm.slane %v1064, %v2177
        %v2180 = vunpack.c.l.s4 1983009808
        %v2181 = vunpack.c.0.s8 %v2180
        %v2182 = vperm.slane %v2174, %v2181
        %v2183 = vrot.slane %v2178, 4
        %v2184 = vsel %vm2021, 0.0, %v2183
        %v2186 = vunpack.c.l.s4 1934713408
        %v2187 = vunpack.c.0.s8 %v2186
        %v2188 = vperm.slane %v2178, %v2187
        %v2190 = vunpack.c.l.s4 1934713408
        %v2191 = vunpack.c.0.s8 %v2190
        %v2192 = vperm.slane %v2184, %v2191
        %v2193 = vrot.slane %v2182, 4
        %v2194 = vsel %vm2021, 0.0, %v2193
        %v2196 = vunpack.c.l.s4 1934713408
        %v2197 = vunpack.c.0.s8 %v2196
        %v2198 = vperm.slane %v2182, %v2197
        %v2200 = vunpack.c.l.s4 1934713408
        %v2201 = vunpack.c.0.s8 %v2200
        %v2202 = vperm.slane %v2194, %v2201
        %v2203 = vrot.slane %v2188, 4
        %v2204 = vsel %vm2021, 0.0, %v2203
        %v2205 = vrot.slane %v2192, 4
        %v2206 = vsel %vm2021, 0.0, %v2205
        %v2207 = vrot.slane %v2198, 4
        %v2208 = vsel %vm2021, 0.0, %v2207
        %v2209 = vrot.slane %v2202, 4
        %v2210 = vsel %vm2021, 0.0, %v2209
        %v2211 = vrot.slane %v1065, 4
        %v2212 = vsel %vm2021, 0.0, %v2211
        %v2214 = vunpack.c.l.s4 1983009808
        %v2215 = vunpack.c.0.s8 %v2214
        %v2216 = vperm.slane %v1065, %v2215
        %v2218 = vunpack.c.l.s4 1983009808
        %v2219 = vunpack.c.0.s8 %v2218
        %v2220 = vperm.slane %v2212, %v2219
        %v2221 = vrot.slane %v2216, 4
        %v2222 = vsel %vm2021, 0.0, %v2221
        %v2224 = vunpack.c.l.s4 1934713408
        %v2225 = vunpack.c.0.s8 %v2224
        %v2226 = vperm.slane %v2216, %v2225
        %v2228 = vunpack.c.l.s4 1934713408
        %v2229 = vunpack.c.0.s8 %v2228
        %v2230 = vperm.slane %v2222, %v2229
        %v2231 = vrot.slane %v2220, 4
        %v2232 = vsel %vm2021, 0.0, %v2231
        %v2234 = vunpack.c.l.s4 1934713408
        %v2235 = vunpack.c.0.s8 %v2234
        %v2236 = vperm.slane %v2220, %v2235
        %v2238 = vunpack.c.l.s4 1934713408
        %v2239 = vunpack.c.0.s8 %v2238
        %v2240 = vperm.slane %v2232, %v2239
        %v2241 = vrot.slane %v2226, 4
        %v2242 = vsel %vm2021, 0.0, %v2241
        %v2243 = vrot.slane %v2230, 4
        %v2244 = vsel %vm2021, 0.0, %v2243
        %v2245 = vrot.slane %v2236, 4
        %v2246 = vsel %vm2021, 0.0, %v2245
        %v2247 = vrot.slane %v2240, 4
        %v2248 = vsel %vm2021, 0.0, %v2247
        %v2249 = vrot.slane %v1066, 4
        %v2250 = vsel %vm2021, 0.0, %v2249
        %v2252 = vunpack.c.l.s4 1983009808
        %v2253 = vunpack.c.0.s8 %v2252
        %v2254 = vperm.slane %v1066, %v2253
        %v2256 = vunpack.c.l.s4 1983009808
        %v2257 = vunpack.c.0.s8 %v2256
        %v2258 = vperm.slane %v2250, %v2257
        %v2259 = vrot.slane %v2254, 4
        %v2260 = vsel %vm2021, 0.0, %v2259
        %v2262 = vunpack.c.l.s4 1934713408
        %v2263 = vunpack.c.0.s8 %v2262
        %v2264 = vperm.slane %v2254, %v2263
        %v2266 = vunpack.c.l.s4 1934713408
        %v2267 = vunpack.c.0.s8 %v2266
        %v2268 = vperm.slane %v2260, %v2267
        %v2269 = vrot.slane %v2258, 4
        %v2270 = vsel %vm2021, 0.0, %v2269
        %v2272 = vunpack.c.l.s4 1934713408
        %v2273 = vunpack.c.0.s8 %v2272
        %v2274 = vperm.slane %v2258, %v2273
        %v2276 = vunpack.c.l.s4 1934713408
        %v2277 = vunpack.c.0.s8 %v2276
        %v2278 = vperm.slane %v2270, %v2277
        %v2279 = vrot.slane %v2264, 4
        %v2280 = vsel %vm2021, 0.0, %v2279
        %v2281 = vrot.slane %v2268, 4
        %v2282 = vsel %vm2021, 0.0, %v2281
        %v2283 = vrot.slane %v2274, 4
        %v2284 = vsel %vm2021, 0.0, %v2283
        %v2285 = vrot.slane %v2278, 4
        %v2286 = vsel %vm2021, 0.0, %v2285
        %v2287 = vrot.slane %v1067, 4
        %v2288 = vsel %vm2021, 0.0, %v2287
        %v2290 = vunpack.c.l.s4 1983009808
        %v2291 = vunpack.c.0.s8 %v2290
        %v2292 = vperm.slane %v1067, %v2291
        %v2294 = vunpack.c.l.s4 1983009808
        %v2295 = vunpack.c.0.s8 %v2294
        %v2296 = vperm.slane %v2288, %v2295
        %v2297 = vrot.slane %v2292, 4
        %v2298 = vsel %vm2021, 0.0, %v2297
        %v2300 = vunpack.c.l.s4 1934713408
        %v2301 = vunpack.c.0.s8 %v2300
        %v2302 = vperm.slane %v2292, %v2301
        %v2304 = vunpack.c.l.s4 1934713408
        %v2305 = vunpack.c.0.s8 %v2304
        %v2306 = vperm.slane %v2298, %v2305
        %v2307 = vrot.slane %v2296, 4
        %v2308 = vsel %vm2021, 0.0, %v2307
        %v2310 = vunpack.c.l.s4 1934713408
        %v2311 = vunpack.c.0.s8 %v2310
        %v2312 = vperm.slane %v2296, %v2311
        %v2314 = vunpack.c.l.s4 1934713408
        %v2315 = vunpack.c.0.s8 %v2314
        %v2316 = vperm.slane %v2308, %v2315
        %v2317 = vrot.slane %v2302, 4
        %v2318 = vsel %vm2021, 0.0, %v2317
        %v2319 = vrot.slane %v2306, 4
        %v2320 = vsel %vm2021, 0.0, %v2319
        %v2321 = vrot.slane %v2312, 4
        %v2322 = vsel %vm2021, 0.0, %v2321
        %v2323 = vrot.slane %v2316, 4
        %v2324 = vsel %vm2021, 0.0, %v2323
        %v2325 = vrot.slane %v1068, 4
        %v2326 = vsel %vm2021, 0.0, %v2325
        %v2328 = vunpack.c.l.s4 1983009808
        %v2329 = vunpack.c.0.s8 %v2328
        %v2330 = vperm.slane %v1068, %v2329
        %v2332 = vunpack.c.l.s4 1983009808
        %v2333 = vunpack.c.0.s8 %v2332
        %v2334 = vperm.slane %v2326, %v2333
        %v2335 = vrot.slane %v2330, 4
        %v2336 = vsel %vm2021, 0.0, %v2335
        %v2338 = vunpack.c.l.s4 1934713408
        %v2339 = vunpack.c.0.s8 %v2338
        %v2340 = vperm.slane %v2330, %v2339
        %v2342 = vunpack.c.l.s4 1934713408
        %v2343 = vunpack.c.0.s8 %v2342
        %v2344 = vperm.slane %v2336, %v2343
        %v2345 = vrot.slane %v2334, 4
        %v2346 = vsel %vm2021, 0.0, %v2345
        %v2348 = vunpack.c.l.s4 1934713408
        %v2349 = vunpack.c.0.s8 %v2348
        %v2350 = vperm.slane %v2334, %v2349
        %v2352 = vunpack.c.l.s4 1934713408
        %v2353 = vunpack.c.0.s8 %v2352
        %v2354 = vperm.slane %v2346, %v2353
        %v2355 = vrot.slane %v2340, 4
        %v2356 = vsel %vm2021, 0.0, %v2355
        %v2357 = vrot.slane %v2344, 4
        %v2358 = vsel %vm2021, 0.0, %v2357
        %v2359 = vrot.slane %v2350, 4
        %v2360 = vsel %vm2021, 0.0, %v2359
        %v2361 = vrot.slane %v2354, 4
        %v2362 = vsel %vm2021, 0.0, %v2361
        %v2363 = vrot.slane %v1069, 4
        %v2364 = vsel %vm2021, 0.0, %v2363
        %v2366 = vunpack.c.l.s4 1983009808
        %v2367 = vunpack.c.0.s8 %v2366
        %v2368 = vperm.slane %v1069, %v2367
        %v2370 = vunpack.c.l.s4 1983009808
        %v2371 = vunpack.c.0.s8 %v2370
        %v2372 = vperm.slane %v2364, %v2371
        %v2373 = vrot.slane %v2368, 4
        %v2374 = vsel %vm2021, 0.0, %v2373
        %v2376 = vunpack.c.l.s4 1934713408
        %v2377 = vunpack.c.0.s8 %v2376
        %v2378 = vperm.slane %v2368, %v2377
        %v2380 = vunpack.c.l.s4 1934713408
        %v2381 = vunpack.c.0.s8 %v2380
        %v2382 = vperm.slane %v2374, %v2381
        %v2383 = vrot.slane %v2372, 4
        %v2384 = vsel %vm2021, 0.0, %v2383
        %v2386 = vunpack.c.l.s4 1934713408
        %v2387 = vunpack.c.0.s8 %v2386
        %v2388 = vperm.slane %v2372, %v2387
        %v2390 = vunpack.c.l.s4 1934713408
        %v2391 = vunpack.c.0.s8 %v2390
        %v2392 = vperm.slane %v2384, %v2391
        %v2393 = vrot.slane %v2378, 4
        %v2394 = vsel %vm2021, 0.0, %v2393
        %v2395 = vrot.slane %v2382, 4
        %v2396 = vsel %vm2021, 0.0, %v2395
        %v2397 = vrot.slane %v2388, 4
        %v2398 = vsel %vm2021, 0.0, %v2397
        %v2399 = vrot.slane %v2392, 4
        %v2400 = vsel %vm2021, 0.0, %v2399
        %v2401 = vrot.slane %v1070, 4
        %v2402 = vsel %vm2021, 0.0, %v2401
        %v2404 = vunpack.c.l.s4 1983009808
        %v2405 = vunpack.c.0.s8 %v2404
        %v2406 = vperm.slane %v1070, %v2405
        %v2408 = vunpack.c.l.s4 1983009808
        %v2409 = vunpack.c.0.s8 %v2408
        %v2410 = vperm.slane %v2402, %v2409
        %v2411 = vrot.slane %v2406, 4
        %v2412 = vsel %vm2021, 0.0, %v2411
        %v2414 = vunpack.c.l.s4 1934713408
        %v2415 = vunpack.c.0.s8 %v2414
        %v2416 = vperm.slane %v2406, %v2415
        %v2418 = vunpack.c.l.s4 1934713408
        %v2419 = vunpack.c.0.s8 %v2418
        %v2420 = vperm.slane %v2412, %v2419
        %v2421 = vrot.slane %v2410, 4
        %v2422 = vsel %vm2021, 0.0, %v2421
        %v2424 = vunpack.c.l.s4 1934713408
        %v2425 = vunpack.c.0.s8 %v2424
        %v2426 = vperm.slane %v2410, %v2425
        %v2428 = vunpack.c.l.s4 1934713408
        %v2429 = vunpack.c.0.s8 %v2428
        %v2430 = vperm.slane %v2422, %v2429
        %v2431 = vrot.slane %v2416, 4
        %v2432 = vsel %vm2021, 0.0, %v2431
        %v2433 = vrot.slane %v2420, 4
        %v2434 = vsel %vm2021, 0.0, %v2433
        %v2435 = vrot.slane %v2426, 4
        %v2436 = vsel %vm2021, 0.0, %v2435
        %v2437 = vrot.slane %v2430, 4
        %v2438 = vsel %vm2021, 0.0, %v2437
        %v2439 = vrot.slane %v1071, 4
        %v2440 = vsel %vm2021, 0.0, %v2439
        %v2442 = vunpack.c.l.s4 1983009808
        %v2443 = vunpack.c.0.s8 %v2442
        %v2444 = vperm.slane %v1071, %v2443
        %v2446 = vunpack.c.l.s4 1983009808
        %v2447 = vunpack.c.0.s8 %v2446
        %v2448 = vperm.slane %v2440, %v2447
        %v2449 = vrot.slane %v2444, 4
        %v2450 = vsel %vm2021, 0.0, %v2449
        %v2452 = vunpack.c.l.s4 1934713408
        %v2453 = vunpack.c.0.s8 %v2452
        %v2454 = vperm.slane %v2444, %v2453
        %v2456 = vunpack.c.l.s4 1934713408
        %v2457 = vunpack.c.0.s8 %v2456
        %v2458 = vperm.slane %v2450, %v2457
        %v2459 = vrot.slane %v2448, 4
        %v2460 = vsel %vm2021, 0.0, %v2459
        %v2462 = vunpack.c.l.s4 1934713408
        %v2463 = vunpack.c.0.s8 %v2462
        %v2464 = vperm.slane %v2448, %v2463
        %v2466 = vunpack.c.l.s4 1934713408
        %v2467 = vunpack.c.0.s8 %v2466
        %v2468 = vperm.slane %v2460, %v2467
        %v2469 = vrot.slane %v2454, 4
        %v2470 = vsel %vm2021, 0.0, %v2469
        %v2471 = vrot.slane %v2458, 4
        %v2472 = vsel %vm2021, 0.0, %v2471
        %v2473 = vrot.slane %v2464, 4
        %v2474 = vsel %vm2021, 0.0, %v2473
        %v2475 = vrot.slane %v2468, 4
        %v2476 = vsel %vm2021, 0.0, %v2475
        %v2477 = vrot.slane %v1072, 4
        %v2478 = vsel %vm2021, 0.0, %v2477
        %v2480 = vunpack.c.l.s4 1983009808
        %v2481 = vunpack.c.0.s8 %v2480
        %v2482 = vperm.slane %v1072, %v2481
        %v2484 = vunpack.c.l.s4 1983009808
        %v2485 = vunpack.c.0.s8 %v2484
        %v2486 = vperm.slane %v2478, %v2485
        %v2487 = vrot.slane %v2482, 4
        %v2488 = vsel %vm2021, 0.0, %v2487
        %v2490 = vunpack.c.l.s4 1934713408
        %v2491 = vunpack.c.0.s8 %v2490
        %v2492 = vperm.slane %v2482, %v2491
        %v2494 = vunpack.c.l.s4 1934713408
        %v2495 = vunpack.c.0.s8 %v2494
        %v2496 = vperm.slane %v2488, %v2495
        %v2497 = vrot.slane %v2486, 4
        %v2498 = vsel %vm2021, 0.0, %v2497
        %v2500 = vunpack.c.l.s4 1934713408
        %v2501 = vunpack.c.0.s8 %v2500
        %v2502 = vperm.slane %v2486, %v2501
        %v2504 = vunpack.c.l.s4 1934713408
        %v2505 = vunpack.c.0.s8 %v2504
        %v2506 = vperm.slane %v2498, %v2505
        %v2507 = vrot.slane %v2492, 4
        %v2508 = vsel %vm2021, 0.0, %v2507
        %v2509 = vrot.slane %v2496, 4
        %v2510 = vsel %vm2021, 0.0, %v2509
        %v2511 = vrot.slane %v2502, 4
        %v2512 = vsel %vm2021, 0.0, %v2511
        %v2513 = vrot.slane %v2506, 4
        %v2514 = vsel %vm2021, 0.0, %v2513
        %v2515 = vrot.slane %v1073, 4
        %v2516 = vsel %vm2021, 0.0, %v2515
        %v2518 = vunpack.c.l.s4 1983009808
        %v2519 = vunpack.c.0.s8 %v2518
        %v2520 = vperm.slane %v1073, %v2519
        %v2522 = vunpack.c.l.s4 1983009808
        %v2523 = vunpack.c.0.s8 %v2522
        %v2524 = vperm.slane %v2516, %v2523
        %v2525 = vrot.slane %v2520, 4
        %v2526 = vsel %vm2021, 0.0, %v2525
        %v2528 = vunpack.c.l.s4 1934713408
        %v2529 = vunpack.c.0.s8 %v2528
        %v2530 = vperm.slane %v2520, %v2529
        %v2532 = vunpack.c.l.s4 1934713408
        %v2533 = vunpack.c.0.s8 %v2532
        %v2534 = vperm.slane %v2526, %v2533
        %v2535 = vrot.slane %v2524, 4
        %v2536 = vsel %vm2021, 0.0, %v2535
        %v2538 = vunpack.c.l.s4 1934713408
        %v2539 = vunpack.c.0.s8 %v2538
        %v2540 = vperm.slane %v2524, %v2539
        %v2542 = vunpack.c.l.s4 1934713408
        %v2543 = vunpack.c.0.s8 %v2542
        %v2544 = vperm.slane %v2536, %v2543
        %v2545 = vrot.slane %v2530, 4
        %v2546 = vsel %vm2021, 0.0, %v2545
        %v2547 = vrot.slane %v2534, 4
        %v2548 = vsel %vm2021, 0.0, %v2547
        %v2549 = vrot.slane %v2540, 4
        %v2550 = vsel %vm2021, 0.0, %v2549
        %v2551 = vrot.slane %v2544, 4
        %v2552 = vsel %vm2021, 0.0, %v2551
        %v2553 = vrot.slane %v1074, 4
        %v2554 = vsel %vm2021, 0.0, %v2553
        %v2556 = vunpack.c.l.s4 1983009808
        %v2557 = vunpack.c.0.s8 %v2556
        %v2558 = vperm.slane %v1074, %v2557
        %v2560 = vunpack.c.l.s4 1983009808
        %v2561 = vunpack.c.0.s8 %v2560
        %v2562 = vperm.slane %v2554, %v2561
        %v2563 = vrot.slane %v2558, 4
        %v2564 = vsel %vm2021, 0.0, %v2563
        %v2566 = vunpack.c.l.s4 1934713408
        %v2567 = vunpack.c.0.s8 %v2566
        %v2568 = vperm.slane %v2558, %v2567
        %v2570 = vunpack.c.l.s4 1934713408
        %v2571 = vunpack.c.0.s8 %v2570
        %v2572 = vperm.slane %v2564, %v2571
        %v2573 = vrot.slane %v2562, 4
        %v2574 = vsel %vm2021, 0.0, %v2573
        %v2576 = vunpack.c.l.s4 1934713408
        %v2577 = vunpack.c.0.s8 %v2576
        %v2578 = vperm.slane %v2562, %v2577
        %v2580 = vunpack.c.l.s4 1934713408
        %v2581 = vunpack.c.0.s8 %v2580
        %v2582 = vperm.slane %v2574, %v2581
        %v2583 = vrot.slane %v2568, 4
        %v2584 = vsel %vm2021, 0.0, %v2583
        %v2585 = vrot.slane %v2572, 4
        %v2586 = vsel %vm2021, 0.0, %v2585
        %v2587 = vrot.slane %v2578, 4
        %v2588 = vsel %vm2021, 0.0, %v2587
        %v2589 = vrot.slane %v2582, 4
        %v2590 = vsel %vm2021, 0.0, %v2589
        %v2591 = vrot.slane %v1075, 4
        %v2592 = vsel %vm2021, 0.0, %v2591
        %v2594 = vunpack.c.l.s4 1983009808
        %v2595 = vunpack.c.0.s8 %v2594
        %v2596 = vperm.slane %v1075, %v2595
        %v2598 = vunpack.c.l.s4 1983009808
        %v2599 = vunpack.c.0.s8 %v2598
        %v2600 = vperm.slane %v2592, %v2599
        %v2601 = vrot.slane %v2596, 4
        %v2602 = vsel %vm2021, 0.0, %v2601
        %v2604 = vunpack.c.l.s4 1934713408
        %v2605 = vunpack.c.0.s8 %v2604
        %v2606 = vperm.slane %v2596, %v2605
        %v2608 = vunpack.c.l.s4 1934713408
        %v2609 = vunpack.c.0.s8 %v2608
        %v2610 = vperm.slane %v2602, %v2609
        %v2611 = vrot.slane %v2600, 4
        %v2612 = vsel %vm2021, 0.0, %v2611
        %v2614 = vunpack.c.l.s4 1934713408
        %v2615 = vunpack.c.0.s8 %v2614
        %v2616 = vperm.slane %v2600, %v2615
        %v2618 = vunpack.c.l.s4 1934713408
        %v2619 = vunpack.c.0.s8 %v2618
        %v2620 = vperm.slane %v2612, %v2619
        %v2621 = vrot.slane %v2606, 4
        %v2622 = vsel %vm2021, 0.0, %v2621
        %v2623 = vrot.slane %v2610, 4
        %v2624 = vsel %vm2021, 0.0, %v2623
        %v2625 = vrot.slane %v2616, 4
        %v2626 = vsel %vm2021, 0.0, %v2625
        %v2627 = vrot.slane %v2620, 4
        %v2628 = vsel %vm2021, 0.0, %v2627
        %v2629 = vrot.slane %v1076, 4
        %v2630 = vsel %vm2021, 0.0, %v2629
        %v2632 = vunpack.c.l.s4 1983009808
        %v2633 = vunpack.c.0.s8 %v2632
        %v2634 = vperm.slane %v1076, %v2633
        %v2636 = vunpack.c.l.s4 1983009808
        %v2637 = vunpack.c.0.s8 %v2636
        %v2638 = vperm.slane %v2630, %v2637
        %v2639 = vrot.slane %v2634, 4
        %v2640 = vsel %vm2021, 0.0, %v2639
        %v2642 = vunpack.c.l.s4 1934713408
        %v2643 = vunpack.c.0.s8 %v2642
        %v2644 = vperm.slane %v2634, %v2643
        %v2646 = vunpack.c.l.s4 1934713408
        %v2647 = vunpack.c.0.s8 %v2646
        %v2648 = vperm.slane %v2640, %v2647
        %v2649 = vrot.slane %v2638, 4
        %v2650 = vsel %vm2021, 0.0, %v2649
        %v2652 = vunpack.c.l.s4 1934713408
        %v2653 = vunpack.c.0.s8 %v2652
        %v2654 = vperm.slane %v2638, %v2653
        %v2656 = vunpack.c.l.s4 1934713408
        %v2657 = vunpack.c.0.s8 %v2656
        %v2658 = vperm.slane %v2650, %v2657
        %v2659 = vrot.slane %v2644, 4
        %v2660 = vsel %vm2021, 0.0, %v2659
        %v2661 = vrot.slane %v2648, 4
        %v2662 = vsel %vm2021, 0.0, %v2661
        %v2663 = vrot.slane %v2654, 4
        %v2664 = vsel %vm2021, 0.0, %v2663
        %v2665 = vrot.slane %v2658, 4
        %v2666 = vsel %vm2021, 0.0, %v2665
        %v2667 = vrot.slane %v1077, 4
        %v2668 = vsel %vm2021, 0.0, %v2667
        %v2670 = vunpack.c.l.s4 1983009808
        %v2671 = vunpack.c.0.s8 %v2670
        %v2672 = vperm.slane %v1077, %v2671
        %v2674 = vunpack.c.l.s4 1983009808
        %v2675 = vunpack.c.0.s8 %v2674
        %v2676 = vperm.slane %v2668, %v2675
        %v2677 = vrot.slane %v2672, 4
        %v2678 = vsel %vm2021, 0.0, %v2677
        %v2680 = vunpack.c.l.s4 1934713408
        %v2681 = vunpack.c.0.s8 %v2680
        %v2682 = vperm.slane %v2672, %v2681
        %v2684 = vunpack.c.l.s4 1934713408
        %v2685 = vunpack.c.0.s8 %v2684
        %v2686 = vperm.slane %v2678, %v2685
        %v2687 = vrot.slane %v2676, 4
        %v2688 = vsel %vm2021, 0.0, %v2687
        %v2690 = vunpack.c.l.s4 1934713408
        %v2691 = vunpack.c.0.s8 %v2690
        %v2692 = vperm.slane %v2676, %v2691
        %v2694 = vunpack.c.l.s4 1934713408
        %v2695 = vunpack.c.0.s8 %v2694
        %v2696 = vperm.slane %v2688, %v2695
        %v2697 = vrot.slane %v2682, 4
        %v2698 = vsel %vm2021, 0.0, %v2697
        %v2699 = vrot.slane %v2686, 4
        %v2700 = vsel %vm2021, 0.0, %v2699
        %v2701 = vrot.slane %v2692, 4
        %v2702 = vsel %vm2021, 0.0, %v2701
        %v2703 = vrot.slane %v2696, 4
        %v2704 = vsel %vm2021, 0.0, %v2703
        %v2705 = vrot.slane %v1078, 4
        %v2706 = vsel %vm2021, 0.0, %v2705
        %v2708 = vunpack.c.l.s4 1983009808
        %v2709 = vunpack.c.0.s8 %v2708
        %v2710 = vperm.slane %v1078, %v2709
        %v2712 = vunpack.c.l.s4 1983009808
        %v2713 = vunpack.c.0.s8 %v2712
        %v2714 = vperm.slane %v2706, %v2713
        %v2715 = vrot.slane %v2710, 4
        %v2716 = vsel %vm2021, 0.0, %v2715
        %v2718 = vunpack.c.l.s4 1934713408
        %v2719 = vunpack.c.0.s8 %v2718
        %v2720 = vperm.slane %v2710, %v2719
        %v2722 = vunpack.c.l.s4 1934713408
        %v2723 = vunpack.c.0.s8 %v2722
        %v2724 = vperm.slane %v2716, %v2723
        %v2725 = vrot.slane %v2714, 4
        %v2726 = vsel %vm2021, 0.0, %v2725
        %v2728 = vunpack.c.l.s4 1934713408
        %v2729 = vunpack.c.0.s8 %v2728
        %v2730 = vperm.slane %v2714, %v2729
        %v2732 = vunpack.c.l.s4 1934713408
        %v2733 = vunpack.c.0.s8 %v2732
        %v2734 = vperm.slane %v2726, %v2733
        %v2735 = vrot.slane %v2720, 4
        %v2736 = vsel %vm2021, 0.0, %v2735
        %v2737 = vrot.slane %v2724, 4
        %v2738 = vsel %vm2021, 0.0, %v2737
        %v2739 = vrot.slane %v2730, 4
        %v2740 = vsel %vm2021, 0.0, %v2739
        %v2741 = vrot.slane %v2734, 4
        %v2742 = vsel %vm2021, 0.0, %v2741
        %v2743 = vrot.slane %v1079, 4
        %v2744 = vsel %vm2021, 0.0, %v2743
        %v2746 = vunpack.c.l.s4 1983009808
        %v2747 = vunpack.c.0.s8 %v2746
        %v2748 = vperm.slane %v1079, %v2747
        %v2750 = vunpack.c.l.s4 1983009808
        %v2751 = vunpack.c.0.s8 %v2750
        %v2752 = vperm.slane %v2744, %v2751
        %v2753 = vrot.slane %v2748, 4
        %v2754 = vsel %vm2021, 0.0, %v2753
        %v2756 = vunpack.c.l.s4 1934713408
        %v2757 = vunpack.c.0.s8 %v2756
        %v2758 = vperm.slane %v2748, %v2757
        %v2760 = vunpack.c.l.s4 1934713408
        %v2761 = vunpack.c.0.s8 %v2760
        %v2762 = vperm.slane %v2754, %v2761
        %v2763 = vrot.slane %v2752, 4
        %v2764 = vsel %vm2021, 0.0, %v2763
        %v2766 = vunpack.c.l.s4 1934713408
        %v2767 = vunpack.c.0.s8 %v2766
        %v2768 = vperm.slane %v2752, %v2767
        %v2770 = vunpack.c.l.s4 1934713408
        %v2771 = vunpack.c.0.s8 %v2770
        %v2772 = vperm.slane %v2764, %v2771
        %v2773 = vrot.slane %v2758, 4
        %v2774 = vsel %vm2021, 0.0, %v2773
        %v2775 = vrot.slane %v2762, 4
        %v2776 = vsel %vm2021, 0.0, %v2775
        %v2777 = vrot.slane %v2768, 4
        %v2778 = vsel %vm2021, 0.0, %v2777
        %v2779 = vrot.slane %v2772, 4
        %v2780 = vsel %vm2021, 0.0, %v2779
        %v2781 = vrot.slane %v1080, 4
        %v2782 = vsel %vm2021, 0.0, %v2781
        %v2784 = vunpack.c.l.s4 1983009808
        %v2785 = vunpack.c.0.s8 %v2784
        %v2786 = vperm.slane %v1080, %v2785
        %v2788 = vunpack.c.l.s4 1983009808
        %v2789 = vunpack.c.0.s8 %v2788
        %v2790 = vperm.slane %v2782, %v2789
        %v2791 = vrot.slane %v2786, 4
        %v2792 = vsel %vm2021, 0.0, %v2791
        %v2794 = vunpack.c.l.s4 1934713408
        %v2795 = vunpack.c.0.s8 %v2794
        %v2796 = vperm.slane %v2786, %v2795
        %v2798 = vunpack.c.l.s4 1934713408
        %v2799 = vunpack.c.0.s8 %v2798
        %v2800 = vperm.slane %v2792, %v2799
        %v2801 = vrot.slane %v2790, 4
        %v2802 = vsel %vm2021, 0.0, %v2801
        %v2804 = vunpack.c.l.s4 1934713408
        %v2805 = vunpack.c.0.s8 %v2804
        %v2806 = vperm.slane %v2790, %v2805
        %v2808 = vunpack.c.l.s4 1934713408
        %v2809 = vunpack.c.0.s8 %v2808
        %v2810 = vperm.slane %v2802, %v2809
        %v2811 = vrot.slane %v2796, 4
        %v2812 = vsel %vm2021, 0.0, %v2811
        %v2813 = vrot.slane %v2800, 4
        %v2814 = vsel %vm2021, 0.0, %v2813
        %v2815 = vrot.slane %v2806, 4
        %v2816 = vsel %vm2021, 0.0, %v2815
        %v2817 = vrot.slane %v2810, 4
        %v2818 = vsel %vm2021, 0.0, %v2817
        %v2819 = vrot.slane %v1081, 4
        %v2820 = vsel %vm2021, 0.0, %v2819
        %v2822 = vunpack.c.l.s4 1983009808
        %v2823 = vunpack.c.0.s8 %v2822
        %v2824 = vperm.slane %v1081, %v2823
        %v2826 = vunpack.c.l.s4 1983009808
        %v2827 = vunpack.c.0.s8 %v2826
        %v2828 = vperm.slane %v2820, %v2827
        %v2829 = vrot.slane %v2824, 4
        %v2830 = vsel %vm2021, 0.0, %v2829
        %v2832 = vunpack.c.l.s4 1934713408
        %v2833 = vunpack.c.0.s8 %v2832
        %v2834 = vperm.slane %v2824, %v2833
        %v2836 = vunpack.c.l.s4 1934713408
        %v2837 = vunpack.c.0.s8 %v2836
        %v2838 = vperm.slane %v2830, %v2837
        %v2839 = vrot.slane %v2828, 4
        %v2840 = vsel %vm2021, 0.0, %v2839
        %v2842 = vunpack.c.l.s4 1934713408
        %v2843 = vunpack.c.0.s8 %v2842
        %v2844 = vperm.slane %v2828, %v2843
        %v2846 = vunpack.c.l.s4 1934713408
        %v2847 = vunpack.c.0.s8 %v2846
        %v2848 = vperm.slane %v2840, %v2847
        %v2849 = vrot.slane %v2834, 4
        %v2850 = vsel %vm2021, 0.0, %v2849
        %v2851 = vrot.slane %v2838, 4
        %v2852 = vsel %vm2021, 0.0, %v2851
        %v2853 = vrot.slane %v2844, 4
        %v2854 = vsel %vm2021, 0.0, %v2853
        %v2855 = vrot.slane %v2848, 4
        %v2856 = vsel %vm2021, 0.0, %v2855
        %v2857 = vrot.slane %v1082, 4
        %v2858 = vsel %vm2021, 0.0, %v2857
        %v2860 = vunpack.c.l.s4 1983009808
        %v2861 = vunpack.c.0.s8 %v2860
        %v2862 = vperm.slane %v1082, %v2861
        %v2864 = vunpack.c.l.s4 1983009808
        %v2865 = vunpack.c.0.s8 %v2864
        %v2866 = vperm.slane %v2858, %v2865
        %v2867 = vrot.slane %v2862, 4
        %v2868 = vsel %vm2021, 0.0, %v2867
        %v2870 = vunpack.c.l.s4 1934713408
        %v2871 = vunpack.c.0.s8 %v2870
        %v2872 = vperm.slane %v2862, %v2871
        %v2874 = vunpack.c.l.s4 1934713408
        %v2875 = vunpack.c.0.s8 %v2874
        %v2876 = vperm.slane %v2868, %v2875
        %v2877 = vrot.slane %v2866, 4
        %v2878 = vsel %vm2021, 0.0, %v2877
        %v2880 = vunpack.c.l.s4 1934713408
        %v2881 = vunpack.c.0.s8 %v2880
        %v2882 = vperm.slane %v2866, %v2881
        %v2884 = vunpack.c.l.s4 1934713408
        %v2885 = vunpack.c.0.s8 %v2884
        %v2886 = vperm.slane %v2878, %v2885
        %v2887 = vrot.slane %v2872, 4
        %v2888 = vsel %vm2021, 0.0, %v2887
        %v2889 = vrot.slane %v2876, 4
        %v2890 = vsel %vm2021, 0.0, %v2889
        %v2891 = vrot.slane %v2882, 4
        %v2892 = vsel %vm2021, 0.0, %v2891
        %v2893 = vrot.slane %v2886, 4
        %v2894 = vsel %vm2021, 0.0, %v2893
        %v2895 = vrot.slane %v1083, 4
        %v2896 = vsel %vm2021, 0.0, %v2895
        %v2898 = vunpack.c.l.s4 1983009808
        %v2899 = vunpack.c.0.s8 %v2898
        %v2900 = vperm.slane %v1083, %v2899
        %v2902 = vunpack.c.l.s4 1983009808
        %v2903 = vunpack.c.0.s8 %v2902
        %v2904 = vperm.slane %v2896, %v2903
        %v2905 = vrot.slane %v2900, 4
        %v2906 = vsel %vm2021, 0.0, %v2905
        %v2908 = vunpack.c.l.s4 1934713408
        %v2909 = vunpack.c.0.s8 %v2908
        %v2910 = vperm.slane %v2900, %v2909
        %v2912 = vunpack.c.l.s4 1934713408
        %v2913 = vunpack.c.0.s8 %v2912
        %v2914 = vperm.slane %v2906, %v2913
        %v2915 = vrot.slane %v2904, 4
        %v2916 = vsel %vm2021, 0.0, %v2915
        %v2918 = vunpack.c.l.s4 1934713408
        %v2919 = vunpack.c.0.s8 %v2918
        %v2920 = vperm.slane %v2904, %v2919
        %v2922 = vunpack.c.l.s4 1934713408
        %v2923 = vunpack.c.0.s8 %v2922
        %v2924 = vperm.slane %v2916, %v2923
        %v2925 = vrot.slane %v2910, 4
        %v2926 = vsel %vm2021, 0.0, %v2925
        %v2927 = vrot.slane %v2914, 4
        %v2928 = vsel %vm2021, 0.0, %v2927
        %v2929 = vrot.slane %v2920, 4
        %v2930 = vsel %vm2021, 0.0, %v2929
        %v2931 = vrot.slane %v2924, 4
        %v2932 = vsel %vm2021, 0.0, %v2931
        %v2933 = vrot.slane %v1084, 4
        %v2934 = vsel %vm2021, 0.0, %v2933
        %v2936 = vunpack.c.l.s4 1983009808
        %v2937 = vunpack.c.0.s8 %v2936
        %v2938 = vperm.slane %v1084, %v2937
        %v2940 = vunpack.c.l.s4 1983009808
        %v2941 = vunpack.c.0.s8 %v2940
        %v2942 = vperm.slane %v2934, %v2941
        %v2943 = vrot.slane %v2938, 4
        %v2944 = vsel %vm2021, 0.0, %v2943
        %v2946 = vunpack.c.l.s4 1934713408
        %v2947 = vunpack.c.0.s8 %v2946
        %v2948 = vperm.slane %v2938, %v2947
        %v2950 = vunpack.c.l.s4 1934713408
        %v2951 = vunpack.c.0.s8 %v2950
        %v2952 = vperm.slane %v2944, %v2951
        %v2953 = vrot.slane %v2942, 4
        %v2954 = vsel %vm2021, 0.0, %v2953
        %v2956 = vunpack.c.l.s4 1934713408
        %v2957 = vunpack.c.0.s8 %v2956
        %v2958 = vperm.slane %v2942, %v2957
        %v2960 = vunpack.c.l.s4 1934713408
        %v2961 = vunpack.c.0.s8 %v2960
        %v2962 = vperm.slane %v2954, %v2961
        %v2963 = vrot.slane %v2948, 4
        %v2964 = vsel %vm2021, 0.0, %v2963
        %v2965 = vrot.slane %v2952, 4
        %v2966 = vsel %vm2021, 0.0, %v2965
        %v2967 = vrot.slane %v2958, 4
        %v2968 = vsel %vm2021, 0.0, %v2967
        %v2969 = vrot.slane %v2962, 4
        %v2970 = vsel %vm2021, 0.0, %v2969
        %v2971 = vrot.slane %v1085, 4
        %v2972 = vsel %vm2021, 0.0, %v2971
        %v2974 = vunpack.c.l.s4 1983009808
        %v2975 = vunpack.c.0.s8 %v2974
        %v2976 = vperm.slane %v1085, %v2975
        %v2978 = vunpack.c.l.s4 1983009808
        %v2979 = vunpack.c.0.s8 %v2978
        %v2980 = vperm.slane %v2972, %v2979
        %v2981 = vrot.slane %v2976, 4
        %v2982 = vsel %vm2021, 0.0, %v2981
        %v2984 = vunpack.c.l.s4 1934713408
        %v2985 = vunpack.c.0.s8 %v2984
        %v2986 = vperm.slane %v2976, %v2985
        %v2988 = vunpack.c.l.s4 1934713408
        %v2989 = vunpack.c.0.s8 %v2988
        %v2990 = vperm.slane %v2982, %v2989
        %v2991 = vrot.slane %v2980, 4
        %v2992 = vsel %vm2021, 0.0, %v2991
        %v2994 = vunpack.c.l.s4 1934713408
        %v2995 = vunpack.c.0.s8 %v2994
        %v2996 = vperm.slane %v2980, %v2995
        %v2998 = vunpack.c.l.s4 1934713408
        %v2999 = vunpack.c.0.s8 %v2998
        %v3000 = vperm.slane %v2992, %v2999
        %v3001 = vrot.slane %v2986, 4
        %v3002 = vsel %vm2021, 0.0, %v3001
        %v3003 = vrot.slane %v2990, 4
        %v3004 = vsel %vm2021, 0.0, %v3003
        %v3005 = vrot.slane %v2996, 4
        %v3006 = vsel %vm2021, 0.0, %v3005
        %v3007 = vrot.slane %v3000, 4
        %v3008 = vsel %vm2021, 0.0, %v3007
        %v3009 = vrot.slane %v1086, 4
        %v3010 = vsel %vm2021, 0.0, %v3009
        %v3012 = vunpack.c.l.s4 1983009808
        %v3013 = vunpack.c.0.s8 %v3012
        %v3014 = vperm.slane %v1086, %v3013
        %v3016 = vunpack.c.l.s4 1983009808
        %v3017 = vunpack.c.0.s8 %v3016
        %v3018 = vperm.slane %v3010, %v3017
        %v3019 = vrot.slane %v3014, 4
        %v3020 = vsel %vm2021, 0.0, %v3019
        %v3022 = vunpack.c.l.s4 1934713408
        %v3023 = vunpack.c.0.s8 %v3022
        %v3024 = vperm.slane %v3014, %v3023
        %v3026 = vunpack.c.l.s4 1934713408
        %v3027 = vunpack.c.0.s8 %v3026
        %v3028 = vperm.slane %v3020, %v3027
        %v3029 = vrot.slane %v3018, 4
        %v3030 = vsel %vm2021, 0.0, %v3029
        %v3032 = vunpack.c.l.s4 1934713408
        %v3033 = vunpack.c.0.s8 %v3032
        %v3034 = vperm.slane %v3018, %v3033
        %v3036 = vunpack.c.l.s4 1934713408
        %v3037 = vunpack.c.0.s8 %v3036
        %v3038 = vperm.slane %v3030, %v3037
        %v3039 = vrot.slane %v3024, 4
        %v3040 = vsel %vm2021, 0.0, %v3039
        %v3041 = vrot.slane %v3028, 4
        %v3042 = vsel %vm2021, 0.0, %v3041
        %v3043 = vrot.slane %v3034, 4
        %v3044 = vsel %vm2021, 0.0, %v3043
        %v3045 = vrot.slane %v3038, 4
        %v3046 = vsel %vm2021, 0.0, %v3045
        %v3047 = vrot.slane %v1087, 4
        %v3048 = vsel %vm2021, 0.0, %v3047
        %v3050 = vunpack.c.l.s4 1983009808
        %v3051 = vunpack.c.0.s8 %v3050
        %v3052 = vperm.slane %v1087, %v3051
        %v3054 = vunpack.c.l.s4 1983009808
        %v3055 = vunpack.c.0.s8 %v3054
        %v3056 = vperm.slane %v3048, %v3055
        %v3057 = vrot.slane %v3052, 4
        %v3058 = vsel %vm2021, 0.0, %v3057
        %v3060 = vunpack.c.l.s4 1934713408
        %v3061 = vunpack.c.0.s8 %v3060
        %v3062 = vperm.slane %v3052, %v3061
        %v3064 = vunpack.c.l.s4 1934713408
        %v3065 = vunpack.c.0.s8 %v3064
        %v3066 = vperm.slane %v3058, %v3065
        %v3067 = vrot.slane %v3056, 4
        %v3068 = vsel %vm2021, 0.0, %v3067
        %v3070 = vunpack.c.l.s4 1934713408
        %v3071 = vunpack.c.0.s8 %v3070
        %v3072 = vperm.slane %v3056, %v3071
        %v3074 = vunpack.c.l.s4 1934713408
        %v3075 = vunpack.c.0.s8 %v3074
        %v3076 = vperm.slane %v3068, %v3075
        %v3077 = vrot.slane %v3062, 4
        %v3078 = vsel %vm2021, 0.0, %v3077
        %v3079 = vrot.slane %v3066, 4
        %v3080 = vsel %vm2021, 0.0, %v3079
        %v3081 = vrot.slane %v3072, 4
        %v3082 = vsel %vm2021, 0.0, %v3081
        %v3083 = vrot.slane %v3076, 4
        %v3084 = vsel %vm2021, 0.0, %v3083
        %v3085 = vrot.slane %v1088, 4
        %v3086 = vsel %vm2021, 0.0, %v3085
        %v3088 = vunpack.c.l.s4 1983009808
        %v3089 = vunpack.c.0.s8 %v3088
        %v3090 = vperm.slane %v1088, %v3089
        %v3092 = vunpack.c.l.s4 1983009808
        %v3093 = vunpack.c.0.s8 %v3092
        %v3094 = vperm.slane %v3086, %v3093
        %v3095 = vrot.slane %v3090, 4
        %v3096 = vsel %vm2021, 0.0, %v3095
        %v3098 = vunpack.c.l.s4 1934713408
        %v3099 = vunpack.c.0.s8 %v3098
        %v3100 = vperm.slane %v3090, %v3099
        %v3102 = vunpack.c.l.s4 1934713408
        %v3103 = vunpack.c.0.s8 %v3102
        %v3104 = vperm.slane %v3096, %v3103
        %v3105 = vrot.slane %v3094, 4
        %v3106 = vsel %vm2021, 0.0, %v3105
        %v3108 = vunpack.c.l.s4 1934713408
        %v3109 = vunpack.c.0.s8 %v3108
        %v3110 = vperm.slane %v3094, %v3109
        %v3112 = vunpack.c.l.s4 1934713408
        %v3113 = vunpack.c.0.s8 %v3112
        %v3114 = vperm.slane %v3106, %v3113
        %v3115 = vrot.slane %v3100, 4
        %v3116 = vsel %vm2021, 0.0, %v3115
        %v3117 = vrot.slane %v3104, 4
        %v3118 = vsel %vm2021, 0.0, %v3117
        %v3119 = vrot.slane %v3110, 4
        %v3120 = vsel %vm2021, 0.0, %v3119
        %v3121 = vrot.slane %v3114, 4
        %v3122 = vsel %vm2021, 0.0, %v3121
        %v3123 = vrot.slane %v1089, 4
        %v3124 = vsel %vm2021, 0.0, %v3123
        %v3126 = vunpack.c.l.s4 1983009808
        %v3127 = vunpack.c.0.s8 %v3126
        %v3128 = vperm.slane %v1089, %v3127
        %v3130 = vunpack.c.l.s4 1983009808
        %v3131 = vunpack.c.0.s8 %v3130
        %v3132 = vperm.slane %v3124, %v3131
        %v3133 = vrot.slane %v3128, 4
        %v3134 = vsel %vm2021, 0.0, %v3133
        %v3136 = vunpack.c.l.s4 1934713408
        %v3137 = vunpack.c.0.s8 %v3136
        %v3138 = vperm.slane %v3128, %v3137
        %v3140 = vunpack.c.l.s4 1934713408
        %v3141 = vunpack.c.0.s8 %v3140
        %v3142 = vperm.slane %v3134, %v3141
        %v3143 = vrot.slane %v3132, 4
        %v3144 = vsel %vm2021, 0.0, %v3143
        %v3146 = vunpack.c.l.s4 1934713408
        %v3147 = vunpack.c.0.s8 %v3146
        %v3148 = vperm.slane %v3132, %v3147
        %v3150 = vunpack.c.l.s4 1934713408
        %v3151 = vunpack.c.0.s8 %v3150
        %v3152 = vperm.slane %v3144, %v3151
        %v3153 = vrot.slane %v3138, 4
        %v3154 = vsel %vm2021, 0.0, %v3153
        %v3155 = vrot.slane %v3142, 4
        %v3156 = vsel %vm2021, 0.0, %v3155
        %v3157 = vrot.slane %v3148, 4
        %v3158 = vsel %vm2021, 0.0, %v3157
        %v3159 = vrot.slane %v3152, 4
        %v3160 = vsel %vm2021, 0.0, %v3159
        %v3161 = vrot.slane %v1090, 4
        %v3162 = vsel %vm2021, 0.0, %v3161
        %v3164 = vunpack.c.l.s4 1983009808
        %v3165 = vunpack.c.0.s8 %v3164
        %v3166 = vperm.slane %v1090, %v3165
        %v3168 = vunpack.c.l.s4 1983009808
        %v3169 = vunpack.c.0.s8 %v3168
        %v3170 = vperm.slane %v3162, %v3169
        %v3171 = vrot.slane %v3166, 4
        %v3172 = vsel %vm2021, 0.0, %v3171
        %v3174 = vunpack.c.l.s4 1934713408
        %v3175 = vunpack.c.0.s8 %v3174
        %v3176 = vperm.slane %v3166, %v3175
        %v3178 = vunpack.c.l.s4 1934713408
        %v3179 = vunpack.c.0.s8 %v3178
        %v3180 = vperm.slane %v3172, %v3179
        %v3181 = vrot.slane %v3170, 4
        %v3182 = vsel %vm2021, 0.0, %v3181
        %v3184 = vunpack.c.l.s4 1934713408
        %v3185 = vunpack.c.0.s8 %v3184
        %v3186 = vperm.slane %v3170, %v3185
        %v3188 = vunpack.c.l.s4 1934713408
        %v3189 = vunpack.c.0.s8 %v3188
        %v3190 = vperm.slane %v3182, %v3189
        %v3191 = vrot.slane %v3176, 4
        %v3192 = vsel %vm2021, 0.0, %v3191
        %v3193 = vrot.slane %v3180, 4
        %v3194 = vsel %vm2021, 0.0, %v3193
        %v3195 = vrot.slane %v3186, 4
        %v3196 = vsel %vm2021, 0.0, %v3195
        %v3197 = vrot.slane %v3190, 4
        %v3198 = vsel %vm2021, 0.0, %v3197
        %v3199 = vrot.slane %v1091, 4
        %v3200 = vsel %vm2021, 0.0, %v3199
        %v3202 = vunpack.c.l.s4 1983009808
        %v3203 = vunpack.c.0.s8 %v3202
        %v3204 = vperm.slane %v1091, %v3203
        %v3206 = vunpack.c.l.s4 1983009808
        %v3207 = vunpack.c.0.s8 %v3206
        %v3208 = vperm.slane %v3200, %v3207
        %v3209 = vrot.slane %v3204, 4
        %v3210 = vsel %vm2021, 0.0, %v3209
        %v3212 = vunpack.c.l.s4 1934713408
        %v3213 = vunpack.c.0.s8 %v3212
        %v3214 = vperm.slane %v3204, %v3213
        %v3216 = vunpack.c.l.s4 1934713408
        %v3217 = vunpack.c.0.s8 %v3216
        %v3218 = vperm.slane %v3210, %v3217
        %v3219 = vrot.slane %v3208, 4
        %v3220 = vsel %vm2021, 0.0, %v3219
        %v3222 = vunpack.c.l.s4 1934713408
        %v3223 = vunpack.c.0.s8 %v3222
        %v3224 = vperm.slane %v3208, %v3223
        %v3226 = vunpack.c.l.s4 1934713408
        %v3227 = vunpack.c.0.s8 %v3226
        %v3228 = vperm.slane %v3220, %v3227
        %v3229 = vrot.slane %v3214, 4
        %v3230 = vsel %vm2021, 0.0, %v3229
        %v3231 = vrot.slane %v3218, 4
        %v3232 = vsel %vm2021, 0.0, %v3231
        %v3233 = vrot.slane %v3224, 4
        %v3234 = vsel %vm2021, 0.0, %v3233
        %v3235 = vrot.slane %v3228, 4
        %v3236 = vsel %vm2021, 0.0, %v3235
        %v3237 = vrot.slane %v1092, 4
        %v3238 = vsel %vm2021, 0.0, %v3237
        %v3240 = vunpack.c.l.s4 1983009808
        %v3241 = vunpack.c.0.s8 %v3240
        %v3242 = vperm.slane %v1092, %v3241
        %v3244 = vunpack.c.l.s4 1983009808
        %v3245 = vunpack.c.0.s8 %v3244
        %v3246 = vperm.slane %v3238, %v3245
        %v3247 = vrot.slane %v3242, 4
        %v3248 = vsel %vm2021, 0.0, %v3247
        %v3250 = vunpack.c.l.s4 1934713408
        %v3251 = vunpack.c.0.s8 %v3250
        %v3252 = vperm.slane %v3242, %v3251
        %v3254 = vunpack.c.l.s4 1934713408
        %v3255 = vunpack.c.0.s8 %v3254
        %v3256 = vperm.slane %v3248, %v3255
        %v3257 = vrot.slane %v3246, 4
        %v3258 = vsel %vm2021, 0.0, %v3257
        %v3260 = vunpack.c.l.s4 1934713408
        %v3261 = vunpack.c.0.s8 %v3260
        %v3262 = vperm.slane %v3246, %v3261
        %v3264 = vunpack.c.l.s4 1934713408
        %v3265 = vunpack.c.0.s8 %v3264
        %v3266 = vperm.slane %v3258, %v3265
        %v3267 = vrot.slane %v3252, 4
        %v3268 = vsel %vm2021, 0.0, %v3267
        %v3269 = vrot.slane %v3256, 4
        %v3270 = vsel %vm2021, 0.0, %v3269
        %v3271 = vrot.slane %v3262, 4
        %v3272 = vsel %vm2021, 0.0, %v3271
        %v3273 = vrot.slane %v3266, 4
        %v3274 = vsel %vm2021, 0.0, %v3273
        %v3275 = vrot.slane %v1093, 4
        %v3276 = vsel %vm2021, 0.0, %v3275
        %v3278 = vunpack.c.l.s4 1983009808
        %v3279 = vunpack.c.0.s8 %v3278
        %v3280 = vperm.slane %v1093, %v3279
        %v3282 = vunpack.c.l.s4 1983009808
        %v3283 = vunpack.c.0.s8 %v3282
        %v3284 = vperm.slane %v3276, %v3283
        %v3285 = vrot.slane %v3280, 4
        %v3286 = vsel %vm2021, 0.0, %v3285
        %v3288 = vunpack.c.l.s4 1934713408
        %v3289 = vunpack.c.0.s8 %v3288
        %v3290 = vperm.slane %v3280, %v3289
        %v3292 = vunpack.c.l.s4 1934713408
        %v3293 = vunpack.c.0.s8 %v3292
        %v3294 = vperm.slane %v3286, %v3293
        %v3295 = vrot.slane %v3284, 4
        %v3296 = vsel %vm2021, 0.0, %v3295
        %v3298 = vunpack.c.l.s4 1934713408
        %v3299 = vunpack.c.0.s8 %v3298
        %v3300 = vperm.slane %v3284, %v3299
        %v3302 = vunpack.c.l.s4 1934713408
        %v3303 = vunpack.c.0.s8 %v3302
        %v3304 = vperm.slane %v3296, %v3303
        %v3305 = vrot.slane %v3290, 4
        %v3306 = vsel %vm2021, 0.0, %v3305
        %v3307 = vrot.slane %v3294, 4
        %v3308 = vsel %vm2021, 0.0, %v3307
        %v3309 = vrot.slane %v3300, 4
        %v3310 = vsel %vm2021, 0.0, %v3309
        %v3311 = vrot.slane %v3304, 4
        %v3312 = vsel %vm2021, 0.0, %v3311
        %v3313 = vrot.slane %v1094, 4
        %v3314 = vsel %vm2021, 0.0, %v3313
        %v3316 = vunpack.c.l.s4 1983009808
        %v3317 = vunpack.c.0.s8 %v3316
        %v3318 = vperm.slane %v1094, %v3317
        %v3320 = vunpack.c.l.s4 1983009808
        %v3321 = vunpack.c.0.s8 %v3320
        %v3322 = vperm.slane %v3314, %v3321
        %v3323 = vrot.slane %v3318, 4
        %v3324 = vsel %vm2021, 0.0, %v3323
        %v3326 = vunpack.c.l.s4 1934713408
        %v3327 = vunpack.c.0.s8 %v3326
        %v3328 = vperm.slane %v3318, %v3327
        %v3330 = vunpack.c.l.s4 1934713408
        %v3331 = vunpack.c.0.s8 %v3330
        %v3332 = vperm.slane %v3324, %v3331
        %v3333 = vrot.slane %v3322, 4
        %v3334 = vsel %vm2021, 0.0, %v3333
        %v3336 = vunpack.c.l.s4 1934713408
        %v3337 = vunpack.c.0.s8 %v3336
        %v3338 = vperm.slane %v3322, %v3337
        %v3340 = vunpack.c.l.s4 1934713408
        %v3341 = vunpack.c.0.s8 %v3340
        %v3342 = vperm.slane %v3334, %v3341
        %v3343 = vrot.slane %v3328, 4
        %v3344 = vsel %vm2021, 0.0, %v3343
        %v3345 = vrot.slane %v3332, 4
        %v3346 = vsel %vm2021, 0.0, %v3345
        %v3347 = vrot.slane %v3338, 4
        %v3348 = vsel %vm2021, 0.0, %v3347
        %v3349 = vrot.slane %v3342, 4
        %v3350 = vsel %vm2021, 0.0, %v3349
        %v3351 = vrot.slane %v1095, 4
        %v3352 = vsel %vm2021, 0.0, %v3351
        %v3354 = vunpack.c.l.s4 1983009808
        %v3355 = vunpack.c.0.s8 %v3354
        %v3356 = vperm.slane %v1095, %v3355
        %v3358 = vunpack.c.l.s4 1983009808
        %v3359 = vunpack.c.0.s8 %v3358
        %v3360 = vperm.slane %v3352, %v3359
        %v3361 = vrot.slane %v3356, 4
        %v3362 = vsel %vm2021, 0.0, %v3361
        %v3364 = vunpack.c.l.s4 1934713408
        %v3365 = vunpack.c.0.s8 %v3364
        %v3366 = vperm.slane %v3356, %v3365
        %v3368 = vunpack.c.l.s4 1934713408
        %v3369 = vunpack.c.0.s8 %v3368
        %v3370 = vperm.slane %v3362, %v3369
        %v3371 = vrot.slane %v3360, 4
        %v3372 = vsel %vm2021, 0.0, %v3371
        %v3374 = vunpack.c.l.s4 1934713408
        %v3375 = vunpack.c.0.s8 %v3374
        %v3376 = vperm.slane %v3360, %v3375
        %v3378 = vunpack.c.l.s4 1934713408
        %v3379 = vunpack.c.0.s8 %v3378
        %v3380 = vperm.slane %v3372, %v3379
        %v3381 = vrot.slane %v3366, 4
        %v3382 = vsel %vm2021, 0.0, %v3381
        %v3383 = vrot.slane %v3370, 4
        %v3384 = vsel %vm2021, 0.0, %v3383
        %v3385 = vrot.slane %v3376, 4
        %v3386 = vsel %vm2021, 0.0, %v3385
        %v3387 = vrot.slane %v3380, 4
        %v3388 = vsel %vm2021, 0.0, %v3387
        %v3389 = vrot.slane %v1096, 4
        %v3390 = vsel %vm2021, 0.0, %v3389
        %v3392 = vunpack.c.l.s4 1983009808
        %v3393 = vunpack.c.0.s8 %v3392
        %v3394 = vperm.slane %v1096, %v3393
        %v3396 = vunpack.c.l.s4 1983009808
        %v3397 = vunpack.c.0.s8 %v3396
        %v3398 = vperm.slane %v3390, %v3397
        %v3399 = vrot.slane %v3394, 4
        %v3400 = vsel %vm2021, 0.0, %v3399
        %v3402 = vunpack.c.l.s4 1934713408
        %v3403 = vunpack.c.0.s8 %v3402
        %v3404 = vperm.slane %v3394, %v3403
        %v3406 = vunpack.c.l.s4 1934713408
        %v3407 = vunpack.c.0.s8 %v3406
        %v3408 = vperm.slane %v3400, %v3407
        %v3409 = vrot.slane %v3398, 4
        %v3410 = vsel %vm2021, 0.0, %v3409
        %v3412 = vunpack.c.l.s4 1934713408
        %v3413 = vunpack.c.0.s8 %v3412
        %v3414 = vperm.slane %v3398, %v3413
        %v3416 = vunpack.c.l.s4 1934713408
        %v3417 = vunpack.c.0.s8 %v3416
        %v3418 = vperm.slane %v3410, %v3417
        %v3419 = vrot.slane %v3404, 4
        %v3420 = vsel %vm2021, 0.0, %v3419
        %v3421 = vrot.slane %v3408, 4
        %v3422 = vsel %vm2021, 0.0, %v3421
        %v3423 = vrot.slane %v3414, 4
        %v3424 = vsel %vm2021, 0.0, %v3423
        %v3425 = vrot.slane %v3418, 4
        %v3426 = vsel %vm2021, 0.0, %v3425
        %v3427 = vrot.slane %v1097, 4
        %v3428 = vsel %vm2021, 0.0, %v3427
        %v3430 = vunpack.c.l.s4 1983009808
        %v3431 = vunpack.c.0.s8 %v3430
        %v3432 = vperm.slane %v1097, %v3431
        %v3434 = vunpack.c.l.s4 1983009808
        %v3435 = vunpack.c.0.s8 %v3434
        %v3436 = vperm.slane %v3428, %v3435
        %v3437 = vrot.slane %v3432, 4
        %v3438 = vsel %vm2021, 0.0, %v3437
        %v3440 = vunpack.c.l.s4 1934713408
        %v3441 = vunpack.c.0.s8 %v3440
        %v3442 = vperm.slane %v3432, %v3441
        %v3444 = vunpack.c.l.s4 1934713408
        %v3445 = vunpack.c.0.s8 %v3444
        %v3446 = vperm.slane %v3438, %v3445
        %v3447 = vrot.slane %v3436, 4
        %v3448 = vsel %vm2021, 0.0, %v3447
        %v3450 = vunpack.c.l.s4 1934713408
        %v3451 = vunpack.c.0.s8 %v3450
        %v3452 = vperm.slane %v3436, %v3451
        %v3454 = vunpack.c.l.s4 1934713408
        %v3455 = vunpack.c.0.s8 %v3454
        %v3456 = vperm.slane %v3448, %v3455
        %v3457 = vrot.slane %v3442, 4
        %v3458 = vsel %vm2021, 0.0, %v3457
        %v3459 = vrot.slane %v3446, 4
        %v3460 = vsel %vm2021, 0.0, %v3459
        %v3461 = vrot.slane %v3452, 4
        %v3462 = vsel %vm2021, 0.0, %v3461
        %v3463 = vrot.slane %v3456, 4
        %v3464 = vsel %vm2021, 0.0, %v3463
        %v3465 = vrot.slane %v1098, 4
        %v3466 = vsel %vm2021, 0.0, %v3465
        %v3468 = vunpack.c.l.s4 1983009808
        %v3469 = vunpack.c.0.s8 %v3468
        %v3470 = vperm.slane %v1098, %v3469
        %v3472 = vunpack.c.l.s4 1983009808
        %v3473 = vunpack.c.0.s8 %v3472
        %v3474 = vperm.slane %v3466, %v3473
        %v3475 = vrot.slane %v3470, 4
        %v3476 = vsel %vm2021, 0.0, %v3475
        %v3478 = vunpack.c.l.s4 1934713408
        %v3479 = vunpack.c.0.s8 %v3478
        %v3480 = vperm.slane %v3470, %v3479
        %v3482 = vunpack.c.l.s4 1934713408
        %v3483 = vunpack.c.0.s8 %v3482
        %v3484 = vperm.slane %v3476, %v3483
        %v3485 = vrot.slane %v3474, 4
        %v3486 = vsel %vm2021, 0.0, %v3485
        %v3488 = vunpack.c.l.s4 1934713408
        %v3489 = vunpack.c.0.s8 %v3488
        %v3490 = vperm.slane %v3474, %v3489
        %v3492 = vunpack.c.l.s4 1934713408
        %v3493 = vunpack.c.0.s8 %v3492
        %v3494 = vperm.slane %v3486, %v3493
        %v3495 = vrot.slane %v3480, 4
        %v3496 = vsel %vm2021, 0.0, %v3495
        %v3497 = vrot.slane %v3484, 4
        %v3498 = vsel %vm2021, 0.0, %v3497
        %v3499 = vrot.slane %v3490, 4
        %v3500 = vsel %vm2021, 0.0, %v3499
        %v3501 = vrot.slane %v3494, 4
        %v3502 = vsel %vm2021, 0.0, %v3501
        %v3503 = vrot.slane %v1099, 4
        %v3504 = vsel %vm2021, 0.0, %v3503
        %v3506 = vunpack.c.l.s4 1983009808
        %v3507 = vunpack.c.0.s8 %v3506
        %v3508 = vperm.slane %v1099, %v3507
        %v3510 = vunpack.c.l.s4 1983009808
        %v3511 = vunpack.c.0.s8 %v3510
        %v3512 = vperm.slane %v3504, %v3511
        %v3513 = vrot.slane %v3508, 4
        %v3514 = vsel %vm2021, 0.0, %v3513
        %v3516 = vunpack.c.l.s4 1934713408
        %v3517 = vunpack.c.0.s8 %v3516
        %v3518 = vperm.slane %v3508, %v3517
        %v3520 = vunpack.c.l.s4 1934713408
        %v3521 = vunpack.c.0.s8 %v3520
        %v3522 = vperm.slane %v3514, %v3521
        %v3523 = vrot.slane %v3512, 4
        %v3524 = vsel %vm2021, 0.0, %v3523
        %v3526 = vunpack.c.l.s4 1934713408
        %v3527 = vunpack.c.0.s8 %v3526
        %v3528 = vperm.slane %v3512, %v3527
        %v3530 = vunpack.c.l.s4 1934713408
        %v3531 = vunpack.c.0.s8 %v3530
        %v3532 = vperm.slane %v3524, %v3531
        %v3533 = vrot.slane %v3518, 4
        %v3534 = vsel %vm2021, 0.0, %v3533
        %v3535 = vrot.slane %v3522, 4
        %v3536 = vsel %vm2021, 0.0, %v3535
        %v3537 = vrot.slane %v3528, 4
        %v3538 = vsel %vm2021, 0.0, %v3537
        %v3539 = vrot.slane %v3532, 4
        %v3540 = vsel %vm2021, 0.0, %v3539
        %v3541 = vrot.slane %v1100, 4
        %v3542 = vsel %vm2021, 0.0, %v3541
        %v3544 = vunpack.c.l.s4 1983009808
        %v3545 = vunpack.c.0.s8 %v3544
        %v3546 = vperm.slane %v1100, %v3545
        %v3548 = vunpack.c.l.s4 1983009808
        %v3549 = vunpack.c.0.s8 %v3548
        %v3550 = vperm.slane %v3542, %v3549
        %v3551 = vrot.slane %v3546, 4
        %v3552 = vsel %vm2021, 0.0, %v3551
        %v3554 = vunpack.c.l.s4 1934713408
        %v3555 = vunpack.c.0.s8 %v3554
        %v3556 = vperm.slane %v3546, %v3555
        %v3558 = vunpack.c.l.s4 1934713408
        %v3559 = vunpack.c.0.s8 %v3558
        %v3560 = vperm.slane %v3552, %v3559
        %v3561 = vrot.slane %v3550, 4
        %v3562 = vsel %vm2021, 0.0, %v3561
        %v3564 = vunpack.c.l.s4 1934713408
        %v3565 = vunpack.c.0.s8 %v3564
        %v3566 = vperm.slane %v3550, %v3565
        %v3568 = vunpack.c.l.s4 1934713408
        %v3569 = vunpack.c.0.s8 %v3568
        %v3570 = vperm.slane %v3562, %v3569
        %v3571 = vrot.slane %v3556, 4
        %v3572 = vsel %vm2021, 0.0, %v3571
        %v3573 = vrot.slane %v3560, 4
        %v3574 = vsel %vm2021, 0.0, %v3573
        %v3575 = vrot.slane %v3566, 4
        %v3576 = vsel %vm2021, 0.0, %v3575
        %v3577 = vrot.slane %v3570, 4
        %v3578 = vsel %vm2021, 0.0, %v3577
        %v3579 = vrot.slane %v1101, 4
        %v3580 = vsel %vm2021, 0.0, %v3579
        %v3582 = vunpack.c.l.s4 1983009808
        %v3583 = vunpack.c.0.s8 %v3582
        %v3584 = vperm.slane %v1101, %v3583
        %v3586 = vunpack.c.l.s4 1983009808
        %v3587 = vunpack.c.0.s8 %v3586
        %v3588 = vperm.slane %v3580, %v3587
        %v3589 = vrot.slane %v3584, 4
        %v3590 = vsel %vm2021, 0.0, %v3589
        %v3592 = vunpack.c.l.s4 1934713408
        %v3593 = vunpack.c.0.s8 %v3592
        %v3594 = vperm.slane %v3584, %v3593
        %v3596 = vunpack.c.l.s4 1934713408
        %v3597 = vunpack.c.0.s8 %v3596
        %v3598 = vperm.slane %v3590, %v3597
        %v3599 = vrot.slane %v3588, 4
        %v3600 = vsel %vm2021, 0.0, %v3599
        %v3602 = vunpack.c.l.s4 1934713408
        %v3603 = vunpack.c.0.s8 %v3602
        %v3604 = vperm.slane %v3588, %v3603
        %v3606 = vunpack.c.l.s4 1934713408
        %v3607 = vunpack.c.0.s8 %v3606
        %v3608 = vperm.slane %v3600, %v3607
        %v3609 = vrot.slane %v3594, 4
        %v3610 = vsel %vm2021, 0.0, %v3609
        %v3611 = vrot.slane %v3598, 4
        %v3612 = vsel %vm2021, 0.0, %v3611
        %v3613 = vrot.slane %v3604, 4
        %v3614 = vsel %vm2021, 0.0, %v3613
        %v3615 = vrot.slane %v3608, 4
        %v3616 = vsel %vm2021, 0.0, %v3615
        %v3617 = vrot.slane %v1102, 4
        %v3618 = vsel %vm2021, 0.0, %v3617
        %v3620 = vunpack.c.l.s4 1983009808
        %v3621 = vunpack.c.0.s8 %v3620
        %v3622 = vperm.slane %v1102, %v3621
        %v3624 = vunpack.c.l.s4 1983009808
        %v3625 = vunpack.c.0.s8 %v3624
        %v3626 = vperm.slane %v3618, %v3625
        %v3627 = vrot.slane %v3622, 4
        %v3628 = vsel %vm2021, 0.0, %v3627
        %v3630 = vunpack.c.l.s4 1934713408
        %v3631 = vunpack.c.0.s8 %v3630
        %v3632 = vperm.slane %v3622, %v3631
        %v3634 = vunpack.c.l.s4 1934713408
        %v3635 = vunpack.c.0.s8 %v3634
        %v3636 = vperm.slane %v3628, %v3635
        %v3637 = vrot.slane %v3626, 4
        %v3638 = vsel %vm2021, 0.0, %v3637
        %v3640 = vunpack.c.l.s4 1934713408
        %v3641 = vunpack.c.0.s8 %v3640
        %v3642 = vperm.slane %v3626, %v3641
        %v3644 = vunpack.c.l.s4 1934713408
        %v3645 = vunpack.c.0.s8 %v3644
        %v3646 = vperm.slane %v3638, %v3645
        %v3647 = vrot.slane %v3632, 4
        %v3648 = vsel %vm2021, 0.0, %v3647
        %v3649 = vrot.slane %v3636, 4
        %v3650 = vsel %vm2021, 0.0, %v3649
        %v3651 = vrot.slane %v3642, 4
        %v3652 = vsel %vm2021, 0.0, %v3651
        %v3653 = vrot.slane %v3646, 4
        %v3654 = vsel %vm2021, 0.0, %v3653
        %v3655 = vrot.slane %v1103, 4
        %v3656 = vsel %vm2021, 0.0, %v3655
        %v3658 = vunpack.c.l.s4 1983009808
        %v3659 = vunpack.c.0.s8 %v3658
        %v3660 = vperm.slane %v1103, %v3659
        %v3662 = vunpack.c.l.s4 1983009808
        %v3663 = vunpack.c.0.s8 %v3662
        %v3664 = vperm.slane %v3656, %v3663
        %v3665 = vrot.slane %v3660, 4
        %v3666 = vsel %vm2021, 0.0, %v3665
        %v3668 = vunpack.c.l.s4 1934713408
        %v3669 = vunpack.c.0.s8 %v3668
        %v3670 = vperm.slane %v3660, %v3669
        %v3672 = vunpack.c.l.s4 1934713408
        %v3673 = vunpack.c.0.s8 %v3672
        %v3674 = vperm.slane %v3666, %v3673
        %v3675 = vrot.slane %v3664, 4
        %v3676 = vsel %vm2021, 0.0, %v3675
        %v3678 = vunpack.c.l.s4 1934713408
        %v3679 = vunpack.c.0.s8 %v3678
        %v3680 = vperm.slane %v3664, %v3679
        %v3682 = vunpack.c.l.s4 1934713408
        %v3683 = vunpack.c.0.s8 %v3682
        %v3684 = vperm.slane %v3676, %v3683
        %v3685 = vrot.slane %v3670, 4
        %v3686 = vsel %vm2021, 0.0, %v3685
        %v3687 = vrot.slane %v3674, 4
        %v3688 = vsel %vm2021, 0.0, %v3687
        %v3689 = vrot.slane %v3680, 4
        %v3690 = vsel %vm2021, 0.0, %v3689
        %v3691 = vrot.slane %v3684, 4
        %v3692 = vsel %vm2021, 0.0, %v3691
        %v3693 = vrot.slane %v1104, 4
        %v3694 = vsel %vm2021, 0.0, %v3693
        %v3696 = vunpack.c.l.s4 1983009808
        %v3697 = vunpack.c.0.s8 %v3696
        %v3698 = vperm.slane %v1104, %v3697
        %v3700 = vunpack.c.l.s4 1983009808
        %v3701 = vunpack.c.0.s8 %v3700
        %v3702 = vperm.slane %v3694, %v3701
        %v3703 = vrot.slane %v3698, 4
        %v3704 = vsel %vm2021, 0.0, %v3703
        %v3706 = vunpack.c.l.s4 1934713408
        %v3707 = vunpack.c.0.s8 %v3706
        %v3708 = vperm.slane %v3698, %v3707
        %v3710 = vunpack.c.l.s4 1934713408
        %v3711 = vunpack.c.0.s8 %v3710
        %v3712 = vperm.slane %v3704, %v3711
        %v3713 = vrot.slane %v3702, 4
        %v3714 = vsel %vm2021, 0.0, %v3713
        %v3716 = vunpack.c.l.s4 1934713408
        %v3717 = vunpack.c.0.s8 %v3716
        %v3718 = vperm.slane %v3702, %v3717
        %v3720 = vunpack.c.l.s4 1934713408
        %v3721 = vunpack.c.0.s8 %v3720
        %v3722 = vperm.slane %v3714, %v3721
        %v3723 = vrot.slane %v3708, 4
        %v3724 = vsel %vm2021, 0.0, %v3723
        %v3725 = vrot.slane %v3712, 4
        %v3726 = vsel %vm2021, 0.0, %v3725
        %v3727 = vrot.slane %v3718, 4
        %v3728 = vsel %vm2021, 0.0, %v3727
        %v3729 = vrot.slane %v3722, 4
        %v3730 = vsel %vm2021, 0.0, %v3729
        %v3731 = vrot.slane %v1105, 4
        %v3732 = vsel %vm2021, 0.0, %v3731
        %v3734 = vunpack.c.l.s4 1983009808
        %v3735 = vunpack.c.0.s8 %v3734
        %v3736 = vperm.slane %v1105, %v3735
        %v3738 = vunpack.c.l.s4 1983009808
        %v3739 = vunpack.c.0.s8 %v3738
        %v3740 = vperm.slane %v3732, %v3739
        %v3741 = vrot.slane %v3736, 4
        %v3742 = vsel %vm2021, 0.0, %v3741
        %v3744 = vunpack.c.l.s4 1934713408
        %v3745 = vunpack.c.0.s8 %v3744
        %v3746 = vperm.slane %v3736, %v3745
        %v3748 = vunpack.c.l.s4 1934713408
        %v3749 = vunpack.c.0.s8 %v3748
        %v3750 = vperm.slane %v3742, %v3749
        %v3751 = vrot.slane %v3740, 4
        %v3752 = vsel %vm2021, 0.0, %v3751
        %v3754 = vunpack.c.l.s4 1934713408
        %v3755 = vunpack.c.0.s8 %v3754
        %v3756 = vperm.slane %v3740, %v3755
        %v3758 = vunpack.c.l.s4 1934713408
        %v3759 = vunpack.c.0.s8 %v3758
        %v3760 = vperm.slane %v3752, %v3759
        %v3761 = vrot.slane %v3746, 4
        %v3762 = vsel %vm2021, 0.0, %v3761
        %v3763 = vrot.slane %v3750, 4
        %v3764 = vsel %vm2021, 0.0, %v3763
        %v3765 = vrot.slane %v3756, 4
        %v3766 = vsel %vm2021, 0.0, %v3765
        %v3767 = vrot.slane %v3760, 4
        %v3768 = vsel %vm2021, 0.0, %v3767
        %v3769 = vrot.slane %v1106, 4
        %v3770 = vsel %vm2021, 0.0, %v3769
        %v3772 = vunpack.c.l.s4 1983009808
        %v3773 = vunpack.c.0.s8 %v3772
        %v3774 = vperm.slane %v1106, %v3773
        %v3776 = vunpack.c.l.s4 1983009808
        %v3777 = vunpack.c.0.s8 %v3776
        %v3778 = vperm.slane %v3770, %v3777
        %v3779 = vrot.slane %v3774, 4
        %v3780 = vsel %vm2021, 0.0, %v3779
        %v3782 = vunpack.c.l.s4 1934713408
        %v3783 = vunpack.c.0.s8 %v3782
        %v3784 = vperm.slane %v3774, %v3783
        %v3786 = vunpack.c.l.s4 1934713408
        %v3787 = vunpack.c.0.s8 %v3786
        %v3788 = vperm.slane %v3780, %v3787
        %v3789 = vrot.slane %v3778, 4
        %v3790 = vsel %vm2021, 0.0, %v3789
        %v3792 = vunpack.c.l.s4 1934713408
        %v3793 = vunpack.c.0.s8 %v3792
        %v3794 = vperm.slane %v3778, %v3793
        %v3796 = vunpack.c.l.s4 1934713408
        %v3797 = vunpack.c.0.s8 %v3796
        %v3798 = vperm.slane %v3790, %v3797
        %v3799 = vrot.slane %v3784, 4
        %v3800 = vsel %vm2021, 0.0, %v3799
        %v3801 = vrot.slane %v3788, 4
        %v3802 = vsel %vm2021, 0.0, %v3801
        %v3803 = vrot.slane %v3794, 4
        %v3804 = vsel %vm2021, 0.0, %v3803
        %v3805 = vrot.slane %v3798, 4
        %v3806 = vsel %vm2021, 0.0, %v3805
        %v3807 = vrot.slane %v1107, 4
        %v3808 = vsel %vm2021, 0.0, %v3807
        %v3810 = vunpack.c.l.s4 1983009808
        %v3811 = vunpack.c.0.s8 %v3810
        %v3812 = vperm.slane %v1107, %v3811
        %v3814 = vunpack.c.l.s4 1983009808
        %v3815 = vunpack.c.0.s8 %v3814
        %v3816 = vperm.slane %v3808, %v3815
        %v3817 = vrot.slane %v3812, 4
        %v3818 = vsel %vm2021, 0.0, %v3817
        %v3820 = vunpack.c.l.s4 1934713408
        %v3821 = vunpack.c.0.s8 %v3820
        %v3822 = vperm.slane %v3812, %v3821
        %v3824 = vunpack.c.l.s4 1934713408
        %v3825 = vunpack.c.0.s8 %v3824
        %v3826 = vperm.slane %v3818, %v3825
        %v3827 = vrot.slane %v3816, 4
        %v3828 = vsel %vm2021, 0.0, %v3827
        %v3830 = vunpack.c.l.s4 1934713408
        %v3831 = vunpack.c.0.s8 %v3830
        %v3832 = vperm.slane %v3816, %v3831
        %v3834 = vunpack.c.l.s4 1934713408
        %v3835 = vunpack.c.0.s8 %v3834
        %v3836 = vperm.slane %v3828, %v3835
        %v3837 = vrot.slane %v3822, 4
        %v3838 = vsel %vm2021, 0.0, %v3837
        %v3839 = vrot.slane %v3826, 4
        %v3840 = vsel %vm2021, 0.0, %v3839
        %v3841 = vrot.slane %v3832, 4
        %v3842 = vsel %vm2021, 0.0, %v3841
        %v3843 = vrot.slane %v3836, 4
        %v3844 = vsel %vm2021, 0.0, %v3843
        %v3845 = vrot.slane %v1108, 4
        %v3846 = vsel %vm2021, 0.0, %v3845
        %v3848 = vunpack.c.l.s4 1983009808
        %v3849 = vunpack.c.0.s8 %v3848
        %v3850 = vperm.slane %v1108, %v3849
        %v3852 = vunpack.c.l.s4 1983009808
        %v3853 = vunpack.c.0.s8 %v3852
        %v3854 = vperm.slane %v3846, %v3853
        %v3855 = vrot.slane %v3850, 4
        %v3856 = vsel %vm2021, 0.0, %v3855
        %v3858 = vunpack.c.l.s4 1934713408
        %v3859 = vunpack.c.0.s8 %v3858
        %v3860 = vperm.slane %v3850, %v3859
        %v3862 = vunpack.c.l.s4 1934713408
        %v3863 = vunpack.c.0.s8 %v3862
        %v3864 = vperm.slane %v3856, %v3863
        %v3865 = vrot.slane %v3854, 4
        %v3866 = vsel %vm2021, 0.0, %v3865
        %v3868 = vunpack.c.l.s4 1934713408
        %v3869 = vunpack.c.0.s8 %v3868
        %v3870 = vperm.slane %v3854, %v3869
        %v3872 = vunpack.c.l.s4 1934713408
        %v3873 = vunpack.c.0.s8 %v3872
        %v3874 = vperm.slane %v3866, %v3873
        %v3875 = vrot.slane %v3860, 4
        %v3876 = vsel %vm2021, 0.0, %v3875
        %v3877 = vrot.slane %v3864, 4
        %v3878 = vsel %vm2021, 0.0, %v3877
        %v3879 = vrot.slane %v3870, 4
        %v3880 = vsel %vm2021, 0.0, %v3879
        %v3881 = vrot.slane %v3874, 4
        %v3882 = vsel %vm2021, 0.0, %v3881
        %v3883 = vrot.slane %v1109, 4
        %v3884 = vsel %vm2021, 0.0, %v3883
        %v3886 = vunpack.c.l.s4 1983009808
        %v3887 = vunpack.c.0.s8 %v3886
        %v3888 = vperm.slane %v1109, %v3887
        %v3890 = vunpack.c.l.s4 1983009808
        %v3891 = vunpack.c.0.s8 %v3890
        %v3892 = vperm.slane %v3884, %v3891
        %v3893 = vrot.slane %v3888, 4
        %v3894 = vsel %vm2021, 0.0, %v3893
        %v3896 = vunpack.c.l.s4 1934713408
        %v3897 = vunpack.c.0.s8 %v3896
        %v3898 = vperm.slane %v3888, %v3897
        %v3900 = vunpack.c.l.s4 1934713408
        %v3901 = vunpack.c.0.s8 %v3900
        %v3902 = vperm.slane %v3894, %v3901
        %v3903 = vrot.slane %v3892, 4
        %v3904 = vsel %vm2021, 0.0, %v3903
        %v3906 = vunpack.c.l.s4 1934713408
        %v3907 = vunpack.c.0.s8 %v3906
        %v3908 = vperm.slane %v3892, %v3907
        %v3910 = vunpack.c.l.s4 1934713408
        %v3911 = vunpack.c.0.s8 %v3910
        %v3912 = vperm.slane %v3904, %v3911
        %v3913 = vrot.slane %v3898, 4
        %v3914 = vsel %vm2021, 0.0, %v3913
        %v3915 = vrot.slane %v3902, 4
        %v3916 = vsel %vm2021, 0.0, %v3915
        %v3917 = vrot.slane %v3908, 4
        %v3918 = vsel %vm2021, 0.0, %v3917
        %v3919 = vrot.slane %v3912, 4
        %v3920 = vsel %vm2021, 0.0, %v3919
        %v3921 = vrot.slane %v1110, 4
        %v3922 = vsel %vm2021, 0.0, %v3921
        %v3924 = vunpack.c.l.s4 1983009808
        %v3925 = vunpack.c.0.s8 %v3924
        %v3926 = vperm.slane %v1110, %v3925
        %v3928 = vunpack.c.l.s4 1983009808
        %v3929 = vunpack.c.0.s8 %v3928
        %v3930 = vperm.slane %v3922, %v3929
        %v3931 = vrot.slane %v3926, 4
        %v3932 = vsel %vm2021, 0.0, %v3931
        %v3934 = vunpack.c.l.s4 1934713408
        %v3935 = vunpack.c.0.s8 %v3934
        %v3936 = vperm.slane %v3926, %v3935
        %v3938 = vunpack.c.l.s4 1934713408
        %v3939 = vunpack.c.0.s8 %v3938
        %v3940 = vperm.slane %v3932, %v3939
        %v3941 = vrot.slane %v3930, 4
        %v3942 = vsel %vm2021, 0.0, %v3941
        %v3944 = vunpack.c.l.s4 1934713408
        %v3945 = vunpack.c.0.s8 %v3944
        %v3946 = vperm.slane %v3930, %v3945
        %v3948 = vunpack.c.l.s4 1934713408
        %v3949 = vunpack.c.0.s8 %v3948
        %v3950 = vperm.slane %v3942, %v3949
        %v3951 = vrot.slane %v3936, 4
        %v3952 = vsel %vm2021, 0.0, %v3951
        %v3953 = vrot.slane %v3940, 4
        %v3954 = vsel %vm2021, 0.0, %v3953
        %v3955 = vrot.slane %v3946, 4
        %v3956 = vsel %vm2021, 0.0, %v3955
        %v3957 = vrot.slane %v3950, 4
        %v3958 = vsel %vm2021, 0.0, %v3957
        %v3959 = vrot.slane %v1111, 4
        %v3960 = vsel %vm2021, 0.0, %v3959
        %v3962 = vunpack.c.l.s4 1983009808
        %v3963 = vunpack.c.0.s8 %v3962
        %v3964 = vperm.slane %v1111, %v3963
        %v3966 = vunpack.c.l.s4 1983009808
        %v3967 = vunpack.c.0.s8 %v3966
        %v3968 = vperm.slane %v3960, %v3967
        %v3969 = vrot.slane %v3964, 4
        %v3970 = vsel %vm2021, 0.0, %v3969
        %v3972 = vunpack.c.l.s4 1934713408
        %v3973 = vunpack.c.0.s8 %v3972
        %v3974 = vperm.slane %v3964, %v3973
        %v3976 = vunpack.c.l.s4 1934713408
        %v3977 = vunpack.c.0.s8 %v3976
        %v3978 = vperm.slane %v3970, %v3977
        %v3979 = vrot.slane %v3968, 4
        %v3980 = vsel %vm2021, 0.0, %v3979
        %v3982 = vunpack.c.l.s4 1934713408
        %v3983 = vunpack.c.0.s8 %v3982
        %v3984 = vperm.slane %v3968, %v3983
        %v3986 = vunpack.c.l.s4 1934713408
        %v3987 = vunpack.c.0.s8 %v3986
        %v3988 = vperm.slane %v3980, %v3987
        %v3989 = vrot.slane %v3974, 4
        %v3990 = vsel %vm2021, 0.0, %v3989
        %v3991 = vrot.slane %v3978, 4
        %v3992 = vsel %vm2021, 0.0, %v3991
        %v3993 = vrot.slane %v3984, 4
        %v3994 = vsel %vm2021, 0.0, %v3993
        %v3995 = vrot.slane %v3988, 4
        %v3996 = vsel %vm2021, 0.0, %v3995
        %v3997 = vrot.slane %v1112, 4
        %v3998 = vsel %vm2021, 0.0, %v3997
        %v4000 = vunpack.c.l.s4 1983009808
        %v4001 = vunpack.c.0.s8 %v4000
        %v4002 = vperm.slane %v1112, %v4001
        %v4004 = vunpack.c.l.s4 1983009808
        %v4005 = vunpack.c.0.s8 %v4004
        %v4006 = vperm.slane %v3998, %v4005
        %v4007 = vrot.slane %v4002, 4
        %v4008 = vsel %vm2021, 0.0, %v4007
        %v4010 = vunpack.c.l.s4 1934713408
        %v4011 = vunpack.c.0.s8 %v4010
        %v4012 = vperm.slane %v4002, %v4011
        %v4014 = vunpack.c.l.s4 1934713408
        %v4015 = vunpack.c.0.s8 %v4014
        %v4016 = vperm.slane %v4008, %v4015
        %v4017 = vrot.slane %v4006, 4
        %v4018 = vsel %vm2021, 0.0, %v4017
        %v4020 = vunpack.c.l.s4 1934713408
        %v4021 = vunpack.c.0.s8 %v4020
        %v4022 = vperm.slane %v4006, %v4021
        %v4024 = vunpack.c.l.s4 1934713408
        %v4025 = vunpack.c.0.s8 %v4024
        %v4026 = vperm.slane %v4018, %v4025
        %v4027 = vrot.slane %v4012, 4
        %v4028 = vsel %vm2021, 0.0, %v4027
        %v4029 = vrot.slane %v4016, 4
        %v4030 = vsel %vm2021, 0.0, %v4029
        %v4031 = vrot.slane %v4022, 4
        %v4032 = vsel %vm2021, 0.0, %v4031
        %v4033 = vrot.slane %v4026, 4
        %v4034 = vsel %vm2021, 0.0, %v4033
        %v4035 = vrot.slane %v1113, 4
        %v4036 = vsel %vm2021, 0.0, %v4035
        %v4038 = vunpack.c.l.s4 1983009808
        %v4039 = vunpack.c.0.s8 %v4038
        %v4040 = vperm.slane %v1113, %v4039
        %v4042 = vunpack.c.l.s4 1983009808
        %v4043 = vunpack.c.0.s8 %v4042
        %v4044 = vperm.slane %v4036, %v4043
        %v4045 = vrot.slane %v4040, 4
        %v4046 = vsel %vm2021, 0.0, %v4045
        %v4048 = vunpack.c.l.s4 1934713408
        %v4049 = vunpack.c.0.s8 %v4048
        %v4050 = vperm.slane %v4040, %v4049
        %v4052 = vunpack.c.l.s4 1934713408
        %v4053 = vunpack.c.0.s8 %v4052
        %v4054 = vperm.slane %v4046, %v4053
        %v4055 = vrot.slane %v4044, 4
        %v4056 = vsel %vm2021, 0.0, %v4055
        %v4058 = vunpack.c.l.s4 1934713408
        %v4059 = vunpack.c.0.s8 %v4058
        %v4060 = vperm.slane %v4044, %v4059
        %v4062 = vunpack.c.l.s4 1934713408
        %v4063 = vunpack.c.0.s8 %v4062
        %v4064 = vperm.slane %v4056, %v4063
        %v4065 = vrot.slane %v4050, 4
        %v4066 = vsel %vm2021, 0.0, %v4065
        %v4067 = vrot.slane %v4054, 4
        %v4068 = vsel %vm2021, 0.0, %v4067
        %v4069 = vrot.slane %v4060, 4
        %v4070 = vsel %vm2021, 0.0, %v4069
        %v4071 = vrot.slane %v4064, 4
        %v4072 = vsel %vm2021, 0.0, %v4071
        %v4073 = vrot.slane %v1114, 4
        %v4074 = vsel %vm2021, 0.0, %v4073
        %v4076 = vunpack.c.l.s4 1983009808
        %v4077 = vunpack.c.0.s8 %v4076
        %v4078 = vperm.slane %v1114, %v4077
        %v4080 = vunpack.c.l.s4 1983009808
        %v4081 = vunpack.c.0.s8 %v4080
        %v4082 = vperm.slane %v4074, %v4081
        %v4083 = vrot.slane %v4078, 4
        %v4084 = vsel %vm2021, 0.0, %v4083
        %v4086 = vunpack.c.l.s4 1934713408
        %v4087 = vunpack.c.0.s8 %v4086
        %v4088 = vperm.slane %v4078, %v4087
        %v4090 = vunpack.c.l.s4 1934713408
        %v4091 = vunpack.c.0.s8 %v4090
        %v4092 = vperm.slane %v4084, %v4091
        %v4093 = vrot.slane %v4082, 4
        %v4094 = vsel %vm2021, 0.0, %v4093
        %v4096 = vunpack.c.l.s4 1934713408
        %v4097 = vunpack.c.0.s8 %v4096
        %v4098 = vperm.slane %v4082, %v4097
        %v4100 = vunpack.c.l.s4 1934713408
        %v4101 = vunpack.c.0.s8 %v4100
        %v4102 = vperm.slane %v4094, %v4101
        %v4103 = vrot.slane %v4088, 4
        %v4104 = vsel %vm2021, 0.0, %v4103
        %v4105 = vrot.slane %v4092, 4
        %v4106 = vsel %vm2021, 0.0, %v4105
        %v4107 = vrot.slane %v4098, 4
        %v4108 = vsel %vm2021, 0.0, %v4107
        %v4109 = vrot.slane %v4102, 4
        %v4110 = vsel %vm2021, 0.0, %v4109
        %v4111 = vrot.slane %v1115, 4
        %v4112 = vsel %vm2021, 0.0, %v4111
        %v4114 = vunpack.c.l.s4 1983009808
        %v4115 = vunpack.c.0.s8 %v4114
        %v4116 = vperm.slane %v1115, %v4115
        %v4118 = vunpack.c.l.s4 1983009808
        %v4119 = vunpack.c.0.s8 %v4118
        %v4120 = vperm.slane %v4112, %v4119
        %v4121 = vrot.slane %v4116, 4
        %v4122 = vsel %vm2021, 0.0, %v4121
        %v4124 = vunpack.c.l.s4 1934713408
        %v4125 = vunpack.c.0.s8 %v4124
        %v4126 = vperm.slane %v4116, %v4125
        %v4128 = vunpack.c.l.s4 1934713408
        %v4129 = vunpack.c.0.s8 %v4128
        %v4130 = vperm.slane %v4122, %v4129
        %v4131 = vrot.slane %v4120, 4
        %v4132 = vsel %vm2021, 0.0, %v4131
        %v4134 = vunpack.c.l.s4 1934713408
        %v4135 = vunpack.c.0.s8 %v4134
        %v4136 = vperm.slane %v4120, %v4135
        %v4138 = vunpack.c.l.s4 1934713408
        %v4139 = vunpack.c.0.s8 %v4138
        %v4140 = vperm.slane %v4132, %v4139
        %v4141 = vrot.slane %v4126, 4
        %v4142 = vsel %vm2021, 0.0, %v4141
        %v4143 = vrot.slane %v4130, 4
        %v4144 = vsel %vm2021, 0.0, %v4143
        %v4145 = vrot.slane %v4136, 4
        %v4146 = vsel %vm2021, 0.0, %v4145
        %v4147 = vrot.slane %v4140, 4
        %v4148 = vsel %vm2021, 0.0, %v4147
        %v4149 = vrot.slane %v1116, 4
        %v4150 = vsel %vm2021, 0.0, %v4149
        %v4152 = vunpack.c.l.s4 1983009808
        %v4153 = vunpack.c.0.s8 %v4152
        %v4154 = vperm.slane %v1116, %v4153
        %v4156 = vunpack.c.l.s4 1983009808
        %v4157 = vunpack.c.0.s8 %v4156
        %v4158 = vperm.slane %v4150, %v4157
        %v4159 = vrot.slane %v4154, 4
        %v4160 = vsel %vm2021, 0.0, %v4159
        %v4162 = vunpack.c.l.s4 1934713408
        %v4163 = vunpack.c.0.s8 %v4162
        %v4164 = vperm.slane %v4154, %v4163
        %v4166 = vunpack.c.l.s4 1934713408
        %v4167 = vunpack.c.0.s8 %v4166
        %v4168 = vperm.slane %v4160, %v4167
        %v4169 = vrot.slane %v4158, 4
        %v4170 = vsel %vm2021, 0.0, %v4169
        %v4172 = vunpack.c.l.s4 1934713408
        %v4173 = vunpack.c.0.s8 %v4172
        %v4174 = vperm.slane %v4158, %v4173
        %v4176 = vunpack.c.l.s4 1934713408
        %v4177 = vunpack.c.0.s8 %v4176
        %v4178 = vperm.slane %v4170, %v4177
        %v4179 = vrot.slane %v4164, 4
        %v4180 = vsel %vm2021, 0.0, %v4179
        %v4181 = vrot.slane %v4168, 4
        %v4182 = vsel %vm2021, 0.0, %v4181
        %v4183 = vrot.slane %v4174, 4
        %v4184 = vsel %vm2021, 0.0, %v4183
        %v4185 = vrot.slane %v4178, 4
        %v4186 = vsel %vm2021, 0.0, %v4185
        %v4187 = vrot.slane %v1117, 4
        %v4188 = vsel %vm2021, 0.0, %v4187
        %v4190 = vunpack.c.l.s4 1983009808
        %v4191 = vunpack.c.0.s8 %v4190
        %v4192 = vperm.slane %v1117, %v4191
        %v4194 = vunpack.c.l.s4 1983009808
        %v4195 = vunpack.c.0.s8 %v4194
        %v4196 = vperm.slane %v4188, %v4195
        %v4197 = vrot.slane %v4192, 4
        %v4198 = vsel %vm2021, 0.0, %v4197
        %v4200 = vunpack.c.l.s4 1934713408
        %v4201 = vunpack.c.0.s8 %v4200
        %v4202 = vperm.slane %v4192, %v4201
        %v4204 = vunpack.c.l.s4 1934713408
        %v4205 = vunpack.c.0.s8 %v4204
        %v4206 = vperm.slane %v4198, %v4205
        %v4207 = vrot.slane %v4196, 4
        %v4208 = vsel %vm2021, 0.0, %v4207
        %v4210 = vunpack.c.l.s4 1934713408
        %v4211 = vunpack.c.0.s8 %v4210
        %v4212 = vperm.slane %v4196, %v4211
        %v4214 = vunpack.c.l.s4 1934713408
        %v4215 = vunpack.c.0.s8 %v4214
        %v4216 = vperm.slane %v4208, %v4215
        %v4217 = vrot.slane %v4202, 4
        %v4218 = vsel %vm2021, 0.0, %v4217
        %v4219 = vrot.slane %v4206, 4
        %v4220 = vsel %vm2021, 0.0, %v4219
        %v4221 = vrot.slane %v4212, 4
        %v4222 = vsel %vm2021, 0.0, %v4221
        %v4223 = vrot.slane %v4216, 4
        %v4224 = vsel %vm2021, 0.0, %v4223
        %v4225 = vrot.slane %v1118, 4
        %v4226 = vsel %vm2021, 0.0, %v4225
        %v4228 = vunpack.c.l.s4 1983009808
        %v4229 = vunpack.c.0.s8 %v4228
        %v4230 = vperm.slane %v1118, %v4229
        %v4232 = vunpack.c.l.s4 1983009808
        %v4233 = vunpack.c.0.s8 %v4232
        %v4234 = vperm.slane %v4226, %v4233
        %v4235 = vrot.slane %v4230, 4
        %v4236 = vsel %vm2021, 0.0, %v4235
        %v4238 = vunpack.c.l.s4 1934713408
        %v4239 = vunpack.c.0.s8 %v4238
        %v4240 = vperm.slane %v4230, %v4239
        %v4242 = vunpack.c.l.s4 1934713408
        %v4243 = vunpack.c.0.s8 %v4242
        %v4244 = vperm.slane %v4236, %v4243
        %v4245 = vrot.slane %v4234, 4
        %v4246 = vsel %vm2021, 0.0, %v4245
        %v4248 = vunpack.c.l.s4 1934713408
        %v4249 = vunpack.c.0.s8 %v4248
        %v4250 = vperm.slane %v4234, %v4249
        %v4252 = vunpack.c.l.s4 1934713408
        %v4253 = vunpack.c.0.s8 %v4252
        %v4254 = vperm.slane %v4246, %v4253
        %v4255 = vrot.slane %v4240, 4
        %v4256 = vsel %vm2021, 0.0, %v4255
        %v4257 = vrot.slane %v4244, 4
        %v4258 = vsel %vm2021, 0.0, %v4257
        %v4259 = vrot.slane %v4250, 4
        %v4260 = vsel %vm2021, 0.0, %v4259
        %v4261 = vrot.slane %v4254, 4
        %v4262 = vsel %vm2021, 0.0, %v4261
        %v4263 = vrot.slane %v1119, 4
        %v4264 = vsel %vm2021, 0.0, %v4263
        %v4266 = vunpack.c.l.s4 1983009808
        %v4267 = vunpack.c.0.s8 %v4266
        %v4268 = vperm.slane %v1119, %v4267
        %v4270 = vunpack.c.l.s4 1983009808
        %v4271 = vunpack.c.0.s8 %v4270
        %v4272 = vperm.slane %v4264, %v4271
        %v4273 = vrot.slane %v4268, 4
        %v4274 = vsel %vm2021, 0.0, %v4273
        %v4276 = vunpack.c.l.s4 1934713408
        %v4277 = vunpack.c.0.s8 %v4276
        %v4278 = vperm.slane %v4268, %v4277
        %v4280 = vunpack.c.l.s4 1934713408
        %v4281 = vunpack.c.0.s8 %v4280
        %v4282 = vperm.slane %v4274, %v4281
        %v4283 = vrot.slane %v4272, 4
        %v4284 = vsel %vm2021, 0.0, %v4283
        %v4286 = vunpack.c.l.s4 1934713408
        %v4287 = vunpack.c.0.s8 %v4286
        %v4288 = vperm.slane %v4272, %v4287
        %v4290 = vunpack.c.l.s4 1934713408
        %v4291 = vunpack.c.0.s8 %v4290
        %v4292 = vperm.slane %v4284, %v4291
        %v4293 = vrot.slane %v4278, 4
        %v4294 = vsel %vm2021, 0.0, %v4293
        %v4295 = vrot.slane %v4282, 4
        %v4296 = vsel %vm2021, 0.0, %v4295
        %v4297 = vrot.slane %v4288, 4
        %v4298 = vsel %vm2021, 0.0, %v4297
        %v4299 = vrot.slane %v4292, 4
        %v4300 = vsel %vm2021, 0.0, %v4299
        %v4301 = vrot.slane %v1120, 4
        %v4302 = vsel %vm2021, 0.0, %v4301
        %v4304 = vunpack.c.l.s4 1983009808
        %v4305 = vunpack.c.0.s8 %v4304
        %v4306 = vperm.slane %v1120, %v4305
        %v4308 = vunpack.c.l.s4 1983009808
        %v4309 = vunpack.c.0.s8 %v4308
        %v4310 = vperm.slane %v4302, %v4309
        %v4311 = vrot.slane %v4306, 4
        %v4312 = vsel %vm2021, 0.0, %v4311
        %v4314 = vunpack.c.l.s4 1934713408
        %v4315 = vunpack.c.0.s8 %v4314
        %v4316 = vperm.slane %v4306, %v4315
        %v4318 = vunpack.c.l.s4 1934713408
        %v4319 = vunpack.c.0.s8 %v4318
        %v4320 = vperm.slane %v4312, %v4319
        %v4321 = vrot.slane %v4310, 4
        %v4322 = vsel %vm2021, 0.0, %v4321
        %v4324 = vunpack.c.l.s4 1934713408
        %v4325 = vunpack.c.0.s8 %v4324
        %v4326 = vperm.slane %v4310, %v4325
        %v4328 = vunpack.c.l.s4 1934713408
        %v4329 = vunpack.c.0.s8 %v4328
        %v4330 = vperm.slane %v4322, %v4329
        %v4331 = vrot.slane %v4316, 4
        %v4332 = vsel %vm2021, 0.0, %v4331
        %v4333 = vrot.slane %v4320, 4
        %v4334 = vsel %vm2021, 0.0, %v4333
        %v4335 = vrot.slane %v4326, 4
        %v4336 = vsel %vm2021, 0.0, %v4335
        %v4337 = vrot.slane %v4330, 4
        %v4338 = vsel %vm2021, 0.0, %v4337
        %v4339 = vrot.slane %v1121, 4
        %v4340 = vsel %vm2021, 0.0, %v4339
        %v4342 = vunpack.c.l.s4 1983009808
        %v4343 = vunpack.c.0.s8 %v4342
        %v4344 = vperm.slane %v1121, %v4343
        %v4346 = vunpack.c.l.s4 1983009808
        %v4347 = vunpack.c.0.s8 %v4346
        %v4348 = vperm.slane %v4340, %v4347
        %v4349 = vrot.slane %v4344, 4
        %v4350 = vsel %vm2021, 0.0, %v4349
        %v4352 = vunpack.c.l.s4 1934713408
        %v4353 = vunpack.c.0.s8 %v4352
        %v4354 = vperm.slane %v4344, %v4353
        %v4356 = vunpack.c.l.s4 1934713408
        %v4357 = vunpack.c.0.s8 %v4356
        %v4358 = vperm.slane %v4350, %v4357
        %v4359 = vrot.slane %v4348, 4
        %v4360 = vsel %vm2021, 0.0, %v4359
        %v4362 = vunpack.c.l.s4 1934713408
        %v4363 = vunpack.c.0.s8 %v4362
        %v4364 = vperm.slane %v4348, %v4363
        %v4366 = vunpack.c.l.s4 1934713408
        %v4367 = vunpack.c.0.s8 %v4366
        %v4368 = vperm.slane %v4360, %v4367
        %v4369 = vrot.slane %v4354, 4
        %v4370 = vsel %vm2021, 0.0, %v4369
        %v4371 = vrot.slane %v4358, 4
        %v4372 = vsel %vm2021, 0.0, %v4371
        %v4373 = vrot.slane %v4364, 4
        %v4374 = vsel %vm2021, 0.0, %v4373
        %v4375 = vrot.slane %v4368, 4
        %v4376 = vsel %vm2021, 0.0, %v4375
        %v4377 = vrot.slane %v1122, 4
        %v4378 = vsel %vm2021, 0.0, %v4377
        %v4380 = vunpack.c.l.s4 1983009808
        %v4381 = vunpack.c.0.s8 %v4380
        %v4382 = vperm.slane %v1122, %v4381
        %v4384 = vunpack.c.l.s4 1983009808
        %v4385 = vunpack.c.0.s8 %v4384
        %v4386 = vperm.slane %v4378, %v4385
        %v4387 = vrot.slane %v4382, 4
        %v4388 = vsel %vm2021, 0.0, %v4387
        %v4390 = vunpack.c.l.s4 1934713408
        %v4391 = vunpack.c.0.s8 %v4390
        %v4392 = vperm.slane %v4382, %v4391
        %v4394 = vunpack.c.l.s4 1934713408
        %v4395 = vunpack.c.0.s8 %v4394
        %v4396 = vperm.slane %v4388, %v4395
        %v4397 = vrot.slane %v4386, 4
        %v4398 = vsel %vm2021, 0.0, %v4397
        %v4400 = vunpack.c.l.s4 1934713408
        %v4401 = vunpack.c.0.s8 %v4400
        %v4402 = vperm.slane %v4386, %v4401
        %v4404 = vunpack.c.l.s4 1934713408
        %v4405 = vunpack.c.0.s8 %v4404
        %v4406 = vperm.slane %v4398, %v4405
        %v4407 = vrot.slane %v4392, 4
        %v4408 = vsel %vm2021, 0.0, %v4407
        %v4409 = vrot.slane %v4396, 4
        %v4410 = vsel %vm2021, 0.0, %v4409
        %v4411 = vrot.slane %v4402, 4
        %v4412 = vsel %vm2021, 0.0, %v4411
        %v4413 = vrot.slane %v4406, 4
        %v4414 = vsel %vm2021, 0.0, %v4413
        %v4415 = vrot.slane %v1123, 4
        %v4416 = vsel %vm2021, 0.0, %v4415
        %v4418 = vunpack.c.l.s4 1983009808
        %v4419 = vunpack.c.0.s8 %v4418
        %v4420 = vperm.slane %v1123, %v4419
        %v4422 = vunpack.c.l.s4 1983009808
        %v4423 = vunpack.c.0.s8 %v4422
        %v4424 = vperm.slane %v4416, %v4423
        %v4425 = vrot.slane %v4420, 4
        %v4426 = vsel %vm2021, 0.0, %v4425
        %v4428 = vunpack.c.l.s4 1934713408
        %v4429 = vunpack.c.0.s8 %v4428
        %v4430 = vperm.slane %v4420, %v4429
        %v4432 = vunpack.c.l.s4 1934713408
        %v4433 = vunpack.c.0.s8 %v4432
        %v4434 = vperm.slane %v4426, %v4433
        %v4435 = vrot.slane %v4424, 4
        %v4436 = vsel %vm2021, 0.0, %v4435
        %v4438 = vunpack.c.l.s4 1934713408
        %v4439 = vunpack.c.0.s8 %v4438
        %v4440 = vperm.slane %v4424, %v4439
        %v4442 = vunpack.c.l.s4 1934713408
        %v4443 = vunpack.c.0.s8 %v4442
        %v4444 = vperm.slane %v4436, %v4443
        %v4445 = vrot.slane %v4430, 4
        %v4446 = vsel %vm2021, 0.0, %v4445
        %v4447 = vrot.slane %v4434, 4
        %v4448 = vsel %vm2021, 0.0, %v4447
        %v4449 = vrot.slane %v4440, 4
        %v4450 = vsel %vm2021, 0.0, %v4449
        %v4451 = vrot.slane %v4444, 4
        %v4452 = vsel %vm2021, 0.0, %v4451
        %4485 = vrot.lane.b32.xlu0 %v2052, 2
        %v4486 = vpop.permute.xlu0 %4485
        %4487 = vrot.lane.b32.xlu0 %v2128, 2
        %v4488 = vpop.permute.xlu0 %4487
        %4489 = vrot.lane.b32.xlu0 %v2204, 2
        %v4490 = vpop.permute.xlu0 %4489
        %4491 = vrot.lane.b32.xlu0 %v2280, 2
        %v4492 = vpop.permute.xlu0 %4491
        %4493 = vrot.lane.b32.xlu0 %v2356, 2
        %v4494 = vpop.permute.xlu0 %4493
        %4495 = vrot.lane.b32.xlu0 %v2432, 2
        %v4496 = vpop.permute.xlu0 %4495
        %4497 = vrot.lane.b32.xlu0 %v2508, 2
        %v4498 = vpop.permute.xlu0 %4497
        %4499 = vrot.lane.b32.xlu0 %v2584, 2
        %v4500 = vpop.permute.xlu0 %4499
        %4501 = vrot.lane.b32.xlu0 %v2660, 2
        %v4502 = vpop.permute.xlu0 %4501
        %4503 = vrot.lane.b32.xlu0 %v2736, 2
        %v4504 = vpop.permute.xlu0 %4503
        %4505 = vrot.lane.b32.xlu0 %v2812, 2
        %v4506 = vpop.permute.xlu0 %4505
        %4507 = vrot.lane.b32.xlu0 %v2888, 2
        %v4508 = vpop.permute.xlu0 %4507
        %4509 = vrot.lane.b32.xlu0 %v2964, 2
        %v4510 = vpop.permute.xlu0 %4509
        %4511 = vrot.lane.b32.xlu0 %v3040, 2
        %v4512 = vpop.permute.xlu0 %4511
        %4513 = vrot.lane.b32.xlu0 %v3116, 2
        %v4514 = vpop.permute.xlu0 %4513
        %4515 = vrot.lane.b32.xlu0 %v3192, 2
        %v4516 = vpop.permute.xlu0 %4515
        %4517 = vrot.lane.b32.xlu0 %v3268, 2
        %v4518 = vpop.permute.xlu0 %4517
        %4519 = vrot.lane.b32.xlu0 %v3344, 2
        %v4520 = vpop.permute.xlu0 %4519
        %4521 = vrot.lane.b32.xlu0 %v3420, 2
        %v4522 = vpop.permute.xlu0 %4521
        %4523 = vrot.lane.b32.xlu0 %v3496, 2
        %v4524 = vpop.permute.xlu0 %4523
        %4525 = vrot.lane.b32.xlu0 %v3572, 2
        %v4526 = vpop.permute.xlu0 %4525
        %4527 = vrot.lane.b32.xlu0 %v3648, 2
        %v4528 = vpop.permute.xlu0 %4527
        %4529 = vrot.lane.b32.xlu0 %v3724, 2
        %v4530 = vpop.permute.xlu0 %4529
        %4531 = vrot.lane.b32.xlu0 %v3800, 2
        %v4532 = vpop.permute.xlu0 %4531
        %4533 = vrot.lane.b32.xlu0 %v3876, 2
        %v4534 = vpop.permute.xlu0 %4533
        %4535 = vrot.lane.b32.xlu0 %v3952, 2
        %v4536 = vpop.permute.xlu0 %4535
        %4537 = vrot.lane.b32.xlu0 %v4028, 2
        %v4538 = vpop.permute.xlu0 %4537
        %4539 = vrot.lane.b32.xlu0 %v4104, 2
        %v4540 = vpop.permute.xlu0 %4539
        %4541 = vrot.lane.b32.xlu0 %v4180, 2
        %v4542 = vpop.permute.xlu0 %4541
        %4543 = vrot.lane.b32.xlu0 %v4256, 2
        %v4544 = vpop.permute.xlu0 %4543
        %4545 = vrot.lane.b32.xlu0 %v4332, 2
        %v4546 = vpop.permute.xlu0 %4545
        %4547 = vrot.lane.b32.xlu0 %v4408, 2
        %v4548 = vpop.permute.xlu0 %4547
        %4613 = vrot.lane.b32.xlu0 %v2040, 4
        %v4614 = vpop.permute.xlu0 %4613
        %4615 = vrot.lane.b32.xlu0 %v2116, 4
        %v4616 = vpop.permute.xlu0 %4615
        %4617 = vrot.lane.b32.xlu0 %v2192, 4
        %v4618 = vpop.permute.xlu0 %4617
        %4619 = vrot.lane.b32.xlu0 %v2268, 4
        %v4620 = vpop.permute.xlu0 %4619
        %4621 = vrot.lane.b32.xlu0 %v2344, 4
        %v4622 = vpop.permute.xlu0 %4621
        %4623 = vrot.lane.b32.xlu0 %v2420, 4
        %v4624 = vpop.permute.xlu0 %4623
        %4625 = vrot.lane.b32.xlu0 %v2496, 4
        %v4626 = vpop.permute.xlu0 %4625
        %4627 = vrot.lane.b32.xlu0 %v2572, 4
        %v4628 = vpop.permute.xlu0 %4627
        %4629 = vrot.lane.b32.xlu0 %v2648, 4
        %v4630 = vpop.permute.xlu0 %4629
        %4631 = vrot.lane.b32.xlu0 %v2724, 4
        %v4632 = vpop.permute.xlu0 %4631
        %4633 = vrot.lane.b32.xlu0 %v2800, 4
        %v4634 = vpop.permute.xlu0 %4633
        %4635 = vrot.lane.b32.xlu0 %v2876, 4
        %v4636 = vpop.permute.xlu0 %4635
        %4637 = vrot.lane.b32.xlu0 %v2952, 4
        %v4638 = vpop.permute.xlu0 %4637
        %4639 = vrot.lane.b32.xlu0 %v3028, 4
        %v4640 = vpop.permute.xlu0 %4639
        %4641 = vrot.lane.b32.xlu0 %v3104, 4
        %v4642 = vpop.permute.xlu0 %4641
        %4643 = vrot.lane.b32.xlu0 %v3180, 4
        %v4644 = vpop.permute.xlu0 %4643
        %4645 = vrot.lane.b32.xlu0 %v3256, 4
        %v4646 = vpop.permute.xlu0 %4645
        %4647 = vrot.lane.b32.xlu0 %v3332, 4
        %v4648 = vpop.permute.xlu0 %4647
        %4649 = vrot.lane.b32.xlu0 %v3408, 4
        %v4650 = vpop.permute.xlu0 %4649
        %4651 = vrot.lane.b32.xlu0 %v3484, 4
        %v4652 = vpop.permute.xlu0 %4651
        %4653 = vrot.lane.b32.xlu0 %v3560, 4
        %v4654 = vpop.permute.xlu0 %4653
        %4655 = vrot.lane.b32.xlu0 %v3636, 4
        %v4656 = vpop.permute.xlu0 %4655
        %4657 = vrot.lane.b32.xlu0 %v3712, 4
        %v4658 = vpop.permute.xlu0 %4657
        %4659 = vrot.lane.b32.xlu0 %v3788, 4
        %v4660 = vpop.permute.xlu0 %4659
        %4661 = vrot.lane.b32.xlu0 %v3864, 4
        %v4662 = vpop.permute.xlu0 %4661
        %4663 = vrot.lane.b32.xlu0 %v3940, 4
        %v4664 = vpop.permute.xlu0 %4663
        %4665 = vrot.lane.b32.xlu0 %v4016, 4
        %v4666 = vpop.permute.xlu0 %4665
        %4667 = vrot.lane.b32.xlu0 %v4092, 4
        %v4668 = vpop.permute.xlu0 %4667
        %4669 = vrot.lane.b32.xlu0 %v4168, 4
        %v4670 = vpop.permute.xlu0 %4669
        %4671 = vrot.lane.b32.xlu0 %v4244, 4
        %v4672 = vpop.permute.xlu0 %4671
        %4673 = vrot.lane.b32.xlu0 %v4320, 4
        %v4674 = vpop.permute.xlu0 %4673
        %4675 = vrot.lane.b32.xlu0 %v4396, 4
        %v4676 = vpop.permute.xlu0 %4675
        %4741 = vrot.lane.b32.xlu0 %v2054, 6
        %v4742 = vpop.permute.xlu0 %4741
        %4743 = vrot.lane.b32.xlu0 %v2130, 6
        %v4744 = vpop.permute.xlu0 %4743
        %4745 = vrot.lane.b32.xlu0 %v2206, 6
        %v4746 = vpop.permute.xlu0 %4745
        %4747 = vrot.lane.b32.xlu0 %v2282, 6
        %v4748 = vpop.permute.xlu0 %4747
        %4749 = vrot.lane.b32.xlu0 %v2358, 6
        %v4750 = vpop.permute.xlu0 %4749
        %4751 = vrot.lane.b32.xlu0 %v2434, 6
        %v4752 = vpop.permute.xlu0 %4751
        %4753 = vrot.lane.b32.xlu0 %v2510, 6
        %v4754 = vpop.permute.xlu0 %4753
        %4755 = vrot.lane.b32.xlu0 %v2586, 6
        %v4756 = vpop.permute.xlu0 %4755
        %4757 = vrot.lane.b32.xlu0 %v2662, 6
        %v4758 = vpop.permute.xlu0 %4757
        %4759 = vrot.lane.b32.xlu0 %v2738, 6
        %v4760 = vpop.permute.xlu0 %4759
        %4761 = vrot.lane.b32.xlu0 %v2814, 6
        %v4762 = vpop.permute.xlu0 %4761
        %4763 = vrot.lane.b32.xlu0 %v2890, 6
        %v4764 = vpop.permute.xlu0 %4763
        %4765 = vrot.lane.b32.xlu0 %v2966, 6
        %v4766 = vpop.permute.xlu0 %4765
        %4767 = vrot.lane.b32.xlu0 %v3042, 6
        %v4768 = vpop.permute.xlu0 %4767
        %4769 = vrot.lane.b32.xlu0 %v3118, 6
        %v4770 = vpop.permute.xlu0 %4769
        %4771 = vrot.lane.b32.xlu0 %v3194, 6
        %v4772 = vpop.permute.xlu0 %4771
        %4773 = vrot.lane.b32.xlu0 %v3270, 6
        %v4774 = vpop.permute.xlu0 %4773
        %4775 = vrot.lane.b32.xlu0 %v3346, 6
        %v4776 = vpop.permute.xlu0 %4775
        %4777 = vrot.lane.b32.xlu0 %v3422, 6
        %v4778 = vpop.permute.xlu0 %4777
        %4779 = vrot.lane.b32.xlu0 %v3498, 6
        %v4780 = vpop.permute.xlu0 %4779
        %4781 = vrot.lane.b32.xlu0 %v3574, 6
        %v4782 = vpop.permute.xlu0 %4781
        %4783 = vrot.lane.b32.xlu0 %v3650, 6
        %v4784 = vpop.permute.xlu0 %4783
        %4785 = vrot.lane.b32.xlu0 %v3726, 6
        %v4786 = vpop.permute.xlu0 %4785
        %4787 = vrot.lane.b32.xlu0 %v3802, 6
        %v4788 = vpop.permute.xlu0 %4787
        %4789 = vrot.lane.b32.xlu0 %v3878, 6
        %v4790 = vpop.permute.xlu0 %4789
        %4791 = vrot.lane.b32.xlu0 %v3954, 6
        %v4792 = vpop.permute.xlu0 %4791
        %4793 = vrot.lane.b32.xlu0 %v4030, 6
        %v4794 = vpop.permute.xlu0 %4793
        %4795 = vrot.lane.b32.xlu0 %v4106, 6
        %v4796 = vpop.permute.xlu0 %4795
        %4797 = vrot.lane.b32.xlu0 %v4182, 6
        %v4798 = vpop.permute.xlu0 %4797
        %4799 = vrot.lane.b32.xlu0 %v4258, 6
        %v4800 = vpop.permute.xlu0 %4799
        %4801 = vrot.lane.b32.xlu0 %v4334, 6
        %v4802 = vpop.permute.xlu0 %4801
        %4803 = vrot.lane.b32.xlu0 %v4410, 6
        %v4804 = vpop.permute.xlu0 %4803
        %4869 = vrot.lane.b32.xlu0 %v2046, 8
        %v4870 = vpop.permute.xlu0 %4869
        %4871 = vrot.lane.b32.xlu0 %v2122, 8
        %v4872 = vpop.permute.xlu0 %4871
        %4873 = vrot.lane.b32.xlu0 %v2198, 8
        %v4874 = vpop.permute.xlu0 %4873
        %4875 = vrot.lane.b32.xlu0 %v2274, 8
        %v4876 = vpop.permute.xlu0 %4875
        %4877 = vrot.lane.b32.xlu0 %v2350, 8
        %v4878 = vpop.permute.xlu0 %4877
        %4879 = vrot.lane.b32.xlu0 %v2426, 8
        %v4880 = vpop.permute.xlu0 %4879
        %4881 = vrot.lane.b32.xlu0 %v2502, 8
        %v4882 = vpop.permute.xlu0 %4881
        %4883 = vrot.lane.b32.xlu0 %v2578, 8
        %v4884 = vpop.permute.xlu0 %4883
        %4885 = vrot.lane.b32.xlu0 %v2654, 8
        %v4886 = vpop.permute.xlu0 %4885
        %4887 = vrot.lane.b32.xlu0 %v2730, 8
        %v4888 = vpop.permute.xlu0 %4887
        %4889 = vrot.lane.b32.xlu0 %v2806, 8
        %v4890 = vpop.permute.xlu0 %4889
        %4891 = vrot.lane.b32.xlu0 %v2882, 8
        %v4892 = vpop.permute.xlu0 %4891
        %4893 = vrot.lane.b32.xlu0 %v2958, 8
        %v4894 = vpop.permute.xlu0 %4893
        %4895 = vrot.lane.b32.xlu0 %v3034, 8
        %v4896 = vpop.permute.xlu0 %4895
        %4897 = vrot.lane.b32.xlu0 %v3110, 8
        %v4898 = vpop.permute.xlu0 %4897
        %4899 = vrot.lane.b32.xlu0 %v3186, 8
        %v4900 = vpop.permute.xlu0 %4899
        %4901 = vrot.lane.b32.xlu0 %v3262, 8
        %v4902 = vpop.permute.xlu0 %4901
        %4903 = vrot.lane.b32.xlu0 %v3338, 8
        %v4904 = vpop.permute.xlu0 %4903
        %4905 = vrot.lane.b32.xlu0 %v3414, 8
        %v4906 = vpop.permute.xlu0 %4905
        %4907 = vrot.lane.b32.xlu0 %v3490, 8
        %v4908 = vpop.permute.xlu0 %4907
        %4909 = vrot.lane.b32.xlu0 %v3566, 8
        %v4910 = vpop.permute.xlu0 %4909
        %4911 = vrot.lane.b32.xlu0 %v3642, 8
        %v4912 = vpop.permute.xlu0 %4911
        %4913 = vrot.lane.b32.xlu0 %v3718, 8
        %v4914 = vpop.permute.xlu0 %4913
        %4915 = vrot.lane.b32.xlu0 %v3794, 8
        %v4916 = vpop.permute.xlu0 %4915
        %4917 = vrot.lane.b32.xlu0 %v3870, 8
        %v4918 = vpop.permute.xlu0 %4917
        %4919 = vrot.lane.b32.xlu0 %v3946, 8
        %v4920 = vpop.permute.xlu0 %4919
        %4921 = vrot.lane.b32.xlu0 %v4022, 8
        %v4922 = vpop.permute.xlu0 %4921
        %4923 = vrot.lane.b32.xlu0 %v4098, 8
        %v4924 = vpop.permute.xlu0 %4923
        %4925 = vrot.lane.b32.xlu0 %v4174, 8
        %v4926 = vpop.permute.xlu0 %4925
        %4927 = vrot.lane.b32.xlu0 %v4250, 8
        %v4928 = vpop.permute.xlu0 %4927
        %4929 = vrot.lane.b32.xlu0 %v4326, 8
        %v4930 = vpop.permute.xlu0 %4929
        %4931 = vrot.lane.b32.xlu0 %v4402, 8
        %v4932 = vpop.permute.xlu0 %4931
        %4997 = vrot.lane.b32.xlu0 %v2056, 10
        %v4998 = vpop.permute.xlu0 %4997
        %4999 = vrot.lane.b32.xlu0 %v2132, 10
        %v5000 = vpop.permute.xlu0 %4999
        %5001 = vrot.lane.b32.xlu0 %v2208, 10
        %v5002 = vpop.permute.xlu0 %5001
        %5003 = vrot.lane.b32.xlu0 %v2284, 10
        %v5004 = vpop.permute.xlu0 %5003
        %5005 = vrot.lane.b32.xlu0 %v2360, 10
        %v5006 = vpop.permute.xlu0 %5005
        %5007 = vrot.lane.b32.xlu0 %v2436, 10
        %v5008 = vpop.permute.xlu0 %5007
        %5009 = vrot.lane.b32.xlu0 %v2512, 10
        %v5010 = vpop.permute.xlu0 %5009
        %5011 = vrot.lane.b32.xlu0 %v2588, 10
        %v5012 = vpop.permute.xlu0 %5011
        %5013 = vrot.lane.b32.xlu0 %v2664, 10
        %v5014 = vpop.permute.xlu0 %5013
        %5015 = vrot.lane.b32.xlu0 %v2740, 10
        %v5016 = vpop.permute.xlu0 %5015
        %5017 = vrot.lane.b32.xlu0 %v2816, 10
        %v5018 = vpop.permute.xlu0 %5017
        %5019 = vrot.lane.b32.xlu0 %v2892, 10
        %v5020 = vpop.permute.xlu0 %5019
        %5021 = vrot.lane.b32.xlu0 %v2968, 10
        %v5022 = vpop.permute.xlu0 %5021
        %5023 = vrot.lane.b32.xlu0 %v3044, 10
        %v5024 = vpop.permute.xlu0 %5023
        %5025 = vrot.lane.b32.xlu0 %v3120, 10
        %v5026 = vpop.permute.xlu0 %5025
        %5027 = vrot.lane.b32.xlu0 %v3196, 10
        %v5028 = vpop.permute.xlu0 %5027
        %5029 = vrot.lane.b32.xlu0 %v3272, 10
        %v5030 = vpop.permute.xlu0 %5029
        %5031 = vrot.lane.b32.xlu0 %v3348, 10
        %v5032 = vpop.permute.xlu0 %5031
        %5033 = vrot.lane.b32.xlu0 %v3424, 10
        %v5034 = vpop.permute.xlu0 %5033
        %5035 = vrot.lane.b32.xlu0 %v3500, 10
        %v5036 = vpop.permute.xlu0 %5035
        %5037 = vrot.lane.b32.xlu0 %v3576, 10
        %v5038 = vpop.permute.xlu0 %5037
        %5039 = vrot.lane.b32.xlu0 %v3652, 10
        %v5040 = vpop.permute.xlu0 %5039
        %5041 = vrot.lane.b32.xlu0 %v3728, 10
        %v5042 = vpop.permute.xlu0 %5041
        %5043 = vrot.lane.b32.xlu0 %v3804, 10
        %v5044 = vpop.permute.xlu0 %5043
        %5045 = vrot.lane.b32.xlu0 %v3880, 10
        %v5046 = vpop.permute.xlu0 %5045
        %5047 = vrot.lane.b32.xlu0 %v3956, 10
        %v5048 = vpop.permute.xlu0 %5047
        %5049 = vrot.lane.b32.xlu0 %v4032, 10
        %v5050 = vpop.permute.xlu0 %5049
        %5051 = vrot.lane.b32.xlu0 %v4108, 10
        %v5052 = vpop.permute.xlu0 %5051
        %5053 = vrot.lane.b32.xlu0 %v4184, 10
        %v5054 = vpop.permute.xlu0 %5053
        %5055 = vrot.lane.b32.xlu0 %v4260, 10
        %v5056 = vpop.permute.xlu0 %5055
        %5057 = vrot.lane.b32.xlu0 %v4336, 10
        %v5058 = vpop.permute.xlu0 %5057
        %5059 = vrot.lane.b32.xlu0 %v4412, 10
        %v5060 = vpop.permute.xlu0 %5059
        %5125 = vrot.lane.b32.xlu0 %v2050, 12
        %v5126 = vpop.permute.xlu0 %5125
        %5127 = vrot.lane.b32.xlu0 %v2126, 12
        %v5128 = vpop.permute.xlu0 %5127
        %5129 = vrot.lane.b32.xlu0 %v2202, 12
        %v5130 = vpop.permute.xlu0 %5129
        %5131 = vrot.lane.b32.xlu0 %v2278, 12
        %v5132 = vpop.permute.xlu0 %5131
        %5133 = vrot.lane.b32.xlu0 %v2354, 12
        %v5134 = vpop.permute.xlu0 %5133
        %5135 = vrot.lane.b32.xlu0 %v2430, 12
        %v5136 = vpop.permute.xlu0 %5135
        %5137 = vrot.lane.b32.xlu0 %v2506, 12
        %v5138 = vpop.permute.xlu0 %5137
        %5139 = vrot.lane.b32.xlu0 %v2582, 12
        %v5140 = vpop.permute.xlu0 %5139
        %5141 = vrot.lane.b32.xlu0 %v2658, 12
        %v5142 = vpop.permute.xlu0 %5141
        %5143 = vrot.lane.b32.xlu0 %v2734, 12
        %v5144 = vpop.permute.xlu0 %5143
        %5145 = vrot.lane.b32.xlu0 %v2810, 12
        %v5146 = vpop.permute.xlu0 %5145
        %5147 = vrot.lane.b32.xlu0 %v2886, 12
        %v5148 = vpop.permute.xlu0 %5147
        %5149 = vrot.lane.b32.xlu0 %v2962, 12
        %v5150 = vpop.permute.xlu0 %5149
        %5151 = vrot.lane.b32.xlu0 %v3038, 12
        %v5152 = vpop.permute.xlu0 %5151
        %5153 = vrot.lane.b32.xlu0 %v3114, 12
        %v5154 = vpop.permute.xlu0 %5153
        %5155 = vrot.lane.b32.xlu0 %v3190, 12
        %v5156 = vpop.permute.xlu0 %5155
        %5157 = vrot.lane.b32.xlu0 %v3266, 12
        %v5158 = vpop.permute.xlu0 %5157
        %5159 = vrot.lane.b32.xlu0 %v3342, 12
        %v5160 = vpop.permute.xlu0 %5159
        %5161 = vrot.lane.b32.xlu0 %v3418, 12
        %v5162 = vpop.permute.xlu0 %5161
        %5163 = vrot.lane.b32.xlu0 %v3494, 12
        %v5164 = vpop.permute.xlu0 %5163
        %5165 = vrot.lane.b32.xlu0 %v3570, 12
        %v5166 = vpop.permute.xlu0 %5165
        %5167 = vrot.lane.b32.xlu0 %v3646, 12
        %v5168 = vpop.permute.xlu0 %5167
        %5169 = vrot.lane.b32.xlu0 %v3722, 12
        %v5170 = vpop.permute.xlu0 %5169
        %5171 = vrot.lane.b32.xlu0 %v3798, 12
        %v5172 = vpop.permute.xlu0 %5171
        %5173 = vrot.lane.b32.xlu0 %v3874, 12
        %v5174 = vpop.permute.xlu0 %5173
        %5175 = vrot.lane.b32.xlu0 %v3950, 12
        %v5176 = vpop.permute.xlu0 %5175
        %5177 = vrot.lane.b32.xlu0 %v4026, 12
        %v5178 = vpop.permute.xlu0 %5177
        %5179 = vrot.lane.b32.xlu0 %v4102, 12
        %v5180 = vpop.permute.xlu0 %5179
        %5181 = vrot.lane.b32.xlu0 %v4178, 12
        %v5182 = vpop.permute.xlu0 %5181
        %5183 = vrot.lane.b32.xlu0 %v4254, 12
        %v5184 = vpop.permute.xlu0 %5183
        %5185 = vrot.lane.b32.xlu0 %v4330, 12
        %v5186 = vpop.permute.xlu0 %5185
        %5187 = vrot.lane.b32.xlu0 %v4406, 12
        %v5188 = vpop.permute.xlu0 %5187
        %5253 = vrot.lane.b32.xlu0 %v2058, 14
        %v5254 = vpop.permute.xlu0 %5253
        %5255 = vrot.lane.b32.xlu0 %v2134, 14
        %v5256 = vpop.permute.xlu0 %5255
        %5257 = vrot.lane.b32.xlu0 %v2210, 14
        %v5258 = vpop.permute.xlu0 %5257
        %5259 = vrot.lane.b32.xlu0 %v2286, 14
        %v5260 = vpop.permute.xlu0 %5259
        %5261 = vrot.lane.b32.xlu0 %v2362, 14
        %v5262 = vpop.permute.xlu0 %5261
        %5263 = vrot.lane.b32.xlu0 %v2438, 14
        %v5264 = vpop.permute.xlu0 %5263
        %5265 = vrot.lane.b32.xlu0 %v2514, 14
        %v5266 = vpop.permute.xlu0 %5265
        %5267 = vrot.lane.b32.xlu0 %v2590, 14
        %v5268 = vpop.permute.xlu0 %5267
        %5269 = vrot.lane.b32.xlu0 %v2666, 14
        %v5270 = vpop.permute.xlu0 %5269
        %5271 = vrot.lane.b32.xlu0 %v2742, 14
        %v5272 = vpop.permute.xlu0 %5271
        %5273 = vrot.lane.b32.xlu0 %v2818, 14
        %v5274 = vpop.permute.xlu0 %5273
        %5275 = vrot.lane.b32.xlu0 %v2894, 14
        %v5276 = vpop.permute.xlu0 %5275
        %5277 = vrot.lane.b32.xlu0 %v2970, 14
        %v5278 = vpop.permute.xlu0 %5277
        %5279 = vrot.lane.b32.xlu0 %v3046, 14
        %v5280 = vpop.permute.xlu0 %5279
        %5281 = vrot.lane.b32.xlu0 %v3122, 14
        %v5282 = vpop.permute.xlu0 %5281
        %5283 = vrot.lane.b32.xlu0 %v3198, 14
        %v5284 = vpop.permute.xlu0 %5283
        %5285 = vrot.lane.b32.xlu0 %v3274, 14
        %v5286 = vpop.permute.xlu0 %5285
        %5287 = vrot.lane.b32.xlu0 %v3350, 14
        %v5288 = vpop.permute.xlu0 %5287
        %5289 = vrot.lane.b32.xlu0 %v3426, 14
        %v5290 = vpop.permute.xlu0 %5289
        %5291 = vrot.lane.b32.xlu0 %v3502, 14
        %v5292 = vpop.permute.xlu0 %5291
        %5293 = vrot.lane.b32.xlu0 %v3578, 14
        %v5294 = vpop.permute.xlu0 %5293
        %5295 = vrot.lane.b32.xlu0 %v3654, 14
        %v5296 = vpop.permute.xlu0 %5295
        %5297 = vrot.lane.b32.xlu0 %v3730, 14
        %v5298 = vpop.permute.xlu0 %5297
        %5299 = vrot.lane.b32.xlu0 %v3806, 14
        %v5300 = vpop.permute.xlu0 %5299
        %5301 = vrot.lane.b32.xlu0 %v3882, 14
        %v5302 = vpop.permute.xlu0 %5301
        %5303 = vrot.lane.b32.xlu0 %v3958, 14
        %v5304 = vpop.permute.xlu0 %5303
        %5305 = vrot.lane.b32.xlu0 %v4034, 14
        %v5306 = vpop.permute.xlu0 %5305
        %5307 = vrot.lane.b32.xlu0 %v4110, 14
        %v5308 = vpop.permute.xlu0 %5307
        %5309 = vrot.lane.b32.xlu0 %v4186, 14
        %v5310 = vpop.permute.xlu0 %5309
        %5311 = vrot.lane.b32.xlu0 %v4262, 14
        %v5312 = vpop.permute.xlu0 %5311
        %5313 = vrot.lane.b32.xlu0 %v4338, 14
        %v5314 = vpop.permute.xlu0 %5313
        %5315 = vrot.lane.b32.xlu0 %v4414, 14
        %v5316 = vpop.permute.xlu0 %5315
        %5381 = vrot.lane.b32.xlu0 %v2074, 16
        %v5382 = vpop.permute.xlu0 %5381
        %5383 = vrot.lane.b32.xlu0 %v2150, 16
        %v5384 = vpop.permute.xlu0 %5383
        %5385 = vrot.lane.b32.xlu0 %v2226, 16
        %v5386 = vpop.permute.xlu0 %5385
        %5387 = vrot.lane.b32.xlu0 %v2302, 16
        %v5388 = vpop.permute.xlu0 %5387
        %5389 = vrot.lane.b32.xlu0 %v2378, 16
        %v5390 = vpop.permute.xlu0 %5389
        %5391 = vrot.lane.b32.xlu0 %v2454, 16
        %v5392 = vpop.permute.xlu0 %5391
        %5393 = vrot.lane.b32.xlu0 %v2530, 16
        %v5394 = vpop.permute.xlu0 %5393
        %5395 = vrot.lane.b32.xlu0 %v2606, 16
        %v5396 = vpop.permute.xlu0 %5395
        %5397 = vrot.lane.b32.xlu0 %v2682, 16
        %v5398 = vpop.permute.xlu0 %5397
        %5399 = vrot.lane.b32.xlu0 %v2758, 16
        %v5400 = vpop.permute.xlu0 %5399
        %5401 = vrot.lane.b32.xlu0 %v2834, 16
        %v5402 = vpop.permute.xlu0 %5401
        %5403 = vrot.lane.b32.xlu0 %v2910, 16
        %v5404 = vpop.permute.xlu0 %5403
        %5405 = vrot.lane.b32.xlu0 %v2986, 16
        %v5406 = vpop.permute.xlu0 %5405
        %5407 = vrot.lane.b32.xlu0 %v3062, 16
        %v5408 = vpop.permute.xlu0 %5407
        %5409 = vrot.lane.b32.xlu0 %v3138, 16
        %v5410 = vpop.permute.xlu0 %5409
        %5411 = vrot.lane.b32.xlu0 %v3214, 16
        %v5412 = vpop.permute.xlu0 %5411
        %5413 = vrot.lane.b32.xlu0 %v3290, 16
        %v5414 = vpop.permute.xlu0 %5413
        %5415 = vrot.lane.b32.xlu0 %v3366, 16
        %v5416 = vpop.permute.xlu0 %5415
        %5417 = vrot.lane.b32.xlu0 %v3442, 16
        %v5418 = vpop.permute.xlu0 %5417
        %5419 = vrot.lane.b32.xlu0 %v3518, 16
        %v5420 = vpop.permute.xlu0 %5419
        %5421 = vrot.lane.b32.xlu0 %v3594, 16
        %v5422 = vpop.permute.xlu0 %5421
        %5423 = vrot.lane.b32.xlu0 %v3670, 16
        %v5424 = vpop.permute.xlu0 %5423
        %5425 = vrot.lane.b32.xlu0 %v3746, 16
        %v5426 = vpop.permute.xlu0 %5425
        %5427 = vrot.lane.b32.xlu0 %v3822, 16
        %v5428 = vpop.permute.xlu0 %5427
        %5429 = vrot.lane.b32.xlu0 %v3898, 16
        %v5430 = vpop.permute.xlu0 %5429
        %5431 = vrot.lane.b32.xlu0 %v3974, 16
        %v5432 = vpop.permute.xlu0 %5431
        %5433 = vrot.lane.b32.xlu0 %v4050, 16
        %v5434 = vpop.permute.xlu0 %5433
        %5435 = vrot.lane.b32.xlu0 %v4126, 16
        %v5436 = vpop.permute.xlu0 %5435
        %5437 = vrot.lane.b32.xlu0 %v4202, 16
        %v5438 = vpop.permute.xlu0 %5437
        %5439 = vrot.lane.b32.xlu0 %v4278, 16
        %v5440 = vpop.permute.xlu0 %5439
        %5441 = vrot.lane.b32.xlu0 %v4354, 16
        %v5442 = vpop.permute.xlu0 %5441
        %5443 = vrot.lane.b32.xlu0 %v4430, 16
        %v5444 = vpop.permute.xlu0 %5443
        %5509 = vrot.lane.b32.xlu0 %v2090, 18
        %v5510 = vpop.permute.xlu0 %5509
        %5511 = vrot.lane.b32.xlu0 %v2166, 18
        %v5512 = vpop.permute.xlu0 %5511
        %5513 = vrot.lane.b32.xlu0 %v2242, 18
        %v5514 = vpop.permute.xlu0 %5513
        %5515 = vrot.lane.b32.xlu0 %v2318, 18
        %v5516 = vpop.permute.xlu0 %5515
        %5517 = vrot.lane.b32.xlu0 %v2394, 18
        %v5518 = vpop.permute.xlu0 %5517
        %5519 = vrot.lane.b32.xlu0 %v2470, 18
        %v5520 = vpop.permute.xlu0 %5519
        %5521 = vrot.lane.b32.xlu0 %v2546, 18
        %v5522 = vpop.permute.xlu0 %5521
        %5523 = vrot.lane.b32.xlu0 %v2622, 18
        %v5524 = vpop.permute.xlu0 %5523
        %5525 = vrot.lane.b32.xlu0 %v2698, 18
        %v5526 = vpop.permute.xlu0 %5525
        %5527 = vrot.lane.b32.xlu0 %v2774, 18
        %v5528 = vpop.permute.xlu0 %5527
        %5529 = vrot.lane.b32.xlu0 %v2850, 18
        %v5530 = vpop.permute.xlu0 %5529
        %5531 = vrot.lane.b32.xlu0 %v2926, 18
        %v5532 = vpop.permute.xlu0 %5531
        %5533 = vrot.lane.b32.xlu0 %v3002, 18
        %v5534 = vpop.permute.xlu0 %5533
        %5535 = vrot.lane.b32.xlu0 %v3078, 18
        %v5536 = vpop.permute.xlu0 %5535
        %5537 = vrot.lane.b32.xlu0 %v3154, 18
        %v5538 = vpop.permute.xlu0 %5537
        %5539 = vrot.lane.b32.xlu0 %v3230, 18
        %v5540 = vpop.permute.xlu0 %5539
        %5541 = vrot.lane.b32.xlu0 %v3306, 18
        %v5542 = vpop.permute.xlu0 %5541
        %5543 = vrot.lane.b32.xlu0 %v3382, 18
        %v5544 = vpop.permute.xlu0 %5543
        %5545 = vrot.lane.b32.xlu0 %v3458, 18
        %v5546 = vpop.permute.xlu0 %5545
        %5547 = vrot.lane.b32.xlu0 %v3534, 18
        %v5548 = vpop.permute.xlu0 %5547
        %5549 = vrot.lane.b32.xlu0 %v3610, 18
        %v5550 = vpop.permute.xlu0 %5549
        %5551 = vrot.lane.b32.xlu0 %v3686, 18
        %v5552 = vpop.permute.xlu0 %5551
        %5553 = vrot.lane.b32.xlu0 %v3762, 18
        %v5554 = vpop.permute.xlu0 %5553
        %5555 = vrot.lane.b32.xlu0 %v3838, 18
        %v5556 = vpop.permute.xlu0 %5555
        %5557 = vrot.lane.b32.xlu0 %v3914, 18
        %v5558 = vpop.permute.xlu0 %5557
        %5559 = vrot.lane.b32.xlu0 %v3990, 18
        %v5560 = vpop.permute.xlu0 %5559
        %5561 = vrot.lane.b32.xlu0 %v4066, 18
        %v5562 = vpop.permute.xlu0 %5561
        %5563 = vrot.lane.b32.xlu0 %v4142, 18
        %v5564 = vpop.permute.xlu0 %5563
        %5565 = vrot.lane.b32.xlu0 %v4218, 18
        %v5566 = vpop.permute.xlu0 %5565
        %5567 = vrot.lane.b32.xlu0 %v4294, 18
        %v5568 = vpop.permute.xlu0 %5567
        %5569 = vrot.lane.b32.xlu0 %v4370, 18
        %v5570 = vpop.permute.xlu0 %5569
        %5571 = vrot.lane.b32.xlu0 %v4446, 18
        %v5572 = vpop.permute.xlu0 %5571
        %5637 = vrot.lane.b32.xlu0 %v2078, 20
        %v5638 = vpop.permute.xlu0 %5637
        %5639 = vrot.lane.b32.xlu0 %v2154, 20
        %v5640 = vpop.permute.xlu0 %5639
        %5641 = vrot.lane.b32.xlu0 %v2230, 20
        %v5642 = vpop.permute.xlu0 %5641
        %5643 = vrot.lane.b32.xlu0 %v2306, 20
        %v5644 = vpop.permute.xlu0 %5643
        %5645 = vrot.lane.b32.xlu0 %v2382, 20
        %v5646 = vpop.permute.xlu0 %5645
        %5647 = vrot.lane.b32.xlu0 %v2458, 20
        %v5648 = vpop.permute.xlu0 %5647
        %5649 = vrot.lane.b32.xlu0 %v2534, 20
        %v5650 = vpop.permute.xlu0 %5649
        %5651 = vrot.lane.b32.xlu0 %v2610, 20
        %v5652 = vpop.permute.xlu0 %5651
        %5653 = vrot.lane.b32.xlu0 %v2686, 20
        %v5654 = vpop.permute.xlu0 %5653
        %5655 = vrot.lane.b32.xlu0 %v2762, 20
        %v5656 = vpop.permute.xlu0 %5655
        %5657 = vrot.lane.b32.xlu0 %v2838, 20
        %v5658 = vpop.permute.xlu0 %5657
        %5659 = vrot.lane.b32.xlu0 %v2914, 20
        %v5660 = vpop.permute.xlu0 %5659
        %5661 = vrot.lane.b32.xlu0 %v2990, 20
        %v5662 = vpop.permute.xlu0 %5661
        %5663 = vrot.lane.b32.xlu0 %v3066, 20
        %v5664 = vpop.permute.xlu0 %5663
        %5665 = vrot.lane.b32.xlu0 %v3142, 20
        %v5666 = vpop.permute.xlu0 %5665
        %5667 = vrot.lane.b32.xlu0 %v3218, 20
        %v5668 = vpop.permute.xlu0 %5667
        %5669 = vrot.lane.b32.xlu0 %v3294, 20
        %v5670 = vpop.permute.xlu0 %5669
        %5671 = vrot.lane.b32.xlu0 %v3370, 20
        %v5672 = vpop.permute.xlu0 %5671
        %5673 = vrot.lane.b32.xlu0 %v3446, 20
        %v5674 = vpop.permute.xlu0 %5673
        %5675 = vrot.lane.b32.xlu0 %v3522, 20
        %v5676 = vpop.permute.xlu0 %5675
        %5677 = vrot.lane.b32.xlu0 %v3598, 20
        %v5678 = vpop.permute.xlu0 %5677
        %5679 = vrot.lane.b32.xlu0 %v3674, 20
        %v5680 = vpop.permute.xlu0 %5679
        %5681 = vrot.lane.b32.xlu0 %v3750, 20
        %v5682 = vpop.permute.xlu0 %5681
        %5683 = vrot.lane.b32.xlu0 %v3826, 20
        %v5684 = vpop.permute.xlu0 %5683
        %5685 = vrot.lane.b32.xlu0 %v3902, 20
        %v5686 = vpop.permute.xlu0 %5685
        %5687 = vrot.lane.b32.xlu0 %v3978, 20
        %v5688 = vpop.permute.xlu0 %5687
        %5689 = vrot.lane.b32.xlu0 %v4054, 20
        %v5690 = vpop.permute.xlu0 %5689
        %5691 = vrot.lane.b32.xlu0 %v4130, 20
        %v5692 = vpop.permute.xlu0 %5691
        %5693 = vrot.lane.b32.xlu0 %v4206, 20
        %v5694 = vpop.permute.xlu0 %5693
        %5695 = vrot.lane.b32.xlu0 %v4282, 20
        %v5696 = vpop.permute.xlu0 %5695
        %5697 = vrot.lane.b32.xlu0 %v4358, 20
        %v5698 = vpop.permute.xlu0 %5697
        %5699 = vrot.lane.b32.xlu0 %v4434, 20
        %v5700 = vpop.permute.xlu0 %5699
        %5765 = vrot.lane.b32.xlu0 %v2092, 22
        %v5766 = vpop.permute.xlu0 %5765
        %5767 = vrot.lane.b32.xlu0 %v2168, 22
        %v5768 = vpop.permute.xlu0 %5767
        %5769 = vrot.lane.b32.xlu0 %v2244, 22
        %v5770 = vpop.permute.xlu0 %5769
        %5771 = vrot.lane.b32.xlu0 %v2320, 22
        %v5772 = vpop.permute.xlu0 %5771
        %5773 = vrot.lane.b32.xlu0 %v2396, 22
        %v5774 = vpop.permute.xlu0 %5773
        %5775 = vrot.lane.b32.xlu0 %v2472, 22
        %v5776 = vpop.permute.xlu0 %5775
        %5777 = vrot.lane.b32.xlu0 %v2548, 22
        %v5778 = vpop.permute.xlu0 %5777
        %5779 = vrot.lane.b32.xlu0 %v2624, 22
        %v5780 = vpop.permute.xlu0 %5779
        %5781 = vrot.lane.b32.xlu0 %v2700, 22
        %v5782 = vpop.permute.xlu0 %5781
        %5783 = vrot.lane.b32.xlu0 %v2776, 22
        %v5784 = vpop.permute.xlu0 %5783
        %5785 = vrot.lane.b32.xlu0 %v2852, 22
        %v5786 = vpop.permute.xlu0 %5785
        %5787 = vrot.lane.b32.xlu0 %v2928, 22
        %v5788 = vpop.permute.xlu0 %5787
        %5789 = vrot.lane.b32.xlu0 %v3004, 22
        %v5790 = vpop.permute.xlu0 %5789
        %5791 = vrot.lane.b32.xlu0 %v3080, 22
        %v5792 = vpop.permute.xlu0 %5791
        %5793 = vrot.lane.b32.xlu0 %v3156, 22
        %v5794 = vpop.permute.xlu0 %5793
        %5795 = vrot.lane.b32.xlu0 %v3232, 22
        %v5796 = vpop.permute.xlu0 %5795
        %5797 = vrot.lane.b32.xlu0 %v3308, 22
        %v5798 = vpop.permute.xlu0 %5797
        %5799 = vrot.lane.b32.xlu0 %v3384, 22
        %v5800 = vpop.permute.xlu0 %5799
        %5801 = vrot.lane.b32.xlu0 %v3460, 22
        %v5802 = vpop.permute.xlu0 %5801
        %5803 = vrot.lane.b32.xlu0 %v3536, 22
        %v5804 = vpop.permute.xlu0 %5803
        %5805 = vrot.lane.b32.xlu0 %v3612, 22
        %v5806 = vpop.permute.xlu0 %5805
        %5807 = vrot.lane.b32.xlu0 %v3688, 22
        %v5808 = vpop.permute.xlu0 %5807
        %5809 = vrot.lane.b32.xlu0 %v3764, 22
        %v5810 = vpop.permute.xlu0 %5809
        %5811 = vrot.lane.b32.xlu0 %v3840, 22
        %v5812 = vpop.permute.xlu0 %5811
        %5813 = vrot.lane.b32.xlu0 %v3916, 22
        %v5814 = vpop.permute.xlu0 %5813
        %5815 = vrot.lane.b32.xlu0 %v3992, 22
        %v5816 = vpop.permute.xlu0 %5815
        %5817 = vrot.lane.b32.xlu0 %v4068, 22
        %v5818 = vpop.permute.xlu0 %5817
        %5819 = vrot.lane.b32.xlu0 %v4144, 22
        %v5820 = vpop.permute.xlu0 %5819
        %5821 = vrot.lane.b32.xlu0 %v4220, 22
        %v5822 = vpop.permute.xlu0 %5821
        %5823 = vrot.lane.b32.xlu0 %v4296, 22
        %v5824 = vpop.permute.xlu0 %5823
        %5825 = vrot.lane.b32.xlu0 %v4372, 22
        %v5826 = vpop.permute.xlu0 %5825
        %5827 = vrot.lane.b32.xlu0 %v4448, 22
        %v5828 = vpop.permute.xlu0 %5827
        %5893 = vrot.lane.b32.xlu0 %v2084, 24
        %v5894 = vpop.permute.xlu0 %5893
        %5895 = vrot.lane.b32.xlu0 %v2160, 24
        %v5896 = vpop.permute.xlu0 %5895
        %5897 = vrot.lane.b32.xlu0 %v2236, 24
        %v5898 = vpop.permute.xlu0 %5897
        %5899 = vrot.lane.b32.xlu0 %v2312, 24
        %v5900 = vpop.permute.xlu0 %5899
        %5901 = vrot.lane.b32.xlu0 %v2388, 24
        %v5902 = vpop.permute.xlu0 %5901
        %5903 = vrot.lane.b32.xlu0 %v2464, 24
        %v5904 = vpop.permute.xlu0 %5903
        %5905 = vrot.lane.b32.xlu0 %v2540, 24
        %v5906 = vpop.permute.xlu0 %5905
        %5907 = vrot.lane.b32.xlu0 %v2616, 24
        %v5908 = vpop.permute.xlu0 %5907
        %5909 = vrot.lane.b32.xlu0 %v2692, 24
        %v5910 = vpop.permute.xlu0 %5909
        %5911 = vrot.lane.b32.xlu0 %v2768, 24
        %v5912 = vpop.permute.xlu0 %5911
        %5913 = vrot.lane.b32.xlu0 %v2844, 24
        %v5914 = vpop.permute.xlu0 %5913
        %5915 = vrot.lane.b32.xlu0 %v2920, 24
        %v5916 = vpop.permute.xlu0 %5915
        %5917 = vrot.lane.b32.xlu0 %v2996, 24
        %v5918 = vpop.permute.xlu0 %5917
        %5919 = vrot.lane.b32.xlu0 %v3072, 24
        %v5920 = vpop.permute.xlu0 %5919
        %5921 = vrot.lane.b32.xlu0 %v3148, 24
        %v5922 = vpop.permute.xlu0 %5921
        %5923 = vrot.lane.b32.xlu0 %v3224, 24
        %v5924 = vpop.permute.xlu0 %5923
        %5925 = vrot.lane.b32.xlu0 %v3300, 24
        %v5926 = vpop.permute.xlu0 %5925
        %5927 = vrot.lane.b32.xlu0 %v3376, 24
        %v5928 = vpop.permute.xlu0 %5927
        %5929 = vrot.lane.b32.xlu0 %v3452, 24
        %v5930 = vpop.permute.xlu0 %5929
        %5931 = vrot.lane.b32.xlu0 %v3528, 24
        %v5932 = vpop.permute.xlu0 %5931
        %5933 = vrot.lane.b32.xlu0 %v3604, 24
        %v5934 = vpop.permute.xlu0 %5933
        %5935 = vrot.lane.b32.xlu0 %v3680, 24
        %v5936 = vpop.permute.xlu0 %5935
        %5937 = vrot.lane.b32.xlu0 %v3756, 24
        %v5938 = vpop.permute.xlu0 %5937
        %5939 = vrot.lane.b32.xlu0 %v3832, 24
        %v5940 = vpop.permute.xlu0 %5939
        %5941 = vrot.lane.b32.xlu0 %v3908, 24
        %v5942 = vpop.permute.xlu0 %5941
        %5943 = vrot.lane.b32.xlu0 %v3984, 24
        %v5944 = vpop.permute.xlu0 %5943
        %5945 = vrot.lane.b32.xlu0 %v4060, 24
        %v5946 = vpop.permute.xlu0 %5945
        %5947 = vrot.lane.b32.xlu0 %v4136, 24
        %v5948 = vpop.permute.xlu0 %5947
        %5949 = vrot.lane.b32.xlu0 %v4212, 24
        %v5950 = vpop.permute.xlu0 %5949
        %5951 = vrot.lane.b32.xlu0 %v4288, 24
        %v5952 = vpop.permute.xlu0 %5951
        %5953 = vrot.lane.b32.xlu0 %v4364, 24
        %v5954 = vpop.permute.xlu0 %5953
        %5955 = vrot.lane.b32.xlu0 %v4440, 24
        %v5956 = vpop.permute.xlu0 %5955
        %6021 = vrot.lane.b32.xlu0 %v2094, 26
        %v6022 = vpop.permute.xlu0 %6021
        %6023 = vrot.lane.b32.xlu0 %v2170, 26
        %v6024 = vpop.permute.xlu0 %6023
        %6025 = vrot.lane.b32.xlu0 %v2246, 26
        %v6026 = vpop.permute.xlu0 %6025
        %6027 = vrot.lane.b32.xlu0 %v2322, 26
        %v6028 = vpop.permute.xlu0 %6027
        %6029 = vrot.lane.b32.xlu0 %v2398, 26
        %v6030 = vpop.permute.xlu0 %6029
        %6031 = vrot.lane.b32.xlu0 %v2474, 26
        %v6032 = vpop.permute.xlu0 %6031
        %6033 = vrot.lane.b32.xlu0 %v2550, 26
        %v6034 = vpop.permute.xlu0 %6033
        %6035 = vrot.lane.b32.xlu0 %v2626, 26
        %v6036 = vpop.permute.xlu0 %6035
        %6037 = vrot.lane.b32.xlu0 %v2702, 26
        %v6038 = vpop.permute.xlu0 %6037
        %6039 = vrot.lane.b32.xlu0 %v2778, 26
        %v6040 = vpop.permute.xlu0 %6039
        %6041 = vrot.lane.b32.xlu0 %v2854, 26
        %v6042 = vpop.permute.xlu0 %6041
        %6043 = vrot.lane.b32.xlu0 %v2930, 26
        %v6044 = vpop.permute.xlu0 %6043
        %6045 = vrot.lane.b32.xlu0 %v3006, 26
        %v6046 = vpop.permute.xlu0 %6045
        %6047 = vrot.lane.b32.xlu0 %v3082, 26
        %v6048 = vpop.permute.xlu0 %6047
        %6049 = vrot.lane.b32.xlu0 %v3158, 26
        %v6050 = vpop.permute.xlu0 %6049
        %6051 = vrot.lane.b32.xlu0 %v3234, 26
        %v6052 = vpop.permute.xlu0 %6051
        %6053 = vrot.lane.b32.xlu0 %v3310, 26
        %v6054 = vpop.permute.xlu0 %6053
        %6055 = vrot.lane.b32.xlu0 %v3386, 26
        %v6056 = vpop.permute.xlu0 %6055
        %6057 = vrot.lane.b32.xlu0 %v3462, 26
        %v6058 = vpop.permute.xlu0 %6057
        %6059 = vrot.lane.b32.xlu0 %v3538, 26
        %v6060 = vpop.permute.xlu0 %6059
        %6061 = vrot.lane.b32.xlu0 %v3614, 26
        %v6062 = vpop.permute.xlu0 %6061
        %6063 = vrot.lane.b32.xlu0 %v3690, 26
        %v6064 = vpop.permute.xlu0 %6063
        %6065 = vrot.lane.b32.xlu0 %v3766, 26
        %v6066 = vpop.permute.xlu0 %6065
        %6067 = vrot.lane.b32.xlu0 %v3842, 26
        %v6068 = vpop.permute.xlu0 %6067
        %6069 = vrot.lane.b32.xlu0 %v3918, 26
        %v6070 = vpop.permute.xlu0 %6069
        %6071 = vrot.lane.b32.xlu0 %v3994, 26
        %v6072 = vpop.permute.xlu0 %6071
        %6073 = vrot.lane.b32.xlu0 %v4070, 26
        %v6074 = vpop.permute.xlu0 %6073
        %6075 = vrot.lane.b32.xlu0 %v4146, 26
        %v6076 = vpop.permute.xlu0 %6075
        %6077 = vrot.lane.b32.xlu0 %v4222, 26
        %v6078 = vpop.permute.xlu0 %6077
        %6079 = vrot.lane.b32.xlu0 %v4298, 26
        %v6080 = vpop.permute.xlu0 %6079
        %6081 = vrot.lane.b32.xlu0 %v4374, 26
        %v6082 = vpop.permute.xlu0 %6081
        %6083 = vrot.lane.b32.xlu0 %v4450, 26
        %v6084 = vpop.permute.xlu0 %6083
        %6149 = vrot.lane.b32.xlu0 %v2088, 28
        %v6150 = vpop.permute.xlu0 %6149
        %6151 = vrot.lane.b32.xlu0 %v2164, 28
        %v6152 = vpop.permute.xlu0 %6151
        %6153 = vrot.lane.b32.xlu0 %v2240, 28
        %v6154 = vpop.permute.xlu0 %6153
        %6155 = vrot.lane.b32.xlu0 %v2316, 28
        %v6156 = vpop.permute.xlu0 %6155
        %6157 = vrot.lane.b32.xlu0 %v2392, 28
        %v6158 = vpop.permute.xlu0 %6157
        %6159 = vrot.lane.b32.xlu0 %v2468, 28
        %v6160 = vpop.permute.xlu0 %6159
        %6161 = vrot.lane.b32.xlu0 %v2544, 28
        %v6162 = vpop.permute.xlu0 %6161
        %6163 = vrot.lane.b32.xlu0 %v2620, 28
        %v6164 = vpop.permute.xlu0 %6163
        %6165 = vrot.lane.b32.xlu0 %v2696, 28
        %v6166 = vpop.permute.xlu0 %6165
        %6167 = vrot.lane.b32.xlu0 %v2772, 28
        %v6168 = vpop.permute.xlu0 %6167
        %6169 = vrot.lane.b32.xlu0 %v2848, 28
        %v6170 = vpop.permute.xlu0 %6169
        %6171 = vrot.lane.b32.xlu0 %v2924, 28
        %v6172 = vpop.permute.xlu0 %6171
        %6173 = vrot.lane.b32.xlu0 %v3000, 28
        %v6174 = vpop.permute.xlu0 %6173
        %6175 = vrot.lane.b32.xlu0 %v3076, 28
        %v6176 = vpop.permute.xlu0 %6175
        %6177 = vrot.lane.b32.xlu0 %v3152, 28
        %v6178 = vpop.permute.xlu0 %6177
        %6179 = vrot.lane.b32.xlu0 %v3228, 28
        %v6180 = vpop.permute.xlu0 %6179
        %6181 = vrot.lane.b32.xlu0 %v3304, 28
        %v6182 = vpop.permute.xlu0 %6181
        %6183 = vrot.lane.b32.xlu0 %v3380, 28
        %v6184 = vpop.permute.xlu0 %6183
        %6185 = vrot.lane.b32.xlu0 %v3456, 28
        %v6186 = vpop.permute.xlu0 %6185
        %6187 = vrot.lane.b32.xlu0 %v3532, 28
        %v6188 = vpop.permute.xlu0 %6187
        %6189 = vrot.lane.b32.xlu0 %v3608, 28
        %v6190 = vpop.permute.xlu0 %6189
        %6191 = vrot.lane.b32.xlu0 %v3684, 28
        %v6192 = vpop.permute.xlu0 %6191
        %6193 = vrot.lane.b32.xlu0 %v3760, 28
        %v6194 = vpop.permute.xlu0 %6193
        %6195 = vrot.lane.b32.xlu0 %v3836, 28
        %v6196 = vpop.permute.xlu0 %6195
        %6197 = vrot.lane.b32.xlu0 %v3912, 28
        %v6198 = vpop.permute.xlu0 %6197
        %6199 = vrot.lane.b32.xlu0 %v3988, 28
        %v6200 = vpop.permute.xlu0 %6199
        %6201 = vrot.lane.b32.xlu0 %v4064, 28
        %v6202 = vpop.permute.xlu0 %6201
        %6203 = vrot.lane.b32.xlu0 %v4140, 28
        %v6204 = vpop.permute.xlu0 %6203
        %6205 = vrot.lane.b32.xlu0 %v4216, 28
        %v6206 = vpop.permute.xlu0 %6205
        %6207 = vrot.lane.b32.xlu0 %v4292, 28
        %v6208 = vpop.permute.xlu0 %6207
        %6209 = vrot.lane.b32.xlu0 %v4368, 28
        %v6210 = vpop.permute.xlu0 %6209
        %6211 = vrot.lane.b32.xlu0 %v4444, 28
        %v6212 = vpop.permute.xlu0 %6211
        %6277 = vrot.lane.b32.xlu0 %v2096, 30
        %v6278 = vpop.permute.xlu0 %6277
        %6279 = vrot.lane.b32.xlu0 %v2172, 30
        %v6280 = vpop.permute.xlu0 %6279
        %6281 = vrot.lane.b32.xlu0 %v2248, 30
        %v6282 = vpop.permute.xlu0 %6281
        %6283 = vrot.lane.b32.xlu0 %v2324, 30
        %v6284 = vpop.permute.xlu0 %6283
        %6285 = vrot.lane.b32.xlu0 %v2400, 30
        %v6286 = vpop.permute.xlu0 %6285
        %6287 = vrot.lane.b32.xlu0 %v2476, 30
        %v6288 = vpop.permute.xlu0 %6287
        %6289 = vrot.lane.b32.xlu0 %v2552, 30
        %v6290 = vpop.permute.xlu0 %6289
        %6291 = vrot.lane.b32.xlu0 %v2628, 30
        %v6292 = vpop.permute.xlu0 %6291
        %6293 = vrot.lane.b32.xlu0 %v2704, 30
        %v6294 = vpop.permute.xlu0 %6293
        %6295 = vrot.lane.b32.xlu0 %v2780, 30
        %v6296 = vpop.permute.xlu0 %6295
        %6297 = vrot.lane.b32.xlu0 %v2856, 30
        %v6298 = vpop.permute.xlu0 %6297
        %6299 = vrot.lane.b32.xlu0 %v2932, 30
        %v6300 = vpop.permute.xlu0 %6299
        %6301 = vrot.lane.b32.xlu0 %v3008, 30
        %v6302 = vpop.permute.xlu0 %6301
        %6303 = vrot.lane.b32.xlu0 %v3084, 30
        %v6304 = vpop.permute.xlu0 %6303
        %6305 = vrot.lane.b32.xlu0 %v3160, 30
        %v6306 = vpop.permute.xlu0 %6305
        %6307 = vrot.lane.b32.xlu0 %v3236, 30
        %v6308 = vpop.permute.xlu0 %6307
        %6309 = vrot.lane.b32.xlu0 %v3312, 30
        %v6310 = vpop.permute.xlu0 %6309
        %6311 = vrot.lane.b32.xlu0 %v3388, 30
        %v6312 = vpop.permute.xlu0 %6311
        %6313 = vrot.lane.b32.xlu0 %v3464, 30
        %v6314 = vpop.permute.xlu0 %6313
        %6315 = vrot.lane.b32.xlu0 %v3540, 30
        %v6316 = vpop.permute.xlu0 %6315
        %6317 = vrot.lane.b32.xlu0 %v3616, 30
        %v6318 = vpop.permute.xlu0 %6317
        %6319 = vrot.lane.b32.xlu0 %v3692, 30
        %v6320 = vpop.permute.xlu0 %6319
        %6321 = vrot.lane.b32.xlu0 %v3768, 30
        %v6322 = vpop.permute.xlu0 %6321
        %6323 = vrot.lane.b32.xlu0 %v3844, 30
        %v6324 = vpop.permute.xlu0 %6323
        %6325 = vrot.lane.b32.xlu0 %v3920, 30
        %v6326 = vpop.permute.xlu0 %6325
        %6327 = vrot.lane.b32.xlu0 %v3996, 30
        %v6328 = vpop.permute.xlu0 %6327
        %6329 = vrot.lane.b32.xlu0 %v4072, 30
        %v6330 = vpop.permute.xlu0 %6329
        %6331 = vrot.lane.b32.xlu0 %v4148, 30
        %v6332 = vpop.permute.xlu0 %6331
        %6333 = vrot.lane.b32.xlu0 %v4224, 30
        %v6334 = vpop.permute.xlu0 %6333
        %6335 = vrot.lane.b32.xlu0 %v4300, 30
        %v6336 = vpop.permute.xlu0 %6335
        %6337 = vrot.lane.b32.xlu0 %v4376, 30
        %v6338 = vpop.permute.xlu0 %6337
        %6339 = vrot.lane.b32.xlu0 %v4452, 30
        %v6340 = vpop.permute.xlu0 %6339
        %vm6373 = vcmask 15360
        %v6374 = vsel %vm6373, %v2036, %v4486
        %v6375 = vsel %vm6373, %v2112, %v4488
        %v6376 = vsel %vm6373, %v2188, %v4490
        %v6377 = vsel %vm6373, %v2264, %v4492
        %v6378 = vsel %vm6373, %v2340, %v4494
        %v6379 = vsel %vm6373, %v2416, %v4496
        %v6380 = vsel %vm6373, %v2492, %v4498
        %v6381 = vsel %vm6373, %v2568, %v4500
        %v6382 = vsel %vm6373, %v2644, %v4502
        %v6383 = vsel %vm6373, %v2720, %v4504
        %v6384 = vsel %vm6373, %v2796, %v4506
        %v6385 = vsel %vm6373, %v2872, %v4508
        %v6386 = vsel %vm6373, %v2948, %v4510
        %v6387 = vsel %vm6373, %v3024, %v4512
        %v6388 = vsel %vm6373, %v3100, %v4514
        %v6389 = vsel %vm6373, %v3176, %v4516
        %v6390 = vsel %vm6373, %v3252, %v4518
        %v6391 = vsel %vm6373, %v3328, %v4520
        %v6392 = vsel %vm6373, %v3404, %v4522
        %v6393 = vsel %vm6373, %v3480, %v4524
        %v6394 = vsel %vm6373, %v3556, %v4526
        %v6395 = vsel %vm6373, %v3632, %v4528
        %v6396 = vsel %vm6373, %v3708, %v4530
        %v6397 = vsel %vm6373, %v3784, %v4532
        %v6398 = vsel %vm6373, %v3860, %v4534
        %v6399 = vsel %vm6373, %v3936, %v4536
        %v6400 = vsel %vm6373, %v4012, %v4538
        %v6401 = vsel %vm6373, %v4088, %v4540
        %v6402 = vsel %vm6373, %v4164, %v4542
        %v6403 = vsel %vm6373, %v4240, %v4544
        %v6404 = vsel %vm6373, %v4316, %v4546
        %v6405 = vsel %vm6373, %v4392, %v4548
        %vm6406 = vcmask 31744
        %v6407 = vsel %vm6406, %v6374, %v4614
        %v6408 = vsel %vm6406, %v6375, %v4616
        %v6409 = vsel %vm6406, %v6376, %v4618
        %v6410 = vsel %vm6406, %v6377, %v4620
        %v6411 = vsel %vm6406, %v6378, %v4622
        %v6412 = vsel %vm6406, %v6379, %v4624
        %v6413 = vsel %vm6406, %v6380, %v4626
        %v6414 = vsel %vm6406, %v6381, %v4628
        %v6415 = vsel %vm6406, %v6382, %v4630
        %v6416 = vsel %vm6406, %v6383, %v4632
        %v6417 = vsel %vm6406, %v6384, %v4634
        %v6418 = vsel %vm6406, %v6385, %v4636
        %v6419 = vsel %vm6406, %v6386, %v4638
        %v6420 = vsel %vm6406, %v6387, %v4640
        %v6421 = vsel %vm6406, %v6388, %v4642
        %v6422 = vsel %vm6406, %v6389, %v4644
        %v6423 = vsel %vm6406, %v6390, %v4646
        %v6424 = vsel %vm6406, %v6391, %v4648
        %v6425 = vsel %vm6406, %v6392, %v4650
        %v6426 = vsel %vm6406, %v6393, %v4652
        %v6427 = vsel %vm6406, %v6394, %v4654
        %v6428 = vsel %vm6406, %v6395, %v4656
        %v6429 = vsel %vm6406, %v6396, %v4658
        %v6430 = vsel %vm6406, %v6397, %v4660
        %v6431 = vsel %vm6406, %v6398, %v4662
        %v6432 = vsel %vm6406, %v6399, %v4664
        %v6433 = vsel %vm6406, %v6400, %v4666
        %v6434 = vsel %vm6406, %v6401, %v4668
        %v6435 = vsel %vm6406, %v6402, %v4670
        %v6436 = vsel %vm6406, %v6403, %v4672
        %v6437 = vsel %vm6406, %v6404, %v4674
        %v6438 = vsel %vm6406, %v6405, %v4676
        %vm6439 = vcmask 48128
        %v6440 = vsel %vm6439, %v6407, %v4742
        %v6441 = vsel %vm6439, %v6408, %v4744
        %v6442 = vsel %vm6439, %v6409, %v4746
        %v6443 = vsel %vm6439, %v6410, %v4748
        %v6444 = vsel %vm6439, %v6411, %v4750
        %v6445 = vsel %vm6439, %v6412, %v4752
        %v6446 = vsel %vm6439, %v6413, %v4754
        %v6447 = vsel %vm6439, %v6414, %v4756
        %v6448 = vsel %vm6439, %v6415, %v4758
        %v6449 = vsel %vm6439, %v6416, %v4760
        %v6450 = vsel %vm6439, %v6417, %v4762
        %v6451 = vsel %vm6439, %v6418, %v4764
        %v6452 = vsel %vm6439, %v6419, %v4766
        %v6453 = vsel %vm6439, %v6420, %v4768
        %v6454 = vsel %vm6439, %v6421, %v4770
        %v6455 = vsel %vm6439, %v6422, %v4772
        %v6456 = vsel %vm6439, %v6423, %v4774
        %v6457 = vsel %vm6439, %v6424, %v4776
        %v6458 = vsel %vm6439, %v6425, %v4778
        %v6459 = vsel %vm6439, %v6426, %v4780
        %v6460 = vsel %vm6439, %v6427, %v4782
        %v6461 = vsel %vm6439, %v6428, %v4784
        %v6462 = vsel %vm6439, %v6429, %v4786
        %v6463 = vsel %vm6439, %v6430, %v4788
        %v6464 = vsel %vm6439, %v6431, %v4790
        %v6465 = vsel %vm6439, %v6432, %v4792
        %v6466 = vsel %vm6439, %v6433, %v4794
        %v6467 = vsel %vm6439, %v6434, %v4796
        %v6468 = vsel %vm6439, %v6435, %v4798
        %v6469 = vsel %vm6439, %v6436, %v4800
        %v6470 = vsel %vm6439, %v6437, %v4802
        %v6471 = vsel %vm6439, %v6438, %v4804
        %vm6472 = vcmask 64512
        %v6473 = vsel %vm6472, %v6440, %v4870
        %v6474 = vsel %vm6472, %v6441, %v4872
        %v6475 = vsel %vm6472, %v6442, %v4874
        %v6476 = vsel %vm6472, %v6443, %v4876
        %v6477 = vsel %vm6472, %v6444, %v4878
        %v6478 = vsel %vm6472, %v6445, %v4880
        %v6479 = vsel %vm6472, %v6446, %v4882
        %v6480 = vsel %vm6472, %v6447, %v4884
        %v6481 = vsel %vm6472, %v6448, %v4886
        %v6482 = vsel %vm6472, %v6449, %v4888
        %v6483 = vsel %vm6472, %v6450, %v4890
        %v6484 = vsel %vm6472, %v6451, %v4892
        %v6485 = vsel %vm6472, %v6452, %v4894
        %v6486 = vsel %vm6472, %v6453, %v4896
        %v6487 = vsel %vm6472, %v6454, %v4898
        %v6488 = vsel %vm6472, %v6455, %v4900
        %v6489 = vsel %vm6472, %v6456, %v4902
        %v6490 = vsel %vm6472, %v6457, %v4904
        %v6491 = vsel %vm6472, %v6458, %v4906
        %v6492 = vsel %vm6472, %v6459, %v4908
        %v6493 = vsel %vm6472, %v6460, %v4910
        %v6494 = vsel %vm6472, %v6461, %v4912
        %v6495 = vsel %vm6472, %v6462, %v4914
        %v6496 = vsel %vm6472, %v6463, %v4916
        %v6497 = vsel %vm6472, %v6464, %v4918
        %v6498 = vsel %vm6472, %v6465, %v4920
        %v6499 = vsel %vm6472, %v6466, %v4922
        %v6500 = vsel %vm6472, %v6467, %v4924
        %v6501 = vsel %vm6472, %v6468, %v4926
        %v6502 = vsel %vm6472, %v6469, %v4928
        %v6503 = vsel %vm6472, %v6470, %v4930
        %v6504 = vsel %vm6472, %v6471, %v4932
        %vm6505 = vcmask 80896
        %v6506 = vsel %vm6505, %v6473, %v4998
        %v6507 = vsel %vm6505, %v6474, %v5000
        %v6508 = vsel %vm6505, %v6475, %v5002
        %v6509 = vsel %vm6505, %v6476, %v5004
        %v6510 = vsel %vm6505, %v6477, %v5006
        %v6511 = vsel %vm6505, %v6478, %v5008
        %v6512 = vsel %vm6505, %v6479, %v5010
        %v6513 = vsel %vm6505, %v6480, %v5012
        %v6514 = vsel %vm6505, %v6481, %v5014
        %v6515 = vsel %vm6505, %v6482, %v5016
        %v6516 = vsel %vm6505, %v6483, %v5018
        %v6517 = vsel %vm6505, %v6484, %v5020
        %v6518 = vsel %vm6505, %v6485, %v5022
        %v6519 = vsel %vm6505, %v6486, %v5024
        %v6520 = vsel %vm6505, %v6487, %v5026
        %v6521 = vsel %vm6505, %v6488, %v5028
        %v6522 = vsel %vm6505, %v6489, %v5030
        %v6523 = vsel %vm6505, %v6490, %v5032
        %v6524 = vsel %vm6505, %v6491, %v5034
        %v6525 = vsel %vm6505, %v6492, %v5036
        %v6526 = vsel %vm6505, %v6493, %v5038
        %v6527 = vsel %vm6505, %v6494, %v5040
        %v6528 = vsel %vm6505, %v6495, %v5042
        %v6529 = vsel %vm6505, %v6496, %v5044
        %v6530 = vsel %vm6505, %v6497, %v5046
        %v6531 = vsel %vm6505, %v6498, %v5048
        %v6532 = vsel %vm6505, %v6499, %v5050
        %v6533 = vsel %vm6505, %v6500, %v5052
        %v6534 = vsel %vm6505, %v6501, %v5054
        %v6535 = vsel %vm6505, %v6502, %v5056
        %v6536 = vsel %vm6505, %v6503, %v5058
        %v6537 = vsel %vm6505, %v6504, %v5060
        %vm6538 = vcmask 97280
        %v6539 = vsel %vm6538, %v6506, %v5126
        %v6540 = vsel %vm6538, %v6507, %v5128
        %v6541 = vsel %vm6538, %v6508, %v5130
        %v6542 = vsel %vm6538, %v6509, %v5132
        %v6543 = vsel %vm6538, %v6510, %v5134
        %v6544 = vsel %vm6538, %v6511, %v5136
        %v6545 = vsel %vm6538, %v6512, %v5138
        %v6546 = vsel %vm6538, %v6513, %v5140
        %v6547 = vsel %vm6538, %v6514, %v5142
        %v6548 = vsel %vm6538, %v6515, %v5144
        %v6549 = vsel %vm6538, %v6516, %v5146
        %v6550 = vsel %vm6538, %v6517, %v5148
        %v6551 = vsel %vm6538, %v6518, %v5150
        %v6552 = vsel %vm6538, %v6519, %v5152
        %v6553 = vsel %vm6538, %v6520, %v5154
        %v6554 = vsel %vm6538, %v6521, %v5156
        %v6555 = vsel %vm6538, %v6522, %v5158
        %v6556 = vsel %vm6538, %v6523, %v5160
        %v6557 = vsel %vm6538, %v6524, %v5162
        %v6558 = vsel %vm6538, %v6525, %v5164
        %v6559 = vsel %vm6538, %v6526, %v5166
        %v6560 = vsel %vm6538, %v6527, %v5168
        %v6561 = vsel %vm6538, %v6528, %v5170
        %v6562 = vsel %vm6538, %v6529, %v5172
        %v6563 = vsel %vm6538, %v6530, %v5174
        %v6564 = vsel %vm6538, %v6531, %v5176
        %v6565 = vsel %vm6538, %v6532, %v5178
        %v6566 = vsel %vm6538, %v6533, %v5180
        %v6567 = vsel %vm6538, %v6534, %v5182
        %v6568 = vsel %vm6538, %v6535, %v5184
        %v6569 = vsel %vm6538, %v6536, %v5186
        %v6570 = vsel %vm6538, %v6537, %v5188
        %vm6571 = vcmask 113664
        %v6572 = vsel %vm6571, %v6539, %v5254
        %v6573 = vsel %vm6571, %v6540, %v5256
        %v6574 = vsel %vm6571, %v6541, %v5258
        %v6575 = vsel %vm6571, %v6542, %v5260
        %v6576 = vsel %vm6571, %v6543, %v5262
        %v6577 = vsel %vm6571, %v6544, %v5264
        %v6578 = vsel %vm6571, %v6545, %v5266
        %v6579 = vsel %vm6571, %v6546, %v5268
        %v6580 = vsel %vm6571, %v6547, %v5270
        %v6581 = vsel %vm6571, %v6548, %v5272
        %v6582 = vsel %vm6571, %v6549, %v5274
        %v6583 = vsel %vm6571, %v6550, %v5276
        %v6584 = vsel %vm6571, %v6551, %v5278
        %v6585 = vsel %vm6571, %v6552, %v5280
        %v6586 = vsel %vm6571, %v6553, %v5282
        %v6587 = vsel %vm6571, %v6554, %v5284
        %v6588 = vsel %vm6571, %v6555, %v5286
        %v6589 = vsel %vm6571, %v6556, %v5288
        %v6590 = vsel %vm6571, %v6557, %v5290
        %v6591 = vsel %vm6571, %v6558, %v5292
        %v6592 = vsel %vm6571, %v6559, %v5294
        %v6593 = vsel %vm6571, %v6560, %v5296
        %v6594 = vsel %vm6571, %v6561, %v5298
        %v6595 = vsel %vm6571, %v6562, %v5300
        %v6596 = vsel %vm6571, %v6563, %v5302
        %v6597 = vsel %vm6571, %v6564, %v5304
        %v6598 = vsel %vm6571, %v6565, %v5306
        %v6599 = vsel %vm6571, %v6566, %v5308
        %v6600 = vsel %vm6571, %v6567, %v5310
        %v6601 = vsel %vm6571, %v6568, %v5312
        %v6602 = vsel %vm6571, %v6569, %v5314
        %v6603 = vsel %vm6571, %v6570, %v5316
        %vm6604 = vcmask 130048
        %v6605 = vsel %vm6604, %v6572, %v5382
        %v6606 = vsel %vm6604, %v6573, %v5384
        %v6607 = vsel %vm6604, %v6574, %v5386
        %v6608 = vsel %vm6604, %v6575, %v5388
        %v6609 = vsel %vm6604, %v6576, %v5390
        %v6610 = vsel %vm6604, %v6577, %v5392
        %v6611 = vsel %vm6604, %v6578, %v5394
        %v6612 = vsel %vm6604, %v6579, %v5396
        %v6613 = vsel %vm6604, %v6580, %v5398
        %v6614 = vsel %vm6604, %v6581, %v5400
        %v6615 = vsel %vm6604, %v6582, %v5402
        %v6616 = vsel %vm6604, %v6583, %v5404
        %v6617 = vsel %vm6604, %v6584, %v5406
        %v6618 = vsel %vm6604, %v6585, %v5408
        %v6619 = vsel %vm6604, %v6586, %v5410
        %v6620 = vsel %vm6604, %v6587, %v5412
        %v6621 = vsel %vm6604, %v6588, %v5414
        %v6622 = vsel %vm6604, %v6589, %v5416
        %v6623 = vsel %vm6604, %v6590, %v5418
        %v6624 = vsel %vm6604, %v6591, %v5420
        %v6625 = vsel %vm6604, %v6592, %v5422
        %v6626 = vsel %vm6604, %v6593, %v5424
        %v6627 = vsel %vm6604, %v6594, %v5426
        %v6628 = vsel %vm6604, %v6595, %v5428
        %v6629 = vsel %vm6604, %v6596, %v5430
        %v6630 = vsel %vm6604, %v6597, %v5432
        %v6631 = vsel %vm6604, %v6598, %v5434
        %v6632 = vsel %vm6604, %v6599, %v5436
        %v6633 = vsel %vm6604, %v6600, %v5438
        %v6634 = vsel %vm6604, %v6601, %v5440
        %v6635 = vsel %vm6604, %v6602, %v5442
        %v6636 = vsel %vm6604, %v6603, %v5444
        %vm6637 = vcmask 146432
        %v6638 = vsel %vm6637, %v6605, %v5510
        %v6639 = vsel %vm6637, %v6606, %v5512
        %v6640 = vsel %vm6637, %v6607, %v5514
        %v6641 = vsel %vm6637, %v6608, %v5516
        %v6642 = vsel %vm6637, %v6609, %v5518
        %v6643 = vsel %vm6637, %v6610, %v5520
        %v6644 = vsel %vm6637, %v6611, %v5522
        %v6645 = vsel %vm6637, %v6612, %v5524
        %v6646 = vsel %vm6637, %v6613, %v5526
        %v6647 = vsel %vm6637, %v6614, %v5528
        %v6648 = vsel %vm6637, %v6615, %v5530
        %v6649 = vsel %vm6637, %v6616, %v5532
        %v6650 = vsel %vm6637, %v6617, %v5534
        %v6651 = vsel %vm6637, %v6618, %v5536
        %v6652 = vsel %vm6637, %v6619, %v5538
        %v6653 = vsel %vm6637, %v6620, %v5540
        %v6654 = vsel %vm6637, %v6621, %v5542
        %v6655 = vsel %vm6637, %v6622, %v5544
        %v6656 = vsel %vm6637, %v6623, %v5546
        %v6657 = vsel %vm6637, %v6624, %v5548
        %v6658 = vsel %vm6637, %v6625, %v5550
        %v6659 = vsel %vm6637, %v6626, %v5552
        %v6660 = vsel %vm6637, %v6627, %v5554
        %v6661 = vsel %vm6637, %v6628, %v5556
        %v6662 = vsel %vm6637, %v6629, %v5558
        %v6663 = vsel %vm6637, %v6630, %v5560
        %v6664 = vsel %vm6637, %v6631, %v5562
        %v6665 = vsel %vm6637, %v6632, %v5564
        %v6666 = vsel %vm6637, %v6633, %v5566
        %v6667 = vsel %vm6637, %v6634, %v5568
        %v6668 = vsel %vm6637, %v6635, %v5570
        %v6669 = vsel %vm6637, %v6636, %v5572
        %vm6670 = vcmask 162816
        %v6671 = vsel %vm6670, %v6638, %v5638
        %v6672 = vsel %vm6670, %v6639, %v5640
        %v6673 = vsel %vm6670, %v6640, %v5642
        %v6674 = vsel %vm6670, %v6641, %v5644
        %v6675 = vsel %vm6670, %v6642, %v5646
        %v6676 = vsel %vm6670, %v6643, %v5648
        %v6677 = vsel %vm6670, %v6644, %v5650
        %v6678 = vsel %vm6670, %v6645, %v5652
        %v6679 = vsel %vm6670, %v6646, %v5654
        %v6680 = vsel %vm6670, %v6647, %v5656
        %v6681 = vsel %vm6670, %v6648, %v5658
        %v6682 = vsel %vm6670, %v6649, %v5660
        %v6683 = vsel %vm6670, %v6650, %v5662
        %v6684 = vsel %vm6670, %v6651, %v5664
        %v6685 = vsel %vm6670, %v6652, %v5666
        %v6686 = vsel %vm6670, %v6653, %v5668
        %v6687 = vsel %vm6670, %v6654, %v5670
        %v6688 = vsel %vm6670, %v6655, %v5672
        %v6689 = vsel %vm6670, %v6656, %v5674
        %v6690 = vsel %vm6670, %v6657, %v5676
        %v6691 = vsel %vm6670, %v6658, %v5678
        %v6692 = vsel %vm6670, %v6659, %v5680
        %v6693 = vsel %vm6670, %v6660, %v5682
        %v6694 = vsel %vm6670, %v6661, %v5684
        %v6695 = vsel %vm6670, %v6662, %v5686
        %v6696 = vsel %vm6670, %v6663, %v5688
        %v6697 = vsel %vm6670, %v6664, %v5690
        %v6698 = vsel %vm6670, %v6665, %v5692
        %v6699 = vsel %vm6670, %v6666, %v5694
        %v6700 = vsel %vm6670, %v6667, %v5696
        %v6701 = vsel %vm6670, %v6668, %v5698
        %v6702 = vsel %vm6670, %v6669, %v5700
        %vm6703 = vcmask 179200
        %v6704 = vsel %vm6703, %v6671, %v5766
        %v6705 = vsel %vm6703, %v6672, %v5768
        %v6706 = vsel %vm6703, %v6673, %v5770
        %v6707 = vsel %vm6703, %v6674, %v5772
        %v6708 = vsel %vm6703, %v6675, %v5774
        %v6709 = vsel %vm6703, %v6676, %v5776
        %v6710 = vsel %vm6703, %v6677, %v5778
        %v6711 = vsel %vm6703, %v6678, %v5780
        %v6712 = vsel %vm6703, %v6679, %v5782
        %v6713 = vsel %vm6703, %v6680, %v5784
        %v6714 = vsel %vm6703, %v6681, %v5786
        %v6715 = vsel %vm6703, %v6682, %v5788
        %v6716 = vsel %vm6703, %v6683, %v5790
        %v6717 = vsel %vm6703, %v6684, %v5792
        %v6718 = vsel %vm6703, %v6685, %v5794
        %v6719 = vsel %vm6703, %v6686, %v5796
        %v6720 = vsel %vm6703, %v6687, %v5798
        %v6721 = vsel %vm6703, %v6688, %v5800
        %v6722 = vsel %vm6703, %v6689, %v5802
        %v6723 = vsel %vm6703, %v6690, %v5804
        %v6724 = vsel %vm6703, %v6691, %v5806
        %v6725 = vsel %vm6703, %v6692, %v5808
        %v6726 = vsel %vm6703, %v6693, %v5810
        %v6727 = vsel %vm6703, %v6694, %v5812
        %v6728 = vsel %vm6703, %v6695, %v5814
        %v6729 = vsel %vm6703, %v6696, %v5816
        %v6730 = vsel %vm6703, %v6697, %v5818
        %v6731 = vsel %vm6703, %v6698, %v5820
        %v6732 = vsel %vm6703, %v6699, %v5822
        %v6733 = vsel %vm6703, %v6700, %v5824
        %v6734 = vsel %vm6703, %v6701, %v5826
        %v6735 = vsel %vm6703, %v6702, %v5828
        %vm6736 = vcmask 195584
        %v6737 = vsel %vm6736, %v6704, %v5894
        %v6738 = vsel %vm6736, %v6705, %v5896
        %v6739 = vsel %vm6736, %v6706, %v5898
        %v6740 = vsel %vm6736, %v6707, %v5900
        %v6741 = vsel %vm6736, %v6708, %v5902
        %v6742 = vsel %vm6736, %v6709, %v5904
        %v6743 = vsel %vm6736, %v6710, %v5906
        %v6744 = vsel %vm6736, %v6711, %v5908
        %v6745 = vsel %vm6736, %v6712, %v5910
        %v6746 = vsel %vm6736, %v6713, %v5912
        %v6747 = vsel %vm6736, %v6714, %v5914
        %v6748 = vsel %vm6736, %v6715, %v5916
        %v6749 = vsel %vm6736, %v6716, %v5918
        %v6750 = vsel %vm6736, %v6717, %v5920
        %v6751 = vsel %vm6736, %v6718, %v5922
        %v6752 = vsel %vm6736, %v6719, %v5924
        %v6753 = vsel %vm6736, %v6720, %v5926
        %v6754 = vsel %vm6736, %v6721, %v5928
        %v6755 = vsel %vm6736, %v6722, %v5930
        %v6756 = vsel %vm6736, %v6723, %v5932
        %v6757 = vsel %vm6736, %v6724, %v5934
        %v6758 = vsel %vm6736, %v6725, %v5936
        %v6759 = vsel %vm6736, %v6726, %v5938
        %v6760 = vsel %vm6736, %v6727, %v5940
        %v6761 = vsel %vm6736, %v6728, %v5942
        %v6762 = vsel %vm6736, %v6729, %v5944
        %v6763 = vsel %vm6736, %v6730, %v5946
        %v6764 = vsel %vm6736, %v6731, %v5948
        %v6765 = vsel %vm6736, %v6732, %v5950
        %v6766 = vsel %vm6736, %v6733, %v5952
        %v6767 = vsel %vm6736, %v6734, %v5954
        %v6768 = vsel %vm6736, %v6735, %v5956
        %vm6769 = vcmask 211968
        %v6770 = vsel %vm6769, %v6737, %v6022
        %v6771 = vsel %vm6769, %v6738, %v6024
        %v6772 = vsel %vm6769, %v6739, %v6026
        %v6773 = vsel %vm6769, %v6740, %v6028
        %v6774 = vsel %vm6769, %v6741, %v6030
        %v6775 = vsel %vm6769, %v6742, %v6032
        %v6776 = vsel %vm6769, %v6743, %v6034
        %v6777 = vsel %vm6769, %v6744, %v6036
        %v6778 = vsel %vm6769, %v6745, %v6038
        %v6779 = vsel %vm6769, %v6746, %v6040
        %v6780 = vsel %vm6769, %v6747, %v6042
        %v6781 = vsel %vm6769, %v6748, %v6044
        %v6782 = vsel %vm6769, %v6749, %v6046
        %v6783 = vsel %vm6769, %v6750, %v6048
        %v6784 = vsel %vm6769, %v6751, %v6050
        %v6785 = vsel %vm6769, %v6752, %v6052
        %v6786 = vsel %vm6769, %v6753, %v6054
        %v6787 = vsel %vm6769, %v6754, %v6056
        %v6788 = vsel %vm6769, %v6755, %v6058
        %v6789 = vsel %vm6769, %v6756, %v6060
        %v6790 = vsel %vm6769, %v6757, %v6062
        %v6791 = vsel %vm6769, %v6758, %v6064
        %v6792 = vsel %vm6769, %v6759, %v6066
        %v6793 = vsel %vm6769, %v6760, %v6068
        %v6794 = vsel %vm6769, %v6761, %v6070
        %v6795 = vsel %vm6769, %v6762, %v6072
        %v6796 = vsel %vm6769, %v6763, %v6074
        %v6797 = vsel %vm6769, %v6764, %v6076
        %v6798 = vsel %vm6769, %v6765, %v6078
        %v6799 = vsel %vm6769, %v6766, %v6080
        %v6800 = vsel %vm6769, %v6767, %v6082
        %v6801 = vsel %vm6769, %v6768, %v6084
        %vm6802 = vcmask 228352
        %v6803 = vsel %vm6802, %v6770, %v6150
        %v6804 = vsel %vm6802, %v6771, %v6152
        %v6805 = vsel %vm6802, %v6772, %v6154
        %v6806 = vsel %vm6802, %v6773, %v6156
        %v6807 = vsel %vm6802, %v6774, %v6158
        %v6808 = vsel %vm6802, %v6775, %v6160
        %v6809 = vsel %vm6802, %v6776, %v6162
        %v6810 = vsel %vm6802, %v6777, %v6164
        %v6811 = vsel %vm6802, %v6778, %v6166
        %v6812 = vsel %vm6802, %v6779, %v6168
        %v6813 = vsel %vm6802, %v6780, %v6170
        %v6814 = vsel %vm6802, %v6781, %v6172
        %v6815 = vsel %vm6802, %v6782, %v6174
        %v6816 = vsel %vm6802, %v6783, %v6176
        %v6817 = vsel %vm6802, %v6784, %v6178
        %v6818 = vsel %vm6802, %v6785, %v6180
        %v6819 = vsel %vm6802, %v6786, %v6182
        %v6820 = vsel %vm6802, %v6787, %v6184
        %v6821 = vsel %vm6802, %v6788, %v6186
        %v6822 = vsel %vm6802, %v6789, %v6188
        %v6823 = vsel %vm6802, %v6790, %v6190
        %v6824 = vsel %vm6802, %v6791, %v6192
        %v6825 = vsel %vm6802, %v6792, %v6194
        %v6826 = vsel %vm6802, %v6793, %v6196
        %v6827 = vsel %vm6802, %v6794, %v6198
        %v6828 = vsel %vm6802, %v6795, %v6200
        %v6829 = vsel %vm6802, %v6796, %v6202
        %v6830 = vsel %vm6802, %v6797, %v6204
        %v6831 = vsel %vm6802, %v6798, %v6206
        %v6832 = vsel %vm6802, %v6799, %v6208
        %v6833 = vsel %vm6802, %v6800, %v6210
        %v6834 = vsel %vm6802, %v6801, %v6212
        %vm6835 = vcmask 244736
        %v6836 = vsel %vm6835, %v6803, %v6278
        %v6837 = vsel %vm6835, %v6804, %v6280
        %v6838 = vsel %vm6835, %v6805, %v6282
        %v6839 = vsel %vm6835, %v6806, %v6284
        %v6840 = vsel %vm6835, %v6807, %v6286
        %v6841 = vsel %vm6835, %v6808, %v6288
        %v6842 = vsel %vm6835, %v6809, %v6290
        %v6843 = vsel %vm6835, %v6810, %v6292
        %v6844 = vsel %vm6835, %v6811, %v6294
        %v6845 = vsel %vm6835, %v6812, %v6296
        %v6846 = vsel %vm6835, %v6813, %v6298
        %v6847 = vsel %vm6835, %v6814, %v6300
        %v6848 = vsel %vm6835, %v6815, %v6302
        %v6849 = vsel %vm6835, %v6816, %v6304
        %v6850 = vsel %vm6835, %v6817, %v6306
        %v6851 = vsel %vm6835, %v6818, %v6308
        %v6852 = vsel %vm6835, %v6819, %v6310
        %v6853 = vsel %vm6835, %v6820, %v6312
        %v6854 = vsel %vm6835, %v6821, %v6314
        %v6855 = vsel %vm6835, %v6822, %v6316
        %v6856 = vsel %vm6835, %v6823, %v6318
        %v6857 = vsel %vm6835, %v6824, %v6320
        %v6858 = vsel %vm6835, %v6825, %v6322
        %v6859 = vsel %vm6835, %v6826, %v6324
        %v6860 = vsel %vm6835, %v6827, %v6326
        %v6861 = vsel %vm6835, %v6828, %v6328
        %v6862 = vsel %vm6835, %v6829, %v6330
        %v6863 = vsel %vm6835, %v6830, %v6332
        %v6864 = vsel %vm6835, %v6831, %v6334
        %v6865 = vsel %vm6835, %v6832, %v6336
        %v6866 = vsel %vm6835, %v6833, %v6338
        %v6867 = vsel %vm6835, %v6834, %v6340
        %vm6868 = vcmask 253952
        %6869 = vst.msk [vmem:[%s155] sm:$0x1] %vm6868, %v6836
        %6870 = vst.msk [vmem:[%s155 + $0x2] sm:$0x1] %vm6868, %v6837
        %6871 = vst.msk [vmem:[%s155 + $0x4] sm:$0x1] %vm6868, %v6838
        %6872 = vst.msk [vmem:[%s155 + $0x6] sm:$0x1] %vm6868, %v6839
        %6873 = vst.msk [vmem:[%s155 + $0x8] sm:$0x1] %vm6868, %v6840
        %6874 = vst.msk [vmem:[%s155 + $0xa] sm:$0x1] %vm6868, %v6841
        %6875 = vst.msk [vmem:[%s155 + $0xc] sm:$0x1] %vm6868, %v6842
        %6876 = vst.msk [vmem:[%s155 + $0xe] sm:$0x1] %vm6868, %v6843
        %6877 = vst.msk [vmem:[%s155 + $0x10] sm:$0x1] %vm6868, %v6844
        %6878 = vst.msk [vmem:[%s155 + $0x12] sm:$0x1] %vm6868, %v6845
        %6879 = vst.msk [vmem:[%s155 + $0x14] sm:$0x1] %vm6868, %v6846
        %6880 = vst.msk [vmem:[%s155 + $0x16] sm:$0x1] %vm6868, %v6847
        %6881 = vst.msk [vmem:[%s155 + $0x18] sm:$0x1] %vm6868, %v6848
        %6882 = vst.msk [vmem:[%s155 + $0x1a] sm:$0x1] %vm6868, %v6849
        %6883 = vst.msk [vmem:[%s155 + $0x1c] sm:$0x1] %vm6868, %v6850
        %6884 = vst.msk [vmem:[%s155 + $0x1e] sm:$0x1] %vm6868, %v6851
        %6885 = vst.msk [vmem:[%s155 + $0x20] sm:$0x1] %vm6868, %v6852
        %6886 = vst.msk [vmem:[%s155 + $0x22] sm:$0x1] %vm6868, %v6853
        %6887 = vst.msk [vmem:[%s155 + $0x24] sm:$0x1] %vm6868, %v6854
        %6888 = vst.msk [vmem:[%s155 + $0x26] sm:$0x1] %vm6868, %v6855
        %6889 = vst.msk [vmem:[%s155 + $0x28] sm:$0x1] %vm6868, %v6856
        %6890 = vst.msk [vmem:[%s155 + $0x2a] sm:$0x1] %vm6868, %v6857
        %6891 = vst.msk [vmem:[%s155 + $0x2c] sm:$0x1] %vm6868, %v6858
        %6892 = vst.msk [vmem:[%s155 + $0x2e] sm:$0x1] %vm6868, %v6859
        %6893 = vst.msk [vmem:[%s155 + $0x30] sm:$0x1] %vm6868, %v6860
        %6894 = vst.msk [vmem:[%s155 + $0x32] sm:$0x1] %vm6868, %v6861
        %6895 = vst.msk [vmem:[%s155 + $0x34] sm:$0x1] %vm6868, %v6862
        %6896 = vst.msk [vmem:[%s155 + $0x36] sm:$0x1] %vm6868, %v6863
        %6897 = vst.msk [vmem:[%s155 + $0x38] sm:$0x1] %vm6868, %v6864
        %6898 = vst.msk [vmem:[%s155 + $0x3a] sm:$0x1] %vm6868, %v6865
        %6899 = vst.msk [vmem:[%s155 + $0x3c] sm:$0x1] %vm6868, %v6866
        %6900 = vst.msk [vmem:[%s155 + $0x3e] sm:$0x1] %vm6868, %v6867
        %v6901 = vrot.slane %v1956, 4
        %v6902 = vsel %vm2021, 0.0, %v6901
        %v6904 = vunpack.c.l.s4 1983009808
        %v6905 = vunpack.c.0.s8 %v6904
        %v6906 = vperm.slane %v1956, %v6905
        %v6908 = vunpack.c.l.s4 1983009808
        %v6909 = vunpack.c.0.s8 %v6908
        %v6910 = vperm.slane %v6902, %v6909
        %v6911 = vrot.slane %v6906, 4
        %v6912 = vsel %vm2021, 0.0, %v6911
        %v6914 = vunpack.c.l.s4 1934713408
        %v6915 = vunpack.c.0.s8 %v6914
        %v6916 = vperm.slane %v6906, %v6915
        %v6918 = vunpack.c.l.s4 1934713408
        %v6919 = vunpack.c.0.s8 %v6918
        %v6920 = vperm.slane %v6912, %v6919
        %v6921 = vrot.slane %v6910, 4
        %v6922 = vsel %vm2021, 0.0, %v6921
        %v6924 = vunpack.c.l.s4 1934713408
        %v6925 = vunpack.c.0.s8 %v6924
        %v6926 = vperm.slane %v6910, %v6925
        %v6928 = vunpack.c.l.s4 1934713408
        %v6929 = vunpack.c.0.s8 %v6928
        %v6930 = vperm.slane %v6922, %v6929
        %v6931 = vrot.slane %v6916, 4
        %v6932 = vsel %vm2021, 0.0, %v6931
        %v6933 = vrot.slane %v6920, 4
        %v6934 = vsel %vm2021, 0.0, %v6933
        %v6935 = vrot.slane %v6926, 4
        %v6936 = vsel %vm2021, 0.0, %v6935
        %v6937 = vrot.slane %v6930, 4
        %v6938 = vsel %vm2021, 0.0, %v6937
        %v6939 = vrot.slane %v1957, 4
        %v6940 = vsel %vm2021, 0.0, %v6939
        %v6942 = vunpack.c.l.s4 1983009808
        %v6943 = vunpack.c.0.s8 %v6942
        %v6944 = vperm.slane %v1957, %v6943
        %v6946 = vunpack.c.l.s4 1983009808
        %v6947 = vunpack.c.0.s8 %v6946
        %v6948 = vperm.slane %v6940, %v6947
        %v6949 = vrot.slane %v6944, 4
        %v6950 = vsel %vm2021, 0.0, %v6949
        %v6952 = vunpack.c.l.s4 1934713408
        %v6953 = vunpack.c.0.s8 %v6952
        %v6954 = vperm.slane %v6944, %v6953
        %v6956 = vunpack.c.l.s4 1934713408
        %v6957 = vunpack.c.0.s8 %v6956
        %v6958 = vperm.slane %v6950, %v6957
        %v6959 = vrot.slane %v6948, 4
        %v6960 = vsel %vm2021, 0.0, %v6959
        %v6962 = vunpack.c.l.s4 1934713408
        %v6963 = vunpack.c.0.s8 %v6962
        %v6964 = vperm.slane %v6948, %v6963
        %v6966 = vunpack.c.l.s4 1934713408
        %v6967 = vunpack.c.0.s8 %v6966
        %v6968 = vperm.slane %v6960, %v6967
        %v6969 = vrot.slane %v6954, 4
        %v6970 = vsel %vm2021, 0.0, %v6969
        %v6971 = vrot.slane %v6958, 4
        %v6972 = vsel %vm2021, 0.0, %v6971
        %v6973 = vrot.slane %v6964, 4
        %v6974 = vsel %vm2021, 0.0, %v6973
        %v6975 = vrot.slane %v6968, 4
        %v6976 = vsel %vm2021, 0.0, %v6975
        %v6977 = vrot.slane %v1958, 4
        %v6978 = vsel %vm2021, 0.0, %v6977
        %v6980 = vunpack.c.l.s4 1983009808
        %v6981 = vunpack.c.0.s8 %v6980
        %v6982 = vperm.slane %v1958, %v6981
        %v6984 = vunpack.c.l.s4 1983009808
        %v6985 = vunpack.c.0.s8 %v6984
        %v6986 = vperm.slane %v6978, %v6985
        %v6987 = vrot.slane %v6982, 4
        %v6988 = vsel %vm2021, 0.0, %v6987
        %v6990 = vunpack.c.l.s4 1934713408
        %v6991 = vunpack.c.0.s8 %v6990
        %v6992 = vperm.slane %v6982, %v6991
        %v6994 = vunpack.c.l.s4 1934713408
        %v6995 = vunpack.c.0.s8 %v6994
        %v6996 = vperm.slane %v6988, %v6995
        %v6997 = vrot.slane %v6986, 4
        %v6998 = vsel %vm2021, 0.0, %v6997
        %v7000 = vunpack.c.l.s4 1934713408
        %v7001 = vunpack.c.0.s8 %v7000
        %v7002 = vperm.slane %v6986, %v7001
        %v7004 = vunpack.c.l.s4 1934713408
        %v7005 = vunpack.c.0.s8 %v7004
        %v7006 = vperm.slane %v6998, %v7005
        %v7007 = vrot.slane %v6992, 4
        %v7008 = vsel %vm2021, 0.0, %v7007
        %v7009 = vrot.slane %v6996, 4
        %v7010 = vsel %vm2021, 0.0, %v7009
        %v7011 = vrot.slane %v7002, 4
        %v7012 = vsel %vm2021, 0.0, %v7011
        %v7013 = vrot.slane %v7006, 4
        %v7014 = vsel %vm2021, 0.0, %v7013
        %v7015 = vrot.slane %v1959, 4
        %v7016 = vsel %vm2021, 0.0, %v7015
        %v7018 = vunpack.c.l.s4 1983009808
        %v7019 = vunpack.c.0.s8 %v7018
        %v7020 = vperm.slane %v1959, %v7019
        %v7022 = vunpack.c.l.s4 1983009808
        %v7023 = vunpack.c.0.s8 %v7022
        %v7024 = vperm.slane %v7016, %v7023
        %v7025 = vrot.slane %v7020, 4
        %v7026 = vsel %vm2021, 0.0, %v7025
        %v7028 = vunpack.c.l.s4 1934713408
        %v7029 = vunpack.c.0.s8 %v7028
        %v7030 = vperm.slane %v7020, %v7029
        %v7032 = vunpack.c.l.s4 1934713408
        %v7033 = vunpack.c.0.s8 %v7032
        %v7034 = vperm.slane %v7026, %v7033
        %v7035 = vrot.slane %v7024, 4
        %v7036 = vsel %vm2021, 0.0, %v7035
        %v7038 = vunpack.c.l.s4 1934713408
        %v7039 = vunpack.c.0.s8 %v7038
        %v7040 = vperm.slane %v7024, %v7039
        %v7042 = vunpack.c.l.s4 1934713408
        %v7043 = vunpack.c.0.s8 %v7042
        %v7044 = vperm.slane %v7036, %v7043
        %v7045 = vrot.slane %v7030, 4
        %v7046 = vsel %vm2021, 0.0, %v7045
        %v7047 = vrot.slane %v7034, 4
        %v7048 = vsel %vm2021, 0.0, %v7047
        %v7049 = vrot.slane %v7040, 4
        %v7050 = vsel %vm2021, 0.0, %v7049
        %v7051 = vrot.slane %v7044, 4
        %v7052 = vsel %vm2021, 0.0, %v7051
        %v7053 = vrot.slane %v1960, 4
        %v7054 = vsel %vm2021, 0.0, %v7053
        %v7056 = vunpack.c.l.s4 1983009808
        %v7057 = vunpack.c.0.s8 %v7056
        %v7058 = vperm.slane %v1960, %v7057
        %v7060 = vunpack.c.l.s4 1983009808
        %v7061 = vunpack.c.0.s8 %v7060
        %v7062 = vperm.slane %v7054, %v7061
        %v7063 = vrot.slane %v7058, 4
        %v7064 = vsel %vm2021, 0.0, %v7063
        %v7066 = vunpack.c.l.s4 1934713408
        %v7067 = vunpack.c.0.s8 %v7066
        %v7068 = vperm.slane %v7058, %v7067
        %v7070 = vunpack.c.l.s4 1934713408
        %v7071 = vunpack.c.0.s8 %v7070
        %v7072 = vperm.slane %v7064, %v7071
        %v7073 = vrot.slane %v7062, 4
        %v7074 = vsel %vm2021, 0.0, %v7073
        %v7076 = vunpack.c.l.s4 1934713408
        %v7077 = vunpack.c.0.s8 %v7076
        %v7078 = vperm.slane %v7062, %v7077
        %v7080 = vunpack.c.l.s4 1934713408
        %v7081 = vunpack.c.0.s8 %v7080
        %v7082 = vperm.slane %v7074, %v7081
        %v7083 = vrot.slane %v7068, 4
        %v7084 = vsel %vm2021, 0.0, %v7083
        %v7085 = vrot.slane %v7072, 4
        %v7086 = vsel %vm2021, 0.0, %v7085
        %v7087 = vrot.slane %v7078, 4
        %v7088 = vsel %vm2021, 0.0, %v7087
        %v7089 = vrot.slane %v7082, 4
        %v7090 = vsel %vm2021, 0.0, %v7089
        %v7091 = vrot.slane %v1961, 4
        %v7092 = vsel %vm2021, 0.0, %v7091
        %v7094 = vunpack.c.l.s4 1983009808
        %v7095 = vunpack.c.0.s8 %v7094
        %v7096 = vperm.slane %v1961, %v7095
        %v7098 = vunpack.c.l.s4 1983009808
        %v7099 = vunpack.c.0.s8 %v7098
        %v7100 = vperm.slane %v7092, %v7099
        %v7101 = vrot.slane %v7096, 4
        %v7102 = vsel %vm2021, 0.0, %v7101
        %v7104 = vunpack.c.l.s4 1934713408
        %v7105 = vunpack.c.0.s8 %v7104
        %v7106 = vperm.slane %v7096, %v7105
        %v7108 = vunpack.c.l.s4 1934713408
        %v7109 = vunpack.c.0.s8 %v7108
        %v7110 = vperm.slane %v7102, %v7109
        %v7111 = vrot.slane %v7100, 4
        %v7112 = vsel %vm2021, 0.0, %v7111
        %v7114 = vunpack.c.l.s4 1934713408
        %v7115 = vunpack.c.0.s8 %v7114
        %v7116 = vperm.slane %v7100, %v7115
        %v7118 = vunpack.c.l.s4 1934713408
        %v7119 = vunpack.c.0.s8 %v7118
        %v7120 = vperm.slane %v7112, %v7119
        %v7121 = vrot.slane %v7106, 4
        %v7122 = vsel %vm2021, 0.0, %v7121
        %v7123 = vrot.slane %v7110, 4
        %v7124 = vsel %vm2021, 0.0, %v7123
        %v7125 = vrot.slane %v7116, 4
        %v7126 = vsel %vm2021, 0.0, %v7125
        %v7127 = vrot.slane %v7120, 4
        %v7128 = vsel %vm2021, 0.0, %v7127
        %v7129 = vrot.slane %v1962, 4
        %v7130 = vsel %vm2021, 0.0, %v7129
        %v7132 = vunpack.c.l.s4 1983009808
        %v7133 = vunpack.c.0.s8 %v7132
        %v7134 = vperm.slane %v1962, %v7133
        %v7136 = vunpack.c.l.s4 1983009808
        %v7137 = vunpack.c.0.s8 %v7136
        %v7138 = vperm.slane %v7130, %v7137
        %v7139 = vrot.slane %v7134, 4
        %v7140 = vsel %vm2021, 0.0, %v7139
        %v7142 = vunpack.c.l.s4 1934713408
        %v7143 = vunpack.c.0.s8 %v7142
        %v7144 = vperm.slane %v7134, %v7143
        %v7146 = vunpack.c.l.s4 1934713408
        %v7147 = vunpack.c.0.s8 %v7146
        %v7148 = vperm.slane %v7140, %v7147
        %v7149 = vrot.slane %v7138, 4
        %v7150 = vsel %vm2021, 0.0, %v7149
        %v7152 = vunpack.c.l.s4 1934713408
        %v7153 = vunpack.c.0.s8 %v7152
        %v7154 = vperm.slane %v7138, %v7153
        %v7156 = vunpack.c.l.s4 1934713408
        %v7157 = vunpack.c.0.s8 %v7156
        %v7158 = vperm.slane %v7150, %v7157
        %v7159 = vrot.slane %v7144, 4
        %v7160 = vsel %vm2021, 0.0, %v7159
        %v7161 = vrot.slane %v7148, 4
        %v7162 = vsel %vm2021, 0.0, %v7161
        %v7163 = vrot.slane %v7154, 4
        %v7164 = vsel %vm2021, 0.0, %v7163
        %v7165 = vrot.slane %v7158, 4
        %v7166 = vsel %vm2021, 0.0, %v7165
        %v7167 = vrot.slane %v1963, 4
        %v7168 = vsel %vm2021, 0.0, %v7167
        %v7170 = vunpack.c.l.s4 1983009808
        %v7171 = vunpack.c.0.s8 %v7170
        %v7172 = vperm.slane %v1963, %v7171
        %v7174 = vunpack.c.l.s4 1983009808
        %v7175 = vunpack.c.0.s8 %v7174
        %v7176 = vperm.slane %v7168, %v7175
        %v7177 = vrot.slane %v7172, 4
        %v7178 = vsel %vm2021, 0.0, %v7177
        %v7180 = vunpack.c.l.s4 1934713408
        %v7181 = vunpack.c.0.s8 %v7180
        %v7182 = vperm.slane %v7172, %v7181
        %v7184 = vunpack.c.l.s4 1934713408
        %v7185 = vunpack.c.0.s8 %v7184
        %v7186 = vperm.slane %v7178, %v7185
        %v7187 = vrot.slane %v7176, 4
        %v7188 = vsel %vm2021, 0.0, %v7187
        %v7190 = vunpack.c.l.s4 1934713408
        %v7191 = vunpack.c.0.s8 %v7190
        %v7192 = vperm.slane %v7176, %v7191
        %v7194 = vunpack.c.l.s4 1934713408
        %v7195 = vunpack.c.0.s8 %v7194
        %v7196 = vperm.slane %v7188, %v7195
        %v7197 = vrot.slane %v7182, 4
        %v7198 = vsel %vm2021, 0.0, %v7197
        %v7199 = vrot.slane %v7186, 4
        %v7200 = vsel %vm2021, 0.0, %v7199
        %v7201 = vrot.slane %v7192, 4
        %v7202 = vsel %vm2021, 0.0, %v7201
        %v7203 = vrot.slane %v7196, 4
        %v7204 = vsel %vm2021, 0.0, %v7203
        %v7205 = vrot.slane %v1964, 4
        %v7206 = vsel %vm2021, 0.0, %v7205
        %v7208 = vunpack.c.l.s4 1983009808
        %v7209 = vunpack.c.0.s8 %v7208
        %v7210 = vperm.slane %v1964, %v7209
        %v7212 = vunpack.c.l.s4 1983009808
        %v7213 = vunpack.c.0.s8 %v7212
        %v7214 = vperm.slane %v7206, %v7213
        %v7215 = vrot.slane %v7210, 4
        %v7216 = vsel %vm2021, 0.0, %v7215
        %v7218 = vunpack.c.l.s4 1934713408
        %v7219 = vunpack.c.0.s8 %v7218
        %v7220 = vperm.slane %v7210, %v7219
        %v7222 = vunpack.c.l.s4 1934713408
        %v7223 = vunpack.c.0.s8 %v7222
        %v7224 = vperm.slane %v7216, %v7223
        %v7225 = vrot.slane %v7214, 4
        %v7226 = vsel %vm2021, 0.0, %v7225
        %v7228 = vunpack.c.l.s4 1934713408
        %v7229 = vunpack.c.0.s8 %v7228
        %v7230 = vperm.slane %v7214, %v7229
        %v7232 = vunpack.c.l.s4 1934713408
        %v7233 = vunpack.c.0.s8 %v7232
        %v7234 = vperm.slane %v7226, %v7233
        %v7235 = vrot.slane %v7220, 4
        %v7236 = vsel %vm2021, 0.0, %v7235
        %v7237 = vrot.slane %v7224, 4
        %v7238 = vsel %vm2021, 0.0, %v7237
        %v7239 = vrot.slane %v7230, 4
        %v7240 = vsel %vm2021, 0.0, %v7239
        %v7241 = vrot.slane %v7234, 4
        %v7242 = vsel %vm2021, 0.0, %v7241
        %v7243 = vrot.slane %v1965, 4
        %v7244 = vsel %vm2021, 0.0, %v7243
        %v7246 = vunpack.c.l.s4 1983009808
        %v7247 = vunpack.c.0.s8 %v7246
        %v7248 = vperm.slane %v1965, %v7247
        %v7250 = vunpack.c.l.s4 1983009808
        %v7251 = vunpack.c.0.s8 %v7250
        %v7252 = vperm.slane %v7244, %v7251
        %v7253 = vrot.slane %v7248, 4
        %v7254 = vsel %vm2021, 0.0, %v7253
        %v7256 = vunpack.c.l.s4 1934713408
        %v7257 = vunpack.c.0.s8 %v7256
        %v7258 = vperm.slane %v7248, %v7257
        %v7260 = vunpack.c.l.s4 1934713408
        %v7261 = vunpack.c.0.s8 %v7260
        %v7262 = vperm.slane %v7254, %v7261
        %v7263 = vrot.slane %v7252, 4
        %v7264 = vsel %vm2021, 0.0, %v7263
        %v7266 = vunpack.c.l.s4 1934713408
        %v7267 = vunpack.c.0.s8 %v7266
        %v7268 = vperm.slane %v7252, %v7267
        %v7270 = vunpack.c.l.s4 1934713408
        %v7271 = vunpack.c.0.s8 %v7270
        %v7272 = vperm.slane %v7264, %v7271
        %v7273 = vrot.slane %v7258, 4
        %v7274 = vsel %vm2021, 0.0, %v7273
        %v7275 = vrot.slane %v7262, 4
        %v7276 = vsel %vm2021, 0.0, %v7275
        %v7277 = vrot.slane %v7268, 4
        %v7278 = vsel %vm2021, 0.0, %v7277
        %v7279 = vrot.slane %v7272, 4
        %v7280 = vsel %vm2021, 0.0, %v7279
        %v7281 = vrot.slane %v1966, 4
        %v7282 = vsel %vm2021, 0.0, %v7281
        %v7284 = vunpack.c.l.s4 1983009808
        %v7285 = vunpack.c.0.s8 %v7284
        %v7286 = vperm.slane %v1966, %v7285
        %v7288 = vunpack.c.l.s4 1983009808
        %v7289 = vunpack.c.0.s8 %v7288
        %v7290 = vperm.slane %v7282, %v7289
        %v7291 = vrot.slane %v7286, 4
        %v7292 = vsel %vm2021, 0.0, %v7291
        %v7294 = vunpack.c.l.s4 1934713408
        %v7295 = vunpack.c.0.s8 %v7294
        %v7296 = vperm.slane %v7286, %v7295
        %v7298 = vunpack.c.l.s4 1934713408
        %v7299 = vunpack.c.0.s8 %v7298
        %v7300 = vperm.slane %v7292, %v7299
        %v7301 = vrot.slane %v7290, 4
        %v7302 = vsel %vm2021, 0.0, %v7301
        %v7304 = vunpack.c.l.s4 1934713408
        %v7305 = vunpack.c.0.s8 %v7304
        %v7306 = vperm.slane %v7290, %v7305
        %v7308 = vunpack.c.l.s4 1934713408
        %v7309 = vunpack.c.0.s8 %v7308
        %v7310 = vperm.slane %v7302, %v7309
        %v7311 = vrot.slane %v7296, 4
        %v7312 = vsel %vm2021, 0.0, %v7311
        %v7313 = vrot.slane %v7300, 4
        %v7314 = vsel %vm2021, 0.0, %v7313
        %v7315 = vrot.slane %v7306, 4
        %v7316 = vsel %vm2021, 0.0, %v7315
        %v7317 = vrot.slane %v7310, 4
        %v7318 = vsel %vm2021, 0.0, %v7317
        %v7319 = vrot.slane %v1967, 4
        %v7320 = vsel %vm2021, 0.0, %v7319
        %v7322 = vunpack.c.l.s4 1983009808
        %v7323 = vunpack.c.0.s8 %v7322
        %v7324 = vperm.slane %v1967, %v7323
        %v7326 = vunpack.c.l.s4 1983009808
        %v7327 = vunpack.c.0.s8 %v7326
        %v7328 = vperm.slane %v7320, %v7327
        %v7329 = vrot.slane %v7324, 4
        %v7330 = vsel %vm2021, 0.0, %v7329
        %v7332 = vunpack.c.l.s4 1934713408
        %v7333 = vunpack.c.0.s8 %v7332
        %v7334 = vperm.slane %v7324, %v7333
        %v7336 = vunpack.c.l.s4 1934713408
        %v7337 = vunpack.c.0.s8 %v7336
        %v7338 = vperm.slane %v7330, %v7337
        %v7339 = vrot.slane %v7328, 4
        %v7340 = vsel %vm2021, 0.0, %v7339
        %v7342 = vunpack.c.l.s4 1934713408
        %v7343 = vunpack.c.0.s8 %v7342
        %v7344 = vperm.slane %v7328, %v7343
        %v7346 = vunpack.c.l.s4 1934713408
        %v7347 = vunpack.c.0.s8 %v7346
        %v7348 = vperm.slane %v7340, %v7347
        %v7349 = vrot.slane %v7334, 4
        %v7350 = vsel %vm2021, 0.0, %v7349
        %v7351 = vrot.slane %v7338, 4
        %v7352 = vsel %vm2021, 0.0, %v7351
        %v7353 = vrot.slane %v7344, 4
        %v7354 = vsel %vm2021, 0.0, %v7353
        %v7355 = vrot.slane %v7348, 4
        %v7356 = vsel %vm2021, 0.0, %v7355
        %v7357 = vrot.slane %v1968, 4
        %v7358 = vsel %vm2021, 0.0, %v7357
        %v7360 = vunpack.c.l.s4 1983009808
        %v7361 = vunpack.c.0.s8 %v7360
        %v7362 = vperm.slane %v1968, %v7361
        %v7364 = vunpack.c.l.s4 1983009808
        %v7365 = vunpack.c.0.s8 %v7364
        %v7366 = vperm.slane %v7358, %v7365
        %v7367 = vrot.slane %v7362, 4
        %v7368 = vsel %vm2021, 0.0, %v7367
        %v7370 = vunpack.c.l.s4 1934713408
        %v7371 = vunpack.c.0.s8 %v7370
        %v7372 = vperm.slane %v7362, %v7371
        %v7374 = vunpack.c.l.s4 1934713408
        %v7375 = vunpack.c.0.s8 %v7374
        %v7376 = vperm.slane %v7368, %v7375
        %v7377 = vrot.slane %v7366, 4
        %v7378 = vsel %vm2021, 0.0, %v7377
        %v7380 = vunpack.c.l.s4 1934713408
        %v7381 = vunpack.c.0.s8 %v7380
        %v7382 = vperm.slane %v7366, %v7381
        %v7384 = vunpack.c.l.s4 1934713408
        %v7385 = vunpack.c.0.s8 %v7384
        %v7386 = vperm.slane %v7378, %v7385
        %v7387 = vrot.slane %v7372, 4
        %v7388 = vsel %vm2021, 0.0, %v7387
        %v7389 = vrot.slane %v7376, 4
        %v7390 = vsel %vm2021, 0.0, %v7389
        %v7391 = vrot.slane %v7382, 4
        %v7392 = vsel %vm2021, 0.0, %v7391
        %v7393 = vrot.slane %v7386, 4
        %v7394 = vsel %vm2021, 0.0, %v7393
        %v7395 = vrot.slane %v1969, 4
        %v7396 = vsel %vm2021, 0.0, %v7395
        %v7398 = vunpack.c.l.s4 1983009808
        %v7399 = vunpack.c.0.s8 %v7398
        %v7400 = vperm.slane %v1969, %v7399
        %v7402 = vunpack.c.l.s4 1983009808
        %v7403 = vunpack.c.0.s8 %v7402
        %v7404 = vperm.slane %v7396, %v7403
        %v7405 = vrot.slane %v7400, 4
        %v7406 = vsel %vm2021, 0.0, %v7405
        %v7408 = vunpack.c.l.s4 1934713408
        %v7409 = vunpack.c.0.s8 %v7408
        %v7410 = vperm.slane %v7400, %v7409
        %v7412 = vunpack.c.l.s4 1934713408
        %v7413 = vunpack.c.0.s8 %v7412
        %v7414 = vperm.slane %v7406, %v7413
        %v7415 = vrot.slane %v7404, 4
        %v7416 = vsel %vm2021, 0.0, %v7415
        %v7418 = vunpack.c.l.s4 1934713408
        %v7419 = vunpack.c.0.s8 %v7418
        %v7420 = vperm.slane %v7404, %v7419
        %v7422 = vunpack.c.l.s4 1934713408
        %v7423 = vunpack.c.0.s8 %v7422
        %v7424 = vperm.slane %v7416, %v7423
        %v7425 = vrot.slane %v7410, 4
        %v7426 = vsel %vm2021, 0.0, %v7425
        %v7427 = vrot.slane %v7414, 4
        %v7428 = vsel %vm2021, 0.0, %v7427
        %v7429 = vrot.slane %v7420, 4
        %v7430 = vsel %vm2021, 0.0, %v7429
        %v7431 = vrot.slane %v7424, 4
        %v7432 = vsel %vm2021, 0.0, %v7431
        %v7433 = vrot.slane %v1970, 4
        %v7434 = vsel %vm2021, 0.0, %v7433
        %v7436 = vunpack.c.l.s4 1983009808
        %v7437 = vunpack.c.0.s8 %v7436
        %v7438 = vperm.slane %v1970, %v7437
        %v7440 = vunpack.c.l.s4 1983009808
        %v7441 = vunpack.c.0.s8 %v7440
        %v7442 = vperm.slane %v7434, %v7441
        %v7443 = vrot.slane %v7438, 4
        %v7444 = vsel %vm2021, 0.0, %v7443
        %v7446 = vunpack.c.l.s4 1934713408
        %v7447 = vunpack.c.0.s8 %v7446
        %v7448 = vperm.slane %v7438, %v7447
        %v7450 = vunpack.c.l.s4 1934713408
        %v7451 = vunpack.c.0.s8 %v7450
        %v7452 = vperm.slane %v7444, %v7451
        %v7453 = vrot.slane %v7442, 4
        %v7454 = vsel %vm2021, 0.0, %v7453
        %v7456 = vunpack.c.l.s4 1934713408
        %v7457 = vunpack.c.0.s8 %v7456
        %v7458 = vperm.slane %v7442, %v7457
        %v7460 = vunpack.c.l.s4 1934713408
        %v7461 = vunpack.c.0.s8 %v7460
        %v7462 = vperm.slane %v7454, %v7461
        %v7463 = vrot.slane %v7448, 4
        %v7464 = vsel %vm2021, 0.0, %v7463
        %v7465 = vrot.slane %v7452, 4
        %v7466 = vsel %vm2021, 0.0, %v7465
        %v7467 = vrot.slane %v7458, 4
        %v7468 = vsel %vm2021, 0.0, %v7467
        %v7469 = vrot.slane %v7462, 4
        %v7470 = vsel %vm2021, 0.0, %v7469
        %v7471 = vrot.slane %v1971, 4
        %v7472 = vsel %vm2021, 0.0, %v7471
        %v7474 = vunpack.c.l.s4 1983009808
        %v7475 = vunpack.c.0.s8 %v7474
        %v7476 = vperm.slane %v1971, %v7475
        %v7478 = vunpack.c.l.s4 1983009808
        %v7479 = vunpack.c.0.s8 %v7478
        %v7480 = vperm.slane %v7472, %v7479
        %v7481 = vrot.slane %v7476, 4
        %v7482 = vsel %vm2021, 0.0, %v7481
        %v7484 = vunpack.c.l.s4 1934713408
        %v7485 = vunpack.c.0.s8 %v7484
        %v7486 = vperm.slane %v7476, %v7485
        %v7488 = vunpack.c.l.s4 1934713408
        %v7489 = vunpack.c.0.s8 %v7488
        %v7490 = vperm.slane %v7482, %v7489
        %v7491 = vrot.slane %v7480, 4
        %v7492 = vsel %vm2021, 0.0, %v7491
        %v7494 = vunpack.c.l.s4 1934713408
        %v7495 = vunpack.c.0.s8 %v7494
        %v7496 = vperm.slane %v7480, %v7495
        %v7498 = vunpack.c.l.s4 1934713408
        %v7499 = vunpack.c.0.s8 %v7498
        %v7500 = vperm.slane %v7492, %v7499
        %v7501 = vrot.slane %v7486, 4
        %v7502 = vsel %vm2021, 0.0, %v7501
        %v7503 = vrot.slane %v7490, 4
        %v7504 = vsel %vm2021, 0.0, %v7503
        %v7505 = vrot.slane %v7496, 4
        %v7506 = vsel %vm2021, 0.0, %v7505
        %v7507 = vrot.slane %v7500, 4
        %v7508 = vsel %vm2021, 0.0, %v7507
        %v7509 = vrot.slane %v1972, 4
        %v7510 = vsel %vm2021, 0.0, %v7509
        %v7512 = vunpack.c.l.s4 1983009808
        %v7513 = vunpack.c.0.s8 %v7512
        %v7514 = vperm.slane %v1972, %v7513
        %v7516 = vunpack.c.l.s4 1983009808
        %v7517 = vunpack.c.0.s8 %v7516
        %v7518 = vperm.slane %v7510, %v7517
        %v7519 = vrot.slane %v7514, 4
        %v7520 = vsel %vm2021, 0.0, %v7519
        %v7522 = vunpack.c.l.s4 1934713408
        %v7523 = vunpack.c.0.s8 %v7522
        %v7524 = vperm.slane %v7514, %v7523
        %v7526 = vunpack.c.l.s4 1934713408
        %v7527 = vunpack.c.0.s8 %v7526
        %v7528 = vperm.slane %v7520, %v7527
        %v7529 = vrot.slane %v7518, 4
        %v7530 = vsel %vm2021, 0.0, %v7529
        %v7532 = vunpack.c.l.s4 1934713408
        %v7533 = vunpack.c.0.s8 %v7532
        %v7534 = vperm.slane %v7518, %v7533
        %v7536 = vunpack.c.l.s4 1934713408
        %v7537 = vunpack.c.0.s8 %v7536
        %v7538 = vperm.slane %v7530, %v7537
        %v7539 = vrot.slane %v7524, 4
        %v7540 = vsel %vm2021, 0.0, %v7539
        %v7541 = vrot.slane %v7528, 4
        %v7542 = vsel %vm2021, 0.0, %v7541
        %v7543 = vrot.slane %v7534, 4
        %v7544 = vsel %vm2021, 0.0, %v7543
        %v7545 = vrot.slane %v7538, 4
        %v7546 = vsel %vm2021, 0.0, %v7545
        %v7547 = vrot.slane %v1973, 4
        %v7548 = vsel %vm2021, 0.0, %v7547
        %v7550 = vunpack.c.l.s4 1983009808
        %v7551 = vunpack.c.0.s8 %v7550
        %v7552 = vperm.slane %v1973, %v7551
        %v7554 = vunpack.c.l.s4 1983009808
        %v7555 = vunpack.c.0.s8 %v7554
        %v7556 = vperm.slane %v7548, %v7555
        %v7557 = vrot.slane %v7552, 4
        %v7558 = vsel %vm2021, 0.0, %v7557
        %v7560 = vunpack.c.l.s4 1934713408
        %v7561 = vunpack.c.0.s8 %v7560
        %v7562 = vperm.slane %v7552, %v7561
        %v7564 = vunpack.c.l.s4 1934713408
        %v7565 = vunpack.c.0.s8 %v7564
        %v7566 = vperm.slane %v7558, %v7565
        %v7567 = vrot.slane %v7556, 4
        %v7568 = vsel %vm2021, 0.0, %v7567
        %v7570 = vunpack.c.l.s4 1934713408
        %v7571 = vunpack.c.0.s8 %v7570
        %v7572 = vperm.slane %v7556, %v7571
        %v7574 = vunpack.c.l.s4 1934713408
        %v7575 = vunpack.c.0.s8 %v7574
        %v7576 = vperm.slane %v7568, %v7575
        %v7577 = vrot.slane %v7562, 4
        %v7578 = vsel %vm2021, 0.0, %v7577
        %v7579 = vrot.slane %v7566, 4
        %v7580 = vsel %vm2021, 0.0, %v7579
        %v7581 = vrot.slane %v7572, 4
        %v7582 = vsel %vm2021, 0.0, %v7581
        %v7583 = vrot.slane %v7576, 4
        %v7584 = vsel %vm2021, 0.0, %v7583
        %v7585 = vrot.slane %v1974, 4
        %v7586 = vsel %vm2021, 0.0, %v7585
        %v7588 = vunpack.c.l.s4 1983009808
        %v7589 = vunpack.c.0.s8 %v7588
        %v7590 = vperm.slane %v1974, %v7589
        %v7592 = vunpack.c.l.s4 1983009808
        %v7593 = vunpack.c.0.s8 %v7592
        %v7594 = vperm.slane %v7586, %v7593
        %v7595 = vrot.slane %v7590, 4
        %v7596 = vsel %vm2021, 0.0, %v7595
        %v7598 = vunpack.c.l.s4 1934713408
        %v7599 = vunpack.c.0.s8 %v7598
        %v7600 = vperm.slane %v7590, %v7599
        %v7602 = vunpack.c.l.s4 1934713408
        %v7603 = vunpack.c.0.s8 %v7602
        %v7604 = vperm.slane %v7596, %v7603
        %v7605 = vrot.slane %v7594, 4
        %v7606 = vsel %vm2021, 0.0, %v7605
        %v7608 = vunpack.c.l.s4 1934713408
        %v7609 = vunpack.c.0.s8 %v7608
        %v7610 = vperm.slane %v7594, %v7609
        %v7612 = vunpack.c.l.s4 1934713408
        %v7613 = vunpack.c.0.s8 %v7612
        %v7614 = vperm.slane %v7606, %v7613
        %v7615 = vrot.slane %v7600, 4
        %v7616 = vsel %vm2021, 0.0, %v7615
        %v7617 = vrot.slane %v7604, 4
        %v7618 = vsel %vm2021, 0.0, %v7617
        %v7619 = vrot.slane %v7610, 4
        %v7620 = vsel %vm2021, 0.0, %v7619
        %v7621 = vrot.slane %v7614, 4
        %v7622 = vsel %vm2021, 0.0, %v7621
        %v7623 = vrot.slane %v1975, 4
        %v7624 = vsel %vm2021, 0.0, %v7623
        %v7626 = vunpack.c.l.s4 1983009808
        %v7627 = vunpack.c.0.s8 %v7626
        %v7628 = vperm.slane %v1975, %v7627
        %v7630 = vunpack.c.l.s4 1983009808
        %v7631 = vunpack.c.0.s8 %v7630
        %v7632 = vperm.slane %v7624, %v7631
        %v7633 = vrot.slane %v7628, 4
        %v7634 = vsel %vm2021, 0.0, %v7633
        %v7636 = vunpack.c.l.s4 1934713408
        %v7637 = vunpack.c.0.s8 %v7636
        %v7638 = vperm.slane %v7628, %v7637
        %v7640 = vunpack.c.l.s4 1934713408
        %v7641 = vunpack.c.0.s8 %v7640
        %v7642 = vperm.slane %v7634, %v7641
        %v7643 = vrot.slane %v7632, 4
        %v7644 = vsel %vm2021, 0.0, %v7643
        %v7646 = vunpack.c.l.s4 1934713408
        %v7647 = vunpack.c.0.s8 %v7646
        %v7648 = vperm.slane %v7632, %v7647
        %v7650 = vunpack.c.l.s4 1934713408
        %v7651 = vunpack.c.0.s8 %v7650
        %v7652 = vperm.slane %v7644, %v7651
        %v7653 = vrot.slane %v7638, 4
        %v7654 = vsel %vm2021, 0.0, %v7653
        %v7655 = vrot.slane %v7642, 4
        %v7656 = vsel %vm2021, 0.0, %v7655
        %v7657 = vrot.slane %v7648, 4
        %v7658 = vsel %vm2021, 0.0, %v7657
        %v7659 = vrot.slane %v7652, 4
        %v7660 = vsel %vm2021, 0.0, %v7659
        %v7661 = vrot.slane %v1976, 4
        %v7662 = vsel %vm2021, 0.0, %v7661
        %v7664 = vunpack.c.l.s4 1983009808
        %v7665 = vunpack.c.0.s8 %v7664
        %v7666 = vperm.slane %v1976, %v7665
        %v7668 = vunpack.c.l.s4 1983009808
        %v7669 = vunpack.c.0.s8 %v7668
        %v7670 = vperm.slane %v7662, %v7669
        %v7671 = vrot.slane %v7666, 4
        %v7672 = vsel %vm2021, 0.0, %v7671
        %v7674 = vunpack.c.l.s4 1934713408
        %v7675 = vunpack.c.0.s8 %v7674
        %v7676 = vperm.slane %v7666, %v7675
        %v7678 = vunpack.c.l.s4 1934713408
        %v7679 = vunpack.c.0.s8 %v7678
        %v7680 = vperm.slane %v7672, %v7679
        %v7681 = vrot.slane %v7670, 4
        %v7682 = vsel %vm2021, 0.0, %v7681
        %v7684 = vunpack.c.l.s4 1934713408
        %v7685 = vunpack.c.0.s8 %v7684
        %v7686 = vperm.slane %v7670, %v7685
        %v7688 = vunpack.c.l.s4 1934713408
        %v7689 = vunpack.c.0.s8 %v7688
        %v7690 = vperm.slane %v7682, %v7689
        %v7691 = vrot.slane %v7676, 4
        %v7692 = vsel %vm2021, 0.0, %v7691
        %v7693 = vrot.slane %v7680, 4
        %v7694 = vsel %vm2021, 0.0, %v7693
        %v7695 = vrot.slane %v7686, 4
        %v7696 = vsel %vm2021, 0.0, %v7695
        %v7697 = vrot.slane %v7690, 4
        %v7698 = vsel %vm2021, 0.0, %v7697
        %v7699 = vrot.slane %v1977, 4
        %v7700 = vsel %vm2021, 0.0, %v7699
        %v7702 = vunpack.c.l.s4 1983009808
        %v7703 = vunpack.c.0.s8 %v7702
        %v7704 = vperm.slane %v1977, %v7703
        %v7706 = vunpack.c.l.s4 1983009808
        %v7707 = vunpack.c.0.s8 %v7706
        %v7708 = vperm.slane %v7700, %v7707
        %v7709 = vrot.slane %v7704, 4
        %v7710 = vsel %vm2021, 0.0, %v7709
        %v7712 = vunpack.c.l.s4 1934713408
        %v7713 = vunpack.c.0.s8 %v7712
        %v7714 = vperm.slane %v7704, %v7713
        %v7716 = vunpack.c.l.s4 1934713408
        %v7717 = vunpack.c.0.s8 %v7716
        %v7718 = vperm.slane %v7710, %v7717
        %v7719 = vrot.slane %v7708, 4
        %v7720 = vsel %vm2021, 0.0, %v7719
        %v7722 = vunpack.c.l.s4 1934713408
        %v7723 = vunpack.c.0.s8 %v7722
        %v7724 = vperm.slane %v7708, %v7723
        %v7726 = vunpack.c.l.s4 1934713408
        %v7727 = vunpack.c.0.s8 %v7726
        %v7728 = vperm.slane %v7720, %v7727
        %v7729 = vrot.slane %v7714, 4
        %v7730 = vsel %vm2021, 0.0, %v7729
        %v7731 = vrot.slane %v7718, 4
        %v7732 = vsel %vm2021, 0.0, %v7731
        %v7733 = vrot.slane %v7724, 4
        %v7734 = vsel %vm2021, 0.0, %v7733
        %v7735 = vrot.slane %v7728, 4
        %v7736 = vsel %vm2021, 0.0, %v7735
        %v7737 = vrot.slane %v1978, 4
        %v7738 = vsel %vm2021, 0.0, %v7737
        %v7740 = vunpack.c.l.s4 1983009808
        %v7741 = vunpack.c.0.s8 %v7740
        %v7742 = vperm.slane %v1978, %v7741
        %v7744 = vunpack.c.l.s4 1983009808
        %v7745 = vunpack.c.0.s8 %v7744
        %v7746 = vperm.slane %v7738, %v7745
        %v7747 = vrot.slane %v7742, 4
        %v7748 = vsel %vm2021, 0.0, %v7747
        %v7750 = vunpack.c.l.s4 1934713408
        %v7751 = vunpack.c.0.s8 %v7750
        %v7752 = vperm.slane %v7742, %v7751
        %v7754 = vunpack.c.l.s4 1934713408
        %v7755 = vunpack.c.0.s8 %v7754
        %v7756 = vperm.slane %v7748, %v7755
        %v7757 = vrot.slane %v7746, 4
        %v7758 = vsel %vm2021, 0.0, %v7757
        %v7760 = vunpack.c.l.s4 1934713408
        %v7761 = vunpack.c.0.s8 %v7760
        %v7762 = vperm.slane %v7746, %v7761
        %v7764 = vunpack.c.l.s4 1934713408
        %v7765 = vunpack.c.0.s8 %v7764
        %v7766 = vperm.slane %v7758, %v7765
        %v7767 = vrot.slane %v7752, 4
        %v7768 = vsel %vm2021, 0.0, %v7767
        %v7769 = vrot.slane %v7756, 4
        %v7770 = vsel %vm2021, 0.0, %v7769
        %v7771 = vrot.slane %v7762, 4
        %v7772 = vsel %vm2021, 0.0, %v7771
        %v7773 = vrot.slane %v7766, 4
        %v7774 = vsel %vm2021, 0.0, %v7773
        %v7775 = vrot.slane %v1979, 4
        %v7776 = vsel %vm2021, 0.0, %v7775
        %v7778 = vunpack.c.l.s4 1983009808
        %v7779 = vunpack.c.0.s8 %v7778
        %v7780 = vperm.slane %v1979, %v7779
        %v7782 = vunpack.c.l.s4 1983009808
        %v7783 = vunpack.c.0.s8 %v7782
        %v7784 = vperm.slane %v7776, %v7783
        %v7785 = vrot.slane %v7780, 4
        %v7786 = vsel %vm2021, 0.0, %v7785
        %v7788 = vunpack.c.l.s4 1934713408
        %v7789 = vunpack.c.0.s8 %v7788
        %v7790 = vperm.slane %v7780, %v7789
        %v7792 = vunpack.c.l.s4 1934713408
        %v7793 = vunpack.c.0.s8 %v7792
        %v7794 = vperm.slane %v7786, %v7793
        %v7795 = vrot.slane %v7784, 4
        %v7796 = vsel %vm2021, 0.0, %v7795
        %v7798 = vunpack.c.l.s4 1934713408
        %v7799 = vunpack.c.0.s8 %v7798
        %v7800 = vperm.slane %v7784, %v7799
        %v7802 = vunpack.c.l.s4 1934713408
        %v7803 = vunpack.c.0.s8 %v7802
        %v7804 = vperm.slane %v7796, %v7803
        %v7805 = vrot.slane %v7790, 4
        %v7806 = vsel %vm2021, 0.0, %v7805
        %v7807 = vrot.slane %v7794, 4
        %v7808 = vsel %vm2021, 0.0, %v7807
        %v7809 = vrot.slane %v7800, 4
        %v7810 = vsel %vm2021, 0.0, %v7809
        %v7811 = vrot.slane %v7804, 4
        %v7812 = vsel %vm2021, 0.0, %v7811
        %v7813 = vrot.slane %v1980, 4
        %v7814 = vsel %vm2021, 0.0, %v7813
        %v7816 = vunpack.c.l.s4 1983009808
        %v7817 = vunpack.c.0.s8 %v7816
        %v7818 = vperm.slane %v1980, %v7817
        %v7820 = vunpack.c.l.s4 1983009808
        %v7821 = vunpack.c.0.s8 %v7820
        %v7822 = vperm.slane %v7814, %v7821
        %v7823 = vrot.slane %v7818, 4
        %v7824 = vsel %vm2021, 0.0, %v7823
        %v7826 = vunpack.c.l.s4 1934713408
        %v7827 = vunpack.c.0.s8 %v7826
        %v7828 = vperm.slane %v7818, %v7827
        %v7830 = vunpack.c.l.s4 1934713408
        %v7831 = vunpack.c.0.s8 %v7830
        %v7832 = vperm.slane %v7824, %v7831
        %v7833 = vrot.slane %v7822, 4
        %v7834 = vsel %vm2021, 0.0, %v7833
        %v7836 = vunpack.c.l.s4 1934713408
        %v7837 = vunpack.c.0.s8 %v7836
        %v7838 = vperm.slane %v7822, %v7837
        %v7840 = vunpack.c.l.s4 1934713408
        %v7841 = vunpack.c.0.s8 %v7840
        %v7842 = vperm.slane %v7834, %v7841
        %v7843 = vrot.slane %v7828, 4
        %v7844 = vsel %vm2021, 0.0, %v7843
        %v7845 = vrot.slane %v7832, 4
        %v7846 = vsel %vm2021, 0.0, %v7845
        %v7847 = vrot.slane %v7838, 4
        %v7848 = vsel %vm2021, 0.0, %v7847
        %v7849 = vrot.slane %v7842, 4
        %v7850 = vsel %vm2021, 0.0, %v7849
        %v7851 = vrot.slane %v1981, 4
        %v7852 = vsel %vm2021, 0.0, %v7851
        %v7854 = vunpack.c.l.s4 1983009808
        %v7855 = vunpack.c.0.s8 %v7854
        %v7856 = vperm.slane %v1981, %v7855
        %v7858 = vunpack.c.l.s4 1983009808
        %v7859 = vunpack.c.0.s8 %v7858
        %v7860 = vperm.slane %v7852, %v7859
        %v7861 = vrot.slane %v7856, 4
        %v7862 = vsel %vm2021, 0.0, %v7861
        %v7864 = vunpack.c.l.s4 1934713408
        %v7865 = vunpack.c.0.s8 %v7864
        %v7866 = vperm.slane %v7856, %v7865
        %v7868 = vunpack.c.l.s4 1934713408
        %v7869 = vunpack.c.0.s8 %v7868
        %v7870 = vperm.slane %v7862, %v7869
        %v7871 = vrot.slane %v7860, 4
        %v7872 = vsel %vm2021, 0.0, %v7871
        %v7874 = vunpack.c.l.s4 1934713408
        %v7875 = vunpack.c.0.s8 %v7874
        %v7876 = vperm.slane %v7860, %v7875
        %v7878 = vunpack.c.l.s4 1934713408
        %v7879 = vunpack.c.0.s8 %v7878
        %v7880 = vperm.slane %v7872, %v7879
        %v7881 = vrot.slane %v7866, 4
        %v7882 = vsel %vm2021, 0.0, %v7881
        %v7883 = vrot.slane %v7870, 4
        %v7884 = vsel %vm2021, 0.0, %v7883
        %v7885 = vrot.slane %v7876, 4
        %v7886 = vsel %vm2021, 0.0, %v7885
        %v7887 = vrot.slane %v7880, 4
        %v7888 = vsel %vm2021, 0.0, %v7887
        %v7889 = vrot.slane %v1982, 4
        %v7890 = vsel %vm2021, 0.0, %v7889
        %v7892 = vunpack.c.l.s4 1983009808
        %v7893 = vunpack.c.0.s8 %v7892
        %v7894 = vperm.slane %v1982, %v7893
        %v7896 = vunpack.c.l.s4 1983009808
        %v7897 = vunpack.c.0.s8 %v7896
        %v7898 = vperm.slane %v7890, %v7897
        %v7899 = vrot.slane %v7894, 4
        %v7900 = vsel %vm2021, 0.0, %v7899
        %v7902 = vunpack.c.l.s4 1934713408
        %v7903 = vunpack.c.0.s8 %v7902
        %v7904 = vperm.slane %v7894, %v7903
        %v7906 = vunpack.c.l.s4 1934713408
        %v7907 = vunpack.c.0.s8 %v7906
        %v7908 = vperm.slane %v7900, %v7907
        %v7909 = vrot.slane %v7898, 4
        %v7910 = vsel %vm2021, 0.0, %v7909
        %v7912 = vunpack.c.l.s4 1934713408
        %v7913 = vunpack.c.0.s8 %v7912
        %v7914 = vperm.slane %v7898, %v7913
        %v7916 = vunpack.c.l.s4 1934713408
        %v7917 = vunpack.c.0.s8 %v7916
        %v7918 = vperm.slane %v7910, %v7917
        %v7919 = vrot.slane %v7904, 4
        %v7920 = vsel %vm2021, 0.0, %v7919
        %v7921 = vrot.slane %v7908, 4
        %v7922 = vsel %vm2021, 0.0, %v7921
        %v7923 = vrot.slane %v7914, 4
        %v7924 = vsel %vm2021, 0.0, %v7923
        %v7925 = vrot.slane %v7918, 4
        %v7926 = vsel %vm2021, 0.0, %v7925
        %v7927 = vrot.slane %v1983, 4
        %v7928 = vsel %vm2021, 0.0, %v7927
        %v7930 = vunpack.c.l.s4 1983009808
        %v7931 = vunpack.c.0.s8 %v7930
        %v7932 = vperm.slane %v1983, %v7931
        %v7934 = vunpack.c.l.s4 1983009808
        %v7935 = vunpack.c.0.s8 %v7934
        %v7936 = vperm.slane %v7928, %v7935
        %v7937 = vrot.slane %v7932, 4
        %v7938 = vsel %vm2021, 0.0, %v7937
        %v7940 = vunpack.c.l.s4 1934713408
        %v7941 = vunpack.c.0.s8 %v7940
        %v7942 = vperm.slane %v7932, %v7941
        %v7944 = vunpack.c.l.s4 1934713408
        %v7945 = vunpack.c.0.s8 %v7944
        %v7946 = vperm.slane %v7938, %v7945
        %v7947 = vrot.slane %v7936, 4
        %v7948 = vsel %vm2021, 0.0, %v7947
        %v7950 = vunpack.c.l.s4 1934713408
        %v7951 = vunpack.c.0.s8 %v7950
        %v7952 = vperm.slane %v7936, %v7951
        %v7954 = vunpack.c.l.s4 1934713408
        %v7955 = vunpack.c.0.s8 %v7954
        %v7956 = vperm.slane %v7948, %v7955
        %v7957 = vrot.slane %v7942, 4
        %v7958 = vsel %vm2021, 0.0, %v7957
        %v7959 = vrot.slane %v7946, 4
        %v7960 = vsel %vm2021, 0.0, %v7959
        %v7961 = vrot.slane %v7952, 4
        %v7962 = vsel %vm2021, 0.0, %v7961
        %v7963 = vrot.slane %v7956, 4
        %v7964 = vsel %vm2021, 0.0, %v7963
        %v7965 = vrot.slane %v1984, 4
        %v7966 = vsel %vm2021, 0.0, %v7965
        %v7968 = vunpack.c.l.s4 1983009808
        %v7969 = vunpack.c.0.s8 %v7968
        %v7970 = vperm.slane %v1984, %v7969
        %v7972 = vunpack.c.l.s4 1983009808
        %v7973 = vunpack.c.0.s8 %v7972
        %v7974 = vperm.slane %v7966, %v7973
        %v7975 = vrot.slane %v7970, 4
        %v7976 = vsel %vm2021, 0.0, %v7975
        %v7978 = vunpack.c.l.s4 1934713408
        %v7979 = vunpack.c.0.s8 %v7978
        %v7980 = vperm.slane %v7970, %v7979
        %v7982 = vunpack.c.l.s4 1934713408
        %v7983 = vunpack.c.0.s8 %v7982
        %v7984 = vperm.slane %v7976, %v7983
        %v7985 = vrot.slane %v7974, 4
        %v7986 = vsel %vm2021, 0.0, %v7985
        %v7988 = vunpack.c.l.s4 1934713408
        %v7989 = vunpack.c.0.s8 %v7988
        %v7990 = vperm.slane %v7974, %v7989
        %v7992 = vunpack.c.l.s4 1934713408
        %v7993 = vunpack.c.0.s8 %v7992
        %v7994 = vperm.slane %v7986, %v7993
        %v7995 = vrot.slane %v7980, 4
        %v7996 = vsel %vm2021, 0.0, %v7995
        %v7997 = vrot.slane %v7984, 4
        %v7998 = vsel %vm2021, 0.0, %v7997
        %v7999 = vrot.slane %v7990, 4
        %v8000 = vsel %vm2021, 0.0, %v7999
        %v8001 = vrot.slane %v7994, 4
        %v8002 = vsel %vm2021, 0.0, %v8001
        %v8003 = vrot.slane %v1985, 4
        %v8004 = vsel %vm2021, 0.0, %v8003
        %v8006 = vunpack.c.l.s4 1983009808
        %v8007 = vunpack.c.0.s8 %v8006
        %v8008 = vperm.slane %v1985, %v8007
        %v8010 = vunpack.c.l.s4 1983009808
        %v8011 = vunpack.c.0.s8 %v8010
        %v8012 = vperm.slane %v8004, %v8011
        %v8013 = vrot.slane %v8008, 4
        %v8014 = vsel %vm2021, 0.0, %v8013
        %v8016 = vunpack.c.l.s4 1934713408
        %v8017 = vunpack.c.0.s8 %v8016
        %v8018 = vperm.slane %v8008, %v8017
        %v8020 = vunpack.c.l.s4 1934713408
        %v8021 = vunpack.c.0.s8 %v8020
        %v8022 = vperm.slane %v8014, %v8021
        %v8023 = vrot.slane %v8012, 4
        %v8024 = vsel %vm2021, 0.0, %v8023
        %v8026 = vunpack.c.l.s4 1934713408
        %v8027 = vunpack.c.0.s8 %v8026
        %v8028 = vperm.slane %v8012, %v8027
        %v8030 = vunpack.c.l.s4 1934713408
        %v8031 = vunpack.c.0.s8 %v8030
        %v8032 = vperm.slane %v8024, %v8031
        %v8033 = vrot.slane %v8018, 4
        %v8034 = vsel %vm2021, 0.0, %v8033
        %v8035 = vrot.slane %v8022, 4
        %v8036 = vsel %vm2021, 0.0, %v8035
        %v8037 = vrot.slane %v8028, 4
        %v8038 = vsel %vm2021, 0.0, %v8037
        %v8039 = vrot.slane %v8032, 4
        %v8040 = vsel %vm2021, 0.0, %v8039
        %v8041 = vrot.slane %v1986, 4
        %v8042 = vsel %vm2021, 0.0, %v8041
        %v8044 = vunpack.c.l.s4 1983009808
        %v8045 = vunpack.c.0.s8 %v8044
        %v8046 = vperm.slane %v1986, %v8045
        %v8048 = vunpack.c.l.s4 1983009808
        %v8049 = vunpack.c.0.s8 %v8048
        %v8050 = vperm.slane %v8042, %v8049
        %v8051 = vrot.slane %v8046, 4
        %v8052 = vsel %vm2021, 0.0, %v8051
        %v8054 = vunpack.c.l.s4 1934713408
        %v8055 = vunpack.c.0.s8 %v8054
        %v8056 = vperm.slane %v8046, %v8055
        %v8058 = vunpack.c.l.s4 1934713408
        %v8059 = vunpack.c.0.s8 %v8058
        %v8060 = vperm.slane %v8052, %v8059
        %v8061 = vrot.slane %v8050, 4
        %v8062 = vsel %vm2021, 0.0, %v8061
        %v8064 = vunpack.c.l.s4 1934713408
        %v8065 = vunpack.c.0.s8 %v8064
        %v8066 = vperm.slane %v8050, %v8065
        %v8068 = vunpack.c.l.s4 1934713408
        %v8069 = vunpack.c.0.s8 %v8068
        %v8070 = vperm.slane %v8062, %v8069
        %v8071 = vrot.slane %v8056, 4
        %v8072 = vsel %vm2021, 0.0, %v8071
        %v8073 = vrot.slane %v8060, 4
        %v8074 = vsel %vm2021, 0.0, %v8073
        %v8075 = vrot.slane %v8066, 4
        %v8076 = vsel %vm2021, 0.0, %v8075
        %v8077 = vrot.slane %v8070, 4
        %v8078 = vsel %vm2021, 0.0, %v8077
        %v8079 = vrot.slane %v1987, 4
        %v8080 = vsel %vm2021, 0.0, %v8079
        %v8082 = vunpack.c.l.s4 1983009808
        %v8083 = vunpack.c.0.s8 %v8082
        %v8084 = vperm.slane %v1987, %v8083
        %v8086 = vunpack.c.l.s4 1983009808
        %v8087 = vunpack.c.0.s8 %v8086
        %v8088 = vperm.slane %v8080, %v8087
        %v8089 = vrot.slane %v8084, 4
        %v8090 = vsel %vm2021, 0.0, %v8089
        %v8092 = vunpack.c.l.s4 1934713408
        %v8093 = vunpack.c.0.s8 %v8092
        %v8094 = vperm.slane %v8084, %v8093
        %v8096 = vunpack.c.l.s4 1934713408
        %v8097 = vunpack.c.0.s8 %v8096
        %v8098 = vperm.slane %v8090, %v8097
        %v8099 = vrot.slane %v8088, 4
        %v8100 = vsel %vm2021, 0.0, %v8099
        %v8102 = vunpack.c.l.s4 1934713408
        %v8103 = vunpack.c.0.s8 %v8102
        %v8104 = vperm.slane %v8088, %v8103
        %v8106 = vunpack.c.l.s4 1934713408
        %v8107 = vunpack.c.0.s8 %v8106
        %v8108 = vperm.slane %v8100, %v8107
        %v8109 = vrot.slane %v8094, 4
        %v8110 = vsel %vm2021, 0.0, %v8109
        %v8111 = vrot.slane %v8098, 4
        %v8112 = vsel %vm2021, 0.0, %v8111
        %v8113 = vrot.slane %v8104, 4
        %v8114 = vsel %vm2021, 0.0, %v8113
        %v8115 = vrot.slane %v8108, 4
        %v8116 = vsel %vm2021, 0.0, %v8115
        %v8117 = vrot.slane %v1988, 4
        %v8118 = vsel %vm2021, 0.0, %v8117
        %v8120 = vunpack.c.l.s4 1983009808
        %v8121 = vunpack.c.0.s8 %v8120
        %v8122 = vperm.slane %v1988, %v8121
        %v8124 = vunpack.c.l.s4 1983009808
        %v8125 = vunpack.c.0.s8 %v8124
        %v8126 = vperm.slane %v8118, %v8125
        %v8127 = vrot.slane %v8122, 4
        %v8128 = vsel %vm2021, 0.0, %v8127
        %v8130 = vunpack.c.l.s4 1934713408
        %v8131 = vunpack.c.0.s8 %v8130
        %v8132 = vperm.slane %v8122, %v8131
        %v8134 = vunpack.c.l.s4 1934713408
        %v8135 = vunpack.c.0.s8 %v8134
        %v8136 = vperm.slane %v8128, %v8135
        %v8137 = vrot.slane %v8126, 4
        %v8138 = vsel %vm2021, 0.0, %v8137
        %v8140 = vunpack.c.l.s4 1934713408
        %v8141 = vunpack.c.0.s8 %v8140
        %v8142 = vperm.slane %v8126, %v8141
        %v8144 = vunpack.c.l.s4 1934713408
        %v8145 = vunpack.c.0.s8 %v8144
        %v8146 = vperm.slane %v8138, %v8145
        %v8147 = vrot.slane %v8132, 4
        %v8148 = vsel %vm2021, 0.0, %v8147
        %v8149 = vrot.slane %v8136, 4
        %v8150 = vsel %vm2021, 0.0, %v8149
        %v8151 = vrot.slane %v8142, 4
        %v8152 = vsel %vm2021, 0.0, %v8151
        %v8153 = vrot.slane %v8146, 4
        %v8154 = vsel %vm2021, 0.0, %v8153
        %v8155 = vrot.slane %v1989, 4
        %v8156 = vsel %vm2021, 0.0, %v8155
        %v8158 = vunpack.c.l.s4 1983009808
        %v8159 = vunpack.c.0.s8 %v8158
        %v8160 = vperm.slane %v1989, %v8159
        %v8162 = vunpack.c.l.s4 1983009808
        %v8163 = vunpack.c.0.s8 %v8162
        %v8164 = vperm.slane %v8156, %v8163
        %v8165 = vrot.slane %v8160, 4
        %v8166 = vsel %vm2021, 0.0, %v8165
        %v8168 = vunpack.c.l.s4 1934713408
        %v8169 = vunpack.c.0.s8 %v8168
        %v8170 = vperm.slane %v8160, %v8169
        %v8172 = vunpack.c.l.s4 1934713408
        %v8173 = vunpack.c.0.s8 %v8172
        %v8174 = vperm.slane %v8166, %v8173
        %v8175 = vrot.slane %v8164, 4
        %v8176 = vsel %vm2021, 0.0, %v8175
        %v8178 = vunpack.c.l.s4 1934713408
        %v8179 = vunpack.c.0.s8 %v8178
        %v8180 = vperm.slane %v8164, %v8179
        %v8182 = vunpack.c.l.s4 1934713408
        %v8183 = vunpack.c.0.s8 %v8182
        %v8184 = vperm.slane %v8176, %v8183
        %v8185 = vrot.slane %v8170, 4
        %v8186 = vsel %vm2021, 0.0, %v8185
        %v8187 = vrot.slane %v8174, 4
        %v8188 = vsel %vm2021, 0.0, %v8187
        %v8189 = vrot.slane %v8180, 4
        %v8190 = vsel %vm2021, 0.0, %v8189
        %v8191 = vrot.slane %v8184, 4
        %v8192 = vsel %vm2021, 0.0, %v8191
        %v8193 = vrot.slane %v1990, 4
        %v8194 = vsel %vm2021, 0.0, %v8193
        %v8196 = vunpack.c.l.s4 1983009808
        %v8197 = vunpack.c.0.s8 %v8196
        %v8198 = vperm.slane %v1990, %v8197
        %v8200 = vunpack.c.l.s4 1983009808
        %v8201 = vunpack.c.0.s8 %v8200
        %v8202 = vperm.slane %v8194, %v8201
        %v8203 = vrot.slane %v8198, 4
        %v8204 = vsel %vm2021, 0.0, %v8203
        %v8206 = vunpack.c.l.s4 1934713408
        %v8207 = vunpack.c.0.s8 %v8206
        %v8208 = vperm.slane %v8198, %v8207
        %v8210 = vunpack.c.l.s4 1934713408
        %v8211 = vunpack.c.0.s8 %v8210
        %v8212 = vperm.slane %v8204, %v8211
        %v8213 = vrot.slane %v8202, 4
        %v8214 = vsel %vm2021, 0.0, %v8213
        %v8216 = vunpack.c.l.s4 1934713408
        %v8217 = vunpack.c.0.s8 %v8216
        %v8218 = vperm.slane %v8202, %v8217
        %v8220 = vunpack.c.l.s4 1934713408
        %v8221 = vunpack.c.0.s8 %v8220
        %v8222 = vperm.slane %v8214, %v8221
        %v8223 = vrot.slane %v8208, 4
        %v8224 = vsel %vm2021, 0.0, %v8223
        %v8225 = vrot.slane %v8212, 4
        %v8226 = vsel %vm2021, 0.0, %v8225
        %v8227 = vrot.slane %v8218, 4
        %v8228 = vsel %vm2021, 0.0, %v8227
        %v8229 = vrot.slane %v8222, 4
        %v8230 = vsel %vm2021, 0.0, %v8229
        %v8231 = vrot.slane %v1991, 4
        %v8232 = vsel %vm2021, 0.0, %v8231
        %v8234 = vunpack.c.l.s4 1983009808
        %v8235 = vunpack.c.0.s8 %v8234
        %v8236 = vperm.slane %v1991, %v8235
        %v8238 = vunpack.c.l.s4 1983009808
        %v8239 = vunpack.c.0.s8 %v8238
        %v8240 = vperm.slane %v8232, %v8239
        %v8241 = vrot.slane %v8236, 4
        %v8242 = vsel %vm2021, 0.0, %v8241
        %v8244 = vunpack.c.l.s4 1934713408
        %v8245 = vunpack.c.0.s8 %v8244
        %v8246 = vperm.slane %v8236, %v8245
        %v8248 = vunpack.c.l.s4 1934713408
        %v8249 = vunpack.c.0.s8 %v8248
        %v8250 = vperm.slane %v8242, %v8249
        %v8251 = vrot.slane %v8240, 4
        %v8252 = vsel %vm2021, 0.0, %v8251
        %v8254 = vunpack.c.l.s4 1934713408
        %v8255 = vunpack.c.0.s8 %v8254
        %v8256 = vperm.slane %v8240, %v8255
        %v8258 = vunpack.c.l.s4 1934713408
        %v8259 = vunpack.c.0.s8 %v8258
        %v8260 = vperm.slane %v8252, %v8259
        %v8261 = vrot.slane %v8246, 4
        %v8262 = vsel %vm2021, 0.0, %v8261
        %v8263 = vrot.slane %v8250, 4
        %v8264 = vsel %vm2021, 0.0, %v8263
        %v8265 = vrot.slane %v8256, 4
        %v8266 = vsel %vm2021, 0.0, %v8265
        %v8267 = vrot.slane %v8260, 4
        %v8268 = vsel %vm2021, 0.0, %v8267
        %v8269 = vrot.slane %v1992, 4
        %v8270 = vsel %vm2021, 0.0, %v8269
        %v8272 = vunpack.c.l.s4 1983009808
        %v8273 = vunpack.c.0.s8 %v8272
        %v8274 = vperm.slane %v1992, %v8273
        %v8276 = vunpack.c.l.s4 1983009808
        %v8277 = vunpack.c.0.s8 %v8276
        %v8278 = vperm.slane %v8270, %v8277
        %v8279 = vrot.slane %v8274, 4
        %v8280 = vsel %vm2021, 0.0, %v8279
        %v8282 = vunpack.c.l.s4 1934713408
        %v8283 = vunpack.c.0.s8 %v8282
        %v8284 = vperm.slane %v8274, %v8283
        %v8286 = vunpack.c.l.s4 1934713408
        %v8287 = vunpack.c.0.s8 %v8286
        %v8288 = vperm.slane %v8280, %v8287
        %v8289 = vrot.slane %v8278, 4
        %v8290 = vsel %vm2021, 0.0, %v8289
        %v8292 = vunpack.c.l.s4 1934713408
        %v8293 = vunpack.c.0.s8 %v8292
        %v8294 = vperm.slane %v8278, %v8293
        %v8296 = vunpack.c.l.s4 1934713408
        %v8297 = vunpack.c.0.s8 %v8296
        %v8298 = vperm.slane %v8290, %v8297
        %v8299 = vrot.slane %v8284, 4
        %v8300 = vsel %vm2021, 0.0, %v8299
        %v8301 = vrot.slane %v8288, 4
        %v8302 = vsel %vm2021, 0.0, %v8301
        %v8303 = vrot.slane %v8294, 4
        %v8304 = vsel %vm2021, 0.0, %v8303
        %v8305 = vrot.slane %v8298, 4
        %v8306 = vsel %vm2021, 0.0, %v8305
        %v8307 = vrot.slane %v1993, 4
        %v8308 = vsel %vm2021, 0.0, %v8307
        %v8310 = vunpack.c.l.s4 1983009808
        %v8311 = vunpack.c.0.s8 %v8310
        %v8312 = vperm.slane %v1993, %v8311
        %v8314 = vunpack.c.l.s4 1983009808
        %v8315 = vunpack.c.0.s8 %v8314
        %v8316 = vperm.slane %v8308, %v8315
        %v8317 = vrot.slane %v8312, 4
        %v8318 = vsel %vm2021, 0.0, %v8317
        %v8320 = vunpack.c.l.s4 1934713408
        %v8321 = vunpack.c.0.s8 %v8320
        %v8322 = vperm.slane %v8312, %v8321
        %v8324 = vunpack.c.l.s4 1934713408
        %v8325 = vunpack.c.0.s8 %v8324
        %v8326 = vperm.slane %v8318, %v8325
        %v8327 = vrot.slane %v8316, 4
        %v8328 = vsel %vm2021, 0.0, %v8327
        %v8330 = vunpack.c.l.s4 1934713408
        %v8331 = vunpack.c.0.s8 %v8330
        %v8332 = vperm.slane %v8316, %v8331
        %v8334 = vunpack.c.l.s4 1934713408
        %v8335 = vunpack.c.0.s8 %v8334
        %v8336 = vperm.slane %v8328, %v8335
        %v8337 = vrot.slane %v8322, 4
        %v8338 = vsel %vm2021, 0.0, %v8337
        %v8339 = vrot.slane %v8326, 4
        %v8340 = vsel %vm2021, 0.0, %v8339
        %v8341 = vrot.slane %v8332, 4
        %v8342 = vsel %vm2021, 0.0, %v8341
        %v8343 = vrot.slane %v8336, 4
        %v8344 = vsel %vm2021, 0.0, %v8343
        %v8345 = vrot.slane %v1994, 4
        %v8346 = vsel %vm2021, 0.0, %v8345
        %v8348 = vunpack.c.l.s4 1983009808
        %v8349 = vunpack.c.0.s8 %v8348
        %v8350 = vperm.slane %v1994, %v8349
        %v8352 = vunpack.c.l.s4 1983009808
        %v8353 = vunpack.c.0.s8 %v8352
        %v8354 = vperm.slane %v8346, %v8353
        %v8355 = vrot.slane %v8350, 4
        %v8356 = vsel %vm2021, 0.0, %v8355
        %v8358 = vunpack.c.l.s4 1934713408
        %v8359 = vunpack.c.0.s8 %v8358
        %v8360 = vperm.slane %v8350, %v8359
        %v8362 = vunpack.c.l.s4 1934713408
        %v8363 = vunpack.c.0.s8 %v8362
        %v8364 = vperm.slane %v8356, %v8363
        %v8365 = vrot.slane %v8354, 4
        %v8366 = vsel %vm2021, 0.0, %v8365
        %v8368 = vunpack.c.l.s4 1934713408
        %v8369 = vunpack.c.0.s8 %v8368
        %v8370 = vperm.slane %v8354, %v8369
        %v8372 = vunpack.c.l.s4 1934713408
        %v8373 = vunpack.c.0.s8 %v8372
        %v8374 = vperm.slane %v8366, %v8373
        %v8375 = vrot.slane %v8360, 4
        %v8376 = vsel %vm2021, 0.0, %v8375
        %v8377 = vrot.slane %v8364, 4
        %v8378 = vsel %vm2021, 0.0, %v8377
        %v8379 = vrot.slane %v8370, 4
        %v8380 = vsel %vm2021, 0.0, %v8379
        %v8381 = vrot.slane %v8374, 4
        %v8382 = vsel %vm2021, 0.0, %v8381
        %v8383 = vrot.slane %v1995, 4
        %v8384 = vsel %vm2021, 0.0, %v8383
        %v8386 = vunpack.c.l.s4 1983009808
        %v8387 = vunpack.c.0.s8 %v8386
        %v8388 = vperm.slane %v1995, %v8387
        %v8390 = vunpack.c.l.s4 1983009808
        %v8391 = vunpack.c.0.s8 %v8390
        %v8392 = vperm.slane %v8384, %v8391
        %v8393 = vrot.slane %v8388, 4
        %v8394 = vsel %vm2021, 0.0, %v8393
        %v8396 = vunpack.c.l.s4 1934713408
        %v8397 = vunpack.c.0.s8 %v8396
        %v8398 = vperm.slane %v8388, %v8397
        %v8400 = vunpack.c.l.s4 1934713408
        %v8401 = vunpack.c.0.s8 %v8400
        %v8402 = vperm.slane %v8394, %v8401
        %v8403 = vrot.slane %v8392, 4
        %v8404 = vsel %vm2021, 0.0, %v8403
        %v8406 = vunpack.c.l.s4 1934713408
        %v8407 = vunpack.c.0.s8 %v8406
        %v8408 = vperm.slane %v8392, %v8407
        %v8410 = vunpack.c.l.s4 1934713408
        %v8411 = vunpack.c.0.s8 %v8410
        %v8412 = vperm.slane %v8404, %v8411
        %v8413 = vrot.slane %v8398, 4
        %v8414 = vsel %vm2021, 0.0, %v8413
        %v8415 = vrot.slane %v8402, 4
        %v8416 = vsel %vm2021, 0.0, %v8415
        %v8417 = vrot.slane %v8408, 4
        %v8418 = vsel %vm2021, 0.0, %v8417
        %v8419 = vrot.slane %v8412, 4
        %v8420 = vsel %vm2021, 0.0, %v8419
        %v8421 = vrot.slane %v1996, 4
        %v8422 = vsel %vm2021, 0.0, %v8421
        %v8424 = vunpack.c.l.s4 1983009808
        %v8425 = vunpack.c.0.s8 %v8424
        %v8426 = vperm.slane %v1996, %v8425
        %v8428 = vunpack.c.l.s4 1983009808
        %v8429 = vunpack.c.0.s8 %v8428
        %v8430 = vperm.slane %v8422, %v8429
        %v8431 = vrot.slane %v8426, 4
        %v8432 = vsel %vm2021, 0.0, %v8431
        %v8434 = vunpack.c.l.s4 1934713408
        %v8435 = vunpack.c.0.s8 %v8434
        %v8436 = vperm.slane %v8426, %v8435
        %v8438 = vunpack.c.l.s4 1934713408
        %v8439 = vunpack.c.0.s8 %v8438
        %v8440 = vperm.slane %v8432, %v8439
        %v8441 = vrot.slane %v8430, 4
        %v8442 = vsel %vm2021, 0.0, %v8441
        %v8444 = vunpack.c.l.s4 1934713408
        %v8445 = vunpack.c.0.s8 %v8444
        %v8446 = vperm.slane %v8430, %v8445
        %v8448 = vunpack.c.l.s4 1934713408
        %v8449 = vunpack.c.0.s8 %v8448
        %v8450 = vperm.slane %v8442, %v8449
        %v8451 = vrot.slane %v8436, 4
        %v8452 = vsel %vm2021, 0.0, %v8451
        %v8453 = vrot.slane %v8440, 4
        %v8454 = vsel %vm2021, 0.0, %v8453
        %v8455 = vrot.slane %v8446, 4
        %v8456 = vsel %vm2021, 0.0, %v8455
        %v8457 = vrot.slane %v8450, 4
        %v8458 = vsel %vm2021, 0.0, %v8457
        %v8459 = vrot.slane %v1997, 4
        %v8460 = vsel %vm2021, 0.0, %v8459
        %v8462 = vunpack.c.l.s4 1983009808
        %v8463 = vunpack.c.0.s8 %v8462
        %v8464 = vperm.slane %v1997, %v8463
        %v8466 = vunpack.c.l.s4 1983009808
        %v8467 = vunpack.c.0.s8 %v8466
        %v8468 = vperm.slane %v8460, %v8467
        %v8469 = vrot.slane %v8464, 4
        %v8470 = vsel %vm2021, 0.0, %v8469
        %v8472 = vunpack.c.l.s4 1934713408
        %v8473 = vunpack.c.0.s8 %v8472
        %v8474 = vperm.slane %v8464, %v8473
        %v8476 = vunpack.c.l.s4 1934713408
        %v8477 = vunpack.c.0.s8 %v8476
        %v8478 = vperm.slane %v8470, %v8477
        %v8479 = vrot.slane %v8468, 4
        %v8480 = vsel %vm2021, 0.0, %v8479
        %v8482 = vunpack.c.l.s4 1934713408
        %v8483 = vunpack.c.0.s8 %v8482
        %v8484 = vperm.slane %v8468, %v8483
        %v8486 = vunpack.c.l.s4 1934713408
        %v8487 = vunpack.c.0.s8 %v8486
        %v8488 = vperm.slane %v8480, %v8487
        %v8489 = vrot.slane %v8474, 4
        %v8490 = vsel %vm2021, 0.0, %v8489
        %v8491 = vrot.slane %v8478, 4
        %v8492 = vsel %vm2021, 0.0, %v8491
        %v8493 = vrot.slane %v8484, 4
        %v8494 = vsel %vm2021, 0.0, %v8493
        %v8495 = vrot.slane %v8488, 4
        %v8496 = vsel %vm2021, 0.0, %v8495
        %v8497 = vrot.slane %v1998, 4
        %v8498 = vsel %vm2021, 0.0, %v8497
        %v8500 = vunpack.c.l.s4 1983009808
        %v8501 = vunpack.c.0.s8 %v8500
        %v8502 = vperm.slane %v1998, %v8501
        %v8504 = vunpack.c.l.s4 1983009808
        %v8505 = vunpack.c.0.s8 %v8504
        %v8506 = vperm.slane %v8498, %v8505
        %v8507 = vrot.slane %v8502, 4
        %v8508 = vsel %vm2021, 0.0, %v8507
        %v8510 = vunpack.c.l.s4 1934713408
        %v8511 = vunpack.c.0.s8 %v8510
        %v8512 = vperm.slane %v8502, %v8511
        %v8514 = vunpack.c.l.s4 1934713408
        %v8515 = vunpack.c.0.s8 %v8514
        %v8516 = vperm.slane %v8508, %v8515
        %v8517 = vrot.slane %v8506, 4
        %v8518 = vsel %vm2021, 0.0, %v8517
        %v8520 = vunpack.c.l.s4 1934713408
        %v8521 = vunpack.c.0.s8 %v8520
        %v8522 = vperm.slane %v8506, %v8521
        %v8524 = vunpack.c.l.s4 1934713408
        %v8525 = vunpack.c.0.s8 %v8524
        %v8526 = vperm.slane %v8518, %v8525
        %v8527 = vrot.slane %v8512, 4
        %v8528 = vsel %vm2021, 0.0, %v8527
        %v8529 = vrot.slane %v8516, 4
        %v8530 = vsel %vm2021, 0.0, %v8529
        %v8531 = vrot.slane %v8522, 4
        %v8532 = vsel %vm2021, 0.0, %v8531
        %v8533 = vrot.slane %v8526, 4
        %v8534 = vsel %vm2021, 0.0, %v8533
        %v8535 = vrot.slane %v1999, 4
        %v8536 = vsel %vm2021, 0.0, %v8535
        %v8538 = vunpack.c.l.s4 1983009808
        %v8539 = vunpack.c.0.s8 %v8538
        %v8540 = vperm.slane %v1999, %v8539
        %v8542 = vunpack.c.l.s4 1983009808
        %v8543 = vunpack.c.0.s8 %v8542
        %v8544 = vperm.slane %v8536, %v8543
        %v8545 = vrot.slane %v8540, 4
        %v8546 = vsel %vm2021, 0.0, %v8545
        %v8548 = vunpack.c.l.s4 1934713408
        %v8549 = vunpack.c.0.s8 %v8548
        %v8550 = vperm.slane %v8540, %v8549
        %v8552 = vunpack.c.l.s4 1934713408
        %v8553 = vunpack.c.0.s8 %v8552
        %v8554 = vperm.slane %v8546, %v8553
        %v8555 = vrot.slane %v8544, 4
        %v8556 = vsel %vm2021, 0.0, %v8555
        %v8558 = vunpack.c.l.s4 1934713408
        %v8559 = vunpack.c.0.s8 %v8558
        %v8560 = vperm.slane %v8544, %v8559
        %v8562 = vunpack.c.l.s4 1934713408
        %v8563 = vunpack.c.0.s8 %v8562
        %v8564 = vperm.slane %v8556, %v8563
        %v8565 = vrot.slane %v8550, 4
        %v8566 = vsel %vm2021, 0.0, %v8565
        %v8567 = vrot.slane %v8554, 4
        %v8568 = vsel %vm2021, 0.0, %v8567
        %v8569 = vrot.slane %v8560, 4
        %v8570 = vsel %vm2021, 0.0, %v8569
        %v8571 = vrot.slane %v8564, 4
        %v8572 = vsel %vm2021, 0.0, %v8571
        %v8573 = vrot.slane %v2000, 4
        %v8574 = vsel %vm2021, 0.0, %v8573
        %v8576 = vunpack.c.l.s4 1983009808
        %v8577 = vunpack.c.0.s8 %v8576
        %v8578 = vperm.slane %v2000, %v8577
        %v8580 = vunpack.c.l.s4 1983009808
        %v8581 = vunpack.c.0.s8 %v8580
        %v8582 = vperm.slane %v8574, %v8581
        %v8583 = vrot.slane %v8578, 4
        %v8584 = vsel %vm2021, 0.0, %v8583
        %v8586 = vunpack.c.l.s4 1934713408
        %v8587 = vunpack.c.0.s8 %v8586
        %v8588 = vperm.slane %v8578, %v8587
        %v8590 = vunpack.c.l.s4 1934713408
        %v8591 = vunpack.c.0.s8 %v8590
        %v8592 = vperm.slane %v8584, %v8591
        %v8593 = vrot.slane %v8582, 4
        %v8594 = vsel %vm2021, 0.0, %v8593
        %v8596 = vunpack.c.l.s4 1934713408
        %v8597 = vunpack.c.0.s8 %v8596
        %v8598 = vperm.slane %v8582, %v8597
        %v8600 = vunpack.c.l.s4 1934713408
        %v8601 = vunpack.c.0.s8 %v8600
        %v8602 = vperm.slane %v8594, %v8601
        %v8603 = vrot.slane %v8588, 4
        %v8604 = vsel %vm2021, 0.0, %v8603
        %v8605 = vrot.slane %v8592, 4
        %v8606 = vsel %vm2021, 0.0, %v8605
        %v8607 = vrot.slane %v8598, 4
        %v8608 = vsel %vm2021, 0.0, %v8607
        %v8609 = vrot.slane %v8602, 4
        %v8610 = vsel %vm2021, 0.0, %v8609
        %v8611 = vrot.slane %v2001, 4
        %v8612 = vsel %vm2021, 0.0, %v8611
        %v8614 = vunpack.c.l.s4 1983009808
        %v8615 = vunpack.c.0.s8 %v8614
        %v8616 = vperm.slane %v2001, %v8615
        %v8618 = vunpack.c.l.s4 1983009808
        %v8619 = vunpack.c.0.s8 %v8618
        %v8620 = vperm.slane %v8612, %v8619
        %v8621 = vrot.slane %v8616, 4
        %v8622 = vsel %vm2021, 0.0, %v8621
        %v8624 = vunpack.c.l.s4 1934713408
        %v8625 = vunpack.c.0.s8 %v8624
        %v8626 = vperm.slane %v8616, %v8625
        %v8628 = vunpack.c.l.s4 1934713408
        %v8629 = vunpack.c.0.s8 %v8628
        %v8630 = vperm.slane %v8622, %v8629
        %v8631 = vrot.slane %v8620, 4
        %v8632 = vsel %vm2021, 0.0, %v8631
        %v8634 = vunpack.c.l.s4 1934713408
        %v8635 = vunpack.c.0.s8 %v8634
        %v8636 = vperm.slane %v8620, %v8635
        %v8638 = vunpack.c.l.s4 1934713408
        %v8639 = vunpack.c.0.s8 %v8638
        %v8640 = vperm.slane %v8632, %v8639
        %v8641 = vrot.slane %v8626, 4
        %v8642 = vsel %vm2021, 0.0, %v8641
        %v8643 = vrot.slane %v8630, 4
        %v8644 = vsel %vm2021, 0.0, %v8643
        %v8645 = vrot.slane %v8636, 4
        %v8646 = vsel %vm2021, 0.0, %v8645
        %v8647 = vrot.slane %v8640, 4
        %v8648 = vsel %vm2021, 0.0, %v8647
        %v8649 = vrot.slane %v2002, 4
        %v8650 = vsel %vm2021, 0.0, %v8649
        %v8652 = vunpack.c.l.s4 1983009808
        %v8653 = vunpack.c.0.s8 %v8652
        %v8654 = vperm.slane %v2002, %v8653
        %v8656 = vunpack.c.l.s4 1983009808
        %v8657 = vunpack.c.0.s8 %v8656
        %v8658 = vperm.slane %v8650, %v8657
        %v8659 = vrot.slane %v8654, 4
        %v8660 = vsel %vm2021, 0.0, %v8659
        %v8662 = vunpack.c.l.s4 1934713408
        %v8663 = vunpack.c.0.s8 %v8662
        %v8664 = vperm.slane %v8654, %v8663
        %v8666 = vunpack.c.l.s4 1934713408
        %v8667 = vunpack.c.0.s8 %v8666
        %v8668 = vperm.slane %v8660, %v8667
        %v8669 = vrot.slane %v8658, 4
        %v8670 = vsel %vm2021, 0.0, %v8669
        %v8672 = vunpack.c.l.s4 1934713408
        %v8673 = vunpack.c.0.s8 %v8672
        %v8674 = vperm.slane %v8658, %v8673
        %v8676 = vunpack.c.l.s4 1934713408
        %v8677 = vunpack.c.0.s8 %v8676
        %v8678 = vperm.slane %v8670, %v8677
        %v8679 = vrot.slane %v8664, 4
        %v8680 = vsel %vm2021, 0.0, %v8679
        %v8681 = vrot.slane %v8668, 4
        %v8682 = vsel %vm2021, 0.0, %v8681
        %v8683 = vrot.slane %v8674, 4
        %v8684 = vsel %vm2021, 0.0, %v8683
        %v8685 = vrot.slane %v8678, 4
        %v8686 = vsel %vm2021, 0.0, %v8685
        %v8687 = vrot.slane %v2003, 4
        %v8688 = vsel %vm2021, 0.0, %v8687
        %v8690 = vunpack.c.l.s4 1983009808
        %v8691 = vunpack.c.0.s8 %v8690
        %v8692 = vperm.slane %v2003, %v8691
        %v8694 = vunpack.c.l.s4 1983009808
        %v8695 = vunpack.c.0.s8 %v8694
        %v8696 = vperm.slane %v8688, %v8695
        %v8697 = vrot.slane %v8692, 4
        %v8698 = vsel %vm2021, 0.0, %v8697
        %v8700 = vunpack.c.l.s4 1934713408
        %v8701 = vunpack.c.0.s8 %v8700
        %v8702 = vperm.slane %v8692, %v8701
        %v8704 = vunpack.c.l.s4 1934713408
        %v8705 = vunpack.c.0.s8 %v8704
        %v8706 = vperm.slane %v8698, %v8705
        %v8707 = vrot.slane %v8696, 4
        %v8708 = vsel %vm2021, 0.0, %v8707
        %v8710 = vunpack.c.l.s4 1934713408
        %v8711 = vunpack.c.0.s8 %v8710
        %v8712 = vperm.slane %v8696, %v8711
        %v8714 = vunpack.c.l.s4 1934713408
        %v8715 = vunpack.c.0.s8 %v8714
        %v8716 = vperm.slane %v8708, %v8715
        %v8717 = vrot.slane %v8702, 4
        %v8718 = vsel %vm2021, 0.0, %v8717
        %v8719 = vrot.slane %v8706, 4
        %v8720 = vsel %vm2021, 0.0, %v8719
        %v8721 = vrot.slane %v8712, 4
        %v8722 = vsel %vm2021, 0.0, %v8721
        %v8723 = vrot.slane %v8716, 4
        %v8724 = vsel %vm2021, 0.0, %v8723
        %v8725 = vrot.slane %v2004, 4
        %v8726 = vsel %vm2021, 0.0, %v8725
        %v8728 = vunpack.c.l.s4 1983009808
        %v8729 = vunpack.c.0.s8 %v8728
        %v8730 = vperm.slane %v2004, %v8729
        %v8732 = vunpack.c.l.s4 1983009808
        %v8733 = vunpack.c.0.s8 %v8732
        %v8734 = vperm.slane %v8726, %v8733
        %v8735 = vrot.slane %v8730, 4
        %v8736 = vsel %vm2021, 0.0, %v8735
        %v8738 = vunpack.c.l.s4 1934713408
        %v8739 = vunpack.c.0.s8 %v8738
        %v8740 = vperm.slane %v8730, %v8739
        %v8742 = vunpack.c.l.s4 1934713408
        %v8743 = vunpack.c.0.s8 %v8742
        %v8744 = vperm.slane %v8736, %v8743
        %v8745 = vrot.slane %v8734, 4
        %v8746 = vsel %vm2021, 0.0, %v8745
        %v8748 = vunpack.c.l.s4 1934713408
        %v8749 = vunpack.c.0.s8 %v8748
        %v8750 = vperm.slane %v8734, %v8749
        %v8752 = vunpack.c.l.s4 1934713408
        %v8753 = vunpack.c.0.s8 %v8752
        %v8754 = vperm.slane %v8746, %v8753
        %v8755 = vrot.slane %v8740, 4
        %v8756 = vsel %vm2021, 0.0, %v8755
        %v8757 = vrot.slane %v8744, 4
        %v8758 = vsel %vm2021, 0.0, %v8757
        %v8759 = vrot.slane %v8750, 4
        %v8760 = vsel %vm2021, 0.0, %v8759
        %v8761 = vrot.slane %v8754, 4
        %v8762 = vsel %vm2021, 0.0, %v8761
        %v8763 = vrot.slane %v2005, 4
        %v8764 = vsel %vm2021, 0.0, %v8763
        %v8766 = vunpack.c.l.s4 1983009808
        %v8767 = vunpack.c.0.s8 %v8766
        %v8768 = vperm.slane %v2005, %v8767
        %v8770 = vunpack.c.l.s4 1983009808
        %v8771 = vunpack.c.0.s8 %v8770
        %v8772 = vperm.slane %v8764, %v8771
        %v8773 = vrot.slane %v8768, 4
        %v8774 = vsel %vm2021, 0.0, %v8773
        %v8776 = vunpack.c.l.s4 1934713408
        %v8777 = vunpack.c.0.s8 %v8776
        %v8778 = vperm.slane %v8768, %v8777
        %v8780 = vunpack.c.l.s4 1934713408
        %v8781 = vunpack.c.0.s8 %v8780
        %v8782 = vperm.slane %v8774, %v8781
        %v8783 = vrot.slane %v8772, 4
        %v8784 = vsel %vm2021, 0.0, %v8783
        %v8786 = vunpack.c.l.s4 1934713408
        %v8787 = vunpack.c.0.s8 %v8786
        %v8788 = vperm.slane %v8772, %v8787
        %v8790 = vunpack.c.l.s4 1934713408
        %v8791 = vunpack.c.0.s8 %v8790
        %v8792 = vperm.slane %v8784, %v8791
        %v8793 = vrot.slane %v8778, 4
        %v8794 = vsel %vm2021, 0.0, %v8793
        %v8795 = vrot.slane %v8782, 4
        %v8796 = vsel %vm2021, 0.0, %v8795
        %v8797 = vrot.slane %v8788, 4
        %v8798 = vsel %vm2021, 0.0, %v8797
        %v8799 = vrot.slane %v8792, 4
        %v8800 = vsel %vm2021, 0.0, %v8799
        %v8801 = vrot.slane %v2006, 4
        %v8802 = vsel %vm2021, 0.0, %v8801
        %v8804 = vunpack.c.l.s4 1983009808
        %v8805 = vunpack.c.0.s8 %v8804
        %v8806 = vperm.slane %v2006, %v8805
        %v8808 = vunpack.c.l.s4 1983009808
        %v8809 = vunpack.c.0.s8 %v8808
        %v8810 = vperm.slane %v8802, %v8809
        %v8811 = vrot.slane %v8806, 4
        %v8812 = vsel %vm2021, 0.0, %v8811
        %v8814 = vunpack.c.l.s4 1934713408
        %v8815 = vunpack.c.0.s8 %v8814
        %v8816 = vperm.slane %v8806, %v8815
        %v8818 = vunpack.c.l.s4 1934713408
        %v8819 = vunpack.c.0.s8 %v8818
        %v8820 = vperm.slane %v8812, %v8819
        %v8821 = vrot.slane %v8810, 4
        %v8822 = vsel %vm2021, 0.0, %v8821
        %v8824 = vunpack.c.l.s4 1934713408
        %v8825 = vunpack.c.0.s8 %v8824
        %v8826 = vperm.slane %v8810, %v8825
        %v8828 = vunpack.c.l.s4 1934713408
        %v8829 = vunpack.c.0.s8 %v8828
        %v8830 = vperm.slane %v8822, %v8829
        %v8831 = vrot.slane %v8816, 4
        %v8832 = vsel %vm2021, 0.0, %v8831
        %v8833 = vrot.slane %v8820, 4
        %v8834 = vsel %vm2021, 0.0, %v8833
        %v8835 = vrot.slane %v8826, 4
        %v8836 = vsel %vm2021, 0.0, %v8835
        %v8837 = vrot.slane %v8830, 4
        %v8838 = vsel %vm2021, 0.0, %v8837
        %v8839 = vrot.slane %v2007, 4
        %v8840 = vsel %vm2021, 0.0, %v8839
        %v8842 = vunpack.c.l.s4 1983009808
        %v8843 = vunpack.c.0.s8 %v8842
        %v8844 = vperm.slane %v2007, %v8843
        %v8846 = vunpack.c.l.s4 1983009808
        %v8847 = vunpack.c.0.s8 %v8846
        %v8848 = vperm.slane %v8840, %v8847
        %v8849 = vrot.slane %v8844, 4
        %v8850 = vsel %vm2021, 0.0, %v8849
        %v8852 = vunpack.c.l.s4 1934713408
        %v8853 = vunpack.c.0.s8 %v8852
        %v8854 = vperm.slane %v8844, %v8853
        %v8856 = vunpack.c.l.s4 1934713408
        %v8857 = vunpack.c.0.s8 %v8856
        %v8858 = vperm.slane %v8850, %v8857
        %v8859 = vrot.slane %v8848, 4
        %v8860 = vsel %vm2021, 0.0, %v8859
        %v8862 = vunpack.c.l.s4 1934713408
        %v8863 = vunpack.c.0.s8 %v8862
        %v8864 = vperm.slane %v8848, %v8863
        %v8866 = vunpack.c.l.s4 1934713408
        %v8867 = vunpack.c.0.s8 %v8866
        %v8868 = vperm.slane %v8860, %v8867
        %v8869 = vrot.slane %v8854, 4
        %v8870 = vsel %vm2021, 0.0, %v8869
        %v8871 = vrot.slane %v8858, 4
        %v8872 = vsel %vm2021, 0.0, %v8871
        %v8873 = vrot.slane %v8864, 4
        %v8874 = vsel %vm2021, 0.0, %v8873
        %v8875 = vrot.slane %v8868, 4
        %v8876 = vsel %vm2021, 0.0, %v8875
        %v8877 = vrot.slane %v2008, 4
        %v8878 = vsel %vm2021, 0.0, %v8877
        %v8880 = vunpack.c.l.s4 1983009808
        %v8881 = vunpack.c.0.s8 %v8880
        %v8882 = vperm.slane %v2008, %v8881
        %v8884 = vunpack.c.l.s4 1983009808
        %v8885 = vunpack.c.0.s8 %v8884
        %v8886 = vperm.slane %v8878, %v8885
        %v8887 = vrot.slane %v8882, 4
        %v8888 = vsel %vm2021, 0.0, %v8887
        %v8890 = vunpack.c.l.s4 1934713408
        %v8891 = vunpack.c.0.s8 %v8890
        %v8892 = vperm.slane %v8882, %v8891
        %v8894 = vunpack.c.l.s4 1934713408
        %v8895 = vunpack.c.0.s8 %v8894
        %v8896 = vperm.slane %v8888, %v8895
        %v8897 = vrot.slane %v8886, 4
        %v8898 = vsel %vm2021, 0.0, %v8897
        %v8900 = vunpack.c.l.s4 1934713408
        %v8901 = vunpack.c.0.s8 %v8900
        %v8902 = vperm.slane %v8886, %v8901
        %v8904 = vunpack.c.l.s4 1934713408
        %v8905 = vunpack.c.0.s8 %v8904
        %v8906 = vperm.slane %v8898, %v8905
        %v8907 = vrot.slane %v8892, 4
        %v8908 = vsel %vm2021, 0.0, %v8907
        %v8909 = vrot.slane %v8896, 4
        %v8910 = vsel %vm2021, 0.0, %v8909
        %v8911 = vrot.slane %v8902, 4
        %v8912 = vsel %vm2021, 0.0, %v8911
        %v8913 = vrot.slane %v8906, 4
        %v8914 = vsel %vm2021, 0.0, %v8913
        %v8915 = vrot.slane %v2009, 4
        %v8916 = vsel %vm2021, 0.0, %v8915
        %v8918 = vunpack.c.l.s4 1983009808
        %v8919 = vunpack.c.0.s8 %v8918
        %v8920 = vperm.slane %v2009, %v8919
        %v8922 = vunpack.c.l.s4 1983009808
        %v8923 = vunpack.c.0.s8 %v8922
        %v8924 = vperm.slane %v8916, %v8923
        %v8925 = vrot.slane %v8920, 4
        %v8926 = vsel %vm2021, 0.0, %v8925
        %v8928 = vunpack.c.l.s4 1934713408
        %v8929 = vunpack.c.0.s8 %v8928
        %v8930 = vperm.slane %v8920, %v8929
        %v8932 = vunpack.c.l.s4 1934713408
        %v8933 = vunpack.c.0.s8 %v8932
        %v8934 = vperm.slane %v8926, %v8933
        %v8935 = vrot.slane %v8924, 4
        %v8936 = vsel %vm2021, 0.0, %v8935
        %v8938 = vunpack.c.l.s4 1934713408
        %v8939 = vunpack.c.0.s8 %v8938
        %v8940 = vperm.slane %v8924, %v8939
        %v8942 = vunpack.c.l.s4 1934713408
        %v8943 = vunpack.c.0.s8 %v8942
        %v8944 = vperm.slane %v8936, %v8943
        %v8945 = vrot.slane %v8930, 4
        %v8946 = vsel %vm2021, 0.0, %v8945
        %v8947 = vrot.slane %v8934, 4
        %v8948 = vsel %vm2021, 0.0, %v8947
        %v8949 = vrot.slane %v8940, 4
        %v8950 = vsel %vm2021, 0.0, %v8949
        %v8951 = vrot.slane %v8944, 4
        %v8952 = vsel %vm2021, 0.0, %v8951
        %v8953 = vrot.slane %v2010, 4
        %v8954 = vsel %vm2021, 0.0, %v8953
        %v8956 = vunpack.c.l.s4 1983009808
        %v8957 = vunpack.c.0.s8 %v8956
        %v8958 = vperm.slane %v2010, %v8957
        %v8960 = vunpack.c.l.s4 1983009808
        %v8961 = vunpack.c.0.s8 %v8960
        %v8962 = vperm.slane %v8954, %v8961
        %v8963 = vrot.slane %v8958, 4
        %v8964 = vsel %vm2021, 0.0, %v8963
        %v8966 = vunpack.c.l.s4 1934713408
        %v8967 = vunpack.c.0.s8 %v8966
        %v8968 = vperm.slane %v8958, %v8967
        %v8970 = vunpack.c.l.s4 1934713408
        %v8971 = vunpack.c.0.s8 %v8970
        %v8972 = vperm.slane %v8964, %v8971
        %v8973 = vrot.slane %v8962, 4
        %v8974 = vsel %vm2021, 0.0, %v8973
        %v8976 = vunpack.c.l.s4 1934713408
        %v8977 = vunpack.c.0.s8 %v8976
        %v8978 = vperm.slane %v8962, %v8977
        %v8980 = vunpack.c.l.s4 1934713408
        %v8981 = vunpack.c.0.s8 %v8980
        %v8982 = vperm.slane %v8974, %v8981
        %v8983 = vrot.slane %v8968, 4
        %v8984 = vsel %vm2021, 0.0, %v8983
        %v8985 = vrot.slane %v8972, 4
        %v8986 = vsel %vm2021, 0.0, %v8985
        %v8987 = vrot.slane %v8978, 4
        %v8988 = vsel %vm2021, 0.0, %v8987
        %v8989 = vrot.slane %v8982, 4
        %v8990 = vsel %vm2021, 0.0, %v8989
        %v8991 = vrot.slane %v2011, 4
        %v8992 = vsel %vm2021, 0.0, %v8991
        %v8994 = vunpack.c.l.s4 1983009808
        %v8995 = vunpack.c.0.s8 %v8994
        %v8996 = vperm.slane %v2011, %v8995
        %v8998 = vunpack.c.l.s4 1983009808
        %v8999 = vunpack.c.0.s8 %v8998
        %v9000 = vperm.slane %v8992, %v8999
        %v9001 = vrot.slane %v8996, 4
        %v9002 = vsel %vm2021, 0.0, %v9001
        %v9004 = vunpack.c.l.s4 1934713408
        %v9005 = vunpack.c.0.s8 %v9004
        %v9006 = vperm.slane %v8996, %v9005
        %v9008 = vunpack.c.l.s4 1934713408
        %v9009 = vunpack.c.0.s8 %v9008
        %v9010 = vperm.slane %v9002, %v9009
        %v9011 = vrot.slane %v9000, 4
        %v9012 = vsel %vm2021, 0.0, %v9011
        %v9014 = vunpack.c.l.s4 1934713408
        %v9015 = vunpack.c.0.s8 %v9014
        %v9016 = vperm.slane %v9000, %v9015
        %v9018 = vunpack.c.l.s4 1934713408
        %v9019 = vunpack.c.0.s8 %v9018
        %v9020 = vperm.slane %v9012, %v9019
        %v9021 = vrot.slane %v9006, 4
        %v9022 = vsel %vm2021, 0.0, %v9021
        %v9023 = vrot.slane %v9010, 4
        %v9024 = vsel %vm2021, 0.0, %v9023
        %v9025 = vrot.slane %v9016, 4
        %v9026 = vsel %vm2021, 0.0, %v9025
        %v9027 = vrot.slane %v9020, 4
        %v9028 = vsel %vm2021, 0.0, %v9027
        %v9029 = vrot.slane %v2012, 4
        %v9030 = vsel %vm2021, 0.0, %v9029
        %v9032 = vunpack.c.l.s4 1983009808
        %v9033 = vunpack.c.0.s8 %v9032
        %v9034 = vperm.slane %v2012, %v9033
        %v9036 = vunpack.c.l.s4 1983009808
        %v9037 = vunpack.c.0.s8 %v9036
        %v9038 = vperm.slane %v9030, %v9037
        %v9039 = vrot.slane %v9034, 4
        %v9040 = vsel %vm2021, 0.0, %v9039
        %v9042 = vunpack.c.l.s4 1934713408
        %v9043 = vunpack.c.0.s8 %v9042
        %v9044 = vperm.slane %v9034, %v9043
        %v9046 = vunpack.c.l.s4 1934713408
        %v9047 = vunpack.c.0.s8 %v9046
        %v9048 = vperm.slane %v9040, %v9047
        %v9049 = vrot.slane %v9038, 4
        %v9050 = vsel %vm2021, 0.0, %v9049
        %v9052 = vunpack.c.l.s4 1934713408
        %v9053 = vunpack.c.0.s8 %v9052
        %v9054 = vperm.slane %v9038, %v9053
        %v9056 = vunpack.c.l.s4 1934713408
        %v9057 = vunpack.c.0.s8 %v9056
        %v9058 = vperm.slane %v9050, %v9057
        %v9059 = vrot.slane %v9044, 4
        %v9060 = vsel %vm2021, 0.0, %v9059
        %v9061 = vrot.slane %v9048, 4
        %v9062 = vsel %vm2021, 0.0, %v9061
        %v9063 = vrot.slane %v9054, 4
        %v9064 = vsel %vm2021, 0.0, %v9063
        %v9065 = vrot.slane %v9058, 4
        %v9066 = vsel %vm2021, 0.0, %v9065
        %v9067 = vrot.slane %v2013, 4
        %v9068 = vsel %vm2021, 0.0, %v9067
        %v9070 = vunpack.c.l.s4 1983009808
        %v9071 = vunpack.c.0.s8 %v9070
        %v9072 = vperm.slane %v2013, %v9071
        %v9074 = vunpack.c.l.s4 1983009808
        %v9075 = vunpack.c.0.s8 %v9074
        %v9076 = vperm.slane %v9068, %v9075
        %v9077 = vrot.slane %v9072, 4
        %v9078 = vsel %vm2021, 0.0, %v9077
        %v9080 = vunpack.c.l.s4 1934713408
        %v9081 = vunpack.c.0.s8 %v9080
        %v9082 = vperm.slane %v9072, %v9081
        %v9084 = vunpack.c.l.s4 1934713408
        %v9085 = vunpack.c.0.s8 %v9084
        %v9086 = vperm.slane %v9078, %v9085
        %v9087 = vrot.slane %v9076, 4
        %v9088 = vsel %vm2021, 0.0, %v9087
        %v9090 = vunpack.c.l.s4 1934713408
        %v9091 = vunpack.c.0.s8 %v9090
        %v9092 = vperm.slane %v9076, %v9091
        %v9094 = vunpack.c.l.s4 1934713408
        %v9095 = vunpack.c.0.s8 %v9094
        %v9096 = vperm.slane %v9088, %v9095
        %v9097 = vrot.slane %v9082, 4
        %v9098 = vsel %vm2021, 0.0, %v9097
        %v9099 = vrot.slane %v9086, 4
        %v9100 = vsel %vm2021, 0.0, %v9099
        %v9101 = vrot.slane %v9092, 4
        %v9102 = vsel %vm2021, 0.0, %v9101
        %v9103 = vrot.slane %v9096, 4
        %v9104 = vsel %vm2021, 0.0, %v9103
        %v9105 = vrot.slane %v2014, 4
        %v9106 = vsel %vm2021, 0.0, %v9105
        %v9108 = vunpack.c.l.s4 1983009808
        %v9109 = vunpack.c.0.s8 %v9108
        %v9110 = vperm.slane %v2014, %v9109
        %v9112 = vunpack.c.l.s4 1983009808
        %v9113 = vunpack.c.0.s8 %v9112
        %v9114 = vperm.slane %v9106, %v9113
        %v9115 = vrot.slane %v9110, 4
        %v9116 = vsel %vm2021, 0.0, %v9115
        %v9118 = vunpack.c.l.s4 1934713408
        %v9119 = vunpack.c.0.s8 %v9118
        %v9120 = vperm.slane %v9110, %v9119
        %v9122 = vunpack.c.l.s4 1934713408
        %v9123 = vunpack.c.0.s8 %v9122
        %v9124 = vperm.slane %v9116, %v9123
        %v9125 = vrot.slane %v9114, 4
        %v9126 = vsel %vm2021, 0.0, %v9125
        %v9128 = vunpack.c.l.s4 1934713408
        %v9129 = vunpack.c.0.s8 %v9128
        %v9130 = vperm.slane %v9114, %v9129
        %v9132 = vunpack.c.l.s4 1934713408
        %v9133 = vunpack.c.0.s8 %v9132
        %v9134 = vperm.slane %v9126, %v9133
        %v9135 = vrot.slane %v9120, 4
        %v9136 = vsel %vm2021, 0.0, %v9135
        %v9137 = vrot.slane %v9124, 4
        %v9138 = vsel %vm2021, 0.0, %v9137
        %v9139 = vrot.slane %v9130, 4
        %v9140 = vsel %vm2021, 0.0, %v9139
        %v9141 = vrot.slane %v9134, 4
        %v9142 = vsel %vm2021, 0.0, %v9141
        %v9143 = vrot.slane %v2015, 4
        %v9144 = vsel %vm2021, 0.0, %v9143
        %v9146 = vunpack.c.l.s4 1983009808
        %v9147 = vunpack.c.0.s8 %v9146
        %v9148 = vperm.slane %v2015, %v9147
        %v9150 = vunpack.c.l.s4 1983009808
        %v9151 = vunpack.c.0.s8 %v9150
        %v9152 = vperm.slane %v9144, %v9151
        %v9153 = vrot.slane %v9148, 4
        %v9154 = vsel %vm2021, 0.0, %v9153
        %v9156 = vunpack.c.l.s4 1934713408
        %v9157 = vunpack.c.0.s8 %v9156
        %v9158 = vperm.slane %v9148, %v9157
        %v9160 = vunpack.c.l.s4 1934713408
        %v9161 = vunpack.c.0.s8 %v9160
        %v9162 = vperm.slane %v9154, %v9161
        %v9163 = vrot.slane %v9152, 4
        %v9164 = vsel %vm2021, 0.0, %v9163
        %v9166 = vunpack.c.l.s4 1934713408
        %v9167 = vunpack.c.0.s8 %v9166
        %v9168 = vperm.slane %v9152, %v9167
        %v9170 = vunpack.c.l.s4 1934713408
        %v9171 = vunpack.c.0.s8 %v9170
        %v9172 = vperm.slane %v9164, %v9171
        %v9173 = vrot.slane %v9158, 4
        %v9174 = vsel %vm2021, 0.0, %v9173
        %v9175 = vrot.slane %v9162, 4
        %v9176 = vsel %vm2021, 0.0, %v9175
        %v9177 = vrot.slane %v9168, 4
        %v9178 = vsel %vm2021, 0.0, %v9177
        %v9179 = vrot.slane %v9172, 4
        %v9180 = vsel %vm2021, 0.0, %v9179
        %v9181 = vrot.slane %v2016, 4
        %v9182 = vsel %vm2021, 0.0, %v9181
        %v9184 = vunpack.c.l.s4 1983009808
        %v9185 = vunpack.c.0.s8 %v9184
        %v9186 = vperm.slane %v2016, %v9185
        %v9188 = vunpack.c.l.s4 1983009808
        %v9189 = vunpack.c.0.s8 %v9188
        %v9190 = vperm.slane %v9182, %v9189
        %v9191 = vrot.slane %v9186, 4
        %v9192 = vsel %vm2021, 0.0, %v9191
        %v9194 = vunpack.c.l.s4 1934713408
        %v9195 = vunpack.c.0.s8 %v9194
        %v9196 = vperm.slane %v9186, %v9195
        %v9198 = vunpack.c.l.s4 1934713408
        %v9199 = vunpack.c.0.s8 %v9198
        %v9200 = vperm.slane %v9192, %v9199
        %v9201 = vrot.slane %v9190, 4
        %v9202 = vsel %vm2021, 0.0, %v9201
        %v9204 = vunpack.c.l.s4 1934713408
        %v9205 = vunpack.c.0.s8 %v9204
        %v9206 = vperm.slane %v9190, %v9205
        %v9208 = vunpack.c.l.s4 1934713408
        %v9209 = vunpack.c.0.s8 %v9208
        %v9210 = vperm.slane %v9202, %v9209
        %v9211 = vrot.slane %v9196, 4
        %v9212 = vsel %vm2021, 0.0, %v9211
        %v9213 = vrot.slane %v9200, 4
        %v9214 = vsel %vm2021, 0.0, %v9213
        %v9215 = vrot.slane %v9206, 4
        %v9216 = vsel %vm2021, 0.0, %v9215
        %v9217 = vrot.slane %v9210, 4
        %v9218 = vsel %vm2021, 0.0, %v9217
        %v9219 = vrot.slane %v2017, 4
        %v9220 = vsel %vm2021, 0.0, %v9219
        %v9222 = vunpack.c.l.s4 1983009808
        %v9223 = vunpack.c.0.s8 %v9222
        %v9224 = vperm.slane %v2017, %v9223
        %v9226 = vunpack.c.l.s4 1983009808
        %v9227 = vunpack.c.0.s8 %v9226
        %v9228 = vperm.slane %v9220, %v9227
        %v9229 = vrot.slane %v9224, 4
        %v9230 = vsel %vm2021, 0.0, %v9229
        %v9232 = vunpack.c.l.s4 1934713408
        %v9233 = vunpack.c.0.s8 %v9232
        %v9234 = vperm.slane %v9224, %v9233
        %v9236 = vunpack.c.l.s4 1934713408
        %v9237 = vunpack.c.0.s8 %v9236
        %v9238 = vperm.slane %v9230, %v9237
        %v9239 = vrot.slane %v9228, 4
        %v9240 = vsel %vm2021, 0.0, %v9239
        %v9242 = vunpack.c.l.s4 1934713408
        %v9243 = vunpack.c.0.s8 %v9242
        %v9244 = vperm.slane %v9228, %v9243
        %v9246 = vunpack.c.l.s4 1934713408
        %v9247 = vunpack.c.0.s8 %v9246
        %v9248 = vperm.slane %v9240, %v9247
        %v9249 = vrot.slane %v9234, 4
        %v9250 = vsel %vm2021, 0.0, %v9249
        %v9251 = vrot.slane %v9238, 4
        %v9252 = vsel %vm2021, 0.0, %v9251
        %v9253 = vrot.slane %v9244, 4
        %v9254 = vsel %vm2021, 0.0, %v9253
        %v9255 = vrot.slane %v9248, 4
        %v9256 = vsel %vm2021, 0.0, %v9255
        %v9257 = vrot.slane %v2018, 4
        %v9258 = vsel %vm2021, 0.0, %v9257
        %v9260 = vunpack.c.l.s4 1983009808
        %v9261 = vunpack.c.0.s8 %v9260
        %v9262 = vperm.slane %v2018, %v9261
        %v9264 = vunpack.c.l.s4 1983009808
        %v9265 = vunpack.c.0.s8 %v9264
        %v9266 = vperm.slane %v9258, %v9265
        %v9267 = vrot.slane %v9262, 4
        %v9268 = vsel %vm2021, 0.0, %v9267
        %v9270 = vunpack.c.l.s4 1934713408
        %v9271 = vunpack.c.0.s8 %v9270
        %v9272 = vperm.slane %v9262, %v9271
        %v9274 = vunpack.c.l.s4 1934713408
        %v9275 = vunpack.c.0.s8 %v9274
        %v9276 = vperm.slane %v9268, %v9275
        %v9277 = vrot.slane %v9266, 4
        %v9278 = vsel %vm2021, 0.0, %v9277
        %v9280 = vunpack.c.l.s4 1934713408
        %v9281 = vunpack.c.0.s8 %v9280
        %v9282 = vperm.slane %v9266, %v9281
        %v9284 = vunpack.c.l.s4 1934713408
        %v9285 = vunpack.c.0.s8 %v9284
        %v9286 = vperm.slane %v9278, %v9285
        %v9287 = vrot.slane %v9272, 4
        %v9288 = vsel %vm2021, 0.0, %v9287
        %v9289 = vrot.slane %v9276, 4
        %v9290 = vsel %vm2021, 0.0, %v9289
        %v9291 = vrot.slane %v9282, 4
        %v9292 = vsel %vm2021, 0.0, %v9291
        %v9293 = vrot.slane %v9286, 4
        %v9294 = vsel %vm2021, 0.0, %v9293
        %v9295 = vrot.slane %v2019, 4
        %v9296 = vsel %vm2021, 0.0, %v9295
        %v9298 = vunpack.c.l.s4 1983009808
        %v9299 = vunpack.c.0.s8 %v9298
        %v9300 = vperm.slane %v2019, %v9299
        %v9302 = vunpack.c.l.s4 1983009808
        %v9303 = vunpack.c.0.s8 %v9302
        %v9304 = vperm.slane %v9296, %v9303
        %v9305 = vrot.slane %v9300, 4
        %v9306 = vsel %vm2021, 0.0, %v9305
        %v9308 = vunpack.c.l.s4 1934713408
        %v9309 = vunpack.c.0.s8 %v9308
        %v9310 = vperm.slane %v9300, %v9309
        %v9312 = vunpack.c.l.s4 1934713408
        %v9313 = vunpack.c.0.s8 %v9312
        %v9314 = vperm.slane %v9306, %v9313
        %v9315 = vrot.slane %v9304, 4
        %v9316 = vsel %vm2021, 0.0, %v9315
        %v9318 = vunpack.c.l.s4 1934713408
        %v9319 = vunpack.c.0.s8 %v9318
        %v9320 = vperm.slane %v9304, %v9319
        %v9322 = vunpack.c.l.s4 1934713408
        %v9323 = vunpack.c.0.s8 %v9322
        %v9324 = vperm.slane %v9316, %v9323
        %v9325 = vrot.slane %v9310, 4
        %v9326 = vsel %vm2021, 0.0, %v9325
        %v9327 = vrot.slane %v9314, 4
        %v9328 = vsel %vm2021, 0.0, %v9327
        %v9329 = vrot.slane %v9320, 4
        %v9330 = vsel %vm2021, 0.0, %v9329
        %v9331 = vrot.slane %v9324, 4
        %v9332 = vsel %vm2021, 0.0, %v9331
        %9365 = vrot.lane.b32.xlu0 %v6932, 2
        %v9366 = vpop.permute.xlu0 %9365
        %9367 = vrot.lane.b32.xlu0 %v7008, 2
        %v9368 = vpop.permute.xlu0 %9367
        %9369 = vrot.lane.b32.xlu0 %v7084, 2
        %v9370 = vpop.permute.xlu0 %9369
        %9371 = vrot.lane.b32.xlu0 %v7160, 2
        %v9372 = vpop.permute.xlu0 %9371
        %9373 = vrot.lane.b32.xlu0 %v7236, 2
        %v9374 = vpop.permute.xlu0 %9373
        %9375 = vrot.lane.b32.xlu0 %v7312, 2
        %v9376 = vpop.permute.xlu0 %9375
        %9377 = vrot.lane.b32.xlu0 %v7388, 2
        %v9378 = vpop.permute.xlu0 %9377
        %9379 = vrot.lane.b32.xlu0 %v7464, 2
        %v9380 = vpop.permute.xlu0 %9379
        %9381 = vrot.lane.b32.xlu0 %v7540, 2
        %v9382 = vpop.permute.xlu0 %9381
        %9383 = vrot.lane.b32.xlu0 %v7616, 2
        %v9384 = vpop.permute.xlu0 %9383
        %9385 = vrot.lane.b32.xlu0 %v7692, 2
        %v9386 = vpop.permute.xlu0 %9385
        %9387 = vrot.lane.b32.xlu0 %v7768, 2
        %v9388 = vpop.permute.xlu0 %9387
        %9389 = vrot.lane.b32.xlu0 %v7844, 2
        %v9390 = vpop.permute.xlu0 %9389
        %9391 = vrot.lane.b32.xlu0 %v7920, 2
        %v9392 = vpop.permute.xlu0 %9391
        %9393 = vrot.lane.b32.xlu0 %v7996, 2
        %v9394 = vpop.permute.xlu0 %9393
        %9395 = vrot.lane.b32.xlu0 %v8072, 2
        %v9396 = vpop.permute.xlu0 %9395
        %9397 = vrot.lane.b32.xlu0 %v8148, 2
        %v9398 = vpop.permute.xlu0 %9397
        %9399 = vrot.lane.b32.xlu0 %v8224, 2
        %v9400 = vpop.permute.xlu0 %9399
        %9401 = vrot.lane.b32.xlu0 %v8300, 2
        %v9402 = vpop.permute.xlu0 %9401
        %9403 = vrot.lane.b32.xlu0 %v8376, 2
        %v9404 = vpop.permute.xlu0 %9403
        %9405 = vrot.lane.b32.xlu0 %v8452, 2
        %v9406 = vpop.permute.xlu0 %9405
        %9407 = vrot.lane.b32.xlu0 %v8528, 2
        %v9408 = vpop.permute.xlu0 %9407
        %9409 = vrot.lane.b32.xlu0 %v8604, 2
        %v9410 = vpop.permute.xlu0 %9409
        %9411 = vrot.lane.b32.xlu0 %v8680, 2
        %v9412 = vpop.permute.xlu0 %9411
        %9413 = vrot.lane.b32.xlu0 %v8756, 2
        %v9414 = vpop.permute.xlu0 %9413
        %9415 = vrot.lane.b32.xlu0 %v8832, 2
        %v9416 = vpop.permute.xlu0 %9415
        %9417 = vrot.lane.b32.xlu0 %v8908, 2
        %v9418 = vpop.permute.xlu0 %9417
        %9419 = vrot.lane.b32.xlu0 %v8984, 2
        %v9420 = vpop.permute.xlu0 %9419
        %9421 = vrot.lane.b32.xlu0 %v9060, 2
        %v9422 = vpop.permute.xlu0 %9421
        %9423 = vrot.lane.b32.xlu0 %v9136, 2
        %v9424 = vpop.permute.xlu0 %9423
        %9425 = vrot.lane.b32.xlu0 %v9212, 2
        %v9426 = vpop.permute.xlu0 %9425
        %9427 = vrot.lane.b32.xlu0 %v9288, 2
        %v9428 = vpop.permute.xlu0 %9427
        %9493 = vrot.lane.b32.xlu0 %v6920, 4
        %v9494 = vpop.permute.xlu0 %9493
        %9495 = vrot.lane.b32.xlu0 %v6996, 4
        %v9496 = vpop.permute.xlu0 %9495
        %9497 = vrot.lane.b32.xlu0 %v7072, 4
        %v9498 = vpop.permute.xlu0 %9497
        %9499 = vrot.lane.b32.xlu0 %v7148, 4
        %v9500 = vpop.permute.xlu0 %9499
        %9501 = vrot.lane.b32.xlu0 %v7224, 4
        %v9502 = vpop.permute.xlu0 %9501
        %9503 = vrot.lane.b32.xlu0 %v7300, 4
        %v9504 = vpop.permute.xlu0 %9503
        %9505 = vrot.lane.b32.xlu0 %v7376, 4
        %v9506 = vpop.permute.xlu0 %9505
        %9507 = vrot.lane.b32.xlu0 %v7452, 4
        %v9508 = vpop.permute.xlu0 %9507
        %9509 = vrot.lane.b32.xlu0 %v7528, 4
        %v9510 = vpop.permute.xlu0 %9509
        %9511 = vrot.lane.b32.xlu0 %v7604, 4
        %v9512 = vpop.permute.xlu0 %9511
        %9513 = vrot.lane.b32.xlu0 %v7680, 4
        %v9514 = vpop.permute.xlu0 %9513
        %9515 = vrot.lane.b32.xlu0 %v7756, 4
        %v9516 = vpop.permute.xlu0 %9515
        %9517 = vrot.lane.b32.xlu0 %v7832, 4
        %v9518 = vpop.permute.xlu0 %9517
        %9519 = vrot.lane.b32.xlu0 %v7908, 4
        %v9520 = vpop.permute.xlu0 %9519
        %9521 = vrot.lane.b32.xlu0 %v7984, 4
        %v9522 = vpop.permute.xlu0 %9521
        %9523 = vrot.lane.b32.xlu0 %v8060, 4
        %v9524 = vpop.permute.xlu0 %9523
        %9525 = vrot.lane.b32.xlu0 %v8136, 4
        %v9526 = vpop.permute.xlu0 %9525
        %9527 = vrot.lane.b32.xlu0 %v8212, 4
        %v9528 = vpop.permute.xlu0 %9527
        %9529 = vrot.lane.b32.xlu0 %v8288, 4
        %v9530 = vpop.permute.xlu0 %9529
        %9531 = vrot.lane.b32.xlu0 %v8364, 4
        %v9532 = vpop.permute.xlu0 %9531
        %9533 = vrot.lane.b32.xlu0 %v8440, 4
        %v9534 = vpop.permute.xlu0 %9533
        %9535 = vrot.lane.b32.xlu0 %v8516, 4
        %v9536 = vpop.permute.xlu0 %9535
        %9537 = vrot.lane.b32.xlu0 %v8592, 4
        %v9538 = vpop.permute.xlu0 %9537
        %9539 = vrot.lane.b32.xlu0 %v8668, 4
        %v9540 = vpop.permute.xlu0 %9539
        %9541 = vrot.lane.b32.xlu0 %v8744, 4
        %v9542 = vpop.permute.xlu0 %9541
        %9543 = vrot.lane.b32.xlu0 %v8820, 4
        %v9544 = vpop.permute.xlu0 %9543
        %9545 = vrot.lane.b32.xlu0 %v8896, 4
        %v9546 = vpop.permute.xlu0 %9545
        %9547 = vrot.lane.b32.xlu0 %v8972, 4
        %v9548 = vpop.permute.xlu0 %9547
        %9549 = vrot.lane.b32.xlu0 %v9048, 4
        %v9550 = vpop.permute.xlu0 %9549
        %9551 = vrot.lane.b32.xlu0 %v9124, 4
        %v9552 = vpop.permute.xlu0 %9551
        %9553 = vrot.lane.b32.xlu0 %v9200, 4
        %v9554 = vpop.permute.xlu0 %9553
        %9555 = vrot.lane.b32.xlu0 %v9276, 4
        %v9556 = vpop.permute.xlu0 %9555
        %9621 = vrot.lane.b32.xlu0 %v6934, 6
        %v9622 = vpop.permute.xlu0 %9621
        %9623 = vrot.lane.b32.xlu0 %v7010, 6
        %v9624 = vpop.permute.xlu0 %9623
        %9625 = vrot.lane.b32.xlu0 %v7086, 6
        %v9626 = vpop.permute.xlu0 %9625
        %9627 = vrot.lane.b32.xlu0 %v7162, 6
        %v9628 = vpop.permute.xlu0 %9627
        %9629 = vrot.lane.b32.xlu0 %v7238, 6
        %v9630 = vpop.permute.xlu0 %9629
        %9631 = vrot.lane.b32.xlu0 %v7314, 6
        %v9632 = vpop.permute.xlu0 %9631
        %9633 = vrot.lane.b32.xlu0 %v7390, 6
        %v9634 = vpop.permute.xlu0 %9633
        %9635 = vrot.lane.b32.xlu0 %v7466, 6
        %v9636 = vpop.permute.xlu0 %9635
        %9637 = vrot.lane.b32.xlu0 %v7542, 6
        %v9638 = vpop.permute.xlu0 %9637
        %9639 = vrot.lane.b32.xlu0 %v7618, 6
        %v9640 = vpop.permute.xlu0 %9639
        %9641 = vrot.lane.b32.xlu0 %v7694, 6
        %v9642 = vpop.permute.xlu0 %9641
        %9643 = vrot.lane.b32.xlu0 %v7770, 6
        %v9644 = vpop.permute.xlu0 %9643
        %9645 = vrot.lane.b32.xlu0 %v7846, 6
        %v9646 = vpop.permute.xlu0 %9645
        %9647 = vrot.lane.b32.xlu0 %v7922, 6
        %v9648 = vpop.permute.xlu0 %9647
        %9649 = vrot.lane.b32.xlu0 %v7998, 6
        %v9650 = vpop.permute.xlu0 %9649
        %9651 = vrot.lane.b32.xlu0 %v8074, 6
        %v9652 = vpop.permute.xlu0 %9651
        %9653 = vrot.lane.b32.xlu0 %v8150, 6
        %v9654 = vpop.permute.xlu0 %9653
        %9655 = vrot.lane.b32.xlu0 %v8226, 6
        %v9656 = vpop.permute.xlu0 %9655
        %9657 = vrot.lane.b32.xlu0 %v8302, 6
        %v9658 = vpop.permute.xlu0 %9657
        %9659 = vrot.lane.b32.xlu0 %v8378, 6
        %v9660 = vpop.permute.xlu0 %9659
        %9661 = vrot.lane.b32.xlu0 %v8454, 6
        %v9662 = vpop.permute.xlu0 %9661
        %9663 = vrot.lane.b32.xlu0 %v8530, 6
        %v9664 = vpop.permute.xlu0 %9663
        %9665 = vrot.lane.b32.xlu0 %v8606, 6
        %v9666 = vpop.permute.xlu0 %9665
        %9667 = vrot.lane.b32.xlu0 %v8682, 6
        %v9668 = vpop.permute.xlu0 %9667
        %9669 = vrot.lane.b32.xlu0 %v8758, 6
        %v9670 = vpop.permute.xlu0 %9669
        %9671 = vrot.lane.b32.xlu0 %v8834, 6
        %v9672 = vpop.permute.xlu0 %9671
        %9673 = vrot.lane.b32.xlu0 %v8910, 6
        %v9674 = vpop.permute.xlu0 %9673
        %9675 = vrot.lane.b32.xlu0 %v8986, 6
        %v9676 = vpop.permute.xlu0 %9675
        %9677 = vrot.lane.b32.xlu0 %v9062, 6
        %v9678 = vpop.permute.xlu0 %9677
        %9679 = vrot.lane.b32.xlu0 %v9138, 6
        %v9680 = vpop.permute.xlu0 %9679
        %9681 = vrot.lane.b32.xlu0 %v9214, 6
        %v9682 = vpop.permute.xlu0 %9681
        %9683 = vrot.lane.b32.xlu0 %v9290, 6
        %v9684 = vpop.permute.xlu0 %9683
        %9749 = vrot.lane.b32.xlu0 %v6926, 8
        %v9750 = vpop.permute.xlu0 %9749
        %9751 = vrot.lane.b32.xlu0 %v7002, 8
        %v9752 = vpop.permute.xlu0 %9751
        %9753 = vrot.lane.b32.xlu0 %v7078, 8
        %v9754 = vpop.permute.xlu0 %9753
        %9755 = vrot.lane.b32.xlu0 %v7154, 8
        %v9756 = vpop.permute.xlu0 %9755
        %9757 = vrot.lane.b32.xlu0 %v7230, 8
        %v9758 = vpop.permute.xlu0 %9757
        %9759 = vrot.lane.b32.xlu0 %v7306, 8
        %v9760 = vpop.permute.xlu0 %9759
        %9761 = vrot.lane.b32.xlu0 %v7382, 8
        %v9762 = vpop.permute.xlu0 %9761
        %9763 = vrot.lane.b32.xlu0 %v7458, 8
        %v9764 = vpop.permute.xlu0 %9763
        %9765 = vrot.lane.b32.xlu0 %v7534, 8
        %v9766 = vpop.permute.xlu0 %9765
        %9767 = vrot.lane.b32.xlu0 %v7610, 8
        %v9768 = vpop.permute.xlu0 %9767
        %9769 = vrot.lane.b32.xlu0 %v7686, 8
        %v9770 = vpop.permute.xlu0 %9769
        %9771 = vrot.lane.b32.xlu0 %v7762, 8
        %v9772 = vpop.permute.xlu0 %9771
        %9773 = vrot.lane.b32.xlu0 %v7838, 8
        %v9774 = vpop.permute.xlu0 %9773
        %9775 = vrot.lane.b32.xlu0 %v7914, 8
        %v9776 = vpop.permute.xlu0 %9775
        %9777 = vrot.lane.b32.xlu0 %v7990, 8
        %v9778 = vpop.permute.xlu0 %9777
        %9779 = vrot.lane.b32.xlu0 %v8066, 8
        %v9780 = vpop.permute.xlu0 %9779
        %9781 = vrot.lane.b32.xlu0 %v8142, 8
        %v9782 = vpop.permute.xlu0 %9781
        %9783 = vrot.lane.b32.xlu0 %v8218, 8
        %v9784 = vpop.permute.xlu0 %9783
        %9785 = vrot.lane.b32.xlu0 %v8294, 8
        %v9786 = vpop.permute.xlu0 %9785
        %9787 = vrot.lane.b32.xlu0 %v8370, 8
        %v9788 = vpop.permute.xlu0 %9787
        %9789 = vrot.lane.b32.xlu0 %v8446, 8
        %v9790 = vpop.permute.xlu0 %9789
        %9791 = vrot.lane.b32.xlu0 %v8522, 8
        %v9792 = vpop.permute.xlu0 %9791
        %9793 = vrot.lane.b32.xlu0 %v8598, 8
        %v9794 = vpop.permute.xlu0 %9793
        %9795 = vrot.lane.b32.xlu0 %v8674, 8
        %v9796 = vpop.permute.xlu0 %9795
        %9797 = vrot.lane.b32.xlu0 %v8750, 8
        %v9798 = vpop.permute.xlu0 %9797
        %9799 = vrot.lane.b32.xlu0 %v8826, 8
        %v9800 = vpop.permute.xlu0 %9799
        %9801 = vrot.lane.b32.xlu0 %v8902, 8
        %v9802 = vpop.permute.xlu0 %9801
        %9803 = vrot.lane.b32.xlu0 %v8978, 8
        %v9804 = vpop.permute.xlu0 %9803
        %9805 = vrot.lane.b32.xlu0 %v9054, 8
        %v9806 = vpop.permute.xlu0 %9805
        %9807 = vrot.lane.b32.xlu0 %v9130, 8
        %v9808 = vpop.permute.xlu0 %9807
        %9809 = vrot.lane.b32.xlu0 %v9206, 8
        %v9810 = vpop.permute.xlu0 %9809
        %9811 = vrot.lane.b32.xlu0 %v9282, 8
        %v9812 = vpop.permute.xlu0 %9811
        %9877 = vrot.lane.b32.xlu0 %v6936, 10
        %v9878 = vpop.permute.xlu0 %9877
        %9879 = vrot.lane.b32.xlu0 %v7012, 10
        %v9880 = vpop.permute.xlu0 %9879
        %9881 = vrot.lane.b32.xlu0 %v7088, 10
        %v9882 = vpop.permute.xlu0 %9881
        %9883 = vrot.lane.b32.xlu0 %v7164, 10
        %v9884 = vpop.permute.xlu0 %9883
        %9885 = vrot.lane.b32.xlu0 %v7240, 10
        %v9886 = vpop.permute.xlu0 %9885
        %9887 = vrot.lane.b32.xlu0 %v7316, 10
        %v9888 = vpop.permute.xlu0 %9887
        %9889 = vrot.lane.b32.xlu0 %v7392, 10
        %v9890 = vpop.permute.xlu0 %9889
        %9891 = vrot.lane.b32.xlu0 %v7468, 10
        %v9892 = vpop.permute.xlu0 %9891
        %9893 = vrot.lane.b32.xlu0 %v7544, 10
        %v9894 = vpop.permute.xlu0 %9893
        %9895 = vrot.lane.b32.xlu0 %v7620, 10
        %v9896 = vpop.permute.xlu0 %9895
        %9897 = vrot.lane.b32.xlu0 %v7696, 10
        %v9898 = vpop.permute.xlu0 %9897
        %9899 = vrot.lane.b32.xlu0 %v7772, 10
        %v9900 = vpop.permute.xlu0 %9899
        %9901 = vrot.lane.b32.xlu0 %v7848, 10
        %v9902 = vpop.permute.xlu0 %9901
        %9903 = vrot.lane.b32.xlu0 %v7924, 10
        %v9904 = vpop.permute.xlu0 %9903
        %9905 = vrot.lane.b32.xlu0 %v8000, 10
        %v9906 = vpop.permute.xlu0 %9905
        %9907 = vrot.lane.b32.xlu0 %v8076, 10
        %v9908 = vpop.permute.xlu0 %9907
        %9909 = vrot.lane.b32.xlu0 %v8152, 10
        %v9910 = vpop.permute.xlu0 %9909
        %9911 = vrot.lane.b32.xlu0 %v8228, 10
        %v9912 = vpop.permute.xlu0 %9911
        %9913 = vrot.lane.b32.xlu0 %v8304, 10
        %v9914 = vpop.permute.xlu0 %9913
        %9915 = vrot.lane.b32.xlu0 %v8380, 10
        %v9916 = vpop.permute.xlu0 %9915
        %9917 = vrot.lane.b32.xlu0 %v8456, 10
        %v9918 = vpop.permute.xlu0 %9917
        %9919 = vrot.lane.b32.xlu0 %v8532, 10
        %v9920 = vpop.permute.xlu0 %9919
        %9921 = vrot.lane.b32.xlu0 %v8608, 10
        %v9922 = vpop.permute.xlu0 %9921
        %9923 = vrot.lane.b32.xlu0 %v8684, 10
        %v9924 = vpop.permute.xlu0 %9923
        %9925 = vrot.lane.b32.xlu0 %v8760, 10
        %v9926 = vpop.permute.xlu0 %9925
        %9927 = vrot.lane.b32.xlu0 %v8836, 10
        %v9928 = vpop.permute.xlu0 %9927
        %9929 = vrot.lane.b32.xlu0 %v8912, 10
        %v9930 = vpop.permute.xlu0 %9929
        %9931 = vrot.lane.b32.xlu0 %v8988, 10
        %v9932 = vpop.permute.xlu0 %9931
        %9933 = vrot.lane.b32.xlu0 %v9064, 10
        %v9934 = vpop.permute.xlu0 %9933
        %9935 = vrot.lane.b32.xlu0 %v9140, 10
        %v9936 = vpop.permute.xlu0 %9935
        %9937 = vrot.lane.b32.xlu0 %v9216, 10
        %v9938 = vpop.permute.xlu0 %9937
        %9939 = vrot.lane.b32.xlu0 %v9292, 10
        %v9940 = vpop.permute.xlu0 %9939
        %10005 = vrot.lane.b32.xlu0 %v6930, 12
        %v10006 = vpop.permute.xlu0 %10005
        %10007 = vrot.lane.b32.xlu0 %v7006, 12
        %v10008 = vpop.permute.xlu0 %10007
        %10009 = vrot.lane.b32.xlu0 %v7082, 12
        %v10010 = vpop.permute.xlu0 %10009
        %10011 = vrot.lane.b32.xlu0 %v7158, 12
        %v10012 = vpop.permute.xlu0 %10011
        %10013 = vrot.lane.b32.xlu0 %v7234, 12
        %v10014 = vpop.permute.xlu0 %10013
        %10015 = vrot.lane.b32.xlu0 %v7310, 12
        %v10016 = vpop.permute.xlu0 %10015
        %10017 = vrot.lane.b32.xlu0 %v7386, 12
        %v10018 = vpop.permute.xlu0 %10017
        %10019 = vrot.lane.b32.xlu0 %v7462, 12
        %v10020 = vpop.permute.xlu0 %10019
        %10021 = vrot.lane.b32.xlu0 %v7538, 12
        %v10022 = vpop.permute.xlu0 %10021
        %10023 = vrot.lane.b32.xlu0 %v7614, 12
        %v10024 = vpop.permute.xlu0 %10023
        %10025 = vrot.lane.b32.xlu0 %v7690, 12
        %v10026 = vpop.permute.xlu0 %10025
        %10027 = vrot.lane.b32.xlu0 %v7766, 12
        %v10028 = vpop.permute.xlu0 %10027
        %10029 = vrot.lane.b32.xlu0 %v7842, 12
        %v10030 = vpop.permute.xlu0 %10029
        %10031 = vrot.lane.b32.xlu0 %v7918, 12
        %v10032 = vpop.permute.xlu0 %10031
        %10033 = vrot.lane.b32.xlu0 %v7994, 12
        %v10034 = vpop.permute.xlu0 %10033
        %10035 = vrot.lane.b32.xlu0 %v8070, 12
        %v10036 = vpop.permute.xlu0 %10035
        %10037 = vrot.lane.b32.xlu0 %v8146, 12
        %v10038 = vpop.permute.xlu0 %10037
        %10039 = vrot.lane.b32.xlu0 %v8222, 12
        %v10040 = vpop.permute.xlu0 %10039
        %10041 = vrot.lane.b32.xlu0 %v8298, 12
        %v10042 = vpop.permute.xlu0 %10041
        %10043 = vrot.lane.b32.xlu0 %v8374, 12
        %v10044 = vpop.permute.xlu0 %10043
        %10045 = vrot.lane.b32.xlu0 %v8450, 12
        %v10046 = vpop.permute.xlu0 %10045
        %10047 = vrot.lane.b32.xlu0 %v8526, 12
        %v10048 = vpop.permute.xlu0 %10047
        %10049 = vrot.lane.b32.xlu0 %v8602, 12
        %v10050 = vpop.permute.xlu0 %10049
        %10051 = vrot.lane.b32.xlu0 %v8678, 12
        %v10052 = vpop.permute.xlu0 %10051
        %10053 = vrot.lane.b32.xlu0 %v8754, 12
        %v10054 = vpop.permute.xlu0 %10053
        %10055 = vrot.lane.b32.xlu0 %v8830, 12
        %v10056 = vpop.permute.xlu0 %10055
        %10057 = vrot.lane.b32.xlu0 %v8906, 12
        %v10058 = vpop.permute.xlu0 %10057
        %10059 = vrot.lane.b32.xlu0 %v8982, 12
        %v10060 = vpop.permute.xlu0 %10059
        %10061 = vrot.lane.b32.xlu0 %v9058, 12
        %v10062 = vpop.permute.xlu0 %10061
        %10063 = vrot.lane.b32.xlu0 %v9134, 12
        %v10064 = vpop.permute.xlu0 %10063
        %10065 = vrot.lane.b32.xlu0 %v9210, 12
        %v10066 = vpop.permute.xlu0 %10065
        %10067 = vrot.lane.b32.xlu0 %v9286, 12
        %v10068 = vpop.permute.xlu0 %10067
        %10133 = vrot.lane.b32.xlu0 %v6938, 14
        %v10134 = vpop.permute.xlu0 %10133
        %10135 = vrot.lane.b32.xlu0 %v7014, 14
        %v10136 = vpop.permute.xlu0 %10135
        %10137 = vrot.lane.b32.xlu0 %v7090, 14
        %v10138 = vpop.permute.xlu0 %10137
        %10139 = vrot.lane.b32.xlu0 %v7166, 14
        %v10140 = vpop.permute.xlu0 %10139
        %10141 = vrot.lane.b32.xlu0 %v7242, 14
        %v10142 = vpop.permute.xlu0 %10141
        %10143 = vrot.lane.b32.xlu0 %v7318, 14
        %v10144 = vpop.permute.xlu0 %10143
        %10145 = vrot.lane.b32.xlu0 %v7394, 14
        %v10146 = vpop.permute.xlu0 %10145
        %10147 = vrot.lane.b32.xlu0 %v7470, 14
        %v10148 = vpop.permute.xlu0 %10147
        %10149 = vrot.lane.b32.xlu0 %v7546, 14
        %v10150 = vpop.permute.xlu0 %10149
        %10151 = vrot.lane.b32.xlu0 %v7622, 14
        %v10152 = vpop.permute.xlu0 %10151
        %10153 = vrot.lane.b32.xlu0 %v7698, 14
        %v10154 = vpop.permute.xlu0 %10153
        %10155 = vrot.lane.b32.xlu0 %v7774, 14
        %v10156 = vpop.permute.xlu0 %10155
        %10157 = vrot.lane.b32.xlu0 %v7850, 14
        %v10158 = vpop.permute.xlu0 %10157
        %10159 = vrot.lane.b32.xlu0 %v7926, 14
        %v10160 = vpop.permute.xlu0 %10159
        %10161 = vrot.lane.b32.xlu0 %v8002, 14
        %v10162 = vpop.permute.xlu0 %10161
        %10163 = vrot.lane.b32.xlu0 %v8078, 14
        %v10164 = vpop.permute.xlu0 %10163
        %10165 = vrot.lane.b32.xlu0 %v8154, 14
        %v10166 = vpop.permute.xlu0 %10165
        %10167 = vrot.lane.b32.xlu0 %v8230, 14
        %v10168 = vpop.permute.xlu0 %10167
        %10169 = vrot.lane.b32.xlu0 %v8306, 14
        %v10170 = vpop.permute.xlu0 %10169
        %10171 = vrot.lane.b32.xlu0 %v8382, 14
        %v10172 = vpop.permute.xlu0 %10171
        %10173 = vrot.lane.b32.xlu0 %v8458, 14
        %v10174 = vpop.permute.xlu0 %10173
        %10175 = vrot.lane.b32.xlu0 %v8534, 14
        %v10176 = vpop.permute.xlu0 %10175
        %10177 = vrot.lane.b32.xlu0 %v8610, 14
        %v10178 = vpop.permute.xlu0 %10177
        %10179 = vrot.lane.b32.xlu0 %v8686, 14
        %v10180 = vpop.permute.xlu0 %10179
        %10181 = vrot.lane.b32.xlu0 %v8762, 14
        %v10182 = vpop.permute.xlu0 %10181
        %10183 = vrot.lane.b32.xlu0 %v8838, 14
        %v10184 = vpop.permute.xlu0 %10183
        %10185 = vrot.lane.b32.xlu0 %v8914, 14
        %v10186 = vpop.permute.xlu0 %10185
        %10187 = vrot.lane.b32.xlu0 %v8990, 14
        %v10188 = vpop.permute.xlu0 %10187
        %10189 = vrot.lane.b32.xlu0 %v9066, 14
        %v10190 = vpop.permute.xlu0 %10189
        %10191 = vrot.lane.b32.xlu0 %v9142, 14
        %v10192 = vpop.permute.xlu0 %10191
        %10193 = vrot.lane.b32.xlu0 %v9218, 14
        %v10194 = vpop.permute.xlu0 %10193
        %10195 = vrot.lane.b32.xlu0 %v9294, 14
        %v10196 = vpop.permute.xlu0 %10195
        %10261 = vrot.lane.b32.xlu0 %v6954, 16
        %v10262 = vpop.permute.xlu0 %10261
        %10263 = vrot.lane.b32.xlu0 %v7030, 16
        %v10264 = vpop.permute.xlu0 %10263
        %10265 = vrot.lane.b32.xlu0 %v7106, 16
        %v10266 = vpop.permute.xlu0 %10265
        %10267 = vrot.lane.b32.xlu0 %v7182, 16
        %v10268 = vpop.permute.xlu0 %10267
        %10269 = vrot.lane.b32.xlu0 %v7258, 16
        %v10270 = vpop.permute.xlu0 %10269
        %10271 = vrot.lane.b32.xlu0 %v7334, 16
        %v10272 = vpop.permute.xlu0 %10271
        %10273 = vrot.lane.b32.xlu0 %v7410, 16
        %v10274 = vpop.permute.xlu0 %10273
        %10275 = vrot.lane.b32.xlu0 %v7486, 16
        %v10276 = vpop.permute.xlu0 %10275
        %10277 = vrot.lane.b32.xlu0 %v7562, 16
        %v10278 = vpop.permute.xlu0 %10277
        %10279 = vrot.lane.b32.xlu0 %v7638, 16
        %v10280 = vpop.permute.xlu0 %10279
        %10281 = vrot.lane.b32.xlu0 %v7714, 16
        %v10282 = vpop.permute.xlu0 %10281
        %10283 = vrot.lane.b32.xlu0 %v7790, 16
        %v10284 = vpop.permute.xlu0 %10283
        %10285 = vrot.lane.b32.xlu0 %v7866, 16
        %v10286 = vpop.permute.xlu0 %10285
        %10287 = vrot.lane.b32.xlu0 %v7942, 16
        %v10288 = vpop.permute.xlu0 %10287
        %10289 = vrot.lane.b32.xlu0 %v8018, 16
        %v10290 = vpop.permute.xlu0 %10289
        %10291 = vrot.lane.b32.xlu0 %v8094, 16
        %v10292 = vpop.permute.xlu0 %10291
        %10293 = vrot.lane.b32.xlu0 %v8170, 16
        %v10294 = vpop.permute.xlu0 %10293
        %10295 = vrot.lane.b32.xlu0 %v8246, 16
        %v10296 = vpop.permute.xlu0 %10295
        %10297 = vrot.lane.b32.xlu0 %v8322, 16
        %v10298 = vpop.permute.xlu0 %10297
        %10299 = vrot.lane.b32.xlu0 %v8398, 16
        %v10300 = vpop.permute.xlu0 %10299
        %10301 = vrot.lane.b32.xlu0 %v8474, 16
        %v10302 = vpop.permute.xlu0 %10301
        %10303 = vrot.lane.b32.xlu0 %v8550, 16
        %v10304 = vpop.permute.xlu0 %10303
        %10305 = vrot.lane.b32.xlu0 %v8626, 16
        %v10306 = vpop.permute.xlu0 %10305
        %10307 = vrot.lane.b32.xlu0 %v8702, 16
        %v10308 = vpop.permute.xlu0 %10307
        %10309 = vrot.lane.b32.xlu0 %v8778, 16
        %v10310 = vpop.permute.xlu0 %10309
        %10311 = vrot.lane.b32.xlu0 %v8854, 16
        %v10312 = vpop.permute.xlu0 %10311
        %10313 = vrot.lane.b32.xlu0 %v8930, 16
        %v10314 = vpop.permute.xlu0 %10313
        %10315 = vrot.lane.b32.xlu0 %v9006, 16
        %v10316 = vpop.permute.xlu0 %10315
        %10317 = vrot.lane.b32.xlu0 %v9082, 16
        %v10318 = vpop.permute.xlu0 %10317
        %10319 = vrot.lane.b32.xlu0 %v9158, 16
        %v10320 = vpop.permute.xlu0 %10319
        %10321 = vrot.lane.b32.xlu0 %v9234, 16
        %v10322 = vpop.permute.xlu0 %10321
        %10323 = vrot.lane.b32.xlu0 %v9310, 16
        %v10324 = vpop.permute.xlu0 %10323
        %10389 = vrot.lane.b32.xlu0 %v6970, 18
        %v10390 = vpop.permute.xlu0 %10389
        %10391 = vrot.lane.b32.xlu0 %v7046, 18
        %v10392 = vpop.permute.xlu0 %10391
        %10393 = vrot.lane.b32.xlu0 %v7122, 18
        %v10394 = vpop.permute.xlu0 %10393
        %10395 = vrot.lane.b32.xlu0 %v7198, 18
        %v10396 = vpop.permute.xlu0 %10395
        %10397 = vrot.lane.b32.xlu0 %v7274, 18
        %v10398 = vpop.permute.xlu0 %10397
        %10399 = vrot.lane.b32.xlu0 %v7350, 18
        %v10400 = vpop.permute.xlu0 %10399
        %10401 = vrot.lane.b32.xlu0 %v7426, 18
        %v10402 = vpop.permute.xlu0 %10401
        %10403 = vrot.lane.b32.xlu0 %v7502, 18
        %v10404 = vpop.permute.xlu0 %10403
        %10405 = vrot.lane.b32.xlu0 %v7578, 18
        %v10406 = vpop.permute.xlu0 %10405
        %10407 = vrot.lane.b32.xlu0 %v7654, 18
        %v10408 = vpop.permute.xlu0 %10407
        %10409 = vrot.lane.b32.xlu0 %v7730, 18
        %v10410 = vpop.permute.xlu0 %10409
        %10411 = vrot.lane.b32.xlu0 %v7806, 18
        %v10412 = vpop.permute.xlu0 %10411
        %10413 = vrot.lane.b32.xlu0 %v7882, 18
        %v10414 = vpop.permute.xlu0 %10413
        %10415 = vrot.lane.b32.xlu0 %v7958, 18
        %v10416 = vpop.permute.xlu0 %10415
        %10417 = vrot.lane.b32.xlu0 %v8034, 18
        %v10418 = vpop.permute.xlu0 %10417
        %10419 = vrot.lane.b32.xlu0 %v8110, 18
        %v10420 = vpop.permute.xlu0 %10419
        %10421 = vrot.lane.b32.xlu0 %v8186, 18
        %v10422 = vpop.permute.xlu0 %10421
        %10423 = vrot.lane.b32.xlu0 %v8262, 18
        %v10424 = vpop.permute.xlu0 %10423
        %10425 = vrot.lane.b32.xlu0 %v8338, 18
        %v10426 = vpop.permute.xlu0 %10425
        %10427 = vrot.lane.b32.xlu0 %v8414, 18
        %v10428 = vpop.permute.xlu0 %10427
        %10429 = vrot.lane.b32.xlu0 %v8490, 18
        %v10430 = vpop.permute.xlu0 %10429
        %10431 = vrot.lane.b32.xlu0 %v8566, 18
        %v10432 = vpop.permute.xlu0 %10431
        %10433 = vrot.lane.b32.xlu0 %v8642, 18
        %v10434 = vpop.permute.xlu0 %10433
        %10435 = vrot.lane.b32.xlu0 %v8718, 18
        %v10436 = vpop.permute.xlu0 %10435
        %10437 = vrot.lane.b32.xlu0 %v8794, 18
        %v10438 = vpop.permute.xlu0 %10437
        %10439 = vrot.lane.b32.xlu0 %v8870, 18
        %v10440 = vpop.permute.xlu0 %10439
        %10441 = vrot.lane.b32.xlu0 %v8946, 18
        %v10442 = vpop.permute.xlu0 %10441
        %10443 = vrot.lane.b32.xlu0 %v9022, 18
        %v10444 = vpop.permute.xlu0 %10443
        %10445 = vrot.lane.b32.xlu0 %v9098, 18
        %v10446 = vpop.permute.xlu0 %10445
        %10447 = vrot.lane.b32.xlu0 %v9174, 18
        %v10448 = vpop.permute.xlu0 %10447
        %10449 = vrot.lane.b32.xlu0 %v9250, 18
        %v10450 = vpop.permute.xlu0 %10449
        %10451 = vrot.lane.b32.xlu0 %v9326, 18
        %v10452 = vpop.permute.xlu0 %10451
        %10517 = vrot.lane.b32.xlu0 %v6958, 20
        %v10518 = vpop.permute.xlu0 %10517
        %10519 = vrot.lane.b32.xlu0 %v7034, 20
        %v10520 = vpop.permute.xlu0 %10519
        %10521 = vrot.lane.b32.xlu0 %v7110, 20
        %v10522 = vpop.permute.xlu0 %10521
        %10523 = vrot.lane.b32.xlu0 %v7186, 20
        %v10524 = vpop.permute.xlu0 %10523
        %10525 = vrot.lane.b32.xlu0 %v7262, 20
        %v10526 = vpop.permute.xlu0 %10525
        %10527 = vrot.lane.b32.xlu0 %v7338, 20
        %v10528 = vpop.permute.xlu0 %10527
        %10529 = vrot.lane.b32.xlu0 %v7414, 20
        %v10530 = vpop.permute.xlu0 %10529
        %10531 = vrot.lane.b32.xlu0 %v7490, 20
        %v10532 = vpop.permute.xlu0 %10531
        %10533 = vrot.lane.b32.xlu0 %v7566, 20
        %v10534 = vpop.permute.xlu0 %10533
        %10535 = vrot.lane.b32.xlu0 %v7642, 20
        %v10536 = vpop.permute.xlu0 %10535
        %10537 = vrot.lane.b32.xlu0 %v7718, 20
        %v10538 = vpop.permute.xlu0 %10537
        %10539 = vrot.lane.b32.xlu0 %v7794, 20
        %v10540 = vpop.permute.xlu0 %10539
        %10541 = vrot.lane.b32.xlu0 %v7870, 20
        %v10542 = vpop.permute.xlu0 %10541
        %10543 = vrot.lane.b32.xlu0 %v7946, 20
        %v10544 = vpop.permute.xlu0 %10543
        %10545 = vrot.lane.b32.xlu0 %v8022, 20
        %v10546 = vpop.permute.xlu0 %10545
        %10547 = vrot.lane.b32.xlu0 %v8098, 20
        %v10548 = vpop.permute.xlu0 %10547
        %10549 = vrot.lane.b32.xlu0 %v8174, 20
        %v10550 = vpop.permute.xlu0 %10549
        %10551 = vrot.lane.b32.xlu0 %v8250, 20
        %v10552 = vpop.permute.xlu0 %10551
        %10553 = vrot.lane.b32.xlu0 %v8326, 20
        %v10554 = vpop.permute.xlu0 %10553
        %10555 = vrot.lane.b32.xlu0 %v8402, 20
        %v10556 = vpop.permute.xlu0 %10555
        %10557 = vrot.lane.b32.xlu0 %v8478, 20
        %v10558 = vpop.permute.xlu0 %10557
        %10559 = vrot.lane.b32.xlu0 %v8554, 20
        %v10560 = vpop.permute.xlu0 %10559
        %10561 = vrot.lane.b32.xlu0 %v8630, 20
        %v10562 = vpop.permute.xlu0 %10561
        %10563 = vrot.lane.b32.xlu0 %v8706, 20
        %v10564 = vpop.permute.xlu0 %10563
        %10565 = vrot.lane.b32.xlu0 %v8782, 20
        %v10566 = vpop.permute.xlu0 %10565
        %10567 = vrot.lane.b32.xlu0 %v8858, 20
        %v10568 = vpop.permute.xlu0 %10567
        %10569 = vrot.lane.b32.xlu0 %v8934, 20
        %v10570 = vpop.permute.xlu0 %10569
        %10571 = vrot.lane.b32.xlu0 %v9010, 20
        %v10572 = vpop.permute.xlu0 %10571
        %10573 = vrot.lane.b32.xlu0 %v9086, 20
        %v10574 = vpop.permute.xlu0 %10573
        %10575 = vrot.lane.b32.xlu0 %v9162, 20
        %v10576 = vpop.permute.xlu0 %10575
        %10577 = vrot.lane.b32.xlu0 %v9238, 20
        %v10578 = vpop.permute.xlu0 %10577
        %10579 = vrot.lane.b32.xlu0 %v9314, 20
        %v10580 = vpop.permute.xlu0 %10579
        %10645 = vrot.lane.b32.xlu0 %v6972, 22
        %v10646 = vpop.permute.xlu0 %10645
        %10647 = vrot.lane.b32.xlu0 %v7048, 22
        %v10648 = vpop.permute.xlu0 %10647
        %10649 = vrot.lane.b32.xlu0 %v7124, 22
        %v10650 = vpop.permute.xlu0 %10649
        %10651 = vrot.lane.b32.xlu0 %v7200, 22
        %v10652 = vpop.permute.xlu0 %10651
        %10653 = vrot.lane.b32.xlu0 %v7276, 22
        %v10654 = vpop.permute.xlu0 %10653
        %10655 = vrot.lane.b32.xlu0 %v7352, 22
        %v10656 = vpop.permute.xlu0 %10655
        %10657 = vrot.lane.b32.xlu0 %v7428, 22
        %v10658 = vpop.permute.xlu0 %10657
        %10659 = vrot.lane.b32.xlu0 %v7504, 22
        %v10660 = vpop.permute.xlu0 %10659
        %10661 = vrot.lane.b32.xlu0 %v7580, 22
        %v10662 = vpop.permute.xlu0 %10661
        %10663 = vrot.lane.b32.xlu0 %v7656, 22
        %v10664 = vpop.permute.xlu0 %10663
        %10665 = vrot.lane.b32.xlu0 %v7732, 22
        %v10666 = vpop.permute.xlu0 %10665
        %10667 = vrot.lane.b32.xlu0 %v7808, 22
        %v10668 = vpop.permute.xlu0 %10667
        %10669 = vrot.lane.b32.xlu0 %v7884, 22
        %v10670 = vpop.permute.xlu0 %10669
        %10671 = vrot.lane.b32.xlu0 %v7960, 22
        %v10672 = vpop.permute.xlu0 %10671
        %10673 = vrot.lane.b32.xlu0 %v8036, 22
        %v10674 = vpop.permute.xlu0 %10673
        %10675 = vrot.lane.b32.xlu0 %v8112, 22
        %v10676 = vpop.permute.xlu0 %10675
        %10677 = vrot.lane.b32.xlu0 %v8188, 22
        %v10678 = vpop.permute.xlu0 %10677
        %10679 = vrot.lane.b32.xlu0 %v8264, 22
        %v10680 = vpop.permute.xlu0 %10679
        %10681 = vrot.lane.b32.xlu0 %v8340, 22
        %v10682 = vpop.permute.xlu0 %10681
        %10683 = vrot.lane.b32.xlu0 %v8416, 22
        %v10684 = vpop.permute.xlu0 %10683
        %10685 = vrot.lane.b32.xlu0 %v8492, 22
        %v10686 = vpop.permute.xlu0 %10685
        %10687 = vrot.lane.b32.xlu0 %v8568, 22
        %v10688 = vpop.permute.xlu0 %10687
        %10689 = vrot.lane.b32.xlu0 %v8644, 22
        %v10690 = vpop.permute.xlu0 %10689
        %10691 = vrot.lane.b32.xlu0 %v8720, 22
        %v10692 = vpop.permute.xlu0 %10691
        %10693 = vrot.lane.b32.xlu0 %v8796, 22
        %v10694 = vpop.permute.xlu0 %10693
        %10695 = vrot.lane.b32.xlu0 %v8872, 22
        %v10696 = vpop.permute.xlu0 %10695
        %10697 = vrot.lane.b32.xlu0 %v8948, 22
        %v10698 = vpop.permute.xlu0 %10697
        %10699 = vrot.lane.b32.xlu0 %v9024, 22
        %v10700 = vpop.permute.xlu0 %10699
        %10701 = vrot.lane.b32.xlu0 %v9100, 22
        %v10702 = vpop.permute.xlu0 %10701
        %10703 = vrot.lane.b32.xlu0 %v9176, 22
        %v10704 = vpop.permute.xlu0 %10703
        %10705 = vrot.lane.b32.xlu0 %v9252, 22
        %v10706 = vpop.permute.xlu0 %10705
        %10707 = vrot.lane.b32.xlu0 %v9328, 22
        %v10708 = vpop.permute.xlu0 %10707
        %10773 = vrot.lane.b32.xlu0 %v6964, 24
        %v10774 = vpop.permute.xlu0 %10773
        %10775 = vrot.lane.b32.xlu0 %v7040, 24
        %v10776 = vpop.permute.xlu0 %10775
        %10777 = vrot.lane.b32.xlu0 %v7116, 24
        %v10778 = vpop.permute.xlu0 %10777
        %10779 = vrot.lane.b32.xlu0 %v7192, 24
        %v10780 = vpop.permute.xlu0 %10779
        %10781 = vrot.lane.b32.xlu0 %v7268, 24
        %v10782 = vpop.permute.xlu0 %10781
        %10783 = vrot.lane.b32.xlu0 %v7344, 24
        %v10784 = vpop.permute.xlu0 %10783
        %10785 = vrot.lane.b32.xlu0 %v7420, 24
        %v10786 = vpop.permute.xlu0 %10785
        %10787 = vrot.lane.b32.xlu0 %v7496, 24
        %v10788 = vpop.permute.xlu0 %10787
        %10789 = vrot.lane.b32.xlu0 %v7572, 24
        %v10790 = vpop.permute.xlu0 %10789
        %10791 = vrot.lane.b32.xlu0 %v7648, 24
        %v10792 = vpop.permute.xlu0 %10791
        %10793 = vrot.lane.b32.xlu0 %v7724, 24
        %v10794 = vpop.permute.xlu0 %10793
        %10795 = vrot.lane.b32.xlu0 %v7800, 24
        %v10796 = vpop.permute.xlu0 %10795
        %10797 = vrot.lane.b32.xlu0 %v7876, 24
        %v10798 = vpop.permute.xlu0 %10797
        %10799 = vrot.lane.b32.xlu0 %v7952, 24
        %v10800 = vpop.permute.xlu0 %10799
        %10801 = vrot.lane.b32.xlu0 %v8028, 24
        %v10802 = vpop.permute.xlu0 %10801
        %10803 = vrot.lane.b32.xlu0 %v8104, 24
        %v10804 = vpop.permute.xlu0 %10803
        %10805 = vrot.lane.b32.xlu0 %v8180, 24
        %v10806 = vpop.permute.xlu0 %10805
        %10807 = vrot.lane.b32.xlu0 %v8256, 24
        %v10808 = vpop.permute.xlu0 %10807
        %10809 = vrot.lane.b32.xlu0 %v8332, 24
        %v10810 = vpop.permute.xlu0 %10809
        %10811 = vrot.lane.b32.xlu0 %v8408, 24
        %v10812 = vpop.permute.xlu0 %10811
        %10813 = vrot.lane.b32.xlu0 %v8484, 24
        %v10814 = vpop.permute.xlu0 %10813
        %10815 = vrot.lane.b32.xlu0 %v8560, 24
        %v10816 = vpop.permute.xlu0 %10815
        %10817 = vrot.lane.b32.xlu0 %v8636, 24
        %v10818 = vpop.permute.xlu0 %10817
        %10819 = vrot.lane.b32.xlu0 %v8712, 24
        %v10820 = vpop.permute.xlu0 %10819
        %10821 = vrot.lane.b32.xlu0 %v8788, 24
        %v10822 = vpop.permute.xlu0 %10821
        %10823 = vrot.lane.b32.xlu0 %v8864, 24
        %v10824 = vpop.permute.xlu0 %10823
        %10825 = vrot.lane.b32.xlu0 %v8940, 24
        %v10826 = vpop.permute.xlu0 %10825
        %10827 = vrot.lane.b32.xlu0 %v9016, 24
        %v10828 = vpop.permute.xlu0 %10827
        %10829 = vrot.lane.b32.xlu0 %v9092, 24
        %v10830 = vpop.permute.xlu0 %10829
        %10831 = vrot.lane.b32.xlu0 %v9168, 24
        %v10832 = vpop.permute.xlu0 %10831
        %10833 = vrot.lane.b32.xlu0 %v9244, 24
        %v10834 = vpop.permute.xlu0 %10833
        %10835 = vrot.lane.b32.xlu0 %v9320, 24
        %v10836 = vpop.permute.xlu0 %10835
        %10901 = vrot.lane.b32.xlu0 %v6974, 26
        %v10902 = vpop.permute.xlu0 %10901
        %10903 = vrot.lane.b32.xlu0 %v7050, 26
        %v10904 = vpop.permute.xlu0 %10903
        %10905 = vrot.lane.b32.xlu0 %v7126, 26
        %v10906 = vpop.permute.xlu0 %10905
        %10907 = vrot.lane.b32.xlu0 %v7202, 26
        %v10908 = vpop.permute.xlu0 %10907
        %10909 = vrot.lane.b32.xlu0 %v7278, 26
        %v10910 = vpop.permute.xlu0 %10909
        %10911 = vrot.lane.b32.xlu0 %v7354, 26
        %v10912 = vpop.permute.xlu0 %10911
        %10913 = vrot.lane.b32.xlu0 %v7430, 26
        %v10914 = vpop.permute.xlu0 %10913
        %10915 = vrot.lane.b32.xlu0 %v7506, 26
        %v10916 = vpop.permute.xlu0 %10915
        %10917 = vrot.lane.b32.xlu0 %v7582, 26
        %v10918 = vpop.permute.xlu0 %10917
        %10919 = vrot.lane.b32.xlu0 %v7658, 26
        %v10920 = vpop.permute.xlu0 %10919
        %10921 = vrot.lane.b32.xlu0 %v7734, 26
        %v10922 = vpop.permute.xlu0 %10921
        %10923 = vrot.lane.b32.xlu0 %v7810, 26
        %v10924 = vpop.permute.xlu0 %10923
        %10925 = vrot.lane.b32.xlu0 %v7886, 26
        %v10926 = vpop.permute.xlu0 %10925
        %10927 = vrot.lane.b32.xlu0 %v7962, 26
        %v10928 = vpop.permute.xlu0 %10927
        %10929 = vrot.lane.b32.xlu0 %v8038, 26
        %v10930 = vpop.permute.xlu0 %10929
        %10931 = vrot.lane.b32.xlu0 %v8114, 26
        %v10932 = vpop.permute.xlu0 %10931
        %10933 = vrot.lane.b32.xlu0 %v8190, 26
        %v10934 = vpop.permute.xlu0 %10933
        %10935 = vrot.lane.b32.xlu0 %v8266, 26
        %v10936 = vpop.permute.xlu0 %10935
        %10937 = vrot.lane.b32.xlu0 %v8342, 26
        %v10938 = vpop.permute.xlu0 %10937
        %10939 = vrot.lane.b32.xlu0 %v8418, 26
        %v10940 = vpop.permute.xlu0 %10939
        %10941 = vrot.lane.b32.xlu0 %v8494, 26
        %v10942 = vpop.permute.xlu0 %10941
        %10943 = vrot.lane.b32.xlu0 %v8570, 26
        %v10944 = vpop.permute.xlu0 %10943
        %10945 = vrot.lane.b32.xlu0 %v8646, 26
        %v10946 = vpop.permute.xlu0 %10945
        %10947 = vrot.lane.b32.xlu0 %v8722, 26
        %v10948 = vpop.permute.xlu0 %10947
        %10949 = vrot.lane.b32.xlu0 %v8798, 26
        %v10950 = vpop.permute.xlu0 %10949
        %10951 = vrot.lane.b32.xlu0 %v8874, 26
        %v10952 = vpop.permute.xlu0 %10951
        %10953 = vrot.lane.b32.xlu0 %v8950, 26
        %v10954 = vpop.permute.xlu0 %10953
        %10955 = vrot.lane.b32.xlu0 %v9026, 26
        %v10956 = vpop.permute.xlu0 %10955
        %10957 = vrot.lane.b32.xlu0 %v9102, 26
        %v10958 = vpop.permute.xlu0 %10957
        %10959 = vrot.lane.b32.xlu0 %v9178, 26
        %v10960 = vpop.permute.xlu0 %10959
        %10961 = vrot.lane.b32.xlu0 %v9254, 26
        %v10962 = vpop.permute.xlu0 %10961
        %10963 = vrot.lane.b32.xlu0 %v9330, 26
        %v10964 = vpop.permute.xlu0 %10963
        %11029 = vrot.lane.b32.xlu0 %v6968, 28
        %v11030 = vpop.permute.xlu0 %11029
        %11031 = vrot.lane.b32.xlu0 %v7044, 28
        %v11032 = vpop.permute.xlu0 %11031
        %11033 = vrot.lane.b32.xlu0 %v7120, 28
        %v11034 = vpop.permute.xlu0 %11033
        %11035 = vrot.lane.b32.xlu0 %v7196, 28
        %v11036 = vpop.permute.xlu0 %11035
        %11037 = vrot.lane.b32.xlu0 %v7272, 28
        %v11038 = vpop.permute.xlu0 %11037
        %11039 = vrot.lane.b32.xlu0 %v7348, 28
        %v11040 = vpop.permute.xlu0 %11039
        %11041 = vrot.lane.b32.xlu0 %v7424, 28
        %v11042 = vpop.permute.xlu0 %11041
        %11043 = vrot.lane.b32.xlu0 %v7500, 28
        %v11044 = vpop.permute.xlu0 %11043
        %11045 = vrot.lane.b32.xlu0 %v7576, 28
        %v11046 = vpop.permute.xlu0 %11045
        %11047 = vrot.lane.b32.xlu0 %v7652, 28
        %v11048 = vpop.permute.xlu0 %11047
        %11049 = vrot.lane.b32.xlu0 %v7728, 28
        %v11050 = vpop.permute.xlu0 %11049
        %11051 = vrot.lane.b32.xlu0 %v7804, 28
        %v11052 = vpop.permute.xlu0 %11051
        %11053 = vrot.lane.b32.xlu0 %v7880, 28
        %v11054 = vpop.permute.xlu0 %11053
        %11055 = vrot.lane.b32.xlu0 %v7956, 28
        %v11056 = vpop.permute.xlu0 %11055
        %11057 = vrot.lane.b32.xlu0 %v8032, 28
        %v11058 = vpop.permute.xlu0 %11057
        %11059 = vrot.lane.b32.xlu0 %v8108, 28
        %v11060 = vpop.permute.xlu0 %11059
        %11061 = vrot.lane.b32.xlu0 %v8184, 28
        %v11062 = vpop.permute.xlu0 %11061
        %11063 = vrot.lane.b32.xlu0 %v8260, 28
        %v11064 = vpop.permute.xlu0 %11063
        %11065 = vrot.lane.b32.xlu0 %v8336, 28
        %v11066 = vpop.permute.xlu0 %11065
        %11067 = vrot.lane.b32.xlu0 %v8412, 28
        %v11068 = vpop.permute.xlu0 %11067
        %11069 = vrot.lane.b32.xlu0 %v8488, 28
        %v11070 = vpop.permute.xlu0 %11069
        %11071 = vrot.lane.b32.xlu0 %v8564, 28
        %v11072 = vpop.permute.xlu0 %11071
        %11073 = vrot.lane.b32.xlu0 %v8640, 28
        %v11074 = vpop.permute.xlu0 %11073
        %11075 = vrot.lane.b32.xlu0 %v8716, 28
        %v11076 = vpop.permute.xlu0 %11075
        %11077 = vrot.lane.b32.xlu0 %v8792, 28
        %v11078 = vpop.permute.xlu0 %11077
        %11079 = vrot.lane.b32.xlu0 %v8868, 28
        %v11080 = vpop.permute.xlu0 %11079
        %11081 = vrot.lane.b32.xlu0 %v8944, 28
        %v11082 = vpop.permute.xlu0 %11081
        %11083 = vrot.lane.b32.xlu0 %v9020, 28
        %v11084 = vpop.permute.xlu0 %11083
        %11085 = vrot.lane.b32.xlu0 %v9096, 28
        %v11086 = vpop.permute.xlu0 %11085
        %11087 = vrot.lane.b32.xlu0 %v9172, 28
        %v11088 = vpop.permute.xlu0 %11087
        %11089 = vrot.lane.b32.xlu0 %v9248, 28
        %v11090 = vpop.permute.xlu0 %11089
        %11091 = vrot.lane.b32.xlu0 %v9324, 28
        %v11092 = vpop.permute.xlu0 %11091
        %11157 = vrot.lane.b32.xlu0 %v6976, 30
        %v11158 = vpop.permute.xlu0 %11157
        %11159 = vrot.lane.b32.xlu0 %v7052, 30
        %v11160 = vpop.permute.xlu0 %11159
        %11161 = vrot.lane.b32.xlu0 %v7128, 30
        %v11162 = vpop.permute.xlu0 %11161
        %11163 = vrot.lane.b32.xlu0 %v7204, 30
        %v11164 = vpop.permute.xlu0 %11163
        %11165 = vrot.lane.b32.xlu0 %v7280, 30
        %v11166 = vpop.permute.xlu0 %11165
        %11167 = vrot.lane.b32.xlu0 %v7356, 30
        %v11168 = vpop.permute.xlu0 %11167
        %11169 = vrot.lane.b32.xlu0 %v7432, 30
        %v11170 = vpop.permute.xlu0 %11169
        %11171 = vrot.lane.b32.xlu0 %v7508, 30
        %v11172 = vpop.permute.xlu0 %11171
        %11173 = vrot.lane.b32.xlu0 %v7584, 30
        %v11174 = vpop.permute.xlu0 %11173
        %11175 = vrot.lane.b32.xlu0 %v7660, 30
        %v11176 = vpop.permute.xlu0 %11175
        %11177 = vrot.lane.b32.xlu0 %v7736, 30
        %v11178 = vpop.permute.xlu0 %11177
        %11179 = vrot.lane.b32.xlu0 %v7812, 30
        %v11180 = vpop.permute.xlu0 %11179
        %11181 = vrot.lane.b32.xlu0 %v7888, 30
        %v11182 = vpop.permute.xlu0 %11181
        %11183 = vrot.lane.b32.xlu0 %v7964, 30
        %v11184 = vpop.permute.xlu0 %11183
        %11185 = vrot.lane.b32.xlu0 %v8040, 30
        %v11186 = vpop.permute.xlu0 %11185
        %11187 = vrot.lane.b32.xlu0 %v8116, 30
        %v11188 = vpop.permute.xlu0 %11187
        %11189 = vrot.lane.b32.xlu0 %v8192, 30
        %v11190 = vpop.permute.xlu0 %11189
        %11191 = vrot.lane.b32.xlu0 %v8268, 30
        %v11192 = vpop.permute.xlu0 %11191
        %11193 = vrot.lane.b32.xlu0 %v8344, 30
        %v11194 = vpop.permute.xlu0 %11193
        %11195 = vrot.lane.b32.xlu0 %v8420, 30
        %v11196 = vpop.permute.xlu0 %11195
        %11197 = vrot.lane.b32.xlu0 %v8496, 30
        %v11198 = vpop.permute.xlu0 %11197
        %11199 = vrot.lane.b32.xlu0 %v8572, 30
        %v11200 = vpop.permute.xlu0 %11199
        %11201 = vrot.lane.b32.xlu0 %v8648, 30
        %v11202 = vpop.permute.xlu0 %11201
        %11203 = vrot.lane.b32.xlu0 %v8724, 30
        %v11204 = vpop.permute.xlu0 %11203
        %11205 = vrot.lane.b32.xlu0 %v8800, 30
        %v11206 = vpop.permute.xlu0 %11205
        %11207 = vrot.lane.b32.xlu0 %v8876, 30
        %v11208 = vpop.permute.xlu0 %11207
        %11209 = vrot.lane.b32.xlu0 %v8952, 30
        %v11210 = vpop.permute.xlu0 %11209
        %11211 = vrot.lane.b32.xlu0 %v9028, 30
        %v11212 = vpop.permute.xlu0 %11211
        %11213 = vrot.lane.b32.xlu0 %v9104, 30
        %v11214 = vpop.permute.xlu0 %11213
        %11215 = vrot.lane.b32.xlu0 %v9180, 30
        %v11216 = vpop.permute.xlu0 %11215
        %11217 = vrot.lane.b32.xlu0 %v9256, 30
        %v11218 = vpop.permute.xlu0 %11217
        %11219 = vrot.lane.b32.xlu0 %v9332, 30
        %v11220 = vpop.permute.xlu0 %11219
        %v11253 = vsel %vm6373, %v6916, %v9366
        %v11254 = vsel %vm6373, %v6992, %v9368
        %v11255 = vsel %vm6373, %v7068, %v9370
        %v11256 = vsel %vm6373, %v7144, %v9372
        %v11257 = vsel %vm6373, %v7220, %v9374
        %v11258 = vsel %vm6373, %v7296, %v9376
        %v11259 = vsel %vm6373, %v7372, %v9378
        %v11260 = vsel %vm6373, %v7448, %v9380
        %v11261 = vsel %vm6373, %v7524, %v9382
        %v11262 = vsel %vm6373, %v7600, %v9384
        %v11263 = vsel %vm6373, %v7676, %v9386
        %v11264 = vsel %vm6373, %v7752, %v9388
        %v11265 = vsel %vm6373, %v7828, %v9390
        %v11266 = vsel %vm6373, %v7904, %v9392
        %v11267 = vsel %vm6373, %v7980, %v9394
        %v11268 = vsel %vm6373, %v8056, %v9396
        %v11269 = vsel %vm6373, %v8132, %v9398
        %v11270 = vsel %vm6373, %v8208, %v9400
        %v11271 = vsel %vm6373, %v8284, %v9402
        %v11272 = vsel %vm6373, %v8360, %v9404
        %v11273 = vsel %vm6373, %v8436, %v9406
        %v11274 = vsel %vm6373, %v8512, %v9408
        %v11275 = vsel %vm6373, %v8588, %v9410
        %v11276 = vsel %vm6373, %v8664, %v9412
        %v11277 = vsel %vm6373, %v8740, %v9414
        %v11278 = vsel %vm6373, %v8816, %v9416
        %v11279 = vsel %vm6373, %v8892, %v9418
        %v11280 = vsel %vm6373, %v8968, %v9420
        %v11281 = vsel %vm6373, %v9044, %v9422
        %v11282 = vsel %vm6373, %v9120, %v9424
        %v11283 = vsel %vm6373, %v9196, %v9426
        %v11284 = vsel %vm6373, %v9272, %v9428
        %v11285 = vsel %vm6406, %v11253, %v9494
        %v11286 = vsel %vm6406, %v11254, %v9496
        %v11287 = vsel %vm6406, %v11255, %v9498
        %v11288 = vsel %vm6406, %v11256, %v9500
        %v11289 = vsel %vm6406, %v11257, %v9502
        %v11290 = vsel %vm6406, %v11258, %v9504
        %v11291 = vsel %vm6406, %v11259, %v9506
        %v11292 = vsel %vm6406, %v11260, %v9508
        %v11293 = vsel %vm6406, %v11261, %v9510
        %v11294 = vsel %vm6406, %v11262, %v9512
        %v11295 = vsel %vm6406, %v11263, %v9514
        %v11296 = vsel %vm6406, %v11264, %v9516
        %v11297 = vsel %vm6406, %v11265, %v9518
        %v11298 = vsel %vm6406, %v11266, %v9520
        %v11299 = vsel %vm6406, %v11267, %v9522
        %v11300 = vsel %vm6406, %v11268, %v9524
        %v11301 = vsel %vm6406, %v11269, %v9526
        %v11302 = vsel %vm6406, %v11270, %v9528
        %v11303 = vsel %vm6406, %v11271, %v9530
        %v11304 = vsel %vm6406, %v11272, %v9532
        %v11305 = vsel %vm6406, %v11273, %v9534
        %v11306 = vsel %vm6406, %v11274, %v9536
        %v11307 = vsel %vm6406, %v11275, %v9538
        %v11308 = vsel %vm6406, %v11276, %v9540
        %v11309 = vsel %vm6406, %v11277, %v9542
        %v11310 = vsel %vm6406, %v11278, %v9544
        %v11311 = vsel %vm6406, %v11279, %v9546
        %v11312 = vsel %vm6406, %v11280, %v9548
        %v11313 = vsel %vm6406, %v11281, %v9550
        %v11314 = vsel %vm6406, %v11282, %v9552
        %v11315 = vsel %vm6406, %v11283, %v9554
        %v11316 = vsel %vm6406, %v11284, %v9556
        %v11317 = vsel %vm6439, %v11285, %v9622
        %v11318 = vsel %vm6439, %v11286, %v9624
        %v11319 = vsel %vm6439, %v11287, %v9626
        %v11320 = vsel %vm6439, %v11288, %v9628
        %v11321 = vsel %vm6439, %v11289, %v9630
        %v11322 = vsel %vm6439, %v11290, %v9632
        %v11323 = vsel %vm6439, %v11291, %v9634
        %v11324 = vsel %vm6439, %v11292, %v9636
        %v11325 = vsel %vm6439, %v11293, %v9638
        %v11326 = vsel %vm6439, %v11294, %v9640
        %v11327 = vsel %vm6439, %v11295, %v9642
        %v11328 = vsel %vm6439, %v11296, %v9644
        %v11329 = vsel %vm6439, %v11297, %v9646
        %v11330 = vsel %vm6439, %v11298, %v9648
        %v11331 = vsel %vm6439, %v11299, %v9650
        %v11332 = vsel %vm6439, %v11300, %v9652
        %v11333 = vsel %vm6439, %v11301, %v9654
        %v11334 = vsel %vm6439, %v11302, %v9656
        %v11335 = vsel %vm6439, %v11303, %v9658
        %v11336 = vsel %vm6439, %v11304, %v9660
        %v11337 = vsel %vm6439, %v11305, %v9662
        %v11338 = vsel %vm6439, %v11306, %v9664
        %v11339 = vsel %vm6439, %v11307, %v9666
        %v11340 = vsel %vm6439, %v11308, %v9668
        %v11341 = vsel %vm6439, %v11309, %v9670
        %v11342 = vsel %vm6439, %v11310, %v9672
        %v11343 = vsel %vm6439, %v11311, %v9674
        %v11344 = vsel %vm6439, %v11312, %v9676
        %v11345 = vsel %vm6439, %v11313, %v9678
        %v11346 = vsel %vm6439, %v11314, %v9680
        %v11347 = vsel %vm6439, %v11315, %v9682
        %v11348 = vsel %vm6439, %v11316, %v9684
        %v11349 = vsel %vm6472, %v11317, %v9750
        %v11350 = vsel %vm6472, %v11318, %v9752
        %v11351 = vsel %vm6472, %v11319, %v9754
        %v11352 = vsel %vm6472, %v11320, %v9756
        %v11353 = vsel %vm6472, %v11321, %v9758
        %v11354 = vsel %vm6472, %v11322, %v9760
        %v11355 = vsel %vm6472, %v11323, %v9762
        %v11356 = vsel %vm6472, %v11324, %v9764
        %v11357 = vsel %vm6472, %v11325, %v9766
        %v11358 = vsel %vm6472, %v11326, %v9768
        %v11359 = vsel %vm6472, %v11327, %v9770
        %v11360 = vsel %vm6472, %v11328, %v9772
        %v11361 = vsel %vm6472, %v11329, %v9774
        %v11362 = vsel %vm6472, %v11330, %v9776
        %v11363 = vsel %vm6472, %v11331, %v9778
        %v11364 = vsel %vm6472, %v11332, %v9780
        %v11365 = vsel %vm6472, %v11333, %v9782
        %v11366 = vsel %vm6472, %v11334, %v9784
        %v11367 = vsel %vm6472, %v11335, %v9786
        %v11368 = vsel %vm6472, %v11336, %v9788
        %v11369 = vsel %vm6472, %v11337, %v9790
        %v11370 = vsel %vm6472, %v11338, %v9792
        %v11371 = vsel %vm6472, %v11339, %v9794
        %v11372 = vsel %vm6472, %v11340, %v9796
        %v11373 = vsel %vm6472, %v11341, %v9798
        %v11374 = vsel %vm6472, %v11342, %v9800
        %v11375 = vsel %vm6472, %v11343, %v9802
        %v11376 = vsel %vm6472, %v11344, %v9804
        %v11377 = vsel %vm6472, %v11345, %v9806
        %v11378 = vsel %vm6472, %v11346, %v9808
        %v11379 = vsel %vm6472, %v11347, %v9810
        %v11380 = vsel %vm6472, %v11348, %v9812
        %v11381 = vsel %vm6505, %v11349, %v9878
        %v11382 = vsel %vm6505, %v11350, %v9880
        %v11383 = vsel %vm6505, %v11351, %v9882
        %v11384 = vsel %vm6505, %v11352, %v9884
        %v11385 = vsel %vm6505, %v11353, %v9886
        %v11386 = vsel %vm6505, %v11354, %v9888
        %v11387 = vsel %vm6505, %v11355, %v9890
        %v11388 = vsel %vm6505, %v11356, %v9892
        %v11389 = vsel %vm6505, %v11357, %v9894
        %v11390 = vsel %vm6505, %v11358, %v9896
        %v11391 = vsel %vm6505, %v11359, %v9898
        %v11392 = vsel %vm6505, %v11360, %v9900
        %v11393 = vsel %vm6505, %v11361, %v9902
        %v11394 = vsel %vm6505, %v11362, %v9904
        %v11395 = vsel %vm6505, %v11363, %v9906
        %v11396 = vsel %vm6505, %v11364, %v9908
        %v11397 = vsel %vm6505, %v11365, %v9910
        %v11398 = vsel %vm6505, %v11366, %v9912
        %v11399 = vsel %vm6505, %v11367, %v9914
        %v11400 = vsel %vm6505, %v11368, %v9916
        %v11401 = vsel %vm6505, %v11369, %v9918
        %v11402 = vsel %vm6505, %v11370, %v9920
        %v11403 = vsel %vm6505, %v11371, %v9922
        %v11404 = vsel %vm6505, %v11372, %v9924
        %v11405 = vsel %vm6505, %v11373, %v9926
        %v11406 = vsel %vm6505, %v11374, %v9928
        %v11407 = vsel %vm6505, %v11375, %v9930
        %v11408 = vsel %vm6505, %v11376, %v9932
        %v11409 = vsel %vm6505, %v11377, %v9934
        %v11410 = vsel %vm6505, %v11378, %v9936
        %v11411 = vsel %vm6505, %v11379, %v9938
        %v11412 = vsel %vm6505, %v11380, %v9940
        %v11413 = vsel %vm6538, %v11381, %v10006
        %v11414 = vsel %vm6538, %v11382, %v10008
        %v11415 = vsel %vm6538, %v11383, %v10010
        %v11416 = vsel %vm6538, %v11384, %v10012
        %v11417 = vsel %vm6538, %v11385, %v10014
        %v11418 = vsel %vm6538, %v11386, %v10016
        %v11419 = vsel %vm6538, %v11387, %v10018
        %v11420 = vsel %vm6538, %v11388, %v10020
        %v11421 = vsel %vm6538, %v11389, %v10022
        %v11422 = vsel %vm6538, %v11390, %v10024
        %v11423 = vsel %vm6538, %v11391, %v10026
        %v11424 = vsel %vm6538, %v11392, %v10028
        %v11425 = vsel %vm6538, %v11393, %v10030
        %v11426 = vsel %vm6538, %v11394, %v10032
        %v11427 = vsel %vm6538, %v11395, %v10034
        %v11428 = vsel %vm6538, %v11396, %v10036
        %v11429 = vsel %vm6538, %v11397, %v10038
        %v11430 = vsel %vm6538, %v11398, %v10040
        %v11431 = vsel %vm6538, %v11399, %v10042
        %v11432 = vsel %vm6538, %v11400, %v10044
        %v11433 = vsel %vm6538, %v11401, %v10046
        %v11434 = vsel %vm6538, %v11402, %v10048
        %v11435 = vsel %vm6538, %v11403, %v10050
        %v11436 = vsel %vm6538, %v11404, %v10052
        %v11437 = vsel %vm6538, %v11405, %v10054
        %v11438 = vsel %vm6538, %v11406, %v10056
        %v11439 = vsel %vm6538, %v11407, %v10058
        %v11440 = vsel %vm6538, %v11408, %v10060
        %v11441 = vsel %vm6538, %v11409, %v10062
        %v11442 = vsel %vm6538, %v11410, %v10064
        %v11443 = vsel %vm6538, %v11411, %v10066
        %v11444 = vsel %vm6538, %v11412, %v10068
        %v11445 = vsel %vm6571, %v11413, %v10134
        %v11446 = vsel %vm6571, %v11414, %v10136
        %v11447 = vsel %vm6571, %v11415, %v10138
        %v11448 = vsel %vm6571, %v11416, %v10140
        %v11449 = vsel %vm6571, %v11417, %v10142
        %v11450 = vsel %vm6571, %v11418, %v10144
        %v11451 = vsel %vm6571, %v11419, %v10146
        %v11452 = vsel %vm6571, %v11420, %v10148
        %v11453 = vsel %vm6571, %v11421, %v10150
        %v11454 = vsel %vm6571, %v11422, %v10152
        %v11455 = vsel %vm6571, %v11423, %v10154
        %v11456 = vsel %vm6571, %v11424, %v10156
        %v11457 = vsel %vm6571, %v11425, %v10158
        %v11458 = vsel %vm6571, %v11426, %v10160
        %v11459 = vsel %vm6571, %v11427, %v10162
        %v11460 = vsel %vm6571, %v11428, %v10164
        %v11461 = vsel %vm6571, %v11429, %v10166
        %v11462 = vsel %vm6571, %v11430, %v10168
        %v11463 = vsel %vm6571, %v11431, %v10170
        %v11464 = vsel %vm6571, %v11432, %v10172
        %v11465 = vsel %vm6571, %v11433, %v10174
        %v11466 = vsel %vm6571, %v11434, %v10176
        %v11467 = vsel %vm6571, %v11435, %v10178
        %v11468 = vsel %vm6571, %v11436, %v10180
        %v11469 = vsel %vm6571, %v11437, %v10182
        %v11470 = vsel %vm6571, %v11438, %v10184
        %v11471 = vsel %vm6571, %v11439, %v10186
        %v11472 = vsel %vm6571, %v11440, %v10188
        %v11473 = vsel %vm6571, %v11441, %v10190
        %v11474 = vsel %vm6571, %v11442, %v10192
        %v11475 = vsel %vm6571, %v11443, %v10194
        %v11476 = vsel %vm6571, %v11444, %v10196
        %v11477 = vsel %vm6604, %v11445, %v10262
        %v11478 = vsel %vm6604, %v11446, %v10264
        %v11479 = vsel %vm6604, %v11447, %v10266
        %v11480 = vsel %vm6604, %v11448, %v10268
        %v11481 = vsel %vm6604, %v11449, %v10270
        %v11482 = vsel %vm6604, %v11450, %v10272
        %v11483 = vsel %vm6604, %v11451, %v10274
        %v11484 = vsel %vm6604, %v11452, %v10276
        %v11485 = vsel %vm6604, %v11453, %v10278
        %v11486 = vsel %vm6604, %v11454, %v10280
        %v11487 = vsel %vm6604, %v11455, %v10282
        %v11488 = vsel %vm6604, %v11456, %v10284
        %v11489 = vsel %vm6604, %v11457, %v10286
        %v11490 = vsel %vm6604, %v11458, %v10288
        %v11491 = vsel %vm6604, %v11459, %v10290
        %v11492 = vsel %vm6604, %v11460, %v10292
        %v11493 = vsel %vm6604, %v11461, %v10294
        %v11494 = vsel %vm6604, %v11462, %v10296
        %v11495 = vsel %vm6604, %v11463, %v10298
        %v11496 = vsel %vm6604, %v11464, %v10300
        %v11497 = vsel %vm6604, %v11465, %v10302
        %v11498 = vsel %vm6604, %v11466, %v10304
        %v11499 = vsel %vm6604, %v11467, %v10306
        %v11500 = vsel %vm6604, %v11468, %v10308
        %v11501 = vsel %vm6604, %v11469, %v10310
        %v11502 = vsel %vm6604, %v11470, %v10312
        %v11503 = vsel %vm6604, %v11471, %v10314
        %v11504 = vsel %vm6604, %v11472, %v10316
        %v11505 = vsel %vm6604, %v11473, %v10318
        %v11506 = vsel %vm6604, %v11474, %v10320
        %v11507 = vsel %vm6604, %v11475, %v10322
        %v11508 = vsel %vm6604, %v11476, %v10324
        %v11509 = vsel %vm6637, %v11477, %v10390
        %v11510 = vsel %vm6637, %v11478, %v10392
        %v11511 = vsel %vm6637, %v11479, %v10394
        %v11512 = vsel %vm6637, %v11480, %v10396
        %v11513 = vsel %vm6637, %v11481, %v10398
        %v11514 = vsel %vm6637, %v11482, %v10400
        %v11515 = vsel %vm6637, %v11483, %v10402
        %v11516 = vsel %vm6637, %v11484, %v10404
        %v11517 = vsel %vm6637, %v11485, %v10406
        %v11518 = vsel %vm6637, %v11486, %v10408
        %v11519 = vsel %vm6637, %v11487, %v10410
        %v11520 = vsel %vm6637, %v11488, %v10412
        %v11521 = vsel %vm6637, %v11489, %v10414
        %v11522 = vsel %vm6637, %v11490, %v10416
        %v11523 = vsel %vm6637, %v11491, %v10418
        %v11524 = vsel %vm6637, %v11492, %v10420
        %v11525 = vsel %vm6637, %v11493, %v10422
        %v11526 = vsel %vm6637, %v11494, %v10424
        %v11527 = vsel %vm6637, %v11495, %v10426
        %v11528 = vsel %vm6637, %v11496, %v10428
        %v11529 = vsel %vm6637, %v11497, %v10430
        %v11530 = vsel %vm6637, %v11498, %v10432
        %v11531 = vsel %vm6637, %v11499, %v10434
        %v11532 = vsel %vm6637, %v11500, %v10436
        %v11533 = vsel %vm6637, %v11501, %v10438
        %v11534 = vsel %vm6637, %v11502, %v10440
        %v11535 = vsel %vm6637, %v11503, %v10442
        %v11536 = vsel %vm6637, %v11504, %v10444
        %v11537 = vsel %vm6637, %v11505, %v10446
        %v11538 = vsel %vm6637, %v11506, %v10448
        %v11539 = vsel %vm6637, %v11507, %v10450
        %v11540 = vsel %vm6637, %v11508, %v10452
        %v11541 = vsel %vm6670, %v11509, %v10518
        %v11542 = vsel %vm6670, %v11510, %v10520
        %v11543 = vsel %vm6670, %v11511, %v10522
        %v11544 = vsel %vm6670, %v11512, %v10524
        %v11545 = vsel %vm6670, %v11513, %v10526
        %v11546 = vsel %vm6670, %v11514, %v10528
        %v11547 = vsel %vm6670, %v11515, %v10530
        %v11548 = vsel %vm6670, %v11516, %v10532
        %v11549 = vsel %vm6670, %v11517, %v10534
        %v11550 = vsel %vm6670, %v11518, %v10536
        %v11551 = vsel %vm6670, %v11519, %v10538
        %v11552 = vsel %vm6670, %v11520, %v10540
        %v11553 = vsel %vm6670, %v11521, %v10542
        %v11554 = vsel %vm6670, %v11522, %v10544
        %v11555 = vsel %vm6670, %v11523, %v10546
        %v11556 = vsel %vm6670, %v11524, %v10548
        %v11557 = vsel %vm6670, %v11525, %v10550
        %v11558 = vsel %vm6670, %v11526, %v10552
        %v11559 = vsel %vm6670, %v11527, %v10554
        %v11560 = vsel %vm6670, %v11528, %v10556
        %v11561 = vsel %vm6670, %v11529, %v10558
        %v11562 = vsel %vm6670, %v11530, %v10560
        %v11563 = vsel %vm6670, %v11531, %v10562
        %v11564 = vsel %vm6670, %v11532, %v10564
        %v11565 = vsel %vm6670, %v11533, %v10566
        %v11566 = vsel %vm6670, %v11534, %v10568
        %v11567 = vsel %vm6670, %v11535, %v10570
        %v11568 = vsel %vm6670, %v11536, %v10572
        %v11569 = vsel %vm6670, %v11537, %v10574
        %v11570 = vsel %vm6670, %v11538, %v10576
        %v11571 = vsel %vm6670, %v11539, %v10578
        %v11572 = vsel %vm6670, %v11540, %v10580
        %v11573 = vsel %vm6703, %v11541, %v10646
        %v11574 = vsel %vm6703, %v11542, %v10648
        %v11575 = vsel %vm6703, %v11543, %v10650
        %v11576 = vsel %vm6703, %v11544, %v10652
        %v11577 = vsel %vm6703, %v11545, %v10654
        %v11578 = vsel %vm6703, %v11546, %v10656
        %v11579 = vsel %vm6703, %v11547, %v10658
        %v11580 = vsel %vm6703, %v11548, %v10660
        %v11581 = vsel %vm6703, %v11549, %v10662
        %v11582 = vsel %vm6703, %v11550, %v10664
        %v11583 = vsel %vm6703, %v11551, %v10666
        %v11584 = vsel %vm6703, %v11552, %v10668
        %v11585 = vsel %vm6703, %v11553, %v10670
        %v11586 = vsel %vm6703, %v11554, %v10672
        %v11587 = vsel %vm6703, %v11555, %v10674
        %v11588 = vsel %vm6703, %v11556, %v10676
        %v11589 = vsel %vm6703, %v11557, %v10678
        %v11590 = vsel %vm6703, %v11558, %v10680
        %v11591 = vsel %vm6703, %v11559, %v10682
        %v11592 = vsel %vm6703, %v11560, %v10684
        %v11593 = vsel %vm6703, %v11561, %v10686
        %v11594 = vsel %vm6703, %v11562, %v10688
        %v11595 = vsel %vm6703, %v11563, %v10690
        %v11596 = vsel %vm6703, %v11564, %v10692
        %v11597 = vsel %vm6703, %v11565, %v10694
        %v11598 = vsel %vm6703, %v11566, %v10696
        %v11599 = vsel %vm6703, %v11567, %v10698
        %v11600 = vsel %vm6703, %v11568, %v10700
        %v11601 = vsel %vm6703, %v11569, %v10702
        %v11602 = vsel %vm6703, %v11570, %v10704
        %v11603 = vsel %vm6703, %v11571, %v10706
        %v11604 = vsel %vm6703, %v11572, %v10708
        %v11605 = vsel %vm6736, %v11573, %v10774
        %v11606 = vsel %vm6736, %v11574, %v10776
        %v11607 = vsel %vm6736, %v11575, %v10778
        %v11608 = vsel %vm6736, %v11576, %v10780
        %v11609 = vsel %vm6736, %v11577, %v10782
        %v11610 = vsel %vm6736, %v11578, %v10784
        %v11611 = vsel %vm6736, %v11579, %v10786
        %v11612 = vsel %vm6736, %v11580, %v10788
        %v11613 = vsel %vm6736, %v11581, %v10790
        %v11614 = vsel %vm6736, %v11582, %v10792
        %v11615 = vsel %vm6736, %v11583, %v10794
        %v11616 = vsel %vm6736, %v11584, %v10796
        %v11617 = vsel %vm6736, %v11585, %v10798
        %v11618 = vsel %vm6736, %v11586, %v10800
        %v11619 = vsel %vm6736, %v11587, %v10802
        %v11620 = vsel %vm6736, %v11588, %v10804
        %v11621 = vsel %vm6736, %v11589, %v10806
        %v11622 = vsel %vm6736, %v11590, %v10808
        %v11623 = vsel %vm6736, %v11591, %v10810
        %v11624 = vsel %vm6736, %v11592, %v10812
        %v11625 = vsel %vm6736, %v11593, %v10814
        %v11626 = vsel %vm6736, %v11594, %v10816
        %v11627 = vsel %vm6736, %v11595, %v10818
        %v11628 = vsel %vm6736, %v11596, %v10820
        %v11629 = vsel %vm6736, %v11597, %v10822
        %v11630 = vsel %vm6736, %v11598, %v10824
        %v11631 = vsel %vm6736, %v11599, %v10826
        %v11632 = vsel %vm6736, %v11600, %v10828
        %v11633 = vsel %vm6736, %v11601, %v10830
        %v11634 = vsel %vm6736, %v11602, %v10832
        %v11635 = vsel %vm6736, %v11603, %v10834
        %v11636 = vsel %vm6736, %v11604, %v10836
        %v11637 = vsel %vm6769, %v11605, %v10902
        %v11638 = vsel %vm6769, %v11606, %v10904
        %v11639 = vsel %vm6769, %v11607, %v10906
        %v11640 = vsel %vm6769, %v11608, %v10908
        %v11641 = vsel %vm6769, %v11609, %v10910
        %v11642 = vsel %vm6769, %v11610, %v10912
        %v11643 = vsel %vm6769, %v11611, %v10914
        %v11644 = vsel %vm6769, %v11612, %v10916
        %v11645 = vsel %vm6769, %v11613, %v10918
        %v11646 = vsel %vm6769, %v11614, %v10920
        %v11647 = vsel %vm6769, %v11615, %v10922
        %v11648 = vsel %vm6769, %v11616, %v10924
        %v11649 = vsel %vm6769, %v11617, %v10926
        %v11650 = vsel %vm6769, %v11618, %v10928
        %v11651 = vsel %vm6769, %v11619, %v10930
        %v11652 = vsel %vm6769, %v11620, %v10932
        %v11653 = vsel %vm6769, %v11621, %v10934
        %v11654 = vsel %vm6769, %v11622, %v10936
        %v11655 = vsel %vm6769, %v11623, %v10938
        %v11656 = vsel %vm6769, %v11624, %v10940
        %v11657 = vsel %vm6769, %v11625, %v10942
        %v11658 = vsel %vm6769, %v11626, %v10944
        %v11659 = vsel %vm6769, %v11627, %v10946
        %v11660 = vsel %vm6769, %v11628, %v10948
        %v11661 = vsel %vm6769, %v11629, %v10950
        %v11662 = vsel %vm6769, %v11630, %v10952
        %v11663 = vsel %vm6769, %v11631, %v10954
        %v11664 = vsel %vm6769, %v11632, %v10956
        %v11665 = vsel %vm6769, %v11633, %v10958
        %v11666 = vsel %vm6769, %v11634, %v10960
        %v11667 = vsel %vm6769, %v11635, %v10962
        %v11668 = vsel %vm6769, %v11636, %v10964
        %v11669 = vsel %vm6802, %v11637, %v11030
        %v11670 = vsel %vm6802, %v11638, %v11032
        %v11671 = vsel %vm6802, %v11639, %v11034
        %v11672 = vsel %vm6802, %v11640, %v11036
        %v11673 = vsel %vm6802, %v11641, %v11038
        %v11674 = vsel %vm6802, %v11642, %v11040
        %v11675 = vsel %vm6802, %v11643, %v11042
        %v11676 = vsel %vm6802, %v11644, %v11044
        %v11677 = vsel %vm6802, %v11645, %v11046
        %v11678 = vsel %vm6802, %v11646, %v11048
        %v11679 = vsel %vm6802, %v11647, %v11050
        %v11680 = vsel %vm6802, %v11648, %v11052
        %v11681 = vsel %vm6802, %v11649, %v11054
        %v11682 = vsel %vm6802, %v11650, %v11056
        %v11683 = vsel %vm6802, %v11651, %v11058
        %v11684 = vsel %vm6802, %v11652, %v11060
        %v11685 = vsel %vm6802, %v11653, %v11062
        %v11686 = vsel %vm6802, %v11654, %v11064
        %v11687 = vsel %vm6802, %v11655, %v11066
        %v11688 = vsel %vm6802, %v11656, %v11068
        %v11689 = vsel %vm6802, %v11657, %v11070
        %v11690 = vsel %vm6802, %v11658, %v11072
        %v11691 = vsel %vm6802, %v11659, %v11074
        %v11692 = vsel %vm6802, %v11660, %v11076
        %v11693 = vsel %vm6802, %v11661, %v11078
        %v11694 = vsel %vm6802, %v11662, %v11080
        %v11695 = vsel %vm6802, %v11663, %v11082
        %v11696 = vsel %vm6802, %v11664, %v11084
        %v11697 = vsel %vm6802, %v11665, %v11086
        %v11698 = vsel %vm6802, %v11666, %v11088
        %v11699 = vsel %vm6802, %v11667, %v11090
        %v11700 = vsel %vm6802, %v11668, %v11092
        %v11701 = vsel %vm6835, %v11669, %v11158
        %v11702 = vsel %vm6835, %v11670, %v11160
        %v11703 = vsel %vm6835, %v11671, %v11162
        %v11704 = vsel %vm6835, %v11672, %v11164
        %v11705 = vsel %vm6835, %v11673, %v11166
        %v11706 = vsel %vm6835, %v11674, %v11168
        %v11707 = vsel %vm6835, %v11675, %v11170
        %v11708 = vsel %vm6835, %v11676, %v11172
        %v11709 = vsel %vm6835, %v11677, %v11174
        %v11710 = vsel %vm6835, %v11678, %v11176
        %v11711 = vsel %vm6835, %v11679, %v11178
        %v11712 = vsel %vm6835, %v11680, %v11180
        %v11713 = vsel %vm6835, %v11681, %v11182
        %v11714 = vsel %vm6835, %v11682, %v11184
        %v11715 = vsel %vm6835, %v11683, %v11186
        %v11716 = vsel %vm6835, %v11684, %v11188
        %v11717 = vsel %vm6835, %v11685, %v11190
        %v11718 = vsel %vm6835, %v11686, %v11192
        %v11719 = vsel %vm6835, %v11687, %v11194
        %v11720 = vsel %vm6835, %v11688, %v11196
        %v11721 = vsel %vm6835, %v11689, %v11198
        %v11722 = vsel %vm6835, %v11690, %v11200
        %v11723 = vsel %vm6835, %v11691, %v11202
        %v11724 = vsel %vm6835, %v11692, %v11204
        %v11725 = vsel %vm6835, %v11693, %v11206
        %v11726 = vsel %vm6835, %v11694, %v11208
        %v11727 = vsel %vm6835, %v11695, %v11210
        %v11728 = vsel %vm6835, %v11696, %v11212
        %v11729 = vsel %vm6835, %v11697, %v11214
        %v11730 = vsel %vm6835, %v11698, %v11216
        %v11731 = vsel %vm6835, %v11699, %v11218
        %v11732 = vsel %vm6835, %v11700, %v11220
        %11733 = vst.msk [vmem:[%s155 + $0x1] sm:$0x1] %vm6868, %v11701
        %11734 = vst.msk [vmem:[%s155 + $0x3] sm:$0x1] %vm6868, %v11702
        %11735 = vst.msk [vmem:[%s155 + $0x5] sm:$0x1] %vm6868, %v11703
        %11736 = vst.msk [vmem:[%s155 + $0x7] sm:$0x1] %vm6868, %v11704
        %11737 = vst.msk [vmem:[%s155 + $0x9] sm:$0x1] %vm6868, %v11705
        %11738 = vst.msk [vmem:[%s155 + $0xb] sm:$0x1] %vm6868, %v11706
        %11739 = vst.msk [vmem:[%s155 + $0xd] sm:$0x1] %vm6868, %v11707
        %11740 = vst.msk [vmem:[%s155 + $0xf] sm:$0x1] %vm6868, %v11708
        %11741 = vst.msk [vmem:[%s155 + $0x11] sm:$0x1] %vm6868, %v11709
        %11742 = vst.msk [vmem:[%s155 + $0x13] sm:$0x1] %vm6868, %v11710
        %11743 = vst.msk [vmem:[%s155 + $0x15] sm:$0x1] %vm6868, %v11711
        %11744 = vst.msk [vmem:[%s155 + $0x17] sm:$0x1] %vm6868, %v11712
        %11745 = vst.msk [vmem:[%s155 + $0x19] sm:$0x1] %vm6868, %v11713
        %11746 = vst.msk [vmem:[%s155 + $0x1b] sm:$0x1] %vm6868, %v11714
        %11747 = vst.msk [vmem:[%s155 + $0x1d] sm:$0x1] %vm6868, %v11715
        %11748 = vst.msk [vmem:[%s155 + $0x1f] sm:$0x1] %vm6868, %v11716
        %11749 = vst.msk [vmem:[%s155 + $0x21] sm:$0x1] %vm6868, %v11717
        %11750 = vst.msk [vmem:[%s155 + $0x23] sm:$0x1] %vm6868, %v11718
        %11751 = vst.msk [vmem:[%s155 + $0x25] sm:$0x1] %vm6868, %v11719
        %11752 = vst.msk [vmem:[%s155 + $0x27] sm:$0x1] %vm6868, %v11720
        %11753 = vst.msk [vmem:[%s155 + $0x29] sm:$0x1] %vm6868, %v11721
        %11754 = vst.msk [vmem:[%s155 + $0x2b] sm:$0x1] %vm6868, %v11722
        %11755 = vst.msk [vmem:[%s155 + $0x2d] sm:$0x1] %vm6868, %v11723
        %11756 = vst.msk [vmem:[%s155 + $0x2f] sm:$0x1] %vm6868, %v11724
        %11757 = vst.msk [vmem:[%s155 + $0x31] sm:$0x1] %vm6868, %v11725
        %11758 = vst.msk [vmem:[%s155 + $0x33] sm:$0x1] %vm6868, %v11726
        %11759 = vst.msk [vmem:[%s155 + $0x35] sm:$0x1] %vm6868, %v11727
        %11760 = vst.msk [vmem:[%s155 + $0x37] sm:$0x1] %vm6868, %v11728
        %11761 = vst.msk [vmem:[%s155 + $0x39] sm:$0x1] %vm6868, %v11729
        %11762 = vst.msk [vmem:[%s155 + $0x3b] sm:$0x1] %vm6868, %v11730
        %11763 = vst.msk [vmem:[%s155 + $0x3d] sm:$0x1] %vm6868, %v11731
        %11764 = vst.msk [vmem:[%s155 + $0x3f] sm:$0x1] %vm6868, %v11732
        %s11765 = sand.u32 %s68, 1
        %s11766 = scalar_lea.sflag [#allocation4], %s11765
        %s11767 = sand.u32 %s68, 1
        %s11768 = smul.addr %s11767, 64
        %s11769 = scalar_lea.vmem [#allocation5], %s11768
        // Predicated region
        $region29: #{tpu_custom_call.1} parent=23 // pred_check
          %p11770 = pneg %p78
        $region30: #{tpu_custom_call.1} parent=23 // pred_check_branch
          %11772 = sbr.rel (%p11770) target = $region32
        $region31: #{tpu_custom_call.1} parent=23 // pred_region
          %s11773 = smul.u32 2, %s22
          %s11774 = smul.u32 16, %s23
          %11776 = vsyncadd %s11766, 0
          %s11777 = smul.addr %s11773, 16
          %s11778 = sadd.s32 %s11774, %s11777
          %s11779 = smul.addr %s11778, 2
          %s11780 = scalar_lea.hbm %s1, %s11779
          %s11781 = sshll.u32 %s11769, 4
          %s11782 = int_to_ptr.vmem [resolvable:$true] %s11781
          %s11783 = sshll.u32 %s11780, 4
          %s11784 = int_to_ptr.hbm [resolvable:$true] %s11783
          %11789 = dma.vmem_to_hbm [thread:$0]  %s11782, 1024, %s11784, %s11766, 32, 32, 2
        $region32: #{tpu_custom_call.1} parent=23 // pred_fallthru
          _
      $region24: #{tpu_custom_call.1} parent=5 // pred_fallthru
        _
      %p11790 = scmp.le.s32.totalorder 2, %s13
      // Predicated region
      $region33: #{tpu_custom_call.1} parent=5 // pred_check
        %p11791 = pneg %p11790
      $region34: #{tpu_custom_call.1} parent=5 // pred_check_branch
        %11793 = sbr.rel (%p11791) target = $region36
      $region35: #{tpu_custom_call.1} parent=5 // pred_region
        %s11794 = ssub.s32 %s13, 2
        // Predicated region
        $region37: #{tpu_custom_call.1} parent=35 // pred_check
          %p11795 = pneg %p84
        $region38: #{tpu_custom_call.1} parent=35 // pred_check_branch
          %11797 = sbr.rel (%p11795) target = $region40
        $region39: #{tpu_custom_call.1} parent=35 // pred_region
          %s11798 = sand.u32 %s69, 1
          %s11799 = scalar_lea.sflag [#allocation4], %s11798
          %s11800 = sand.u32 %s69, 1
          %s11801 = smul.addr %s11800, 64
          %s11802 = scalar_lea.vmem [#allocation5], %s11801
          %11804 = dma.done %s11799, 1024
        $region40: #{tpu_custom_call.1} parent=35 // pred_fallthru
          _
      $region36: #{tpu_custom_call.1} parent=5 // pred_fallthru
        _
    $region6: #{tpu_custom_call.1} parent=1 // loop_footer
      %s17 = sadd.s32 1, %s13
    $region7: #{tpu_custom_call.1} parent=1 // loop_footer_branch
      %12 = sbr.rel target = $region3
    $region8: #{tpu_custom_call.1} parent=1 // loop_exit
      _
    %11805 = vsyncpa [#allocation3], 1
    %s11806 = scalar_lea.sflag [#allocation3], 1
    %11807 = vsyncpa %s11806, 1
    %11808 = vsyncpa [#allocation4], 1
    %s11809 = scalar_lea.sflag [#allocation4], 1
    %11810 = vsyncpa %s11809, 1

</llo_original>
